<compile_context>
chip_gen: v7x
topology: tpu7x:2x2x1
jax: 0.10.0
libtpu: 0.0.40
codegen_flags: <defaults>
</compile_context>

<pallas_src>
import functools

import jax
import jax.numpy as jnp
from jax.experimental import pallas as pl
from jax.experimental.pallas import tpu as pltpu


def _round_up(n, m):
    return ((n + m - 1) // m) * m


def _pad_gates(w, H, H_pad):
    """Pad the gate-major leading 4*H dim of w to 4*H_pad (zero pad per gate)."""
    tail = w.shape[1:]
    w4 = w.reshape((4, H) + tail)
    w4 = jnp.pad(w4, ((0, 0), (0, H_pad - H)) + ((0, 0),) * len(tail))
    return w4.reshape((4 * H_pad,) + tail)


def _vmem_budget_bytes():
    """Per-generation VMEM budget: ~75% of physical, capped at 100 MiB."""
    try:
        cap = pltpu.get_tpu_info().vmem_capacity_bytes
    except Exception:
        cap = 64 * 1024 * 1024          # conservative (v7x-sized) fallback
    return int(min(int(cap * 0.75), 100 * 1024 * 1024))


def _derive_tt(T, Bp, Dp, Hp, Cp, L, budget, cap=64):
    """Largest timestep chunk that fits the VMEM budget (T is padded up to it)."""
    fixed = (L * Dp * 4 * Hp * 2            # w_ih (bf16, single-buffered)
             + L * Hp * 4 * Hp * 2          # w_hh (bf16)
             + L * 4 * Hp * 4               # bias (f32)
             + 2 * L * Bp * Hp * 4          # h0 / c0 inputs
             + 2 * 2 * L * Bp * Hp * 4      # hn / cn outputs (count x2)
             + Dp * Cp * 2 + Cp * 4)        # linear weight / bias
    per_t = (2 * Bp * Dp * 2                # x chunk (double-buffered, bf16)
             + 2 * Bp * Cp * 4              # out chunk (double-buffered, f32)
             + Bp * Dp * 2                  # inter-layer VMEM buffer (bf16)
             + Bp * 4 * Hp * 4)             # hoisted gate projection (f32)
    tt = (budget - fixed) // per_t
    return max(1, min(int(tt), T, cap))


# -----------------------------------------------------------------------------
# Fused kernel: all LSTM layers + final Linear, one TT-timestep chunk per grid
# step.  Gate order matches torch.nn.LSTM: i, f, g, o.
# -----------------------------------------------------------------------------
def _fused_lstm_linear_kernel(x_ref, w_ih_ref, w_hh_ref, b_ref, h0_ref, c0_ref,
                              w2_ref, b2_ref,
                              out_ref, hn_ref, cn_ref,
                              buf_ref, xg_ref,
                              *, t_real, masked):
    tt, bsz, d_in = x_ref.shape
    n_layers = w_ih_ref.shape[0]
    g4 = w_ih_ref.shape[-1]
    hid = hn_ref.shape[-1]
    d_buf = buf_ref.shape[-1]

    @pl.when(pl.program_id(0) == 0)
    def _():
        hn_ref[...] = h0_ref[...]
        cn_ref[...] = c0_ref[...]
        if d_buf > hid:
            # Padding columns [hid:d_buf) are never written; zero them once so
            # uninitialized VMEM can't feed NaNs into the (zero) padded weight
            # rows of the next layer / the Linear.
            buf_ref[...] = jnp.zeros_like(buf_ref)

    t0 = pl.program_id(0) * tt

    def sigmoid(v):
        # Single EUP op (tanh) + VPU mul/add instead of exp + reciprocal.
        return 0.5 * jnp.tanh(0.5 * v) + 0.5

    for layer in range(n_layers):
        # Hoisted input projection for the whole chunk: one batched MXU matmul
        # (TT*B, D) @ (D, 4H) + b instead of TT tiny per-step matmuls.
        if layer == 0:
            xin = x_ref[...].reshape(tt * bsz, d_in)
        else:
            xin = buf_ref[...].reshape(tt * bsz, d_buf)
        xg_ref[...] = (
            jnp.dot(xin, w_ih_ref[layer], preferred_element_type=jnp.float32)
            + b_ref[layer]
        ).reshape(tt, bsz, g4)

        w_hh = w_hh_ref[layer]            # (Hp, 4Hp) bf16, chunk-resident

        def step(t, carry, _w_hh=w_hh):
            h, c = carry
            gates = xg_ref[t] + jnp.dot(h.astype(_w_hh.dtype), _w_hh,
                                        preferred_element_type=jnp.float32)
            i_g = sigmoid(gates[:, 0 * hid:1 * hid])
            f_g = sigmoid(gates[:, 1 * hid:2 * hid])
            g_g = jnp.tanh(gates[:, 2 * hid:3 * hid])
            o_g = sigmoid(gates[:, 3 * hid:4 * hid])
            c_new = f_g * c + i_g * g_g
            h_new = o_g * jnp.tanh(c_new)
            if masked:
                valid = (t0 + t) < t_real      # freeze state on padded steps
                h_new = jnp.where(valid, h_new, h)
                c_new = jnp.where(valid, c_new, c)
            h_out = h_new.astype(buf_ref.dtype)
            if d_buf == hid:
                buf_ref[t] = h_out
            else:
                buf_ref[t, :, pl.ds(0, hid)] = h_out
            return h_new, c_new

        h, c = jax.lax.fori_loop(0, tt, step,
                                 (hn_ref[layer], cn_ref[layer]),
                                 unroll=min(tt, 8))
        hn_ref[layer] = h
        cn_ref[layer] = c

    # Final Linear over the whole chunk (lane-dense C_pad output).
    y = buf_ref[...].reshape(tt * bsz, d_buf)
    out_ref[...] = (
        jnp.dot(y, w2_ref[...], preferred_element_type=jnp.float32)
        + b2_ref[...]
    ).reshape(tt, bsz, out_ref.shape[-1])


# -----------------------------------------------------------------------------
# RNN module (LSTM stack + Linear), forward(x, (h_0, c_0))
# -----------------------------------------------------------------------------
class RNNPallas:
    def __init__(self, dim, dropout_keep_prob, rnn_size, number_of_layers,
                 n_classes, key):
        self.dim = dim
        self.rnn_size = rnn_size
        self.number_of_layers = number_of_layers
        self.n_classes = n_classes
        # TODO(synk): inter-layer dropout is identity at inference; not applied.
        self.dropout = dropout_keep_prob

        self.H_pad = _round_up(rnn_size, 128)
        self.C_pad = _round_up(n_classes, 128)
        self.D_pad = max(_round_up(dim, 128), self.H_pad)

        k = 1.0 / jnp.sqrt(rnn_size)
        keys = jax.random.split(key, 4 * number_of_layers + 2)
        self.raw_layers = []            # unpadded params (reference / inspection)
        w_ih_list, w_hh_list, b_list = [], [], []
        for layer in range(number_of_layers):
            in_dim = dim if layer == 0 else rnn_size
            ki = keys[4 * layer: 4 * layer + 4]
            w_ih = jax.random.uniform(ki[0], (4 * rnn_size, in_dim),
                                      jnp.float32, -k, k)
            w_hh = jax.random.uniform(ki[1], (4 * rnn_size, rnn_size),
                                      jnp.float32, -k, k)
            b_ih = jax.random.uniform(ki[2], (4 * rnn_size,), jnp.float32, -k, k)
            b_hh = jax.random.uniform(ki[3], (4 * rnn_size,), jnp.float32, -k, k)
            self.raw_layers.append((w_ih, w_hh, b_ih, b_hh))

            # Pad gate dim to 4*H_pad, transpose to x@W layout, pad input dim
            # to D_pad (zeros -> padded rows/cols have exactly zero influence).
            w_ih_p = _pad_gates(w_ih, rnn_size, self.H_pad).T    # (in, 4Hp)
            w_ih_p = jnp.pad(w_ih_p, ((0, self.D_pad - in_dim), (0, 0)))
            w_hh_p = _pad_gates(w_hh, rnn_size, self.H_pad).T    # (H, 4Hp)
            w_hh_p = jnp.pad(w_hh_p, ((0, self.H_pad - rnn_size), (0, 0)))
            b_p = _pad_gates(b_ih + b_hh, rnn_size,
                             self.H_pad).reshape(1, 4 * self.H_pad)
            w_ih_list.append(w_ih_p)
            w_hh_list.append(w_hh_p)
            b_list.append(b_p)

        # bf16 MXU operands (accumulation stays f32 via preferred_element_type)
        self.w_ih_stack = jnp.stack(w_ih_list).astype(jnp.bfloat16)  # (L,Dp,4Hp)
        self.w_hh_stack = jnp.stack(w_hh_list).astype(jnp.bfloat16)  # (L,Hp,4Hp)
        self.b_stack = jnp.stack(b_list)                             # (L,1,4Hp) f32

        kl = 1.0 / jnp.sqrt(rnn_size)
        self.w2 = jax.random.uniform(keys[-2], (n_classes, rnn_size),
                                     jnp.float32, -kl, kl)
        self.b2 = jax.random.uniform(keys[-1], (n_classes,),
                                     jnp.float32, -kl, kl)
        w2_p = jnp.pad(self.w2.T, ((0, self.D_pad - rnn_size),
                                   (0, self.C_pad - n_classes)))
        self.w2_t_pad = w2_p.astype(jnp.bfloat16)                 # (Dp, Cp)
        self.b2_pad = jnp.pad(self.b2,
                              (0, self.C_pad - n_classes)).reshape(1, self.C_pad)

    # ------------------------------------------------------------------ #
    def _call_kernel(self, x_tm, h0p, c0p, tt, t_real, budget, use_buffered):
        T_pad, Bp, Dp = x_tm.shape
        L = self.number_of_layers
        Hp, Cp = self.H_pad, self.C_pad
        G4 = 4 * Hp

        def const_spec(shape):
            # Constant-index blocks: single-buffer to halve their VMEM cost.
            if use_buffered:
                return pl.BlockSpec(shape, lambda g, _n=len(shape): (0,) * _n,
                                    pipeline_mode=pl.Buffered(1))
            return pl.BlockSpec(shape, lambda g, _n=len(shape): (0,) * _n)

        kernel = functools.partial(_fused_lstm_linear_kernel,
                                   t_real=t_real, masked=(T_pad != t_real))
        return pl.pallas_call(
            kernel,
            out_shape=(jax.ShapeDtypeStruct((T_pad, Bp, Cp), jnp.float32),
                       jax.ShapeDtypeStruct((L, Bp, Hp), jnp.float32),
                       jax.ShapeDtypeStruct((L, Bp, Hp), jnp.float32)),
            grid_spec=pltpu.PrefetchScalarGridSpec(
                num_scalar_prefetch=0,
                grid=(T_pad // tt,),
                in_specs=[
                    pl.BlockSpec((tt, Bp, Dp), lambda g: (g, 0, 0)),
                    const_spec((L, Dp, G4)),
                    const_spec((L, Hp, G4)),
                    const_spec((L, 1, G4)),
                    const_spec((L, Bp, Hp)),
                    const_spec((L, Bp, Hp)),
                    const_spec((Dp, Cp)),
                    const_spec((1, Cp)),
                ],
                out_specs=(pl.BlockSpec((tt, Bp, Cp), lambda g: (g, 0, 0)),
                           pl.BlockSpec((L, Bp, Hp), lambda g: (0, 0, 0)),
                           pl.BlockSpec((L, Bp, Hp), lambda g: (0, 0, 0))),
                scratch_shapes=[pltpu.VMEM((tt, Bp, Dp), jnp.bfloat16),
                                pltpu.VMEM((tt, Bp, G4), jnp.float32)]),
            compiler_params=pltpu.CompilerParams(
                dimension_semantics=("arbitrary",),
                vmem_limit_bytes=int(budget)),
        )(x_tm, self.w_ih_stack, self.w_hh_stack, self.b_stack,
          h0p, c0p, self.w2_t_pad, self.b2_pad)

    # ------------------------------------------------------------------ #
    def __call__(self, x, nn_tuple_state):
        """x: (B, T, dim); nn_tuple_state = (h_0, c_0), each (L, B, rnn_size)."""
        h0_all, c0_all = nn_tuple_state
        B, T, _ = x.shape
        Bp = _round_up(B, 16)           # bf16 sublane packing
        Hp, Dp, Cp = self.H_pad, self.D_pad, self.C_pad
        L = self.number_of_layers

        budget = _vmem_budget_bytes()
        tt = _derive_tt(T, Bp, Dp, Hp, Cp, L, budget)
        T_pad = _round_up(T, tt)

        x_tm = jnp.transpose(x, (1, 0, 2)).astype(jnp.float32)    # (T, B, D)
        x_tm = jnp.pad(x_tm, ((0, T_pad - T), (0, Bp - B),
                              (0, Dp - x.shape[-1]))).astype(jnp.bfloat16)
        h0p = jnp.pad(h0_all.astype(jnp.float32),
                      ((0, 0), (0, Bp - B), (0, Hp - self.rnn_size)))
        c0p = jnp.pad(c0_all.astype(jnp.float32),
                      ((0, 0), (0, Bp - B), (0, Hp - self.rnn_size)))

        try:
            out_tm, hn, cn = self._call_kernel(x_tm, h0p, c0p, tt, T, budget,
                                               use_buffered=True)
        except Exception:
            # Fallback if pl.Buffered(1) single-buffering is rejected by this
            # jax/Mosaic version; identical semantics, default double-buffer.
            out_tm, hn, cn = self._call_kernel(x_tm, h0p, c0p, tt, T, budget,
                                               use_buffered=False)

        out = jnp.transpose(out_tm[:T], (1, 0, 2))[:B, :, :self.n_classes]
        h_n = hn[:, :B, :self.rnn_size]
        c_n = cn[:, :B, :self.rnn_size]
        return out, (h_n, c_n)


# -----------------------------------------------------------------------------
# Pure-JAX f32 reference (correctness check), using the unpadded parameters.
# -----------------------------------------------------------------------------
def reference_forward(model, x, state):
    h0_all, c0_all = state
    B, T, _ = x.shape
    H = model.rnn_size
    seq = x.astype(jnp.float32)
    h_ns, c_ns = [], []
    for layer, (w_ih, w_hh, b_ih, b_hh) in enumerate(model.raw_layers):
        w_ih_t, w_hh_t = w_ih.T, w_hh.T
        b = (b_ih + b_hh)[None, :]
        h = h0_all[layer]
        c = c0_all[layer]
        outs = []
        for t in range(T):
            g = seq[:, t, :] @ w_ih_t + h @ w_hh_t + b
            i = jax.nn.sigmoid(g[:, 0:H])
            f = jax.nn.sigmoid(g[:, H:2 * H])
            gg = jnp.tanh(g[:, 2 * H:3 * H])
            o = jax.nn.sigmoid(g[:, 3 * H:4 * H])
            c = f * c + i * gg
            h = o * jnp.tanh(c)
            outs.append(h)
        seq = jnp.stack(outs, 1)
        h_ns.append(h)
        c_ns.append(c)
    out = seq @ model.w2.T + model.b2
    return out, (jnp.stack(h_ns, 0), jnp.stack(c_ns, 0))


if __name__ == "__main__":
    B, T, DIM = 2, 8, 16
    RNN_SIZE, N_LAYERS, N_CLASSES = 32, 2, 5

    key = jax.random.PRNGKey(0)
    k_param, k_x, k_h, k_c = jax.random.split(key, 4)

    model = RNNPallas(dim=DIM, dropout_keep_prob=0.0, rnn_size=RNN_SIZE,
                      number_of_layers=N_LAYERS, n_classes=N_CLASSES,
                      key=k_param)

    x = jax.random.normal(k_x, (B, T, DIM), jnp.float32)
    h0 = jax.random.normal(k_h, (N_LAYERS, B, RNN_SIZE), jnp.float32)
    c0 = jax.random.normal(k_c, (N_LAYERS, B, RNN_SIZE), jnp.float32)

    out, (h_n, c_n) = model(x, (h0, c0))
    jax.block_until_ready((out, h_n, c_n))

    ref_out, (ref_h, ref_c) = reference_forward(model, x, (h0, c0))
    assert out.shape == (B, T, N_CLASSES)
    assert h_n.shape == (N_LAYERS, B, RNN_SIZE)
    # bf16 MXU operands (f32 accumulation / state) -> relaxed tolerance.
    assert jnp.allclose(out, ref_out, atol=3e-2, rtol=3e-2)
    assert jnp.allclose(h_n, ref_h, atol=3e-2, rtol=3e-2)
    assert jnp.allclose(c_n, ref_c, atol=3e-2, rtol=3e-2)

    print("KERNEL_OK")
</pallas_src>

<mosaic_0001>
module attributes {stable_mosaic.version = 11 : i64} {
  func.func @_fused_lstm_linear_kernel(%arg0: i32, %arg1: memref<8x16x128xbf16, #tpu.memory_space<vmem>>, %arg2: memref<2x128x512xbf16, #tpu.memory_space<vmem>>, %arg3: memref<2x128x512xbf16, #tpu.memory_space<vmem>>, %arg4: memref<2x1x512xf32, #tpu.memory_space<vmem>>, %arg5: memref<2x16x128xf32, #tpu.memory_space<vmem>>, %arg6: memref<2x16x128xf32, #tpu.memory_space<vmem>>, %arg7: memref<128x128xbf16, #tpu.memory_space<vmem>>, %arg8: memref<1x128xf32, #tpu.memory_space<vmem>>, %arg9: memref<8x16x128xf32, #tpu.memory_space<vmem>>, %arg10: memref<2x16x128xf32, #tpu.memory_space<vmem>>, %arg11: memref<2x16x128xf32, #tpu.memory_space<vmem>>, %arg12: memref<8x16x128xbf16, #tpu.memory_space<vmem>>, %arg13: memref<8x16x512xf32, #tpu.memory_space<vmem>>) attributes {dimension_semantics = [#tpu.dimension_semantics<arbitrary>], iteration_bounds = array<i64: 1>, scalar_prefetch = 0 : i64, scratch_operands = 2 : i64, tpu.core_type = #tpu.core_type<tc>, window_params = [{transform_indices = @transform_0, window_bounds = array<i64: 8, 16, 128>}, {pipeline_mode = #tpu.pipeline_mode<synchronous>, transform_indices = @transform_1, window_bounds = array<i64: 2, 128, 512>}, {pipeline_mode = #tpu.pipeline_mode<synchronous>, transform_indices = @transform_2, window_bounds = array<i64: 2, 128, 512>}, {pipeline_mode = #tpu.pipeline_mode<synchronous>, transform_indices = @transform_3, window_bounds = array<i64: 2, 1, 512>}, {pipeline_mode = #tpu.pipeline_mode<synchronous>, transform_indices = @transform_4, window_bounds = array<i64: 2, 16, 128>}, {pipeline_mode = #tpu.pipeline_mode<synchronous>, transform_indices = @transform_5, window_bounds = array<i64: 2, 16, 128>}, {pipeline_mode = #tpu.pipeline_mode<synchronous>, transform_indices = @transform_6, window_bounds = array<i64: 128, 128>}, {pipeline_mode = #tpu.pipeline_mode<synchronous>, transform_indices = @transform_7, window_bounds = array<i64: 1, 128>}, {transform_indices = @transform_8, window_bounds = array<i64: 8, 16, 128>}, {pipeline_mode = #tpu.pipeline_mode<synchronous>, transform_indices = @transform_9, window_bounds = array<i64: 2, 16, 128>}, {pipeline_mode = #tpu.pipeline_mode<synchronous>, transform_indices = @transform_10, window_bounds = array<i64: 2, 16, 128>}]} {
    %c0_i32 = arith.constant 0 : i32
    %0 = arith.cmpi eq, %arg0, %c0_i32 : i32
    %1 = arith.extui %0 : i1 to i32
    %c0_i32_0 = arith.constant 0 : i32
    %2 = arith.cmpi ne, %1, %c0_i32_0 : i32
    scf.if %2 {
      %c0_299 = arith.constant 0 : index
      %c0_300 = arith.constant 0 : index
      %c0_301 = arith.constant 0 : index
      %730 = vector.load %arg5[%c0_299, %c0_300, %c0_301] : memref<2x16x128xf32, #tpu.memory_space<vmem>>, vector<2x16x128xf32>
      %c0_302 = arith.constant 0 : index
      %c0_303 = arith.constant 0 : index
      %c0_304 = arith.constant 0 : index
      %731 = vector.load %arg10[%c0_302, %c0_303, %c0_304] : memref<2x16x128xf32, #tpu.memory_space<vmem>>, vector<2x16x128xf32>
      tpu.vector_store %arg10[%c0_302, %c0_303, %c0_304], %730 {strides = array<i32>} : memref<2x16x128xf32, #tpu.memory_space<vmem>>, vector<2x16x128xf32>,
      %c0_305 = arith.constant 0 : index
      %c0_306 = arith.constant 0 : index
      %c0_307 = arith.constant 0 : index
      %732 = vector.load %arg6[%c0_305, %c0_306, %c0_307] : memref<2x16x128xf32, #tpu.memory_space<vmem>>, vector<2x16x128xf32>
      %c0_308 = arith.constant 0 : index
      %c0_309 = arith.constant 0 : index
      %c0_310 = arith.constant 0 : index
      %733 = vector.load %arg11[%c0_308, %c0_309, %c0_310] : memref<2x16x128xf32, #tpu.memory_space<vmem>>, vector<2x16x128xf32>
      tpu.vector_store %arg11[%c0_308, %c0_309, %c0_310], %732 {strides = array<i32>} : memref<2x16x128xf32, #tpu.memory_space<vmem>>, vector<2x16x128xf32>,
    } else {
    }
    %c0 = arith.constant 0 : index
    %c0_1 = arith.constant 0 : index
    %c0_2 = arith.constant 0 : index
    %3 = vector.load %arg1[%c0, %c0_1, %c0_2] : memref<8x16x128xbf16, #tpu.memory_space<vmem>>, vector<8x16x128xbf16>
    %4 = vector.shape_cast %3 : vector<8x16x128xbf16> to vector<128x128xbf16>
    %c0_3 = arith.constant 0 : index
    %c0_4 = arith.constant 0 : index
    %c0_5 = arith.constant 0 : index
    %5 = vector.load %arg2[%c0_3, %c0_4, %c0_5] : memref<2x128x512xbf16, #tpu.memory_space<vmem>>, vector<1x128x512xbf16>
    %6 = vector.shape_cast %5 : vector<1x128x512xbf16> to vector<128x512xbf16>
    %cst = arith.constant dense<0.000000e+00> : vector<128x512xf32>
    %7 = tpu.matmul %4, %6, %cst {dimension_numbers = #tpu.dot_dimension_numbers<[1], [0], [0], [1], [0, 0, 1, 1], [], []>} : vector<128x128xbf16>, vector<128x512xbf16>, vector<128x512xf32> -> vector<128x512xf32>
    %c0_6 = arith.constant 0 : index
    %c0_7 = arith.constant 0 : index
    %c0_8 = arith.constant 0 : index
    %8 = vector.load %arg4[%c0_6, %c0_7, %c0_8] : memref<2x1x512xf32, #tpu.memory_space<vmem>>, vector<1x1x512xf32>
    %9 = vector.shape_cast %8 : vector<1x1x512xf32> to vector<1x512xf32>
    %10 = vector.broadcast %9 : vector<1x512xf32> to vector<128x512xf32>
    %11 = arith.addf %7, %10 : vector<128x512xf32>
    %12 = vector.shape_cast %11 : vector<128x512xf32> to vector<8x16x512xf32>
    %c0_9 = arith.constant 0 : index
    %c0_10 = arith.constant 0 : index
    %c0_11 = arith.constant 0 : index
    %13 = vector.load %arg13[%c0_9, %c0_10, %c0_11] : memref<8x16x512xf32, #tpu.memory_space<vmem>>, vector<8x16x512xf32>
    tpu.vector_store %arg13[%c0_9, %c0_10, %c0_11], %12 {strides = array<i32>} : memref<8x16x512xf32, #tpu.memory_space<vmem>>, vector<8x16x512xf32>,
    %c0_12 = arith.constant 0 : index
    %c0_13 = arith.constant 0 : index
    %c0_14 = arith.constant 0 : index
    %14 = vector.load %arg3[%c0_12, %c0_13, %c0_14] : memref<2x128x512xbf16, #tpu.memory_space<vmem>>, vector<1x128x512xbf16>
    %15 = vector.shape_cast %14 : vector<1x128x512xbf16> to vector<128x512xbf16>
    %c0_15 = arith.constant 0 : index
    %c0_16 = arith.constant 0 : index
    %c0_17 = arith.constant 0 : index
    %16 = vector.load %arg10[%c0_15, %c0_16, %c0_17] : memref<2x16x128xf32, #tpu.memory_space<vmem>>, vector<1x16x128xf32>
    %17 = vector.shape_cast %16 : vector<1x16x128xf32> to vector<16x128xf32>
    %c0_18 = arith.constant 0 : index
    %c0_19 = arith.constant 0 : index
    %c0_20 = arith.constant 0 : index
    %18 = vector.load %arg11[%c0_18, %c0_19, %c0_20] : memref<2x16x128xf32, #tpu.memory_space<vmem>>, vector<1x16x128xf32>
    %19 = vector.shape_cast %18 : vector<1x16x128xf32> to vector<16x128xf32>
    %c0_i32_21 = arith.constant 0 : i32
    %20 = arith.index_cast %c0_i32_21 : i32 to index
    %c0_22 = arith.constant 0 : index
    %c0_23 = arith.constant 0 : index
    %21 = vector.load %arg13[%20, %c0_22, %c0_23] : memref<8x16x512xf32, #tpu.memory_space<vmem>>, vector<1x16x512xf32>
    %22 = vector.shape_cast %21 : vector<1x16x512xf32> to vector<16x512xf32>
    %23 = arith.truncf %17 : vector<16x128xf32> to vector<16x128xbf16>
    %cst_24 = arith.constant dense<0.000000e+00> : vector<16x512xf32>
    %24 = tpu.matmul %23, %15, %cst_24 {dimension_numbers = #tpu.dot_dimension_numbers<[1], [0], [0], [1], [0, 0, 1, 1], [], []>} : vector<16x128xbf16>, vector<128x512xbf16>, vector<16x512xf32> -> vector<16x512xf32>
    %25 = arith.addf %22, %24 : vector<16x512xf32>
    %26 = vector.extract_strided_slice %25 {offsets = [0, 0], sizes = [16, 128], strides = [1, 1]} : vector<16x512xf32> to vector<16x128xf32>
    %cst_25 = arith.constant 5.000000e-01 : f32
    %27 = vector.broadcast %cst_25 : f32 to vector<16x128xf32>
    %28 = arith.mulf %27, %26 : vector<16x128xf32>
    %29 = math.tanh %28 : vector<16x128xf32>
    %cst_26 = arith.constant 5.000000e-01 : f32
    %30 = vector.broadcast %cst_26 : f32 to vector<16x128xf32>
    %31 = arith.mulf %30, %29 : vector<16x128xf32>
    %cst_27 = arith.constant 5.000000e-01 : f32
    %32 = vector.broadcast %cst_27 : f32 to vector<16x128xf32>
    %33 = arith.addf %31, %32 : vector<16x128xf32>
    %34 = vector.extract_strided_slice %25 {offsets = [0, 128], sizes = [16, 128], strides = [1, 1]} : vector<16x512xf32> to vector<16x128xf32>
    %cst_28 = arith.constant 5.000000e-01 : f32
    %35 = vector.broadcast %cst_28 : f32 to vector<16x128xf32>
    %36 = arith.mulf %35, %34 : vector<16x128xf32>
    %37 = math.tanh %36 : vector<16x128xf32>
    %cst_29 = arith.constant 5.000000e-01 : f32
    %38 = vector.broadcast %cst_29 : f32 to vector<16x128xf32>
    %39 = arith.mulf %38, %37 : vector<16x128xf32>
    %cst_30 = arith.constant 5.000000e-01 : f32
    %40 = vector.broadcast %cst_30 : f32 to vector<16x128xf32>
    %41 = arith.addf %39, %40 : vector<16x128xf32>
    %42 = vector.extract_strided_slice %25 {offsets = [0, 256], sizes = [16, 128], strides = [1, 1]} : vector<16x512xf32> to vector<16x128xf32>
    %43 = math.tanh %42 : vector<16x128xf32>
    %44 = vector.extract_strided_slice %25 {offsets = [0, 384], sizes = [16, 128], strides = [1, 1]} : vector<16x512xf32> to vector<16x128xf32>
    %cst_31 = arith.constant 5.000000e-01 : f32
    %45 = vector.broadcast %cst_31 : f32 to vector<16x128xf32>
    %46 = arith.mulf %45, %44 : vector<16x128xf32>
    %47 = math.tanh %46 : vector<16x128xf32>
    %cst_32 = arith.constant 5.000000e-01 : f32
    %48 = vector.broadcast %cst_32 : f32 to vector<16x128xf32>
    %49 = arith.mulf %48, %47 : vector<16x128xf32>
    %cst_33 = arith.constant 5.000000e-01 : f32
    %50 = vector.broadcast %cst_33 : f32 to vector<16x128xf32>
    %51 = arith.addf %49, %50 : vector<16x128xf32>
    %52 = arith.mulf %41, %19 : vector<16x128xf32>
    %53 = arith.mulf %33, %43 : vector<16x128xf32>
    %54 = arith.addf %52, %53 : vector<16x128xf32>
    %55 = math.tanh %54 : vector<16x128xf32>
    %56 = arith.mulf %51, %55 : vector<16x128xf32>
    %57 = arith.truncf %56 : vector<16x128xf32> to vector<16x128xbf16>
    %58 = arith.index_cast %c0_i32_21 : i32 to index
    %c0_34 = arith.constant 0 : index
    %c0_35 = arith.constant 0 : index
    %59 = vector.load %arg12[%58, %c0_34, %c0_35] : memref<8x16x128xbf16, #tpu.memory_space<vmem>>, vector<1x16x128xbf16>
    %60 = vector.shape_cast %59 : vector<1x16x128xbf16> to vector<16x128xbf16>
    %61 = vector.shape_cast %57 : vector<16x128xbf16> to vector<1x16x128xbf16>
    tpu.vector_store %arg12[%58, %c0_34, %c0_35], %61 {strides = array<i32>} : memref<8x16x128xbf16, #tpu.memory_space<vmem>>, vector<1x16x128xbf16>,
    %c1_i32 = arith.constant 1 : i32
    %62 = arith.index_cast %c1_i32 : i32 to index
    %c0_36 = arith.constant 0 : index
    %c0_37 = arith.constant 0 : index
    %63 = vector.load %arg13[%62, %c0_36, %c0_37] : memref<8x16x512xf32, #tpu.memory_space<vmem>>, vector<1x16x512xf32>
    %64 = vector.shape_cast %63 : vector<1x16x512xf32> to vector<16x512xf32>
    %65 = arith.truncf %56 : vector<16x128xf32> to vector<16x128xbf16>
    %cst_38 = arith.constant dense<0.000000e+00> : vector<16x512xf32>
    %66 = tpu.matmul %65, %15, %cst_38 {dimension_numbers = #tpu.dot_dimension_numbers<[1], [0], [0], [1], [0, 0, 1, 1], [], []>} : vector<16x128xbf16>, vector<128x512xbf16>, vector<16x512xf32> -> vector<16x512xf32>
    %67 = arith.addf %64, %66 : vector<16x512xf32>
    %68 = vector.extract_strided_slice %67 {offsets = [0, 0], sizes = [16, 128], strides = [1, 1]} : vector<16x512xf32> to vector<16x128xf32>
    %cst_39 = arith.constant 5.000000e-01 : f32
    %69 = vector.broadcast %cst_39 : f32 to vector<16x128xf32>
    %70 = arith.mulf %69, %68 : vector<16x128xf32>
    %71 = math.tanh %70 : vector<16x128xf32>
    %cst_40 = arith.constant 5.000000e-01 : f32
    %72 = vector.broadcast %cst_40 : f32 to vector<16x128xf32>
    %73 = arith.mulf %72, %71 : vector<16x128xf32>
    %cst_41 = arith.constant 5.000000e-01 : f32
    %74 = vector.broadcast %cst_41 : f32 to vector<16x128xf32>
    %75 = arith.addf %73, %74 : vector<16x128xf32>
    %76 = vector.extract_strided_slice %67 {offsets = [0, 128], sizes = [16, 128], strides = [1, 1]} : vector<16x512xf32> to vector<16x128xf32>
    %cst_42 = arith.constant 5.000000e-01 : f32
    %77 = vector.broadcast %cst_42 : f32 to vector<16x128xf32>
    %78 = arith.mulf %77, %76 : vector<16x128xf32>
    %79 = math.tanh %78 : vector<16x128xf32>
    %cst_43 = arith.constant 5.000000e-01 : f32
    %80 = vector.broadcast %cst_43 : f32 to vector<16x128xf32>
    %81 = arith.mulf %80, %79 : vector<16x128xf32>
    %cst_44 = arith.constant 5.000000e-01 : f32
    %82 = vector.broadcast %cst_44 : f32 to vector<16x128xf32>
    %83 = arith.addf %81, %82 : vector<16x128xf32>
    %84 = vector.extract_strided_slice %67 {offsets = [0, 256], sizes = [16, 128], strides = [1, 1]} : vector<16x512xf32> to vector<16x128xf32>
    %85 = math.tanh %84 : vector<16x128xf32>
    %86 = vector.extract_strided_slice %67 {offsets = [0, 384], sizes = [16, 128], strides = [1, 1]} : vector<16x512xf32> to vector<16x128xf32>
    %cst_45 = arith.constant 5.000000e-01 : f32
    %87 = vector.broadcast %cst_45 : f32 to vector<16x128xf32>
    %88 = arith.mulf %87, %86 : vector<16x128xf32>
    %89 = math.tanh %88 : vector<16x128xf32>
    %cst_46 = arith.constant 5.000000e-01 : f32
    %90 = vector.broadcast %cst_46 : f32 to vector<16x128xf32>
    %91 = arith.mulf %90, %89 : vector<16x128xf32>
    %cst_47 = arith.constant 5.000000e-01 : f32
    %92 = vector.broadcast %cst_47 : f32 to vector<16x128xf32>
    %93 = arith.addf %91, %92 : vector<16x128xf32>
    %94 = arith.mulf %83, %54 : vector<16x128xf32>
    %95 = arith.mulf %75, %85 : vector<16x128xf32>
    %96 = arith.addf %94, %95 : vector<16x128xf32>
    %97 = math.tanh %96 : vector<16x128xf32>
    %98 = arith.mulf %93, %97 : vector<16x128xf32>
    %99 = arith.truncf %98 : vector<16x128xf32> to vector<16x128xbf16>
    %100 = arith.index_cast %c1_i32 : i32 to index
    %c0_48 = arith.constant 0 : index
    %c0_49 = arith.constant 0 : index
    %101 = vector.load %arg12[%100, %c0_48, %c0_49] : memref<8x16x128xbf16, #tpu.memory_space<vmem>>, vector<1x16x128xbf16>
    %102 = vector.shape_cast %101 : vector<1x16x128xbf16> to vector<16x128xbf16>
    %103 = vector.shape_cast %99 : vector<16x128xbf16> to vector<1x16x128xbf16>
    tpu.vector_store %arg12[%100, %c0_48, %c0_49], %103 {strides = array<i32>} : memref<8x16x128xbf16, #tpu.memory_space<vmem>>, vector<1x16x128xbf16>,
    %c2_i32 = arith.constant 2 : i32
    %104 = arith.index_cast %c2_i32 : i32 to index
    %c0_50 = arith.constant 0 : index
    %c0_51 = arith.constant 0 : index
    %105 = vector.load %arg13[%104, %c0_50, %c0_51] : memref<8x16x512xf32, #tpu.memory_space<vmem>>, vector<1x16x512xf32>
    %106 = vector.shape_cast %105 : vector<1x16x512xf32> to vector<16x512xf32>
    %107 = arith.truncf %98 : vector<16x128xf32> to vector<16x128xbf16>
    %cst_52 = arith.constant dense<0.000000e+00> : vector<16x512xf32>
    %108 = tpu.matmul %107, %15, %cst_52 {dimension_numbers = #tpu.dot_dimension_numbers<[1], [0], [0], [1], [0, 0, 1, 1], [], []>} : vector<16x128xbf16>, vector<128x512xbf16>, vector<16x512xf32> -> vector<16x512xf32>
    %109 = arith.addf %106, %108 : vector<16x512xf32>
    %110 = vector.extract_strided_slice %109 {offsets = [0, 0], sizes = [16, 128], strides = [1, 1]} : vector<16x512xf32> to vector<16x128xf32>
    %cst_53 = arith.constant 5.000000e-01 : f32
    %111 = vector.broadcast %cst_53 : f32 to vector<16x128xf32>
    %112 = arith.mulf %111, %110 : vector<16x128xf32>
    %113 = math.tanh %112 : vector<16x128xf32>
    %cst_54 = arith.constant 5.000000e-01 : f32
    %114 = vector.broadcast %cst_54 : f32 to vector<16x128xf32>
    %115 = arith.mulf %114, %113 : vector<16x128xf32>
    %cst_55 = arith.constant 5.000000e-01 : f32
    %116 = vector.broadcast %cst_55 : f32 to vector<16x128xf32>
    %117 = arith.addf %115, %116 : vector<16x128xf32>
    %118 = vector.extract_strided_slice %109 {offsets = [0, 128], sizes = [16, 128], strides = [1, 1]} : vector<16x512xf32> to vector<16x128xf32>
    %cst_56 = arith.constant 5.000000e-01 : f32
    %119 = vector.broadcast %cst_56 : f32 to vector<16x128xf32>
    %120 = arith.mulf %119, %118 : vector<16x128xf32>
    %121 = math.tanh %120 : vector<16x128xf32>
    %cst_57 = arith.constant 5.000000e-01 : f32
    %122 = vector.broadcast %cst_57 : f32 to vector<16x128xf32>
    %123 = arith.mulf %122, %121 : vector<16x128xf32>
    %cst_58 = arith.constant 5.000000e-01 : f32
    %124 = vector.broadcast %cst_58 : f32 to vector<16x128xf32>
    %125 = arith.addf %123, %124 : vector<16x128xf32>
    %126 = vector.extract_strided_slice %109 {offsets = [0, 256], sizes = [16, 128], strides = [1, 1]} : vector<16x512xf32> to vector<16x128xf32>
    %127 = math.tanh %126 : vector<16x128xf32>
    %128 = vector.extract_strided_slice %109 {offsets = [0, 384], sizes = [16, 128], strides = [1, 1]} : vector<16x512xf32> to vector<16x128xf32>
    %cst_59 = arith.constant 5.000000e-01 : f32
    %129 = vector.broadcast %cst_59 : f32 to vector<16x128xf32>
    %130 = arith.mulf %129, %128 : vector<16x128xf32>
    %131 = math.tanh %130 : vector<16x128xf32>
    %cst_60 = arith.constant 5.000000e-01 : f32
    %132 = vector.broadcast %cst_60 : f32 to vector<16x128xf32>
    %133 = arith.mulf %132, %131 : vector<16x128xf32>
    %cst_61 = arith.constant 5.000000e-01 : f32
    %134 = vector.broadcast %cst_61 : f32 to vector<16x128xf32>
    %135 = arith.addf %133, %134 : vector<16x128xf32>
    %136 = arith.mulf %125, %96 : vector<16x128xf32>
    %137 = arith.mulf %117, %127 : vector<16x128xf32>
    %138 = arith.addf %136, %137 : vector<16x128xf32>
    %139 = math.tanh %138 : vector<16x128xf32>
    %140 = arith.mulf %135, %139 : vector<16x128xf32>
    %141 = arith.truncf %140 : vector<16x128xf32> to vector<16x128xbf16>
    %142 = arith.index_cast %c2_i32 : i32 to index
    %c0_62 = arith.constant 0 : index
    %c0_63 = arith.constant 0 : index
    %143 = vector.load %arg12[%142, %c0_62, %c0_63] : memref<8x16x128xbf16, #tpu.memory_space<vmem>>, vector<1x16x128xbf16>
    %144 = vector.shape_cast %143 : vector<1x16x128xbf16> to vector<16x128xbf16>
    %145 = vector.shape_cast %141 : vector<16x128xbf16> to vector<1x16x128xbf16>
    tpu.vector_store %arg12[%142, %c0_62, %c0_63], %145 {strides = array<i32>} : memref<8x16x128xbf16, #tpu.memory_space<vmem>>, vector<1x16x128xbf16>,
    %c3_i32 = arith.constant 3 : i32
    %146 = arith.index_cast %c3_i32 : i32 to index
    %c0_64 = arith.constant 0 : index
    %c0_65 = arith.constant 0 : index
    %147 = vector.load %arg13[%146, %c0_64, %c0_65] : memref<8x16x512xf32, #tpu.memory_space<vmem>>, vector<1x16x512xf32>
    %148 = vector.shape_cast %147 : vector<1x16x512xf32> to vector<16x512xf32>
    %149 = arith.truncf %140 : vector<16x128xf32> to vector<16x128xbf16>
    %cst_66 = arith.constant dense<0.000000e+00> : vector<16x512xf32>
    %150 = tpu.matmul %149, %15, %cst_66 {dimension_numbers = #tpu.dot_dimension_numbers<[1], [0], [0], [1], [0, 0, 1, 1], [], []>} : vector<16x128xbf16>, vector<128x512xbf16>, vector<16x512xf32> -> vector<16x512xf32>
    %151 = arith.addf %148, %150 : vector<16x512xf32>
    %152 = vector.extract_strided_slice %151 {offsets = [0, 0], sizes = [16, 128], strides = [1, 1]} : vector<16x512xf32> to vector<16x128xf32>
    %cst_67 = arith.constant 5.000000e-01 : f32
    %153 = vector.broadcast %cst_67 : f32 to vector<16x128xf32>
    %154 = arith.mulf %153, %152 : vector<16x128xf32>
    %155 = math.tanh %154 : vector<16x128xf32>
    %cst_68 = arith.constant 5.000000e-01 : f32
    %156 = vector.broadcast %cst_68 : f32 to vector<16x128xf32>
    %157 = arith.mulf %156, %155 : vector<16x128xf32>
    %cst_69 = arith.constant 5.000000e-01 : f32
    %158 = vector.broadcast %cst_69 : f32 to vector<16x128xf32>
    %159 = arith.addf %157, %158 : vector<16x128xf32>
    %160 = vector.extract_strided_slice %151 {offsets = [0, 128], sizes = [16, 128], strides = [1, 1]} : vector<16x512xf32> to vector<16x128xf32>
    %cst_70 = arith.constant 5.000000e-01 : f32
    %161 = vector.broadcast %cst_70 : f32 to vector<16x128xf32>
    %162 = arith.mulf %161, %160 : vector<16x128xf32>
    %163 = math.tanh %162 : vector<16x128xf32>
    %cst_71 = arith.constant 5.000000e-01 : f32
    %164 = vector.broadcast %cst_71 : f32 to vector<16x128xf32>
    %165 = arith.mulf %164, %163 : vector<16x128xf32>
    %cst_72 = arith.constant 5.000000e-01 : f32
    %166 = vector.broadcast %cst_72 : f32 to vector<16x128xf32>
    %167 = arith.addf %165, %166 : vector<16x128xf32>
    %168 = vector.extract_strided_slice %151 {offsets = [0, 256], sizes = [16, 128], strides = [1, 1]} : vector<16x512xf32> to vector<16x128xf32>
    %169 = math.tanh %168 : vector<16x128xf32>
    %170 = vector.extract_strided_slice %151 {offsets = [0, 384], sizes = [16, 128], strides = [1, 1]} : vector<16x512xf32> to vector<16x128xf32>
    %cst_73 = arith.constant 5.000000e-01 : f32
    %171 = vector.broadcast %cst_73 : f32 to vector<16x128xf32>
    %172 = arith.mulf %171, %170 : vector<16x128xf32>
    %173 = math.tanh %172 : vector<16x128xf32>
    %cst_74 = arith.constant 5.000000e-01 : f32
    %174 = vector.broadcast %cst_74 : f32 to vector<16x128xf32>
    %175 = arith.mulf %174, %173 : vector<16x128xf32>
    %cst_75 = arith.constant 5.000000e-01 : f32
    %176 = vector.broadcast %cst_75 : f32 to vector<16x128xf32>
    %177 = arith.addf %175, %176 : vector<16x128xf32>
    %178 = arith.mulf %167, %138 : vector<16x128xf32>
    %179 = arith.mulf %159, %169 : vector<16x128xf32>
    %180 = arith.addf %178, %179 : vector<16x128xf32>
    %181 = math.tanh %180 : vector<16x128xf32>
    %182 = arith.mulf %177, %181 : vector<16x128xf32>
    %183 = arith.truncf %182 : vector<16x128xf32> to vector<16x128xbf16>
    %184 = arith.index_cast %c3_i32 : i32 to index
    %c0_76 = arith.constant 0 : index
    %c0_77 = arith.constant 0 : index
    %185 = vector.load %arg12[%184, %c0_76, %c0_77] : memref<8x16x128xbf16, #tpu.memory_space<vmem>>, vector<1x16x128xbf16>
    %186 = vector.shape_cast %185 : vector<1x16x128xbf16> to vector<16x128xbf16>
    %187 = vector.shape_cast %183 : vector<16x128xbf16> to vector<1x16x128xbf16>
    tpu.vector_store %arg12[%184, %c0_76, %c0_77], %187 {strides = array<i32>} : memref<8x16x128xbf16, #tpu.memory_space<vmem>>, vector<1x16x128xbf16>,
    %c4_i32 = arith.constant 4 : i32
    %188 = arith.index_cast %c4_i32 : i32 to index
    %c0_78 = arith.constant 0 : index
    %c0_79 = arith.constant 0 : index
    %189 = vector.load %arg13[%188, %c0_78, %c0_79] : memref<8x16x512xf32, #tpu.memory_space<vmem>>, vector<1x16x512xf32>
    %190 = vector.shape_cast %189 : vector<1x16x512xf32> to vector<16x512xf32>
    %191 = arith.truncf %182 : vector<16x128xf32> to vector<16x128xbf16>
    %cst_80 = arith.constant dense<0.000000e+00> : vector<16x512xf32>
    %192 = tpu.matmul %191, %15, %cst_80 {dimension_numbers = #tpu.dot_dimension_numbers<[1], [0], [0], [1], [0, 0, 1, 1], [], []>} : vector<16x128xbf16>, vector<128x512xbf16>, vector<16x512xf32> -> vector<16x512xf32>
    %193 = arith.addf %190, %192 : vector<16x512xf32>
    %194 = vector.extract_strided_slice %193 {offsets = [0, 0], sizes = [16, 128], strides = [1, 1]} : vector<16x512xf32> to vector<16x128xf32>
    %cst_81 = arith.constant 5.000000e-01 : f32
    %195 = vector.broadcast %cst_81 : f32 to vector<16x128xf32>
    %196 = arith.mulf %195, %194 : vector<16x128xf32>
    %197 = math.tanh %196 : vector<16x128xf32>
    %cst_82 = arith.constant 5.000000e-01 : f32
    %198 = vector.broadcast %cst_82 : f32 to vector<16x128xf32>
    %199 = arith.mulf %198, %197 : vector<16x128xf32>
    %cst_83 = arith.constant 5.000000e-01 : f32
    %200 = vector.broadcast %cst_83 : f32 to vector<16x128xf32>
    %201 = arith.addf %199, %200 : vector<16x128xf32>
    %202 = vector.extract_strided_slice %193 {offsets = [0, 128], sizes = [16, 128], strides = [1, 1]} : vector<16x512xf32> to vector<16x128xf32>
    %cst_84 = arith.constant 5.000000e-01 : f32
    %203 = vector.broadcast %cst_84 : f32 to vector<16x128xf32>
    %204 = arith.mulf %203, %202 : vector<16x128xf32>
    %205 = math.tanh %204 : vector<16x128xf32>
    %cst_85 = arith.constant 5.000000e-01 : f32
    %206 = vector.broadcast %cst_85 : f32 to vector<16x128xf32>
    %207 = arith.mulf %206, %205 : vector<16x128xf32>
    %cst_86 = arith.constant 5.000000e-01 : f32
    %208 = vector.broadcast %cst_86 : f32 to vector<16x128xf32>
    %209 = arith.addf %207, %208 : vector<16x128xf32>
    %210 = vector.extract_strided_slice %193 {offsets = [0, 256], sizes = [16, 128], strides = [1, 1]} : vector<16x512xf32> to vector<16x128xf32>
    %211 = math.tanh %210 : vector<16x128xf32>
    %212 = vector.extract_strided_slice %193 {offsets = [0, 384], sizes = [16, 128], strides = [1, 1]} : vector<16x512xf32> to vector<16x128xf32>
    %cst_87 = arith.constant 5.000000e-01 : f32
    %213 = vector.broadcast %cst_87 : f32 to vector<16x128xf32>
    %214 = arith.mulf %213, %212 : vector<16x128xf32>
    %215 = math.tanh %214 : vector<16x128xf32>
    %cst_88 = arith.constant 5.000000e-01 : f32
    %216 = vector.broadcast %cst_88 : f32 to vector<16x128xf32>
    %217 = arith.mulf %216, %215 : vector<16x128xf32>
    %cst_89 = arith.constant 5.000000e-01 : f32
    %218 = vector.broadcast %cst_89 : f32 to vector<16x128xf32>
    %219 = arith.addf %217, %218 : vector<16x128xf32>
    %220 = arith.mulf %209, %180 : vector<16x128xf32>
    %221 = arith.mulf %201, %211 : vector<16x128xf32>
    %222 = arith.addf %220, %221 : vector<16x128xf32>
    %223 = math.tanh %222 : vector<16x128xf32>
    %224 = arith.mulf %219, %223 : vector<16x128xf32>
    %225 = arith.truncf %224 : vector<16x128xf32> to vector<16x128xbf16>
    %226 = arith.index_cast %c4_i32 : i32 to index
    %c0_90 = arith.constant 0 : index
    %c0_91 = arith.constant 0 : index
    %227 = vector.load %arg12[%226, %c0_90, %c0_91] : memref<8x16x128xbf16, #tpu.memory_space<vmem>>, vector<1x16x128xbf16>
    %228 = vector.shape_cast %227 : vector<1x16x128xbf16> to vector<16x128xbf16>
    %229 = vector.shape_cast %225 : vector<16x128xbf16> to vector<1x16x128xbf16>
    tpu.vector_store %arg12[%226, %c0_90, %c0_91], %229 {strides = array<i32>} : memref<8x16x128xbf16, #tpu.memory_space<vmem>>, vector<1x16x128xbf16>,
    %c5_i32 = arith.constant 5 : i32
    %230 = arith.index_cast %c5_i32 : i32 to index
    %c0_92 = arith.constant 0 : index
    %c0_93 = arith.constant 0 : index
    %231 = vector.load %arg13[%230, %c0_92, %c0_93] : memref<8x16x512xf32, #tpu.memory_space<vmem>>, vector<1x16x512xf32>
    %232 = vector.shape_cast %231 : vector<1x16x512xf32> to vector<16x512xf32>
    %233 = arith.truncf %224 : vector<16x128xf32> to vector<16x128xbf16>
    %cst_94 = arith.constant dense<0.000000e+00> : vector<16x512xf32>
    %234 = tpu.matmul %233, %15, %cst_94 {dimension_numbers = #tpu.dot_dimension_numbers<[1], [0], [0], [1], [0, 0, 1, 1], [], []>} : vector<16x128xbf16>, vector<128x512xbf16>, vector<16x512xf32> -> vector<16x512xf32>
    %235 = arith.addf %232, %234 : vector<16x512xf32>
    %236 = vector.extract_strided_slice %235 {offsets = [0, 0], sizes = [16, 128], strides = [1, 1]} : vector<16x512xf32> to vector<16x128xf32>
    %cst_95 = arith.constant 5.000000e-01 : f32
    %237 = vector.broadcast %cst_95 : f32 to vector<16x128xf32>
    %238 = arith.mulf %237, %236 : vector<16x128xf32>
    %239 = math.tanh %238 : vector<16x128xf32>
    %cst_96 = arith.constant 5.000000e-01 : f32
    %240 = vector.broadcast %cst_96 : f32 to vector<16x128xf32>
    %241 = arith.mulf %240, %239 : vector<16x128xf32>
    %cst_97 = arith.constant 5.000000e-01 : f32
    %242 = vector.broadcast %cst_97 : f32 to vector<16x128xf32>
    %243 = arith.addf %241, %242 : vector<16x128xf32>
    %244 = vector.extract_strided_slice %235 {offsets = [0, 128], sizes = [16, 128], strides = [1, 1]} : vector<16x512xf32> to vector<16x128xf32>
    %cst_98 = arith.constant 5.000000e-01 : f32
    %245 = vector.broadcast %cst_98 : f32 to vector<16x128xf32>
    %246 = arith.mulf %245, %244 : vector<16x128xf32>
    %247 = math.tanh %246 : vector<16x128xf32>
    %cst_99 = arith.constant 5.000000e-01 : f32
    %248 = vector.broadcast %cst_99 : f32 to vector<16x128xf32>
    %249 = arith.mulf %248, %247 : vector<16x128xf32>
    %cst_100 = arith.constant 5.000000e-01 : f32
    %250 = vector.broadcast %cst_100 : f32 to vector<16x128xf32>
    %251 = arith.addf %249, %250 : vector<16x128xf32>
    %252 = vector.extract_strided_slice %235 {offsets = [0, 256], sizes = [16, 128], strides = [1, 1]} : vector<16x512xf32> to vector<16x128xf32>
    %253 = math.tanh %252 : vector<16x128xf32>
    %254 = vector.extract_strided_slice %235 {offsets = [0, 384], sizes = [16, 128], strides = [1, 1]} : vector<16x512xf32> to vector<16x128xf32>
    %cst_101 = arith.constant 5.000000e-01 : f32
    %255 = vector.broadcast %cst_101 : f32 to vector<16x128xf32>
    %256 = arith.mulf %255, %254 : vector<16x128xf32>
    %257 = math.tanh %256 : vector<16x128xf32>
    %cst_102 = arith.constant 5.000000e-01 : f32
    %258 = vector.broadcast %cst_102 : f32 to vector<16x128xf32>
    %259 = arith.mulf %258, %257 : vector<16x128xf32>
    %cst_103 = arith.constant 5.000000e-01 : f32
    %260 = vector.broadcast %cst_103 : f32 to vector<16x128xf32>
    %261 = arith.addf %259, %260 : vector<16x128xf32>
    %262 = arith.mulf %251, %222 : vector<16x128xf32>
    %263 = arith.mulf %243, %253 : vector<16x128xf32>
    %264 = arith.addf %262, %263 : vector<16x128xf32>
    %265 = math.tanh %264 : vector<16x128xf32>
    %266 = arith.mulf %261, %265 : vector<16x128xf32>
    %267 = arith.truncf %266 : vector<16x128xf32> to vector<16x128xbf16>
    %268 = arith.index_cast %c5_i32 : i32 to index
    %c0_104 = arith.constant 0 : index
    %c0_105 = arith.constant 0 : index
    %269 = vector.load %arg12[%268, %c0_104, %c0_105] : memref<8x16x128xbf16, #tpu.memory_space<vmem>>, vector<1x16x128xbf16>
    %270 = vector.shape_cast %269 : vector<1x16x128xbf16> to vector<16x128xbf16>
    %271 = vector.shape_cast %267 : vector<16x128xbf16> to vector<1x16x128xbf16>
    tpu.vector_store %arg12[%268, %c0_104, %c0_105], %271 {strides = array<i32>} : memref<8x16x128xbf16, #tpu.memory_space<vmem>>, vector<1x16x128xbf16>,
    %c6_i32 = arith.constant 6 : i32
    %272 = arith.index_cast %c6_i32 : i32 to index
    %c0_106 = arith.constant 0 : index
    %c0_107 = arith.constant 0 : index
    %273 = vector.load %arg13[%272, %c0_106, %c0_107] : memref<8x16x512xf32, #tpu.memory_space<vmem>>, vector<1x16x512xf32>
    %274 = vector.shape_cast %273 : vector<1x16x512xf32> to vector<16x512xf32>
    %275 = arith.truncf %266 : vector<16x128xf32> to vector<16x128xbf16>
    %cst_108 = arith.constant dense<0.000000e+00> : vector<16x512xf32>
    %276 = tpu.matmul %275, %15, %cst_108 {dimension_numbers = #tpu.dot_dimension_numbers<[1], [0], [0], [1], [0, 0, 1, 1], [], []>} : vector<16x128xbf16>, vector<128x512xbf16>, vector<16x512xf32> -> vector<16x512xf32>
    %277 = arith.addf %274, %276 : vector<16x512xf32>
    %278 = vector.extract_strided_slice %277 {offsets = [0, 0], sizes = [16, 128], strides = [1, 1]} : vector<16x512xf32> to vector<16x128xf32>
    %cst_109 = arith.constant 5.000000e-01 : f32
    %279 = vector.broadcast %cst_109 : f32 to vector<16x128xf32>
    %280 = arith.mulf %279, %278 : vector<16x128xf32>
    %281 = math.tanh %280 : vector<16x128xf32>
    %cst_110 = arith.constant 5.000000e-01 : f32
    %282 = vector.broadcast %cst_110 : f32 to vector<16x128xf32>
    %283 = arith.mulf %282, %281 : vector<16x128xf32>
    %cst_111 = arith.constant 5.000000e-01 : f32
    %284 = vector.broadcast %cst_111 : f32 to vector<16x128xf32>
    %285 = arith.addf %283, %284 : vector<16x128xf32>
    %286 = vector.extract_strided_slice %277 {offsets = [0, 128], sizes = [16, 128], strides = [1, 1]} : vector<16x512xf32> to vector<16x128xf32>
    %cst_112 = arith.constant 5.000000e-01 : f32
    %287 = vector.broadcast %cst_112 : f32 to vector<16x128xf32>
    %288 = arith.mulf %287, %286 : vector<16x128xf32>
    %289 = math.tanh %288 : vector<16x128xf32>
    %cst_113 = arith.constant 5.000000e-01 : f32
    %290 = vector.broadcast %cst_113 : f32 to vector<16x128xf32>
    %291 = arith.mulf %290, %289 : vector<16x128xf32>
    %cst_114 = arith.constant 5.000000e-01 : f32
    %292 = vector.broadcast %cst_114 : f32 to vector<16x128xf32>
    %293 = arith.addf %291, %292 : vector<16x128xf32>
    %294 = vector.extract_strided_slice %277 {offsets = [0, 256], sizes = [16, 128], strides = [1, 1]} : vector<16x512xf32> to vector<16x128xf32>
    %295 = math.tanh %294 : vector<16x128xf32>
    %296 = vector.extract_strided_slice %277 {offsets = [0, 384], sizes = [16, 128], strides = [1, 1]} : vector<16x512xf32> to vector<16x128xf32>
    %cst_115 = arith.constant 5.000000e-01 : f32
    %297 = vector.broadcast %cst_115 : f32 to vector<16x128xf32>
    %298 = arith.mulf %297, %296 : vector<16x128xf32>
    %299 = math.tanh %298 : vector<16x128xf32>
    %cst_116 = arith.constant 5.000000e-01 : f32
    %300 = vector.broadcast %cst_116 : f32 to vector<16x128xf32>
    %301 = arith.mulf %300, %299 : vector<16x128xf32>
    %cst_117 = arith.constant 5.000000e-01 : f32
    %302 = vector.broadcast %cst_117 : f32 to vector<16x128xf32>
    %303 = arith.addf %301, %302 : vector<16x128xf32>
    %304 = arith.mulf %293, %264 : vector<16x128xf32>
    %305 = arith.mulf %285, %295 : vector<16x128xf32>
    %306 = arith.addf %304, %305 : vector<16x128xf32>
    %307 = math.tanh %306 : vector<16x128xf32>
    %308 = arith.mulf %303, %307 : vector<16x128xf32>
    %309 = arith.truncf %308 : vector<16x128xf32> to vector<16x128xbf16>
    %310 = arith.index_cast %c6_i32 : i32 to index
    %c0_118 = arith.constant 0 : index
    %c0_119 = arith.constant 0 : index
    %311 = vector.load %arg12[%310, %c0_118, %c0_119] : memref<8x16x128xbf16, #tpu.memory_space<vmem>>, vector<1x16x128xbf16>
    %312 = vector.shape_cast %311 : vector<1x16x128xbf16> to vector<16x128xbf16>
    %313 = vector.shape_cast %309 : vector<16x128xbf16> to vector<1x16x128xbf16>
    tpu.vector_store %arg12[%310, %c0_118, %c0_119], %313 {strides = array<i32>} : memref<8x16x128xbf16, #tpu.memory_space<vmem>>, vector<1x16x128xbf16>,
    %c7_i32 = arith.constant 7 : i32
    %314 = arith.index_cast %c7_i32 : i32 to index
    %c0_120 = arith.constant 0 : index
    %c0_121 = arith.constant 0 : index
    %315 = vector.load %arg13[%314, %c0_120, %c0_121] : memref<8x16x512xf32, #tpu.memory_space<vmem>>, vector<1x16x512xf32>
    %316 = vector.shape_cast %315 : vector<1x16x512xf32> to vector<16x512xf32>
    %317 = arith.truncf %308 : vector<16x128xf32> to vector<16x128xbf16>
    %cst_122 = arith.constant dense<0.000000e+00> : vector<16x512xf32>
    %318 = tpu.matmul %317, %15, %cst_122 {dimension_numbers = #tpu.dot_dimension_numbers<[1], [0], [0], [1], [0, 0, 1, 1], [], []>} : vector<16x128xbf16>, vector<128x512xbf16>, vector<16x512xf32> -> vector<16x512xf32>
    %319 = arith.addf %316, %318 : vector<16x512xf32>
    %320 = vector.extract_strided_slice %319 {offsets = [0, 0], sizes = [16, 128], strides = [1, 1]} : vector<16x512xf32> to vector<16x128xf32>
    %cst_123 = arith.constant 5.000000e-01 : f32
    %321 = vector.broadcast %cst_123 : f32 to vector<16x128xf32>
    %322 = arith.mulf %321, %320 : vector<16x128xf32>
    %323 = math.tanh %322 : vector<16x128xf32>
    %cst_124 = arith.constant 5.000000e-01 : f32
    %324 = vector.broadcast %cst_124 : f32 to vector<16x128xf32>
    %325 = arith.mulf %324, %323 : vector<16x128xf32>
    %cst_125 = arith.constant 5.000000e-01 : f32
    %326 = vector.broadcast %cst_125 : f32 to vector<16x128xf32>
    %327 = arith.addf %325, %326 : vector<16x128xf32>
    %328 = vector.extract_strided_slice %319 {offsets = [0, 128], sizes = [16, 128], strides = [1, 1]} : vector<16x512xf32> to vector<16x128xf32>
    %cst_126 = arith.constant 5.000000e-01 : f32
    %329 = vector.broadcast %cst_126 : f32 to vector<16x128xf32>
    %330 = arith.mulf %329, %328 : vector<16x128xf32>
    %331 = math.tanh %330 : vector<16x128xf32>
    %cst_127 = arith.constant 5.000000e-01 : f32
    %332 = vector.broadcast %cst_127 : f32 to vector<16x128xf32>
    %333 = arith.mulf %332, %331 : vector<16x128xf32>
    %cst_128 = arith.constant 5.000000e-01 : f32
    %334 = vector.broadcast %cst_128 : f32 to vector<16x128xf32>
    %335 = arith.addf %333, %334 : vector<16x128xf32>
    %336 = vector.extract_strided_slice %319 {offsets = [0, 256], sizes = [16, 128], strides = [1, 1]} : vector<16x512xf32> to vector<16x128xf32>
    %337 = math.tanh %336 : vector<16x128xf32>
    %338 = vector.extract_strided_slice %319 {offsets = [0, 384], sizes = [16, 128], strides = [1, 1]} : vector<16x512xf32> to vector<16x128xf32>
    %cst_129 = arith.constant 5.000000e-01 : f32
    %339 = vector.broadcast %cst_129 : f32 to vector<16x128xf32>
    %340 = arith.mulf %339, %338 : vector<16x128xf32>
    %341 = math.tanh %340 : vector<16x128xf32>
    %cst_130 = arith.constant 5.000000e-01 : f32
    %342 = vector.broadcast %cst_130 : f32 to vector<16x128xf32>
    %343 = arith.mulf %342, %341 : vector<16x128xf32>
    %cst_131 = arith.constant 5.000000e-01 : f32
    %344 = vector.broadcast %cst_131 : f32 to vector<16x128xf32>
    %345 = arith.addf %343, %344 : vector<16x128xf32>
    %346 = arith.mulf %335, %306 : vector<16x128xf32>
    %347 = arith.mulf %327, %337 : vector<16x128xf32>
    %348 = arith.addf %346, %347 : vector<16x128xf32>
    %349 = math.tanh %348 : vector<16x128xf32>
    %350 = arith.mulf %345, %349 : vector<16x128xf32>
    %351 = arith.truncf %350 : vector<16x128xf32> to vector<16x128xbf16>
    %352 = arith.index_cast %c7_i32 : i32 to index
    %c0_132 = arith.constant 0 : index
    %c0_133 = arith.constant 0 : index
    %353 = vector.load %arg12[%352, %c0_132, %c0_133] : memref<8x16x128xbf16, #tpu.memory_space<vmem>>, vector<1x16x128xbf16>
    %354 = vector.shape_cast %353 : vector<1x16x128xbf16> to vector<16x128xbf16>
    %355 = vector.shape_cast %351 : vector<16x128xbf16> to vector<1x16x128xbf16>
    tpu.vector_store %arg12[%352, %c0_132, %c0_133], %355 {strides = array<i32>} : memref<8x16x128xbf16, #tpu.memory_space<vmem>>, vector<1x16x128xbf16>,
    %c8_i32 = arith.constant 8 : i32
    %c0_134 = arith.constant 0 : index
    %c0_135 = arith.constant 0 : index
    %c0_136 = arith.constant 0 : index
    %356 = vector.load %arg10[%c0_134, %c0_135, %c0_136] : memref<2x16x128xf32, #tpu.memory_space<vmem>>, vector<1x16x128xf32>
    %357 = vector.shape_cast %356 : vector<1x16x128xf32> to vector<16x128xf32>
    %358 = vector.shape_cast %350 : vector<16x128xf32> to vector<1x16x128xf32>
    tpu.vector_store %arg10[%c0_134, %c0_135, %c0_136], %358 {strides = array<i32>} : memref<2x16x128xf32, #tpu.memory_space<vmem>>, vector<1x16x128xf32>,
    %c0_137 = arith.constant 0 : index
    %c0_138 = arith.constant 0 : index
    %c0_139 = arith.constant 0 : index
    %359 = vector.load %arg11[%c0_137, %c0_138, %c0_139] : memref<2x16x128xf32, #tpu.memory_space<vmem>>, vector<1x16x128xf32>
    %360 = vector.shape_cast %359 : vector<1x16x128xf32> to vector<16x128xf32>
    %361 = vector.shape_cast %348 : vector<16x128xf32> to vector<1x16x128xf32>
    tpu.vector_store %arg11[%c0_137, %c0_138, %c0_139], %361 {strides = array<i32>} : memref<2x16x128xf32, #tpu.memory_space<vmem>>, vector<1x16x128xf32>,
    %c0_140 = arith.constant 0 : index
    %c0_141 = arith.constant 0 : index
    %c0_142 = arith.constant 0 : index
    %362 = vector.load %arg12[%c0_140, %c0_141, %c0_142] : memref<8x16x128xbf16, #tpu.memory_space<vmem>>, vector<8x16x128xbf16>
    %363 = vector.shape_cast %362 : vector<8x16x128xbf16> to vector<128x128xbf16>
    %c1 = arith.constant 1 : index
    %c0_143 = arith.constant 0 : index
    %c0_144 = arith.constant 0 : index
    %364 = vector.load %arg2[%c1, %c0_143, %c0_144] : memref<2x128x512xbf16, #tpu.memory_space<vmem>>, vector<1x128x512xbf16>
    %365 = vector.shape_cast %364 : vector<1x128x512xbf16> to vector<128x512xbf16>
    %cst_145 = arith.constant dense<0.000000e+00> : vector<128x512xf32>
    %366 = tpu.matmul %363, %365, %cst_145 {dimension_numbers = #tpu.dot_dimension_numbers<[1], [0], [0], [1], [0, 0, 1, 1], [], []>} : vector<128x128xbf16>, vector<128x512xbf16>, vector<128x512xf32> -> vector<128x512xf32>
    %c1_146 = arith.constant 1 : index
    %c0_147 = arith.constant 0 : index
    %c0_148 = arith.constant 0 : index
    %367 = vector.load %arg4[%c1_146, %c0_147, %c0_148] : memref<2x1x512xf32, #tpu.memory_space<vmem>>, vector<1x1x512xf32>
    %368 = vector.shape_cast %367 : vector<1x1x512xf32> to vector<1x512xf32>
    %369 = vector.broadcast %368 : vector<1x512xf32> to vector<128x512xf32>
    %370 = arith.addf %366, %369 : vector<128x512xf32>
    %371 = vector.shape_cast %370 : vector<128x512xf32> to vector<8x16x512xf32>
    %c0_149 = arith.constant 0 : index
    %c0_150 = arith.constant 0 : index
    %c0_151 = arith.constant 0 : index
    %372 = vector.load %arg13[%c0_149, %c0_150, %c0_151] : memref<8x16x512xf32, #tpu.memory_space<vmem>>, vector<8x16x512xf32>
    tpu.vector_store %arg13[%c0_149, %c0_150, %c0_151], %371 {strides = array<i32>} : memref<8x16x512xf32, #tpu.memory_space<vmem>>, vector<8x16x512xf32>,
    %c1_152 = arith.constant 1 : index
    %c0_153 = arith.constant 0 : index
    %c0_154 = arith.constant 0 : index
    %373 = vector.load %arg3[%c1_152, %c0_153, %c0_154] : memref<2x128x512xbf16, #tpu.memory_space<vmem>>, vector<1x128x512xbf16>
    %374 = vector.shape_cast %373 : vector<1x128x512xbf16> to vector<128x512xbf16>
    %c1_155 = arith.constant 1 : index
    %c0_156 = arith.constant 0 : index
    %c0_157 = arith.constant 0 : index
    %375 = vector.load %arg10[%c1_155, %c0_156, %c0_157] : memref<2x16x128xf32, #tpu.memory_space<vmem>>, vector<1x16x128xf32>
    %376 = vector.shape_cast %375 : vector<1x16x128xf32> to vector<16x128xf32>
    %c1_158 = arith.constant 1 : index
    %c0_159 = arith.constant 0 : index
    %c0_160 = arith.constant 0 : index
    %377 = vector.load %arg11[%c1_158, %c0_159, %c0_160] : memref<2x16x128xf32, #tpu.memory_space<vmem>>, vector<1x16x128xf32>
    %378 = vector.shape_cast %377 : vector<1x16x128xf32> to vector<16x128xf32>
    %c0_i32_161 = arith.constant 0 : i32
    %379 = arith.index_cast %c0_i32_161 : i32 to index
    %c0_162 = arith.constant 0 : index
    %c0_163 = arith.constant 0 : index
    %380 = vector.load %arg13[%379, %c0_162, %c0_163] : memref<8x16x512xf32, #tpu.memory_space<vmem>>, vector<1x16x512xf32>
    %381 = vector.shape_cast %380 : vector<1x16x512xf32> to vector<16x512xf32>
    %382 = arith.truncf %376 : vector<16x128xf32> to vector<16x128xbf16>
    %cst_164 = arith.constant dense<0.000000e+00> : vector<16x512xf32>
    %383 = tpu.matmul %382, %374, %cst_164 {dimension_numbers = #tpu.dot_dimension_numbers<[1], [0], [0], [1], [0, 0, 1, 1], [], []>} : vector<16x128xbf16>, vector<128x512xbf16>, vector<16x512xf32> -> vector<16x512xf32>
    %384 = arith.addf %381, %383 : vector<16x512xf32>
    %385 = vector.extract_strided_slice %384 {offsets = [0, 0], sizes = [16, 128], strides = [1, 1]} : vector<16x512xf32> to vector<16x128xf32>
    %cst_165 = arith.constant 5.000000e-01 : f32
    %386 = vector.broadcast %cst_165 : f32 to vector<16x128xf32>
    %387 = arith.mulf %386, %385 : vector<16x128xf32>
    %388 = math.tanh %387 : vector<16x128xf32>
    %cst_166 = arith.constant 5.000000e-01 : f32
    %389 = vector.broadcast %cst_166 : f32 to vector<16x128xf32>
    %390 = arith.mulf %389, %388 : vector<16x128xf32>
    %cst_167 = arith.constant 5.000000e-01 : f32
    %391 = vector.broadcast %cst_167 : f32 to vector<16x128xf32>
    %392 = arith.addf %390, %391 : vector<16x128xf32>
    %393 = vector.extract_strided_slice %384 {offsets = [0, 128], sizes = [16, 128], strides = [1, 1]} : vector<16x512xf32> to vector<16x128xf32>
    %cst_168 = arith.constant 5.000000e-01 : f32
    %394 = vector.broadcast %cst_168 : f32 to vector<16x128xf32>
    %395 = arith.mulf %394, %393 : vector<16x128xf32>
    %396 = math.tanh %395 : vector<16x128xf32>
    %cst_169 = arith.constant 5.000000e-01 : f32
    %397 = vector.broadcast %cst_169 : f32 to vector<16x128xf32>
    %398 = arith.mulf %397, %396 : vector<16x128xf32>
    %cst_170 = arith.constant 5.000000e-01 : f32
    %399 = vector.broadcast %cst_170 : f32 to vector<16x128xf32>
    %400 = arith.addf %398, %399 : vector<16x128xf32>
    %401 = vector.extract_strided_slice %384 {offsets = [0, 256], sizes = [16, 128], strides = [1, 1]} : vector<16x512xf32> to vector<16x128xf32>
    %402 = math.tanh %401 : vector<16x128xf32>
    %403 = vector.extract_strided_slice %384 {offsets = [0, 384], sizes = [16, 128], strides = [1, 1]} : vector<16x512xf32> to vector<16x128xf32>
    %cst_171 = arith.constant 5.000000e-01 : f32
    %404 = vector.broadcast %cst_171 : f32 to vector<16x128xf32>
    %405 = arith.mulf %404, %403 : vector<16x128xf32>
    %406 = math.tanh %405 : vector<16x128xf32>
    %cst_172 = arith.constant 5.000000e-01 : f32
    %407 = vector.broadcast %cst_172 : f32 to vector<16x128xf32>
    %408 = arith.mulf %407, %406 : vector<16x128xf32>
    %cst_173 = arith.constant 5.000000e-01 : f32
    %409 = vector.broadcast %cst_173 : f32 to vector<16x128xf32>
    %410 = arith.addf %408, %409 : vector<16x128xf32>
    %411 = arith.mulf %400, %378 : vector<16x128xf32>
    %412 = arith.mulf %392, %402 : vector<16x128xf32>
    %413 = arith.addf %411, %412 : vector<16x128xf32>
    %414 = math.tanh %413 : vector<16x128xf32>
    %415 = arith.mulf %410, %414 : vector<16x128xf32>
    %416 = arith.truncf %415 : vector<16x128xf32> to vector<16x128xbf16>
    %417 = arith.index_cast %c0_i32_161 : i32 to index
    %c0_174 = arith.constant 0 : index
    %c0_175 = arith.constant 0 : index
    %418 = vector.load %arg12[%417, %c0_174, %c0_175] : memref<8x16x128xbf16, #tpu.memory_space<vmem>>, vector<1x16x128xbf16>
    %419 = vector.shape_cast %418 : vector<1x16x128xbf16> to vector<16x128xbf16>
    %420 = vector.shape_cast %416 : vector<16x128xbf16> to vector<1x16x128xbf16>
    tpu.vector_store %arg12[%417, %c0_174, %c0_175], %420 {strides = array<i32>} : memref<8x16x128xbf16, #tpu.memory_space<vmem>>, vector<1x16x128xbf16>,
    %c1_i32_176 = arith.constant 1 : i32
    %421 = arith.index_cast %c1_i32_176 : i32 to index
    %c0_177 = arith.constant 0 : index
    %c0_178 = arith.constant 0 : index
    %422 = vector.load %arg13[%421, %c0_177, %c0_178] : memref<8x16x512xf32, #tpu.memory_space<vmem>>, vector<1x16x512xf32>
    %423 = vector.shape_cast %422 : vector<1x16x512xf32> to vector<16x512xf32>
    %424 = arith.truncf %415 : vector<16x128xf32> to vector<16x128xbf16>
    %cst_179 = arith.constant dense<0.000000e+00> : vector<16x512xf32>
    %425 = tpu.matmul %424, %374, %cst_179 {dimension_numbers = #tpu.dot_dimension_numbers<[1], [0], [0], [1], [0, 0, 1, 1], [], []>} : vector<16x128xbf16>, vector<128x512xbf16>, vector<16x512xf32> -> vector<16x512xf32>
    %426 = arith.addf %423, %425 : vector<16x512xf32>
    %427 = vector.extract_strided_slice %426 {offsets = [0, 0], sizes = [16, 128], strides = [1, 1]} : vector<16x512xf32> to vector<16x128xf32>
    %cst_180 = arith.constant 5.000000e-01 : f32
    %428 = vector.broadcast %cst_180 : f32 to vector<16x128xf32>
    %429 = arith.mulf %428, %427 : vector<16x128xf32>
    %430 = math.tanh %429 : vector<16x128xf32>
    %cst_181 = arith.constant 5.000000e-01 : f32
    %431 = vector.broadcast %cst_181 : f32 to vector<16x128xf32>
    %432 = arith.mulf %431, %430 : vector<16x128xf32>
    %cst_182 = arith.constant 5.000000e-01 : f32
    %433 = vector.broadcast %cst_182 : f32 to vector<16x128xf32>
    %434 = arith.addf %432, %433 : vector<16x128xf32>
    %435 = vector.extract_strided_slice %426 {offsets = [0, 128], sizes = [16, 128], strides = [1, 1]} : vector<16x512xf32> to vector<16x128xf32>
    %cst_183 = arith.constant 5.000000e-01 : f32
    %436 = vector.broadcast %cst_183 : f32 to vector<16x128xf32>
    %437 = arith.mulf %436, %435 : vector<16x128xf32>
    %438 = math.tanh %437 : vector<16x128xf32>
    %cst_184 = arith.constant 5.000000e-01 : f32
    %439 = vector.broadcast %cst_184 : f32 to vector<16x128xf32>
    %440 = arith.mulf %439, %438 : vector<16x128xf32>
    %cst_185 = arith.constant 5.000000e-01 : f32
    %441 = vector.broadcast %cst_185 : f32 to vector<16x128xf32>
    %442 = arith.addf %440, %441 : vector<16x128xf32>
    %443 = vector.extract_strided_slice %426 {offsets = [0, 256], sizes = [16, 128], strides = [1, 1]} : vector<16x512xf32> to vector<16x128xf32>
    %444 = math.tanh %443 : vector<16x128xf32>
    %445 = vector.extract_strided_slice %426 {offsets = [0, 384], sizes = [16, 128], strides = [1, 1]} : vector<16x512xf32> to vector<16x128xf32>
    %cst_186 = arith.constant 5.000000e-01 : f32
    %446 = vector.broadcast %cst_186 : f32 to vector<16x128xf32>
    %447 = arith.mulf %446, %445 : vector<16x128xf32>
    %448 = math.tanh %447 : vector<16x128xf32>
    %cst_187 = arith.constant 5.000000e-01 : f32
    %449 = vector.broadcast %cst_187 : f32 to vector<16x128xf32>
    %450 = arith.mulf %449, %448 : vector<16x128xf32>
    %cst_188 = arith.constant 5.000000e-01 : f32
    %451 = vector.broadcast %cst_188 : f32 to vector<16x128xf32>
    %452 = arith.addf %450, %451 : vector<16x128xf32>
    %453 = arith.mulf %442, %413 : vector<16x128xf32>
    %454 = arith.mulf %434, %444 : vector<16x128xf32>
    %455 = arith.addf %453, %454 : vector<16x128xf32>
    %456 = math.tanh %455 : vector<16x128xf32>
    %457 = arith.mulf %452, %456 : vector<16x128xf32>
    %458 = arith.truncf %457 : vector<16x128xf32> to vector<16x128xbf16>
    %459 = arith.index_cast %c1_i32_176 : i32 to index
    %c0_189 = arith.constant 0 : index
    %c0_190 = arith.constant 0 : index
    %460 = vector.load %arg12[%459, %c0_189, %c0_190] : memref<8x16x128xbf16, #tpu.memory_space<vmem>>, vector<1x16x128xbf16>
    %461 = vector.shape_cast %460 : vector<1x16x128xbf16> to vector<16x128xbf16>
    %462 = vector.shape_cast %458 : vector<16x128xbf16> to vector<1x16x128xbf16>
    tpu.vector_store %arg12[%459, %c0_189, %c0_190], %462 {strides = array<i32>} : memref<8x16x128xbf16, #tpu.memory_space<vmem>>, vector<1x16x128xbf16>,
    %c2_i32_191 = arith.constant 2 : i32
    %463 = arith.index_cast %c2_i32_191 : i32 to index
    %c0_192 = arith.constant 0 : index
    %c0_193 = arith.constant 0 : index
    %464 = vector.load %arg13[%463, %c0_192, %c0_193] : memref<8x16x512xf32, #tpu.memory_space<vmem>>, vector<1x16x512xf32>
    %465 = vector.shape_cast %464 : vector<1x16x512xf32> to vector<16x512xf32>
    %466 = arith.truncf %457 : vector<16x128xf32> to vector<16x128xbf16>
    %cst_194 = arith.constant dense<0.000000e+00> : vector<16x512xf32>
    %467 = tpu.matmul %466, %374, %cst_194 {dimension_numbers = #tpu.dot_dimension_numbers<[1], [0], [0], [1], [0, 0, 1, 1], [], []>} : vector<16x128xbf16>, vector<128x512xbf16>, vector<16x512xf32> -> vector<16x512xf32>
    %468 = arith.addf %465, %467 : vector<16x512xf32>
    %469 = vector.extract_strided_slice %468 {offsets = [0, 0], sizes = [16, 128], strides = [1, 1]} : vector<16x512xf32> to vector<16x128xf32>
    %cst_195 = arith.constant 5.000000e-01 : f32
    %470 = vector.broadcast %cst_195 : f32 to vector<16x128xf32>
    %471 = arith.mulf %470, %469 : vector<16x128xf32>
    %472 = math.tanh %471 : vector<16x128xf32>
    %cst_196 = arith.constant 5.000000e-01 : f32
    %473 = vector.broadcast %cst_196 : f32 to vector<16x128xf32>
    %474 = arith.mulf %473, %472 : vector<16x128xf32>
    %cst_197 = arith.constant 5.000000e-01 : f32
    %475 = vector.broadcast %cst_197 : f32 to vector<16x128xf32>
    %476 = arith.addf %474, %475 : vector<16x128xf32>
    %477 = vector.extract_strided_slice %468 {offsets = [0, 128], sizes = [16, 128], strides = [1, 1]} : vector<16x512xf32> to vector<16x128xf32>
    %cst_198 = arith.constant 5.000000e-01 : f32
    %478 = vector.broadcast %cst_198 : f32 to vector<16x128xf32>
    %479 = arith.mulf %478, %477 : vector<16x128xf32>
    %480 = math.tanh %479 : vector<16x128xf32>
    %cst_199 = arith.constant 5.000000e-01 : f32
    %481 = vector.broadcast %cst_199 : f32 to vector<16x128xf32>
    %482 = arith.mulf %481, %480 : vector<16x128xf32>
    %cst_200 = arith.constant 5.000000e-01 : f32
    %483 = vector.broadcast %cst_200 : f32 to vector<16x128xf32>
    %484 = arith.addf %482, %483 : vector<16x128xf32>
    %485 = vector.extract_strided_slice %468 {offsets = [0, 256], sizes = [16, 128], strides = [1, 1]} : vector<16x512xf32> to vector<16x128xf32>
    %486 = math.tanh %485 : vector<16x128xf32>
    %487 = vector.extract_strided_slice %468 {offsets = [0, 384], sizes = [16, 128], strides = [1, 1]} : vector<16x512xf32> to vector<16x128xf32>
    %cst_201 = arith.constant 5.000000e-01 : f32
    %488 = vector.broadcast %cst_201 : f32 to vector<16x128xf32>
    %489 = arith.mulf %488, %487 : vector<16x128xf32>
    %490 = math.tanh %489 : vector<16x128xf32>
    %cst_202 = arith.constant 5.000000e-01 : f32
    %491 = vector.broadcast %cst_202 : f32 to vector<16x128xf32>
    %492 = arith.mulf %491, %490 : vector<16x128xf32>
    %cst_203 = arith.constant 5.000000e-01 : f32
    %493 = vector.broadcast %cst_203 : f32 to vector<16x128xf32>
    %494 = arith.addf %492, %493 : vector<16x128xf32>
    %495 = arith.mulf %484, %455 : vector<16x128xf32>
    %496 = arith.mulf %476, %486 : vector<16x128xf32>
    %497 = arith.addf %495, %496 : vector<16x128xf32>
    %498 = math.tanh %497 : vector<16x128xf32>
    %499 = arith.mulf %494, %498 : vector<16x128xf32>
    %500 = arith.truncf %499 : vector<16x128xf32> to vector<16x128xbf16>
    %501 = arith.index_cast %c2_i32_191 : i32 to index
    %c0_204 = arith.constant 0 : index
    %c0_205 = arith.constant 0 : index
    %502 = vector.load %arg12[%501, %c0_204, %c0_205] : memref<8x16x128xbf16, #tpu.memory_space<vmem>>, vector<1x16x128xbf16>
    %503 = vector.shape_cast %502 : vector<1x16x128xbf16> to vector<16x128xbf16>
    %504 = vector.shape_cast %500 : vector<16x128xbf16> to vector<1x16x128xbf16>
    tpu.vector_store %arg12[%501, %c0_204, %c0_205], %504 {strides = array<i32>} : memref<8x16x128xbf16, #tpu.memory_space<vmem>>, vector<1x16x128xbf16>,
    %c3_i32_206 = arith.constant 3 : i32
    %505 = arith.index_cast %c3_i32_206 : i32 to index
    %c0_207 = arith.constant 0 : index
    %c0_208 = arith.constant 0 : index
    %506 = vector.load %arg13[%505, %c0_207, %c0_208] : memref<8x16x512xf32, #tpu.memory_space<vmem>>, vector<1x16x512xf32>
    %507 = vector.shape_cast %506 : vector<1x16x512xf32> to vector<16x512xf32>
    %508 = arith.truncf %499 : vector<16x128xf32> to vector<16x128xbf16>
    %cst_209 = arith.constant dense<0.000000e+00> : vector<16x512xf32>
    %509 = tpu.matmul %508, %374, %cst_209 {dimension_numbers = #tpu.dot_dimension_numbers<[1], [0], [0], [1], [0, 0, 1, 1], [], []>} : vector<16x128xbf16>, vector<128x512xbf16>, vector<16x512xf32> -> vector<16x512xf32>
    %510 = arith.addf %507, %509 : vector<16x512xf32>
    %511 = vector.extract_strided_slice %510 {offsets = [0, 0], sizes = [16, 128], strides = [1, 1]} : vector<16x512xf32> to vector<16x128xf32>
    %cst_210 = arith.constant 5.000000e-01 : f32
    %512 = vector.broadcast %cst_210 : f32 to vector<16x128xf32>
    %513 = arith.mulf %512, %511 : vector<16x128xf32>
    %514 = math.tanh %513 : vector<16x128xf32>
    %cst_211 = arith.constant 5.000000e-01 : f32
    %515 = vector.broadcast %cst_211 : f32 to vector<16x128xf32>
    %516 = arith.mulf %515, %514 : vector<16x128xf32>
    %cst_212 = arith.constant 5.000000e-01 : f32
    %517 = vector.broadcast %cst_212 : f32 to vector<16x128xf32>
    %518 = arith.addf %516, %517 : vector<16x128xf32>
    %519 = vector.extract_strided_slice %510 {offsets = [0, 128], sizes = [16, 128], strides = [1, 1]} : vector<16x512xf32> to vector<16x128xf32>
    %cst_213 = arith.constant 5.000000e-01 : f32
    %520 = vector.broadcast %cst_213 : f32 to vector<16x128xf32>
    %521 = arith.mulf %520, %519 : vector<16x128xf32>
    %522 = math.tanh %521 : vector<16x128xf32>
    %cst_214 = arith.constant 5.000000e-01 : f32
    %523 = vector.broadcast %cst_214 : f32 to vector<16x128xf32>
    %524 = arith.mulf %523, %522 : vector<16x128xf32>
    %cst_215 = arith.constant 5.000000e-01 : f32
    %525 = vector.broadcast %cst_215 : f32 to vector<16x128xf32>
    %526 = arith.addf %524, %525 : vector<16x128xf32>
    %527 = vector.extract_strided_slice %510 {offsets = [0, 256], sizes = [16, 128], strides = [1, 1]} : vector<16x512xf32> to vector<16x128xf32>
    %528 = math.tanh %527 : vector<16x128xf32>
    %529 = vector.extract_strided_slice %510 {offsets = [0, 384], sizes = [16, 128], strides = [1, 1]} : vector<16x512xf32> to vector<16x128xf32>
    %cst_216 = arith.constant 5.000000e-01 : f32
    %530 = vector.broadcast %cst_216 : f32 to vector<16x128xf32>
    %531 = arith.mulf %530, %529 : vector<16x128xf32>
    %532 = math.tanh %531 : vector<16x128xf32>
    %cst_217 = arith.constant 5.000000e-01 : f32
    %533 = vector.broadcast %cst_217 : f32 to vector<16x128xf32>
    %534 = arith.mulf %533, %532 : vector<16x128xf32>
    %cst_218 = arith.constant 5.000000e-01 : f32
    %535 = vector.broadcast %cst_218 : f32 to vector<16x128xf32>
    %536 = arith.addf %534, %535 : vector<16x128xf32>
    %537 = arith.mulf %526, %497 : vector<16x128xf32>
    %538 = arith.mulf %518, %528 : vector<16x128xf32>
    %539 = arith.addf %537, %538 : vector<16x128xf32>
    %540 = math.tanh %539 : vector<16x128xf32>
    %541 = arith.mulf %536, %540 : vector<16x128xf32>
    %542 = arith.truncf %541 : vector<16x128xf32> to vector<16x128xbf16>
    %543 = arith.index_cast %c3_i32_206 : i32 to index
    %c0_219 = arith.constant 0 : index
    %c0_220 = arith.constant 0 : index
    %544 = vector.load %arg12[%543, %c0_219, %c0_220] : memref<8x16x128xbf16, #tpu.memory_space<vmem>>, vector<1x16x128xbf16>
    %545 = vector.shape_cast %544 : vector<1x16x128xbf16> to vector<16x128xbf16>
    %546 = vector.shape_cast %542 : vector<16x128xbf16> to vector<1x16x128xbf16>
    tpu.vector_store %arg12[%543, %c0_219, %c0_220], %546 {strides = array<i32>} : memref<8x16x128xbf16, #tpu.memory_space<vmem>>, vector<1x16x128xbf16>,
    %c4_i32_221 = arith.constant 4 : i32
    %547 = arith.index_cast %c4_i32_221 : i32 to index
    %c0_222 = arith.constant 0 : index
    %c0_223 = arith.constant 0 : index
    %548 = vector.load %arg13[%547, %c0_222, %c0_223] : memref<8x16x512xf32, #tpu.memory_space<vmem>>, vector<1x16x512xf32>
    %549 = vector.shape_cast %548 : vector<1x16x512xf32> to vector<16x512xf32>
    %550 = arith.truncf %541 : vector<16x128xf32> to vector<16x128xbf16>
    %cst_224 = arith.constant dense<0.000000e+00> : vector<16x512xf32>
    %551 = tpu.matmul %550, %374, %cst_224 {dimension_numbers = #tpu.dot_dimension_numbers<[1], [0], [0], [1], [0, 0, 1, 1], [], []>} : vector<16x128xbf16>, vector<128x512xbf16>, vector<16x512xf32> -> vector<16x512xf32>
    %552 = arith.addf %549, %551 : vector<16x512xf32>
    %553 = vector.extract_strided_slice %552 {offsets = [0, 0], sizes = [16, 128], strides = [1, 1]} : vector<16x512xf32> to vector<16x128xf32>
    %cst_225 = arith.constant 5.000000e-01 : f32
    %554 = vector.broadcast %cst_225 : f32 to vector<16x128xf32>
    %555 = arith.mulf %554, %553 : vector<16x128xf32>
    %556 = math.tanh %555 : vector<16x128xf32>
    %cst_226 = arith.constant 5.000000e-01 : f32
    %557 = vector.broadcast %cst_226 : f32 to vector<16x128xf32>
    %558 = arith.mulf %557, %556 : vector<16x128xf32>
    %cst_227 = arith.constant 5.000000e-01 : f32
    %559 = vector.broadcast %cst_227 : f32 to vector<16x128xf32>
    %560 = arith.addf %558, %559 : vector<16x128xf32>
    %561 = vector.extract_strided_slice %552 {offsets = [0, 128], sizes = [16, 128], strides = [1, 1]} : vector<16x512xf32> to vector<16x128xf32>
    %cst_228 = arith.constant 5.000000e-01 : f32
    %562 = vector.broadcast %cst_228 : f32 to vector<16x128xf32>
    %563 = arith.mulf %562, %561 : vector<16x128xf32>
    %564 = math.tanh %563 : vector<16x128xf32>
    %cst_229 = arith.constant 5.000000e-01 : f32
    %565 = vector.broadcast %cst_229 : f32 to vector<16x128xf32>
    %566 = arith.mulf %565, %564 : vector<16x128xf32>
    %cst_230 = arith.constant 5.000000e-01 : f32
    %567 = vector.broadcast %cst_230 : f32 to vector<16x128xf32>
    %568 = arith.addf %566, %567 : vector<16x128xf32>
    %569 = vector.extract_strided_slice %552 {offsets = [0, 256], sizes = [16, 128], strides = [1, 1]} : vector<16x512xf32> to vector<16x128xf32>
    %570 = math.tanh %569 : vector<16x128xf32>
    %571 = vector.extract_strided_slice %552 {offsets = [0, 384], sizes = [16, 128], strides = [1, 1]} : vector<16x512xf32> to vector<16x128xf32>
    %cst_231 = arith.constant 5.000000e-01 : f32
    %572 = vector.broadcast %cst_231 : f32 to vector<16x128xf32>
    %573 = arith.mulf %572, %571 : vector<16x128xf32>
    %574 = math.tanh %573 : vector<16x128xf32>
    %cst_232 = arith.constant 5.000000e-01 : f32
    %575 = vector.broadcast %cst_232 : f32 to vector<16x128xf32>
    %576 = arith.mulf %575, %574 : vector<16x128xf32>
    %cst_233 = arith.constant 5.000000e-01 : f32
    %577 = vector.broadcast %cst_233 : f32 to vector<16x128xf32>
    %578 = arith.addf %576, %577 : vector<16x128xf32>
    %579 = arith.mulf %568, %539 : vector<16x128xf32>
    %580 = arith.mulf %560, %570 : vector<16x128xf32>
    %581 = arith.addf %579, %580 : vector<16x128xf32>
    %582 = math.tanh %581 : vector<16x128xf32>
    %583 = arith.mulf %578, %582 : vector<16x128xf32>
    %584 = arith.truncf %583 : vector<16x128xf32> to vector<16x128xbf16>
    %585 = arith.index_cast %c4_i32_221 : i32 to index
    %c0_234 = arith.constant 0 : index
    %c0_235 = arith.constant 0 : index
    %586 = vector.load %arg12[%585, %c0_234, %c0_235] : memref<8x16x128xbf16, #tpu.memory_space<vmem>>, vector<1x16x128xbf16>
    %587 = vector.shape_cast %586 : vector<1x16x128xbf16> to vector<16x128xbf16>
    %588 = vector.shape_cast %584 : vector<16x128xbf16> to vector<1x16x128xbf16>
    tpu.vector_store %arg12[%585, %c0_234, %c0_235], %588 {strides = array<i32>} : memref<8x16x128xbf16, #tpu.memory_space<vmem>>, vector<1x16x128xbf16>,
    %c5_i32_236 = arith.constant 5 : i32
    %589 = arith.index_cast %c5_i32_236 : i32 to index
    %c0_237 = arith.constant 0 : index
    %c0_238 = arith.constant 0 : index
    %590 = vector.load %arg13[%589, %c0_237, %c0_238] : memref<8x16x512xf32, #tpu.memory_space<vmem>>, vector<1x16x512xf32>
    %591 = vector.shape_cast %590 : vector<1x16x512xf32> to vector<16x512xf32>
    %592 = arith.truncf %583 : vector<16x128xf32> to vector<16x128xbf16>
    %cst_239 = arith.constant dense<0.000000e+00> : vector<16x512xf32>
    %593 = tpu.matmul %592, %374, %cst_239 {dimension_numbers = #tpu.dot_dimension_numbers<[1], [0], [0], [1], [0, 0, 1, 1], [], []>} : vector<16x128xbf16>, vector<128x512xbf16>, vector<16x512xf32> -> vector<16x512xf32>
    %594 = arith.addf %591, %593 : vector<16x512xf32>
    %595 = vector.extract_strided_slice %594 {offsets = [0, 0], sizes = [16, 128], strides = [1, 1]} : vector<16x512xf32> to vector<16x128xf32>
    %cst_240 = arith.constant 5.000000e-01 : f32
    %596 = vector.broadcast %cst_240 : f32 to vector<16x128xf32>
    %597 = arith.mulf %596, %595 : vector<16x128xf32>
    %598 = math.tanh %597 : vector<16x128xf32>
    %cst_241 = arith.constant 5.000000e-01 : f32
    %599 = vector.broadcast %cst_241 : f32 to vector<16x128xf32>
    %600 = arith.mulf %599, %598 : vector<16x128xf32>
    %cst_242 = arith.constant 5.000000e-01 : f32
    %601 = vector.broadcast %cst_242 : f32 to vector<16x128xf32>
    %602 = arith.addf %600, %601 : vector<16x128xf32>
    %603 = vector.extract_strided_slice %594 {offsets = [0, 128], sizes = [16, 128], strides = [1, 1]} : vector<16x512xf32> to vector<16x128xf32>
    %cst_243 = arith.constant 5.000000e-01 : f32
    %604 = vector.broadcast %cst_243 : f32 to vector<16x128xf32>
    %605 = arith.mulf %604, %603 : vector<16x128xf32>
    %606 = math.tanh %605 : vector<16x128xf32>
    %cst_244 = arith.constant 5.000000e-01 : f32
    %607 = vector.broadcast %cst_244 : f32 to vector<16x128xf32>
    %608 = arith.mulf %607, %606 : vector<16x128xf32>
    %cst_245 = arith.constant 5.000000e-01 : f32
    %609 = vector.broadcast %cst_245 : f32 to vector<16x128xf32>
    %610 = arith.addf %608, %609 : vector<16x128xf32>
    %611 = vector.extract_strided_slice %594 {offsets = [0, 256], sizes = [16, 128], strides = [1, 1]} : vector<16x512xf32> to vector<16x128xf32>
    %612 = math.tanh %611 : vector<16x128xf32>
    %613 = vector.extract_strided_slice %594 {offsets = [0, 384], sizes = [16, 128], strides = [1, 1]} : vector<16x512xf32> to vector<16x128xf32>
    %cst_246 = arith.constant 5.000000e-01 : f32
    %614 = vector.broadcast %cst_246 : f32 to vector<16x128xf32>
    %615 = arith.mulf %614, %613 : vector<16x128xf32>
    %616 = math.tanh %615 : vector<16x128xf32>
    %cst_247 = arith.constant 5.000000e-01 : f32
    %617 = vector.broadcast %cst_247 : f32 to vector<16x128xf32>
    %618 = arith.mulf %617, %616 : vector<16x128xf32>
    %cst_248 = arith.constant 5.000000e-01 : f32
    %619 = vector.broadcast %cst_248 : f32 to vector<16x128xf32>
    %620 = arith.addf %618, %619 : vector<16x128xf32>
    %621 = arith.mulf %610, %581 : vector<16x128xf32>
    %622 = arith.mulf %602, %612 : vector<16x128xf32>
    %623 = arith.addf %621, %622 : vector<16x128xf32>
    %624 = math.tanh %623 : vector<16x128xf32>
    %625 = arith.mulf %620, %624 : vector<16x128xf32>
    %626 = arith.truncf %625 : vector<16x128xf32> to vector<16x128xbf16>
    %627 = arith.index_cast %c5_i32_236 : i32 to index
    %c0_249 = arith.constant 0 : index
    %c0_250 = arith.constant 0 : index
    %628 = vector.load %arg12[%627, %c0_249, %c0_250] : memref<8x16x128xbf16, #tpu.memory_space<vmem>>, vector<1x16x128xbf16>
    %629 = vector.shape_cast %628 : vector<1x16x128xbf16> to vector<16x128xbf16>
    %630 = vector.shape_cast %626 : vector<16x128xbf16> to vector<1x16x128xbf16>
    tpu.vector_store %arg12[%627, %c0_249, %c0_250], %630 {strides = array<i32>} : memref<8x16x128xbf16, #tpu.memory_space<vmem>>, vector<1x16x128xbf16>,
    %c6_i32_251 = arith.constant 6 : i32
    %631 = arith.index_cast %c6_i32_251 : i32 to index
    %c0_252 = arith.constant 0 : index
    %c0_253 = arith.constant 0 : index
    %632 = vector.load %arg13[%631, %c0_252, %c0_253] : memref<8x16x512xf32, #tpu.memory_space<vmem>>, vector<1x16x512xf32>
    %633 = vector.shape_cast %632 : vector<1x16x512xf32> to vector<16x512xf32>
    %634 = arith.truncf %625 : vector<16x128xf32> to vector<16x128xbf16>
    %cst_254 = arith.constant dense<0.000000e+00> : vector<16x512xf32>
    %635 = tpu.matmul %634, %374, %cst_254 {dimension_numbers = #tpu.dot_dimension_numbers<[1], [0], [0], [1], [0, 0, 1, 1], [], []>} : vector<16x128xbf16>, vector<128x512xbf16>, vector<16x512xf32> -> vector<16x512xf32>
    %636 = arith.addf %633, %635 : vector<16x512xf32>
    %637 = vector.extract_strided_slice %636 {offsets = [0, 0], sizes = [16, 128], strides = [1, 1]} : vector<16x512xf32> to vector<16x128xf32>
    %cst_255 = arith.constant 5.000000e-01 : f32
    %638 = vector.broadcast %cst_255 : f32 to vector<16x128xf32>
    %639 = arith.mulf %638, %637 : vector<16x128xf32>
    %640 = math.tanh %639 : vector<16x128xf32>
    %cst_256 = arith.constant 5.000000e-01 : f32
    %641 = vector.broadcast %cst_256 : f32 to vector<16x128xf32>
    %642 = arith.mulf %641, %640 : vector<16x128xf32>
    %cst_257 = arith.constant 5.000000e-01 : f32
    %643 = vector.broadcast %cst_257 : f32 to vector<16x128xf32>
    %644 = arith.addf %642, %643 : vector<16x128xf32>
    %645 = vector.extract_strided_slice %636 {offsets = [0, 128], sizes = [16, 128], strides = [1, 1]} : vector<16x512xf32> to vector<16x128xf32>
    %cst_258 = arith.constant 5.000000e-01 : f32
    %646 = vector.broadcast %cst_258 : f32 to vector<16x128xf32>
    %647 = arith.mulf %646, %645 : vector<16x128xf32>
    %648 = math.tanh %647 : vector<16x128xf32>
    %cst_259 = arith.constant 5.000000e-01 : f32
    %649 = vector.broadcast %cst_259 : f32 to vector<16x128xf32>
    %650 = arith.mulf %649, %648 : vector<16x128xf32>
    %cst_260 = arith.constant 5.000000e-01 : f32
    %651 = vector.broadcast %cst_260 : f32 to vector<16x128xf32>
    %652 = arith.addf %650, %651 : vector<16x128xf32>
    %653 = vector.extract_strided_slice %636 {offsets = [0, 256], sizes = [16, 128], strides = [1, 1]} : vector<16x512xf32> to vector<16x128xf32>
    %654 = math.tanh %653 : vector<16x128xf32>
    %655 = vector.extract_strided_slice %636 {offsets = [0, 384], sizes = [16, 128], strides = [1, 1]} : vector<16x512xf32> to vector<16x128xf32>
    %cst_261 = arith.constant 5.000000e-01 : f32
    %656 = vector.broadcast %cst_261 : f32 to vector<16x128xf32>
    %657 = arith.mulf %656, %655 : vector<16x128xf32>
    %658 = math.tanh %657 : vector<16x128xf32>
    %cst_262 = arith.constant 5.000000e-01 : f32
    %659 = vector.broadcast %cst_262 : f32 to vector<16x128xf32>
    %660 = arith.mulf %659, %658 : vector<16x128xf32>
    %cst_263 = arith.constant 5.000000e-01 : f32
    %661 = vector.broadcast %cst_263 : f32 to vector<16x128xf32>
    %662 = arith.addf %660, %661 : vector<16x128xf32>
    %663 = arith.mulf %652, %623 : vector<16x128xf32>
    %664 = arith.mulf %644, %654 : vector<16x128xf32>
    %665 = arith.addf %663, %664 : vector<16x128xf32>
    %666 = math.tanh %665 : vector<16x128xf32>
    %667 = arith.mulf %662, %666 : vector<16x128xf32>
    %668 = arith.truncf %667 : vector<16x128xf32> to vector<16x128xbf16>
    %669 = arith.index_cast %c6_i32_251 : i32 to index
    %c0_264 = arith.constant 0 : index
    %c0_265 = arith.constant 0 : index
    %670 = vector.load %arg12[%669, %c0_264, %c0_265] : memref<8x16x128xbf16, #tpu.memory_space<vmem>>, vector<1x16x128xbf16>
    %671 = vector.shape_cast %670 : vector<1x16x128xbf16> to vector<16x128xbf16>
    %672 = vector.shape_cast %668 : vector<16x128xbf16> to vector<1x16x128xbf16>
    tpu.vector_store %arg12[%669, %c0_264, %c0_265], %672 {strides = array<i32>} : memref<8x16x128xbf16, #tpu.memory_space<vmem>>, vector<1x16x128xbf16>,
    %c7_i32_266 = arith.constant 7 : i32
    %673 = arith.index_cast %c7_i32_266 : i32 to index
    %c0_267 = arith.constant 0 : index
    %c0_268 = arith.constant 0 : index
    %674 = vector.load %arg13[%673, %c0_267, %c0_268] : memref<8x16x512xf32, #tpu.memory_space<vmem>>, vector<1x16x512xf32>
    %675 = vector.shape_cast %674 : vector<1x16x512xf32> to vector<16x512xf32>
    %676 = arith.truncf %667 : vector<16x128xf32> to vector<16x128xbf16>
    %cst_269 = arith.constant dense<0.000000e+00> : vector<16x512xf32>
    %677 = tpu.matmul %676, %374, %cst_269 {dimension_numbers = #tpu.dot_dimension_numbers<[1], [0], [0], [1], [0, 0, 1, 1], [], []>} : vector<16x128xbf16>, vector<128x512xbf16>, vector<16x512xf32> -> vector<16x512xf32>
    %678 = arith.addf %675, %677 : vector<16x512xf32>
    %679 = vector.extract_strided_slice %678 {offsets = [0, 0], sizes = [16, 128], strides = [1, 1]} : vector<16x512xf32> to vector<16x128xf32>
    %cst_270 = arith.constant 5.000000e-01 : f32
    %680 = vector.broadcast %cst_270 : f32 to vector<16x128xf32>
    %681 = arith.mulf %680, %679 : vector<16x128xf32>
    %682 = math.tanh %681 : vector<16x128xf32>
    %cst_271 = arith.constant 5.000000e-01 : f32
    %683 = vector.broadcast %cst_271 : f32 to vector<16x128xf32>
    %684 = arith.mulf %683, %682 : vector<16x128xf32>
    %cst_272 = arith.constant 5.000000e-01 : f32
    %685 = vector.broadcast %cst_272 : f32 to vector<16x128xf32>
    %686 = arith.addf %684, %685 : vector<16x128xf32>
    %687 = vector.extract_strided_slice %678 {offsets = [0, 128], sizes = [16, 128], strides = [1, 1]} : vector<16x512xf32> to vector<16x128xf32>
    %cst_273 = arith.constant 5.000000e-01 : f32
    %688 = vector.broadcast %cst_273 : f32 to vector<16x128xf32>
    %689 = arith.mulf %688, %687 : vector<16x128xf32>
    %690 = math.tanh %689 : vector<16x128xf32>
    %cst_274 = arith.constant 5.000000e-01 : f32
    %691 = vector.broadcast %cst_274 : f32 to vector<16x128xf32>
    %692 = arith.mulf %691, %690 : vector<16x128xf32>
    %cst_275 = arith.constant 5.000000e-01 : f32
    %693 = vector.broadcast %cst_275 : f32 to vector<16x128xf32>
    %694 = arith.addf %692, %693 : vector<16x128xf32>
    %695 = vector.extract_strided_slice %678 {offsets = [0, 256], sizes = [16, 128], strides = [1, 1]} : vector<16x512xf32> to vector<16x128xf32>
    %696 = math.tanh %695 : vector<16x128xf32>
    %697 = vector.extract_strided_slice %678 {offsets = [0, 384], sizes = [16, 128], strides = [1, 1]} : vector<16x512xf32> to vector<16x128xf32>
    %cst_276 = arith.constant 5.000000e-01 : f32
    %698 = vector.broadcast %cst_276 : f32 to vector<16x128xf32>
    %699 = arith.mulf %698, %697 : vector<16x128xf32>
    %700 = math.tanh %699 : vector<16x128xf32>
    %cst_277 = arith.constant 5.000000e-01 : f32
    %701 = vector.broadcast %cst_277 : f32 to vector<16x128xf32>
    %702 = arith.mulf %701, %700 : vector<16x128xf32>
    %cst_278 = arith.constant 5.000000e-01 : f32
    %703 = vector.broadcast %cst_278 : f32 to vector<16x128xf32>
    %704 = arith.addf %702, %703 : vector<16x128xf32>
    %705 = arith.mulf %694, %665 : vector<16x128xf32>
    %706 = arith.mulf %686, %696 : vector<16x128xf32>
    %707 = arith.addf %705, %706 : vector<16x128xf32>
    %708 = math.tanh %707 : vector<16x128xf32>
    %709 = arith.mulf %704, %708 : vector<16x128xf32>
    %710 = arith.truncf %709 : vector<16x128xf32> to vector<16x128xbf16>
    %711 = arith.index_cast %c7_i32_266 : i32 to index
    %c0_279 = arith.constant 0 : index
    %c0_280 = arith.constant 0 : index
    %712 = vector.load %arg12[%711, %c0_279, %c0_280] : memref<8x16x128xbf16, #tpu.memory_space<vmem>>, vector<1x16x128xbf16>
    %713 = vector.shape_cast %712 : vector<1x16x128xbf16> to vector<16x128xbf16>
    %714 = vector.shape_cast %710 : vector<16x128xbf16> to vector<1x16x128xbf16>
    tpu.vector_store %arg12[%711, %c0_279, %c0_280], %714 {strides = array<i32>} : memref<8x16x128xbf16, #tpu.memory_space<vmem>>, vector<1x16x128xbf16>,
    %c8_i32_281 = arith.constant 8 : i32
    %c1_282 = arith.constant 1 : index
    %c0_283 = arith.constant 0 : index
    %c0_284 = arith.constant 0 : index
    %715 = vector.load %arg10[%c1_282, %c0_283, %c0_284] : memref<2x16x128xf32, #tpu.memory_space<vmem>>, vector<1x16x128xf32>
    %716 = vector.shape_cast %715 : vector<1x16x128xf32> to vector<16x128xf32>
    %717 = vector.shape_cast %709 : vector<16x128xf32> to vector<1x16x128xf32>
    tpu.vector_store %arg10[%c1_282, %c0_283, %c0_284], %717 {strides = array<i32>} : memref<2x16x128xf32, #tpu.memory_space<vmem>>, vector<1x16x128xf32>,
    %c1_285 = arith.constant 1 : index
    %c0_286 = arith.constant 0 : index
    %c0_287 = arith.constant 0 : index
    %718 = vector.load %arg11[%c1_285, %c0_286, %c0_287] : memref<2x16x128xf32, #tpu.memory_space<vmem>>, vector<1x16x128xf32>
    %719 = vector.shape_cast %718 : vector<1x16x128xf32> to vector<16x128xf32>
    %720 = vector.shape_cast %707 : vector<16x128xf32> to vector<1x16x128xf32>
    tpu.vector_store %arg11[%c1_285, %c0_286, %c0_287], %720 {strides = array<i32>} : memref<2x16x128xf32, #tpu.memory_space<vmem>>, vector<1x16x128xf32>,
    %c0_288 = arith.constant 0 : index
    %c0_289 = arith.constant 0 : index
    %c0_290 = arith.constant 0 : index
    %721 = vector.load %arg12[%c0_288, %c0_289, %c0_290] : memref<8x16x128xbf16, #tpu.memory_space<vmem>>, vector<8x16x128xbf16>
    %722 = vector.shape_cast %721 : vector<8x16x128xbf16> to vector<128x128xbf16>
    %c0_291 = arith.constant 0 : index
    %c0_292 = arith.constant 0 : index
    %723 = vector.load %arg7[%c0_291, %c0_292] : memref<128x128xbf16, #tpu.memory_space<vmem>>, vector<128x128xbf16>
    %cst_293 = arith.constant dense<0.000000e+00> : vector<128x128xf32>
    %724 = tpu.matmul %722, %723, %cst_293 {dimension_numbers = #tpu.dot_dimension_numbers<[1], [0], [0], [1], [0, 0, 1, 1], [], []>} : vector<128x128xbf16>, vector<128x128xbf16>, vector<128x128xf32> -> vector<128x128xf32>
    %c0_294 = arith.constant 0 : index
    %c0_295 = arith.constant 0 : index
    %725 = vector.load %arg8[%c0_294, %c0_295] : memref<1x128xf32, #tpu.memory_space<vmem>>, vector<1x128xf32>
    %726 = vector.broadcast %725 : vector<1x128xf32> to vector<128x128xf32>
    %727 = arith.addf %724, %726 : vector<128x128xf32>
    %728 = vector.shape_cast %727 : vector<128x128xf32> to vector<8x16x128xf32>
    %c0_296 = arith.constant 0 : index
    %c0_297 = arith.constant 0 : index
    %c0_298 = arith.constant 0 : index
    %729 = vector.load %arg9[%c0_296, %c0_297, %c0_298] : memref<8x16x128xf32, #tpu.memory_space<vmem>>, vector<8x16x128xf32>
    tpu.vector_store %arg9[%c0_296, %c0_297, %c0_298], %728 {strides = array<i32>} : memref<8x16x128xf32, #tpu.memory_space<vmem>>, vector<8x16x128xf32>,
    return
  }
  func.func @transform_0(%arg0: i32) -> (i32, i32, i32) {
    %c0_i32 = arith.constant 0 : i32
    %c0_i32_0 = arith.constant 0 : i32
    %c0_i32_1 = arith.constant 0 : i32
    return %arg0, %c0_i32, %c0_i32_0 : i32, i32, i32
  }
  func.func @transform_1(%arg0: i32) -> (i32, i32, i32) {
    %c0_i32 = arith.constant 0 : i32
    %c0_i32_0 = arith.constant 0 : i32
    %c0_i32_1 = arith.constant 0 : i32
    %c0_i32_2 = arith.constant 0 : i32
    return %c0_i32, %c0_i32_0, %c0_i32_1 : i32, i32, i32
  }
  func.func @transform_2(%arg0: i32) -> (i32, i32, i32) {
    %c0_i32 = arith.constant 0 : i32
    %c0_i32_0 = arith.constant 0 : i32
    %c0_i32_1 = arith.constant 0 : i32
    %c0_i32_2 = arith.constant 0 : i32
    return %c0_i32, %c0_i32_0, %c0_i32_1 : i32, i32, i32
  }
  func.func @transform_3(%arg0: i32) -> (i32, i32, i32) {
    %c0_i32 = arith.constant 0 : i32
    %c0_i32_0 = arith.constant 0 : i32
    %c0_i32_1 = arith.constant 0 : i32
    %c0_i32_2 = arith.constant 0 : i32
    return %c0_i32, %c0_i32_0, %c0_i32_1 : i32, i32, i32
  }
  func.func @transform_4(%arg0: i32) -> (i32, i32, i32) {
    %c0_i32 = arith.constant 0 : i32
    %c0_i32_0 = arith.constant 0 : i32
    %c0_i32_1 = arith.constant 0 : i32
    %c0_i32_2 = arith.constant 0 : i32
    return %c0_i32, %c0_i32_0, %c0_i32_1 : i32, i32, i32
  }
  func.func @transform_5(%arg0: i32) -> (i32, i32, i32) {
    %c0_i32 = arith.constant 0 : i32
    %c0_i32_0 = arith.constant 0 : i32
    %c0_i32_1 = arith.constant 0 : i32
    %c0_i32_2 = arith.constant 0 : i32
    return %c0_i32, %c0_i32_0, %c0_i32_1 : i32, i32, i32
  }
  func.func @transform_6(%arg0: i32) -> (i32, i32) {
    %c0_i32 = arith.constant 0 : i32
    %c0_i32_0 = arith.constant 0 : i32
    %c0_i32_1 = arith.constant 0 : i32
    return %c0_i32, %c0_i32_0 : i32, i32
  }
  func.func @transform_7(%arg0: i32) -> (i32, i32) {
    %c0_i32 = arith.constant 0 : i32
    %c0_i32_0 = arith.constant 0 : i32
    %c0_i32_1 = arith.constant 0 : i32
    return %c0_i32, %c0_i32_0 : i32, i32
  }
  func.func @transform_8(%arg0: i32) -> (i32, i32, i32) {
    %c0_i32 = arith.constant 0 : i32
    %c0_i32_0 = arith.constant 0 : i32
    %c0_i32_1 = arith.constant 0 : i32
    return %arg0, %c0_i32, %c0_i32_0 : i32, i32, i32
  }
  func.func @transform_9(%arg0: i32) -> (i32, i32, i32) {
    %c0_i32 = arith.constant 0 : i32
    %c0_i32_0 = arith.constant 0 : i32
    %c0_i32_1 = arith.constant 0 : i32
    %c0_i32_2 = arith.constant 0 : i32
    return %c0_i32, %c0_i32_0, %c0_i32_1 : i32, i32, i32
  }
  func.func @transform_10(%arg0: i32) -> (i32, i32, i32) {
    %c0_i32 = arith.constant 0 : i32
    %c0_i32_0 = arith.constant 0 : i32
    %c0_i32_1 = arith.constant 0 : i32
    %c0_i32_2 = arith.constant 0 : i32
    return %c0_i32, %c0_i32_0, %c0_i32_1 : i32, i32, i32
  }
}

module attributes {stable_mosaic.version = 11 : i64} {
  func.func @_fused_lstm_linear_kernel(%arg0: i32, %arg1: memref<8x16x128xbf16, #tpu.memory_space<vmem>>, %arg2: memref<2x128x512xbf16, #tpu.memory_space<vmem>>, %arg3: memref<2x128x512xbf16, #tpu.memory_space<vmem>>, %arg4: memref<2x1x512xf32, #tpu.memory_space<vmem>>, %arg5: memref<2x16x128xf32, #tpu.memory_space<vmem>>, %arg6: memref<2x16x128xf32, #tpu.memory_space<vmem>>, %arg7: memref<128x128xbf16, #tpu.memory_space<vmem>>, %arg8: memref<1x128xf32, #tpu.memory_space<vmem>>, %arg9: memref<8x16x128xf32, #tpu.memory_space<vmem>>, %arg10: memref<2x16x128xf32, #tpu.memory_space<vmem>>, %arg11: memref<2x16x128xf32, #tpu.memory_space<vmem>>, %arg12: memref<8x16x128xbf16, #tpu.memory_space<vmem>>, %arg13: memref<8x16x512xf32, #tpu.memory_space<vmem>>) attributes {dimension_semantics = [#tpu.dimension_semantics<arbitrary>], iteration_bounds = array<i64: 1>, scalar_prefetch = 0 : i64, scratch_operands = 2 : i64, tpu.core_type = #tpu.core_type<tc>, window_params = [{transform_indices = @transform_0, window_bounds = array<i64: 8, 16, 128>}, {pipeline_mode = #tpu.pipeline_mode<synchronous>, transform_indices = @transform_1, window_bounds = array<i64: 2, 128, 512>}, {pipeline_mode = #tpu.pipeline_mode<synchronous>, transform_indices = @transform_2, window_bounds = array<i64: 2, 128, 512>}, {pipeline_mode = #tpu.pipeline_mode<synchronous>, transform_indices = @transform_3, window_bounds = array<i64: 2, 1, 512>}, {pipeline_mode = #tpu.pipeline_mode<synchronous>, transform_indices = @transform_4, window_bounds = array<i64: 2, 16, 128>}, {pipeline_mode = #tpu.pipeline_mode<synchronous>, transform_indices = @transform_5, window_bounds = array<i64: 2, 16, 128>}, {pipeline_mode = #tpu.pipeline_mode<synchronous>, transform_indices = @transform_6, window_bounds = array<i64: 128, 128>}, {pipeline_mode = #tpu.pipeline_mode<synchronous>, transform_indices = @transform_7, window_bounds = array<i64: 1, 128>}, {transform_indices = @transform_8, window_bounds = array<i64: 8, 16, 128>}, {pipeline_mode = #tpu.pipeline_mode<synchronous>, transform_indices = @transform_9, window_bounds = array<i64: 2, 16, 128>}, {pipeline_mode = #tpu.pipeline_mode<synchronous>, transform_indices = @transform_10, window_bounds = array<i64: 2, 16, 128>}]} {
    %c0_i32 = arith.constant 0 : i32
    %0 = arith.cmpi eq, %arg0, %c0_i32 : i32
    %1 = arith.extui %0 : i1 to i32
    %c0_i32_0 = arith.constant 0 : i32
    %2 = arith.cmpi ne, %1, %c0_i32_0 : i32
    scf.if %2 {
      %c0_299 = arith.constant 0 : index
      %c0_300 = arith.constant 0 : index
      %c0_301 = arith.constant 0 : index
      %730 = vector.load %arg5[%c0_299, %c0_300, %c0_301] : memref<2x16x128xf32, #tpu.memory_space<vmem>>, vector<2x16x128xf32>
      %c0_302 = arith.constant 0 : index
      %c0_303 = arith.constant 0 : index
      %c0_304 = arith.constant 0 : index
      %731 = vector.load %arg10[%c0_302, %c0_303, %c0_304] : memref<2x16x128xf32, #tpu.memory_space<vmem>>, vector<2x16x128xf32>
      tpu.vector_store %arg10[%c0_302, %c0_303, %c0_304], %730 {strides = array<i32>} : memref<2x16x128xf32, #tpu.memory_space<vmem>>, vector<2x16x128xf32>,
      %c0_305 = arith.constant 0 : index
      %c0_306 = arith.constant 0 : index
      %c0_307 = arith.constant 0 : index
      %732 = vector.load %arg6[%c0_305, %c0_306, %c0_307] : memref<2x16x128xf32, #tpu.memory_space<vmem>>, vector<2x16x128xf32>
      %c0_308 = arith.constant 0 : index
      %c0_309 = arith.constant 0 : index
      %c0_310 = arith.constant 0 : index
      %733 = vector.load %arg11[%c0_308, %c0_309, %c0_310] : memref<2x16x128xf32, #tpu.memory_space<vmem>>, vector<2x16x128xf32>
      tpu.vector_store %arg11[%c0_308, %c0_309, %c0_310], %732 {strides = array<i32>} : memref<2x16x128xf32, #tpu.memory_space<vmem>>, vector<2x16x128xf32>,
    } else {
    }
    %c0 = arith.constant 0 : index
    %c0_1 = arith.constant 0 : index
    %c0_2 = arith.constant 0 : index
    %3 = vector.load %arg1[%c0, %c0_1, %c0_2] : memref<8x16x128xbf16, #tpu.memory_space<vmem>>, vector<8x16x128xbf16>
    %4 = vector.shape_cast %3 : vector<8x16x128xbf16> to vector<128x128xbf16>
    %c0_3 = arith.constant 0 : index
    %c0_4 = arith.constant 0 : index
    %c0_5 = arith.constant 0 : index
    %5 = vector.load %arg2[%c0_3, %c0_4, %c0_5] : memref<2x128x512xbf16, #tpu.memory_space<vmem>>, vector<1x128x512xbf16>
    %6 = vector.shape_cast %5 : vector<1x128x512xbf16> to vector<128x512xbf16>
    %cst = arith.constant dense<0.000000e+00> : vector<128x512xf32>
    %7 = tpu.matmul %4, %6, %cst {dimension_numbers = #tpu.dot_dimension_numbers<[1], [0], [0], [1], [0, 0, 1, 1], [], []>} : vector<128x128xbf16>, vector<128x512xbf16>, vector<128x512xf32> -> vector<128x512xf32>
    %c0_6 = arith.constant 0 : index
    %c0_7 = arith.constant 0 : index
    %c0_8 = arith.constant 0 : index
    %8 = vector.load %arg4[%c0_6, %c0_7, %c0_8] : memref<2x1x512xf32, #tpu.memory_space<vmem>>, vector<1x1x512xf32>
    %9 = vector.shape_cast %8 : vector<1x1x512xf32> to vector<1x512xf32>
    %10 = vector.broadcast %9 : vector<1x512xf32> to vector<128x512xf32>
    %11 = arith.addf %7, %10 : vector<128x512xf32>
    %12 = vector.shape_cast %11 : vector<128x512xf32> to vector<8x16x512xf32>
    %c0_9 = arith.constant 0 : index
    %c0_10 = arith.constant 0 : index
    %c0_11 = arith.constant 0 : index
    %13 = vector.load %arg13[%c0_9, %c0_10, %c0_11] : memref<8x16x512xf32, #tpu.memory_space<vmem>>, vector<8x16x512xf32>
    tpu.vector_store %arg13[%c0_9, %c0_10, %c0_11], %12 {strides = array<i32>} : memref<8x16x512xf32, #tpu.memory_space<vmem>>, vector<8x16x512xf32>,
    %c0_12 = arith.constant 0 : index
    %c0_13 = arith.constant 0 : index
    %c0_14 = arith.constant 0 : index
    %14 = vector.load %arg3[%c0_12, %c0_13, %c0_14] : memref<2x128x512xbf16, #tpu.memory_space<vmem>>, vector<1x128x512xbf16>
    %15 = vector.shape_cast %14 : vector<1x128x512xbf16> to vector<128x512xbf16>
    %c0_15 = arith.constant 0 : index
    %c0_16 = arith.constant 0 : index
    %c0_17 = arith.constant 0 : index
    %16 = vector.load %arg10[%c0_15, %c0_16, %c0_17] : memref<2x16x128xf32, #tpu.memory_space<vmem>>, vector<1x16x128xf32>
    %17 = vector.shape_cast %16 : vector<1x16x128xf32> to vector<16x128xf32>
    %c0_18 = arith.constant 0 : index
    %c0_19 = arith.constant 0 : index
    %c0_20 = arith.constant 0 : index
    %18 = vector.load %arg11[%c0_18, %c0_19, %c0_20] : memref<2x16x128xf32, #tpu.memory_space<vmem>>, vector<1x16x128xf32>
    %19 = vector.shape_cast %18 : vector<1x16x128xf32> to vector<16x128xf32>
    %c0_i32_21 = arith.constant 0 : i32
    %20 = arith.index_cast %c0_i32_21 : i32 to index
    %c0_22 = arith.constant 0 : index
    %c0_23 = arith.constant 0 : index
    %21 = vector.load %arg13[%20, %c0_22, %c0_23] : memref<8x16x512xf32, #tpu.memory_space<vmem>>, vector<1x16x512xf32>
    %22 = vector.shape_cast %21 : vector<1x16x512xf32> to vector<16x512xf32>
    %23 = arith.truncf %17 : vector<16x128xf32> to vector<16x128xbf16>
    %cst_24 = arith.constant dense<0.000000e+00> : vector<16x512xf32>
    %24 = tpu.matmul %23, %15, %cst_24 {dimension_numbers = #tpu.dot_dimension_numbers<[1], [0], [0], [1], [0, 0, 1, 1], [], []>} : vector<16x128xbf16>, vector<128x512xbf16>, vector<16x512xf32> -> vector<16x512xf32>
    %25 = arith.addf %22, %24 : vector<16x512xf32>
    %26 = vector.extract_strided_slice %25 {offsets = [0, 0], sizes = [16, 128], strides = [1, 1]} : vector<16x512xf32> to vector<16x128xf32>
    %cst_25 = arith.constant 5.000000e-01 : f32
    %27 = vector.broadcast %cst_25 : f32 to vector<16x128xf32>
    %28 = arith.mulf %27, %26 : vector<16x128xf32>
    %29 = math.tanh %28 : vector<16x128xf32>
    %cst_26 = arith.constant 5.000000e-01 : f32
    %30 = vector.broadcast %cst_26 : f32 to vector<16x128xf32>
    %31 = arith.mulf %30, %29 : vector<16x128xf32>
    %cst_27 = arith.constant 5.000000e-01 : f32
    %32 = vector.broadcast %cst_27 : f32 to vector<16x128xf32>
    %33 = arith.addf %31, %32 : vector<16x128xf32>
    %34 = vector.extract_strided_slice %25 {offsets = [0, 128], sizes = [16, 128], strides = [1, 1]} : vector<16x512xf32> to vector<16x128xf32>
    %cst_28 = arith.constant 5.000000e-01 : f32
    %35 = vector.broadcast %cst_28 : f32 to vector<16x128xf32>
    %36 = arith.mulf %35, %34 : vector<16x128xf32>
    %37 = math.tanh %36 : vector<16x128xf32>
    %cst_29 = arith.constant 5.000000e-01 : f32
    %38 = vector.broadcast %cst_29 : f32 to vector<16x128xf32>
    %39 = arith.mulf %38, %37 : vector<16x128xf32>
    %cst_30 = arith.constant 5.000000e-01 : f32
    %40 = vector.broadcast %cst_30 : f32 to vector<16x128xf32>
    %41 = arith.addf %39, %40 : vector<16x128xf32>
    %42 = vector.extract_strided_slice %25 {offsets = [0, 256], sizes = [16, 128], strides = [1, 1]} : vector<16x512xf32> to vector<16x128xf32>
    %43 = math.tanh %42 : vector<16x128xf32>
    %44 = vector.extract_strided_slice %25 {offsets = [0, 384], sizes = [16, 128], strides = [1, 1]} : vector<16x512xf32> to vector<16x128xf32>
    %cst_31 = arith.constant 5.000000e-01 : f32
    %45 = vector.broadcast %cst_31 : f32 to vector<16x128xf32>
    %46 = arith.mulf %45, %44 : vector<16x128xf32>
    %47 = math.tanh %46 : vector<16x128xf32>
    %cst_32 = arith.constant 5.000000e-01 : f32
    %48 = vector.broadcast %cst_32 : f32 to vector<16x128xf32>
    %49 = arith.mulf %48, %47 : vector<16x128xf32>
    %cst_33 = arith.constant 5.000000e-01 : f32
    %50 = vector.broadcast %cst_33 : f32 to vector<16x128xf32>
    %51 = arith.addf %49, %50 : vector<16x128xf32>
    %52 = arith.mulf %41, %19 : vector<16x128xf32>
    %53 = arith.mulf %33, %43 : vector<16x128xf32>
    %54 = arith.addf %52, %53 : vector<16x128xf32>
    %55 = math.tanh %54 : vector<16x128xf32>
    %56 = arith.mulf %51, %55 : vector<16x128xf32>
    %57 = arith.truncf %56 : vector<16x128xf32> to vector<16x128xbf16>
    %58 = arith.index_cast %c0_i32_21 : i32 to index
    %c0_34 = arith.constant 0 : index
    %c0_35 = arith.constant 0 : index
    %59 = vector.load %arg12[%58, %c0_34, %c0_35] : memref<8x16x128xbf16, #tpu.memory_space<vmem>>, vector<1x16x128xbf16>
    %60 = vector.shape_cast %59 : vector<1x16x128xbf16> to vector<16x128xbf16>
    %61 = vector.shape_cast %57 : vector<16x128xbf16> to vector<1x16x128xbf16>
    tpu.vector_store %arg12[%58, %c0_34, %c0_35], %61 {strides = array<i32>} : memref<8x16x128xbf16, #tpu.memory_space<vmem>>, vector<1x16x128xbf16>,
    %c1_i32 = arith.constant 1 : i32
    %62 = arith.index_cast %c1_i32 : i32 to index
    %c0_36 = arith.constant 0 : index
    %c0_37 = arith.constant 0 : index
    %63 = vector.load %arg13[%62, %c0_36, %c0_37] : memref<8x16x512xf32, #tpu.memory_space<vmem>>, vector<1x16x512xf32>
    %64 = vector.shape_cast %63 : vector<1x16x512xf32> to vector<16x512xf32>
    %65 = arith.truncf %56 : vector<16x128xf32> to vector<16x128xbf16>
    %cst_38 = arith.constant dense<0.000000e+00> : vector<16x512xf32>
    %66 = tpu.matmul %65, %15, %cst_38 {dimension_numbers = #tpu.dot_dimension_numbers<[1], [0], [0], [1], [0, 0, 1, 1], [], []>} : vector<16x128xbf16>, vector<128x512xbf16>, vector<16x512xf32> -> vector<16x512xf32>
    %67 = arith.addf %64, %66 : vector<16x512xf32>
    %68 = vector.extract_strided_slice %67 {offsets = [0, 0], sizes = [16, 128], strides = [1, 1]} : vector<16x512xf32> to vector<16x128xf32>
    %cst_39 = arith.constant 5.000000e-01 : f32
    %69 = vector.broadcast %cst_39 : f32 to vector<16x128xf32>
    %70 = arith.mulf %69, %68 : vector<16x128xf32>
    %71 = math.tanh %70 : vector<16x128xf32>
    %cst_40 = arith.constant 5.000000e-01 : f32
    %72 = vector.broadcast %cst_40 : f32 to vector<16x128xf32>
    %73 = arith.mulf %72, %71 : vector<16x128xf32>
    %cst_41 = arith.constant 5.000000e-01 : f32
    %74 = vector.broadcast %cst_41 : f32 to vector<16x128xf32>
    %75 = arith.addf %73, %74 : vector<16x128xf32>
    %76 = vector.extract_strided_slice %67 {offsets = [0, 128], sizes = [16, 128], strides = [1, 1]} : vector<16x512xf32> to vector<16x128xf32>
    %cst_42 = arith.constant 5.000000e-01 : f32
    %77 = vector.broadcast %cst_42 : f32 to vector<16x128xf32>
    %78 = arith.mulf %77, %76 : vector<16x128xf32>
    %79 = math.tanh %78 : vector<16x128xf32>
    %cst_43 = arith.constant 5.000000e-01 : f32
    %80 = vector.broadcast %cst_43 : f32 to vector<16x128xf32>
    %81 = arith.mulf %80, %79 : vector<16x128xf32>
    %cst_44 = arith.constant 5.000000e-01 : f32
    %82 = vector.broadcast %cst_44 : f32 to vector<16x128xf32>
    %83 = arith.addf %81, %82 : vector<16x128xf32>
    %84 = vector.extract_strided_slice %67 {offsets = [0, 256], sizes = [16, 128], strides = [1, 1]} : vector<16x512xf32> to vector<16x128xf32>
    %85 = math.tanh %84 : vector<16x128xf32>
    %86 = vector.extract_strided_slice %67 {offsets = [0, 384], sizes = [16, 128], strides = [1, 1]} : vector<16x512xf32> to vector<16x128xf32>
    %cst_45 = arith.constant 5.000000e-01 : f32
    %87 = vector.broadcast %cst_45 : f32 to vector<16x128xf32>
    %88 = arith.mulf %87, %86 : vector<16x128xf32>
    %89 = math.tanh %88 : vector<16x128xf32>
    %cst_46 = arith.constant 5.000000e-01 : f32
    %90 = vector.broadcast %cst_46 : f32 to vector<16x128xf32>
    %91 = arith.mulf %90, %89 : vector<16x128xf32>
    %cst_47 = arith.constant 5.000000e-01 : f32
    %92 = vector.broadcast %cst_47 : f32 to vector<16x128xf32>
    %93 = arith.addf %91, %92 : vector<16x128xf32>
    %94 = arith.mulf %83, %54 : vector<16x128xf32>
    %95 = arith.mulf %75, %85 : vector<16x128xf32>
    %96 = arith.addf %94, %95 : vector<16x128xf32>
    %97 = math.tanh %96 : vector<16x128xf32>
    %98 = arith.mulf %93, %97 : vector<16x128xf32>
    %99 = arith.truncf %98 : vector<16x128xf32> to vector<16x128xbf16>
    %100 = arith.index_cast %c1_i32 : i32 to index
    %c0_48 = arith.constant 0 : index
    %c0_49 = arith.constant 0 : index
    %101 = vector.load %arg12[%100, %c0_48, %c0_49] : memref<8x16x128xbf16, #tpu.memory_space<vmem>>, vector<1x16x128xbf16>
    %102 = vector.shape_cast %101 : vector<1x16x128xbf16> to vector<16x128xbf16>
    %103 = vector.shape_cast %99 : vector<16x128xbf16> to vector<1x16x128xbf16>
    tpu.vector_store %arg12[%100, %c0_48, %c0_49], %103 {strides = array<i32>} : memref<8x16x128xbf16, #tpu.memory_space<vmem>>, vector<1x16x128xbf16>,
    %c2_i32 = arith.constant 2 : i32
    %104 = arith.index_cast %c2_i32 : i32 to index
    %c0_50 = arith.constant 0 : index
    %c0_51 = arith.constant 0 : index
    %105 = vector.load %arg13[%104, %c0_50, %c0_51] : memref<8x16x512xf32, #tpu.memory_space<vmem>>, vector<1x16x512xf32>
    %106 = vector.shape_cast %105 : vector<1x16x512xf32> to vector<16x512xf32>
    %107 = arith.truncf %98 : vector<16x128xf32> to vector<16x128xbf16>
    %cst_52 = arith.constant dense<0.000000e+00> : vector<16x512xf32>
    %108 = tpu.matmul %107, %15, %cst_52 {dimension_numbers = #tpu.dot_dimension_numbers<[1], [0], [0], [1], [0, 0, 1, 1], [], []>} : vector<16x128xbf16>, vector<128x512xbf16>, vector<16x512xf32> -> vector<16x512xf32>
    %109 = arith.addf %106, %108 : vector<16x512xf32>
    %110 = vector.extract_strided_slice %109 {offsets = [0, 0], sizes = [16, 128], strides = [1, 1]} : vector<16x512xf32> to vector<16x128xf32>
    %cst_53 = arith.constant 5.000000e-01 : f32
    %111 = vector.broadcast %cst_53 : f32 to vector<16x128xf32>
    %112 = arith.mulf %111, %110 : vector<16x128xf32>
    %113 = math.tanh %112 : vector<16x128xf32>
    %cst_54 = arith.constant 5.000000e-01 : f32
    %114 = vector.broadcast %cst_54 : f32 to vector<16x128xf32>
    %115 = arith.mulf %114, %113 : vector<16x128xf32>
    %cst_55 = arith.constant 5.000000e-01 : f32
    %116 = vector.broadcast %cst_55 : f32 to vector<16x128xf32>
    %117 = arith.addf %115, %116 : vector<16x128xf32>
    %118 = vector.extract_strided_slice %109 {offsets = [0, 128], sizes = [16, 128], strides = [1, 1]} : vector<16x512xf32> to vector<16x128xf32>
    %cst_56 = arith.constant 5.000000e-01 : f32
    %119 = vector.broadcast %cst_56 : f32 to vector<16x128xf32>
    %120 = arith.mulf %119, %118 : vector<16x128xf32>
    %121 = math.tanh %120 : vector<16x128xf32>
    %cst_57 = arith.constant 5.000000e-01 : f32
    %122 = vector.broadcast %cst_57 : f32 to vector<16x128xf32>
    %123 = arith.mulf %122, %121 : vector<16x128xf32>
    %cst_58 = arith.constant 5.000000e-01 : f32
    %124 = vector.broadcast %cst_58 : f32 to vector<16x128xf32>
    %125 = arith.addf %123, %124 : vector<16x128xf32>
    %126 = vector.extract_strided_slice %109 {offsets = [0, 256], sizes = [16, 128], strides = [1, 1]} : vector<16x512xf32> to vector<16x128xf32>
    %127 = math.tanh %126 : vector<16x128xf32>
    %128 = vector.extract_strided_slice %109 {offsets = [0, 384], sizes = [16, 128], strides = [1, 1]} : vector<16x512xf32> to vector<16x128xf32>
    %cst_59 = arith.constant 5.000000e-01 : f32
    %129 = vector.broadcast %cst_59 : f32 to vector<16x128xf32>
    %130 = arith.mulf %129, %128 : vector<16x128xf32>
    %131 = math.tanh %130 : vector<16x128xf32>
    %cst_60 = arith.constant 5.000000e-01 : f32
    %132 = vector.broadcast %cst_60 : f32 to vector<16x128xf32>
    %133 = arith.mulf %132, %131 : vector<16x128xf32>
    %cst_61 = arith.constant 5.000000e-01 : f32
    %134 = vector.broadcast %cst_61 : f32 to vector<16x128xf32>
    %135 = arith.addf %133, %134 : vector<16x128xf32>
    %136 = arith.mulf %125, %96 : vector<16x128xf32>
    %137 = arith.mulf %117, %127 : vector<16x128xf32>
    %138 = arith.addf %136, %137 : vector<16x128xf32>
    %139 = math.tanh %138 : vector<16x128xf32>
    %140 = arith.mulf %135, %139 : vector<16x128xf32>
    %141 = arith.truncf %140 : vector<16x128xf32> to vector<16x128xbf16>
    %142 = arith.index_cast %c2_i32 : i32 to index
    %c0_62 = arith.constant 0 : index
    %c0_63 = arith.constant 0 : index
    %143 = vector.load %arg12[%142, %c0_62, %c0_63] : memref<8x16x128xbf16, #tpu.memory_space<vmem>>, vector<1x16x128xbf16>
    %144 = vector.shape_cast %143 : vector<1x16x128xbf16> to vector<16x128xbf16>
    %145 = vector.shape_cast %141 : vector<16x128xbf16> to vector<1x16x128xbf16>
    tpu.vector_store %arg12[%142, %c0_62, %c0_63], %145 {strides = array<i32>} : memref<8x16x128xbf16, #tpu.memory_space<vmem>>, vector<1x16x128xbf16>,
    %c3_i32 = arith.constant 3 : i32
    %146 = arith.index_cast %c3_i32 : i32 to index
    %c0_64 = arith.constant 0 : index
    %c0_65 = arith.constant 0 : index
    %147 = vector.load %arg13[%146, %c0_64, %c0_65] : memref<8x16x512xf32, #tpu.memory_space<vmem>>, vector<1x16x512xf32>
    %148 = vector.shape_cast %147 : vector<1x16x512xf32> to vector<16x512xf32>
    %149 = arith.truncf %140 : vector<16x128xf32> to vector<16x128xbf16>
    %cst_66 = arith.constant dense<0.000000e+00> : vector<16x512xf32>
    %150 = tpu.matmul %149, %15, %cst_66 {dimension_numbers = #tpu.dot_dimension_numbers<[1], [0], [0], [1], [0, 0, 1, 1], [], []>} : vector<16x128xbf16>, vector<128x512xbf16>, vector<16x512xf32> -> vector<16x512xf32>
    %151 = arith.addf %148, %150 : vector<16x512xf32>
    %152 = vector.extract_strided_slice %151 {offsets = [0, 0], sizes = [16, 128], strides = [1, 1]} : vector<16x512xf32> to vector<16x128xf32>
    %cst_67 = arith.constant 5.000000e-01 : f32
    %153 = vector.broadcast %cst_67 : f32 to vector<16x128xf32>
    %154 = arith.mulf %153, %152 : vector<16x128xf32>
    %155 = math.tanh %154 : vector<16x128xf32>
    %cst_68 = arith.constant 5.000000e-01 : f32
    %156 = vector.broadcast %cst_68 : f32 to vector<16x128xf32>
    %157 = arith.mulf %156, %155 : vector<16x128xf32>
    %cst_69 = arith.constant 5.000000e-01 : f32
    %158 = vector.broadcast %cst_69 : f32 to vector<16x128xf32>
    %159 = arith.addf %157, %158 : vector<16x128xf32>
    %160 = vector.extract_strided_slice %151 {offsets = [0, 128], sizes = [16, 128], strides = [1, 1]} : vector<16x512xf32> to vector<16x128xf32>
    %cst_70 = arith.constant 5.000000e-01 : f32
    %161 = vector.broadcast %cst_70 : f32 to vector<16x128xf32>
    %162 = arith.mulf %161, %160 : vector<16x128xf32>
    %163 = math.tanh %162 : vector<16x128xf32>
    %cst_71 = arith.constant 5.000000e-01 : f32
    %164 = vector.broadcast %cst_71 : f32 to vector<16x128xf32>
    %165 = arith.mulf %164, %163 : vector<16x128xf32>
    %cst_72 = arith.constant 5.000000e-01 : f32
    %166 = vector.broadcast %cst_72 : f32 to vector<16x128xf32>
    %167 = arith.addf %165, %166 : vector<16x128xf32>
    %168 = vector.extract_strided_slice %151 {offsets = [0, 256], sizes = [16, 128], strides = [1, 1]} : vector<16x512xf32> to vector<16x128xf32>
    %169 = math.tanh %168 : vector<16x128xf32>
    %170 = vector.extract_strided_slice %151 {offsets = [0, 384], sizes = [16, 128], strides = [1, 1]} : vector<16x512xf32> to vector<16x128xf32>
    %cst_73 = arith.constant 5.000000e-01 : f32
    %171 = vector.broadcast %cst_73 : f32 to vector<16x128xf32>
    %172 = arith.mulf %171, %170 : vector<16x128xf32>
    %173 = math.tanh %172 : vector<16x128xf32>
    %cst_74 = arith.constant 5.000000e-01 : f32
    %174 = vector.broadcast %cst_74 : f32 to vector<16x128xf32>
    %175 = arith.mulf %174, %173 : vector<16x128xf32>
    %cst_75 = arith.constant 5.000000e-01 : f32
    %176 = vector.broadcast %cst_75 : f32 to vector<16x128xf32>
    %177 = arith.addf %175, %176 : vector<16x128xf32>
    %178 = arith.mulf %167, %138 : vector<16x128xf32>
    %179 = arith.mulf %159, %169 : vector<16x128xf32>
    %180 = arith.addf %178, %179 : vector<16x128xf32>
    %181 = math.tanh %180 : vector<16x128xf32>
    %182 = arith.mulf %177, %181 : vector<16x128xf32>
    %183 = arith.truncf %182 : vector<16x128xf32> to vector<16x128xbf16>
    %184 = arith.index_cast %c3_i32 : i32 to index
    %c0_76 = arith.constant 0 : index
    %c0_77 = arith.constant 0 : index
    %185 = vector.load %arg12[%184, %c0_76, %c0_77] : memref<8x16x128xbf16, #tpu.memory_space<vmem>>, vector<1x16x128xbf16>
    %186 = vector.shape_cast %185 : vector<1x16x128xbf16> to vector<16x128xbf16>
    %187 = vector.shape_cast %183 : vector<16x128xbf16> to vector<1x16x128xbf16>
    tpu.vector_store %arg12[%184, %c0_76, %c0_77], %187 {strides = array<i32>} : memref<8x16x128xbf16, #tpu.memory_space<vmem>>, vector<1x16x128xbf16>,
    %c4_i32 = arith.constant 4 : i32
    %188 = arith.index_cast %c4_i32 : i32 to index
    %c0_78 = arith.constant 0 : index
    %c0_79 = arith.constant 0 : index
    %189 = vector.load %arg13[%188, %c0_78, %c0_79] : memref<8x16x512xf32, #tpu.memory_space<vmem>>, vector<1x16x512xf32>
    %190 = vector.shape_cast %189 : vector<1x16x512xf32> to vector<16x512xf32>
    %191 = arith.truncf %182 : vector<16x128xf32> to vector<16x128xbf16>
    %cst_80 = arith.constant dense<0.000000e+00> : vector<16x512xf32>
    %192 = tpu.matmul %191, %15, %cst_80 {dimension_numbers = #tpu.dot_dimension_numbers<[1], [0], [0], [1], [0, 0, 1, 1], [], []>} : vector<16x128xbf16>, vector<128x512xbf16>, vector<16x512xf32> -> vector<16x512xf32>
    %193 = arith.addf %190, %192 : vector<16x512xf32>
    %194 = vector.extract_strided_slice %193 {offsets = [0, 0], sizes = [16, 128], strides = [1, 1]} : vector<16x512xf32> to vector<16x128xf32>
    %cst_81 = arith.constant 5.000000e-01 : f32
    %195 = vector.broadcast %cst_81 : f32 to vector<16x128xf32>
    %196 = arith.mulf %195, %194 : vector<16x128xf32>
    %197 = math.tanh %196 : vector<16x128xf32>
    %cst_82 = arith.constant 5.000000e-01 : f32
    %198 = vector.broadcast %cst_82 : f32 to vector<16x128xf32>
    %199 = arith.mulf %198, %197 : vector<16x128xf32>
    %cst_83 = arith.constant 5.000000e-01 : f32
    %200 = vector.broadcast %cst_83 : f32 to vector<16x128xf32>
    %201 = arith.addf %199, %200 : vector<16x128xf32>
    %202 = vector.extract_strided_slice %193 {offsets = [0, 128], sizes = [16, 128], strides = [1, 1]} : vector<16x512xf32> to vector<16x128xf32>
    %cst_84 = arith.constant 5.000000e-01 : f32
    %203 = vector.broadcast %cst_84 : f32 to vector<16x128xf32>
    %204 = arith.mulf %203, %202 : vector<16x128xf32>
    %205 = math.tanh %204 : vector<16x128xf32>
    %cst_85 = arith.constant 5.000000e-01 : f32
    %206 = vector.broadcast %cst_85 : f32 to vector<16x128xf32>
    %207 = arith.mulf %206, %205 : vector<16x128xf32>
    %cst_86 = arith.constant 5.000000e-01 : f32
    %208 = vector.broadcast %cst_86 : f32 to vector<16x128xf32>
    %209 = arith.addf %207, %208 : vector<16x128xf32>
    %210 = vector.extract_strided_slice %193 {offsets = [0, 256], sizes = [16, 128], strides = [1, 1]} : vector<16x512xf32> to vector<16x128xf32>
    %211 = math.tanh %210 : vector<16x128xf32>
    %212 = vector.extract_strided_slice %193 {offsets = [0, 384], sizes = [16, 128], strides = [1, 1]} : vector<16x512xf32> to vector<16x128xf32>
    %cst_87 = arith.constant 5.000000e-01 : f32
    %213 = vector.broadcast %cst_87 : f32 to vector<16x128xf32>
    %214 = arith.mulf %213, %212 : vector<16x128xf32>
    %215 = math.tanh %214 : vector<16x128xf32>
    %cst_88 = arith.constant 5.000000e-01 : f32
    %216 = vector.broadcast %cst_88 : f32 to vector<16x128xf32>
    %217 = arith.mulf %216, %215 : vector<16x128xf32>
    %cst_89 = arith.constant 5.000000e-01 : f32
    %218 = vector.broadcast %cst_89 : f32 to vector<16x128xf32>
    %219 = arith.addf %217, %218 : vector<16x128xf32>
    %220 = arith.mulf %209, %180 : vector<16x128xf32>
    %221 = arith.mulf %201, %211 : vector<16x128xf32>
    %222 = arith.addf %220, %221 : vector<16x128xf32>
    %223 = math.tanh %222 : vector<16x128xf32>
    %224 = arith.mulf %219, %223 : vector<16x128xf32>
    %225 = arith.truncf %224 : vector<16x128xf32> to vector<16x128xbf16>
    %226 = arith.index_cast %c4_i32 : i32 to index
    %c0_90 = arith.constant 0 : index
    %c0_91 = arith.constant 0 : index
    %227 = vector.load %arg12[%226, %c0_90, %c0_91] : memref<8x16x128xbf16, #tpu.memory_space<vmem>>, vector<1x16x128xbf16>
    %228 = vector.shape_cast %227 : vector<1x16x128xbf16> to vector<16x128xbf16>
    %229 = vector.shape_cast %225 : vector<16x128xbf16> to vector<1x16x128xbf16>
    tpu.vector_store %arg12[%226, %c0_90, %c0_91], %229 {strides = array<i32>} : memref<8x16x128xbf16, #tpu.memory_space<vmem>>, vector<1x16x128xbf16>,
    %c5_i32 = arith.constant 5 : i32
    %230 = arith.index_cast %c5_i32 : i32 to index
    %c0_92 = arith.constant 0 : index
    %c0_93 = arith.constant 0 : index
    %231 = vector.load %arg13[%230, %c0_92, %c0_93] : memref<8x16x512xf32, #tpu.memory_space<vmem>>, vector<1x16x512xf32>
    %232 = vector.shape_cast %231 : vector<1x16x512xf32> to vector<16x512xf32>
    %233 = arith.truncf %224 : vector<16x128xf32> to vector<16x128xbf16>
    %cst_94 = arith.constant dense<0.000000e+00> : vector<16x512xf32>
    %234 = tpu.matmul %233, %15, %cst_94 {dimension_numbers = #tpu.dot_dimension_numbers<[1], [0], [0], [1], [0, 0, 1, 1], [], []>} : vector<16x128xbf16>, vector<128x512xbf16>, vector<16x512xf32> -> vector<16x512xf32>
    %235 = arith.addf %232, %234 : vector<16x512xf32>
    %236 = vector.extract_strided_slice %235 {offsets = [0, 0], sizes = [16, 128], strides = [1, 1]} : vector<16x512xf32> to vector<16x128xf32>
    %cst_95 = arith.constant 5.000000e-01 : f32
    %237 = vector.broadcast %cst_95 : f32 to vector<16x128xf32>
    %238 = arith.mulf %237, %236 : vector<16x128xf32>
    %239 = math.tanh %238 : vector<16x128xf32>
    %cst_96 = arith.constant 5.000000e-01 : f32
    %240 = vector.broadcast %cst_96 : f32 to vector<16x128xf32>
    %241 = arith.mulf %240, %239 : vector<16x128xf32>
    %cst_97 = arith.constant 5.000000e-01 : f32
    %242 = vector.broadcast %cst_97 : f32 to vector<16x128xf32>
    %243 = arith.addf %241, %242 : vector<16x128xf32>
    %244 = vector.extract_strided_slice %235 {offsets = [0, 128], sizes = [16, 128], strides = [1, 1]} : vector<16x512xf32> to vector<16x128xf32>
    %cst_98 = arith.constant 5.000000e-01 : f32
    %245 = vector.broadcast %cst_98 : f32 to vector<16x128xf32>
    %246 = arith.mulf %245, %244 : vector<16x128xf32>
    %247 = math.tanh %246 : vector<16x128xf32>
    %cst_99 = arith.constant 5.000000e-01 : f32
    %248 = vector.broadcast %cst_99 : f32 to vector<16x128xf32>
    %249 = arith.mulf %248, %247 : vector<16x128xf32>
    %cst_100 = arith.constant 5.000000e-01 : f32
    %250 = vector.broadcast %cst_100 : f32 to vector<16x128xf32>
    %251 = arith.addf %249, %250 : vector<16x128xf32>
    %252 = vector.extract_strided_slice %235 {offsets = [0, 256], sizes = [16, 128], strides = [1, 1]} : vector<16x512xf32> to vector<16x128xf32>
    %253 = math.tanh %252 : vector<16x128xf32>
    %254 = vector.extract_strided_slice %235 {offsets = [0, 384], sizes = [16, 128], strides = [1, 1]} : vector<16x512xf32> to vector<16x128xf32>
    %cst_101 = arith.constant 5.000000e-01 : f32
    %255 = vector.broadcast %cst_101 : f32 to vector<16x128xf32>
    %256 = arith.mulf %255, %254 : vector<16x128xf32>
    %257 = math.tanh %256 : vector<16x128xf32>
    %cst_102 = arith.constant 5.000000e-01 : f32
    %258 = vector.broadcast %cst_102 : f32 to vector<16x128xf32>
    %259 = arith.mulf %258, %257 : vector<16x128xf32>
    %cst_103 = arith.constant 5.000000e-01 : f32
    %260 = vector.broadcast %cst_103 : f32 to vector<16x128xf32>
    %261 = arith.addf %259, %260 : vector<16x128xf32>
    %262 = arith.mulf %251, %222 : vector<16x128xf32>
    %263 = arith.mulf %243, %253 : vector<16x128xf32>
    %264 = arith.addf %262, %263 : vector<16x128xf32>
    %265 = math.tanh %264 : vector<16x128xf32>
    %266 = arith.mulf %261, %265 : vector<16x128xf32>
    %267 = arith.truncf %266 : vector<16x128xf32> to vector<16x128xbf16>
    %268 = arith.index_cast %c5_i32 : i32 to index
    %c0_104 = arith.constant 0 : index
    %c0_105 = arith.constant 0 : index
    %269 = vector.load %arg12[%268, %c0_104, %c0_105] : memref<8x16x128xbf16, #tpu.memory_space<vmem>>, vector<1x16x128xbf16>
    %270 = vector.shape_cast %269 : vector<1x16x128xbf16> to vector<16x128xbf16>
    %271 = vector.shape_cast %267 : vector<16x128xbf16> to vector<1x16x128xbf16>
    tpu.vector_store %arg12[%268, %c0_104, %c0_105], %271 {strides = array<i32>} : memref<8x16x128xbf16, #tpu.memory_space<vmem>>, vector<1x16x128xbf16>,
    %c6_i32 = arith.constant 6 : i32
    %272 = arith.index_cast %c6_i32 : i32 to index
    %c0_106 = arith.constant 0 : index
    %c0_107 = arith.constant 0 : index
    %273 = vector.load %arg13[%272, %c0_106, %c0_107] : memref<8x16x512xf32, #tpu.memory_space<vmem>>, vector<1x16x512xf32>
    %274 = vector.shape_cast %273 : vector<1x16x512xf32> to vector<16x512xf32>
    %275 = arith.truncf %266 : vector<16x128xf32> to vector<16x128xbf16>
    %cst_108 = arith.constant dense<0.000000e+00> : vector<16x512xf32>
    %276 = tpu.matmul %275, %15, %cst_108 {dimension_numbers = #tpu.dot_dimension_numbers<[1], [0], [0], [1], [0, 0, 1, 1], [], []>} : vector<16x128xbf16>, vector<128x512xbf16>, vector<16x512xf32> -> vector<16x512xf32>
    %277 = arith.addf %274, %276 : vector<16x512xf32>
    %278 = vector.extract_strided_slice %277 {offsets = [0, 0], sizes = [16, 128], strides = [1, 1]} : vector<16x512xf32> to vector<16x128xf32>
    %cst_109 = arith.constant 5.000000e-01 : f32
    %279 = vector.broadcast %cst_109 : f32 to vector<16x128xf32>
    %280 = arith.mulf %279, %278 : vector<16x128xf32>
    %281 = math.tanh %280 : vector<16x128xf32>
    %cst_110 = arith.constant 5.000000e-01 : f32
    %282 = vector.broadcast %cst_110 : f32 to vector<16x128xf32>
    %283 = arith.mulf %282, %281 : vector<16x128xf32>
    %cst_111 = arith.constant 5.000000e-01 : f32
    %284 = vector.broadcast %cst_111 : f32 to vector<16x128xf32>
    %285 = arith.addf %283, %284 : vector<16x128xf32>
    %286 = vector.extract_strided_slice %277 {offsets = [0, 128], sizes = [16, 128], strides = [1, 1]} : vector<16x512xf32> to vector<16x128xf32>
    %cst_112 = arith.constant 5.000000e-01 : f32
    %287 = vector.broadcast %cst_112 : f32 to vector<16x128xf32>
    %288 = arith.mulf %287, %286 : vector<16x128xf32>
    %289 = math.tanh %288 : vector<16x128xf32>
    %cst_113 = arith.constant 5.000000e-01 : f32
    %290 = vector.broadcast %cst_113 : f32 to vector<16x128xf32>
    %291 = arith.mulf %290, %289 : vector<16x128xf32>
    %cst_114 = arith.constant 5.000000e-01 : f32
    %292 = vector.broadcast %cst_114 : f32 to vector<16x128xf32>
    %293 = arith.addf %291, %292 : vector<16x128xf32>
    %294 = vector.extract_strided_slice %277 {offsets = [0, 256], sizes = [16, 128], strides = [1, 1]} : vector<16x512xf32> to vector<16x128xf32>
    %295 = math.tanh %294 : vector<16x128xf32>
    %296 = vector.extract_strided_slice %277 {offsets = [0, 384], sizes = [16, 128], strides = [1, 1]} : vector<16x512xf32> to vector<16x128xf32>
    %cst_115 = arith.constant 5.000000e-01 : f32
    %297 = vector.broadcast %cst_115 : f32 to vector<16x128xf32>
    %298 = arith.mulf %297, %296 : vector<16x128xf32>
    %299 = math.tanh %298 : vector<16x128xf32>
    %cst_116 = arith.constant 5.000000e-01 : f32
    %300 = vector.broadcast %cst_116 : f32 to vector<16x128xf32>
    %301 = arith.mulf %300, %299 : vector<16x128xf32>
    %cst_117 = arith.constant 5.000000e-01 : f32
    %302 = vector.broadcast %cst_117 : f32 to vector<16x128xf32>
    %303 = arith.addf %301, %302 : vector<16x128xf32>
    %304 = arith.mulf %293, %264 : vector<16x128xf32>
    %305 = arith.mulf %285, %295 : vector<16x128xf32>
    %306 = arith.addf %304, %305 : vector<16x128xf32>
    %307 = math.tanh %306 : vector<16x128xf32>
    %308 = arith.mulf %303, %307 : vector<16x128xf32>
    %309 = arith.truncf %308 : vector<16x128xf32> to vector<16x128xbf16>
    %310 = arith.index_cast %c6_i32 : i32 to index
    %c0_118 = arith.constant 0 : index
    %c0_119 = arith.constant 0 : index
    %311 = vector.load %arg12[%310, %c0_118, %c0_119] : memref<8x16x128xbf16, #tpu.memory_space<vmem>>, vector<1x16x128xbf16>
    %312 = vector.shape_cast %311 : vector<1x16x128xbf16> to vector<16x128xbf16>
    %313 = vector.shape_cast %309 : vector<16x128xbf16> to vector<1x16x128xbf16>
    tpu.vector_store %arg12[%310, %c0_118, %c0_119], %313 {strides = array<i32>} : memref<8x16x128xbf16, #tpu.memory_space<vmem>>, vector<1x16x128xbf16>,
    %c7_i32 = arith.constant 7 : i32
    %314 = arith.index_cast %c7_i32 : i32 to index
    %c0_120 = arith.constant 0 : index
    %c0_121 = arith.constant 0 : index
    %315 = vector.load %arg13[%314, %c0_120, %c0_121] : memref<8x16x512xf32, #tpu.memory_space<vmem>>, vector<1x16x512xf32>
    %316 = vector.shape_cast %315 : vector<1x16x512xf32> to vector<16x512xf32>
    %317 = arith.truncf %308 : vector<16x128xf32> to vector<16x128xbf16>
    %cst_122 = arith.constant dense<0.000000e+00> : vector<16x512xf32>
    %318 = tpu.matmul %317, %15, %cst_122 {dimension_numbers = #tpu.dot_dimension_numbers<[1], [0], [0], [1], [0, 0, 1, 1], [], []>} : vector<16x128xbf16>, vector<128x512xbf16>, vector<16x512xf32> -> vector<16x512xf32>
    %319 = arith.addf %316, %318 : vector<16x512xf32>
    %320 = vector.extract_strided_slice %319 {offsets = [0, 0], sizes = [16, 128], strides = [1, 1]} : vector<16x512xf32> to vector<16x128xf32>
    %cst_123 = arith.constant 5.000000e-01 : f32
    %321 = vector.broadcast %cst_123 : f32 to vector<16x128xf32>
    %322 = arith.mulf %321, %320 : vector<16x128xf32>
    %323 = math.tanh %322 : vector<16x128xf32>
    %cst_124 = arith.constant 5.000000e-01 : f32
    %324 = vector.broadcast %cst_124 : f32 to vector<16x128xf32>
    %325 = arith.mulf %324, %323 : vector<16x128xf32>
    %cst_125 = arith.constant 5.000000e-01 : f32
    %326 = vector.broadcast %cst_125 : f32 to vector<16x128xf32>
    %327 = arith.addf %325, %326 : vector<16x128xf32>
    %328 = vector.extract_strided_slice %319 {offsets = [0, 128], sizes = [16, 128], strides = [1, 1]} : vector<16x512xf32> to vector<16x128xf32>
    %cst_126 = arith.constant 5.000000e-01 : f32
    %329 = vector.broadcast %cst_126 : f32 to vector<16x128xf32>
    %330 = arith.mulf %329, %328 : vector<16x128xf32>
    %331 = math.tanh %330 : vector<16x128xf32>
    %cst_127 = arith.constant 5.000000e-01 : f32
    %332 = vector.broadcast %cst_127 : f32 to vector<16x128xf32>
    %333 = arith.mulf %332, %331 : vector<16x128xf32>
    %cst_128 = arith.constant 5.000000e-01 : f32
    %334 = vector.broadcast %cst_128 : f32 to vector<16x128xf32>
    %335 = arith.addf %333, %334 : vector<16x128xf32>
    %336 = vector.extract_strided_slice %319 {offsets = [0, 256], sizes = [16, 128], strides = [1, 1]} : vector<16x512xf32> to vector<16x128xf32>
    %337 = math.tanh %336 : vector<16x128xf32>
    %338 = vector.extract_strided_slice %319 {offsets = [0, 384], sizes = [16, 128], strides = [1, 1]} : vector<16x512xf32> to vector<16x128xf32>
    %cst_129 = arith.constant 5.000000e-01 : f32
    %339 = vector.broadcast %cst_129 : f32 to vector<16x128xf32>
    %340 = arith.mulf %339, %338 : vector<16x128xf32>
    %341 = math.tanh %340 : vector<16x128xf32>
    %cst_130 = arith.constant 5.000000e-01 : f32
    %342 = vector.broadcast %cst_130 : f32 to vector<16x128xf32>
    %343 = arith.mulf %342, %341 : vector<16x128xf32>
    %cst_131 = arith.constant 5.000000e-01 : f32
    %344 = vector.broadcast %cst_131 : f32 to vector<16x128xf32>
    %345 = arith.addf %343, %344 : vector<16x128xf32>
    %346 = arith.mulf %335, %306 : vector<16x128xf32>
    %347 = arith.mulf %327, %337 : vector<16x128xf32>
    %348 = arith.addf %346, %347 : vector<16x128xf32>
    %349 = math.tanh %348 : vector<16x128xf32>
    %350 = arith.mulf %345, %349 : vector<16x128xf32>
    %351 = arith.truncf %350 : vector<16x128xf32> to vector<16x128xbf16>
    %352 = arith.index_cast %c7_i32 : i32 to index
    %c0_132 = arith.constant 0 : index
    %c0_133 = arith.constant 0 : index
    %353 = vector.load %arg12[%352, %c0_132, %c0_133] : memref<8x16x128xbf16, #tpu.memory_space<vmem>>, vector<1x16x128xbf16>
    %354 = vector.shape_cast %353 : vector<1x16x128xbf16> to vector<16x128xbf16>
    %355 = vector.shape_cast %351 : vector<16x128xbf16> to vector<1x16x128xbf16>
    tpu.vector_store %arg12[%352, %c0_132, %c0_133], %355 {strides = array<i32>} : memref<8x16x128xbf16, #tpu.memory_space<vmem>>, vector<1x16x128xbf16>,
    %c8_i32 = arith.constant 8 : i32
    %c0_134 = arith.constant 0 : index
    %c0_135 = arith.constant 0 : index
    %c0_136 = arith.constant 0 : index
    %356 = vector.load %arg10[%c0_134, %c0_135, %c0_136] : memref<2x16x128xf32, #tpu.memory_space<vmem>>, vector<1x16x128xf32>
    %357 = vector.shape_cast %356 : vector<1x16x128xf32> to vector<16x128xf32>
    %358 = vector.shape_cast %350 : vector<16x128xf32> to vector<1x16x128xf32>
    tpu.vector_store %arg10[%c0_134, %c0_135, %c0_136], %358 {strides = array<i32>} : memref<2x16x128xf32, #tpu.memory_space<vmem>>, vector<1x16x128xf32>,
    %c0_137 = arith.constant 0 : index
    %c0_138 = arith.constant 0 : index
    %c0_139 = arith.constant 0 : index
    %359 = vector.load %arg11[%c0_137, %c0_138, %c0_139] : memref<2x16x128xf32, #tpu.memory_space<vmem>>, vector<1x16x128xf32>
    %360 = vector.shape_cast %359 : vector<1x16x128xf32> to vector<16x128xf32>
    %361 = vector.shape_cast %348 : vector<16x128xf32> to vector<1x16x128xf32>
    tpu.vector_store %arg11[%c0_137, %c0_138, %c0_139], %361 {strides = array<i32>} : memref<2x16x128xf32, #tpu.memory_space<vmem>>, vector<1x16x128xf32>,
    %c0_140 = arith.constant 0 : index
    %c0_141 = arith.constant 0 : index
    %c0_142 = arith.constant 0 : index
    %362 = vector.load %arg12[%c0_140, %c0_141, %c0_142] : memref<8x16x128xbf16, #tpu.memory_space<vmem>>, vector<8x16x128xbf16>
    %363 = vector.shape_cast %362 : vector<8x16x128xbf16> to vector<128x128xbf16>
    %c1 = arith.constant 1 : index
    %c0_143 = arith.constant 0 : index
    %c0_144 = arith.constant 0 : index
    %364 = vector.load %arg2[%c1, %c0_143, %c0_144] : memref<2x128x512xbf16, #tpu.memory_space<vmem>>, vector<1x128x512xbf16>
    %365 = vector.shape_cast %364 : vector<1x128x512xbf16> to vector<128x512xbf16>
    %cst_145 = arith.constant dense<0.000000e+00> : vector<128x512xf32>
    %366 = tpu.matmul %363, %365, %cst_145 {dimension_numbers = #tpu.dot_dimension_numbers<[1], [0], [0], [1], [0, 0, 1, 1], [], []>} : vector<128x128xbf16>, vector<128x512xbf16>, vector<128x512xf32> -> vector<128x512xf32>
    %c1_146 = arith.constant 1 : index
    %c0_147 = arith.constant 0 : index
    %c0_148 = arith.constant 0 : index
    %367 = vector.load %arg4[%c1_146, %c0_147, %c0_148] : memref<2x1x512xf32, #tpu.memory_space<vmem>>, vector<1x1x512xf32>
    %368 = vector.shape_cast %367 : vector<1x1x512xf32> to vector<1x512xf32>
    %369 = vector.broadcast %368 : vector<1x512xf32> to vector<128x512xf32>
    %370 = arith.addf %366, %369 : vector<128x512xf32>
    %371 = vector.shape_cast %370 : vector<128x512xf32> to vector<8x16x512xf32>
    %c0_149 = arith.constant 0 : index
    %c0_150 = arith.constant 0 : index
    %c0_151 = arith.constant 0 : index
    %372 = vector.load %arg13[%c0_149, %c0_150, %c0_151] : memref<8x16x512xf32, #tpu.memory_space<vmem>>, vector<8x16x512xf32>
    tpu.vector_store %arg13[%c0_149, %c0_150, %c0_151], %371 {strides = array<i32>} : memref<8x16x512xf32, #tpu.memory_space<vmem>>, vector<8x16x512xf32>,
    %c1_152 = arith.constant 1 : index
    %c0_153 = arith.constant 0 : index
    %c0_154 = arith.constant 0 : index
    %373 = vector.load %arg3[%c1_152, %c0_153, %c0_154] : memref<2x128x512xbf16, #tpu.memory_space<vmem>>, vector<1x128x512xbf16>
    %374 = vector.shape_cast %373 : vector<1x128x512xbf16> to vector<128x512xbf16>
    %c1_155 = arith.constant 1 : index
    %c0_156 = arith.constant 0 : index
    %c0_157 = arith.constant 0 : index
    %375 = vector.load %arg10[%c1_155, %c0_156, %c0_157] : memref<2x16x128xf32, #tpu.memory_space<vmem>>, vector<1x16x128xf32>
    %376 = vector.shape_cast %375 : vector<1x16x128xf32> to vector<16x128xf32>
    %c1_158 = arith.constant 1 : index
    %c0_159 = arith.constant 0 : index
    %c0_160 = arith.constant 0 : index
    %377 = vector.load %arg11[%c1_158, %c0_159, %c0_160] : memref<2x16x128xf32, #tpu.memory_space<vmem>>, vector<1x16x128xf32>
    %378 = vector.shape_cast %377 : vector<1x16x128xf32> to vector<16x128xf32>
    %c0_i32_161 = arith.constant 0 : i32
    %379 = arith.index_cast %c0_i32_161 : i32 to index
    %c0_162 = arith.constant 0 : index
    %c0_163 = arith.constant 0 : index
    %380 = vector.load %arg13[%379, %c0_162, %c0_163] : memref<8x16x512xf32, #tpu.memory_space<vmem>>, vector<1x16x512xf32>
    %381 = vector.shape_cast %380 : vector<1x16x512xf32> to vector<16x512xf32>
    %382 = arith.truncf %376 : vector<16x128xf32> to vector<16x128xbf16>
    %cst_164 = arith.constant dense<0.000000e+00> : vector<16x512xf32>
    %383 = tpu.matmul %382, %374, %cst_164 {dimension_numbers = #tpu.dot_dimension_numbers<[1], [0], [0], [1], [0, 0, 1, 1], [], []>} : vector<16x128xbf16>, vector<128x512xbf16>, vector<16x512xf32> -> vector<16x512xf32>
    %384 = arith.addf %381, %383 : vector<16x512xf32>
    %385 = vector.extract_strided_slice %384 {offsets = [0, 0], sizes = [16, 128], strides = [1, 1]} : vector<16x512xf32> to vector<16x128xf32>
    %cst_165 = arith.constant 5.000000e-01 : f32
    %386 = vector.broadcast %cst_165 : f32 to vector<16x128xf32>
    %387 = arith.mulf %386, %385 : vector<16x128xf32>
    %388 = math.tanh %387 : vector<16x128xf32>
    %cst_166 = arith.constant 5.000000e-01 : f32
    %389 = vector.broadcast %cst_166 : f32 to vector<16x128xf32>
    %390 = arith.mulf %389, %388 : vector<16x128xf32>
    %cst_167 = arith.constant 5.000000e-01 : f32
    %391 = vector.broadcast %cst_167 : f32 to vector<16x128xf32>
    %392 = arith.addf %390, %391 : vector<16x128xf32>
    %393 = vector.extract_strided_slice %384 {offsets = [0, 128], sizes = [16, 128], strides = [1, 1]} : vector<16x512xf32> to vector<16x128xf32>
    %cst_168 = arith.constant 5.000000e-01 : f32
    %394 = vector.broadcast %cst_168 : f32 to vector<16x128xf32>
    %395 = arith.mulf %394, %393 : vector<16x128xf32>
    %396 = math.tanh %395 : vector<16x128xf32>
    %cst_169 = arith.constant 5.000000e-01 : f32
    %397 = vector.broadcast %cst_169 : f32 to vector<16x128xf32>
    %398 = arith.mulf %397, %396 : vector<16x128xf32>
    %cst_170 = arith.constant 5.000000e-01 : f32
    %399 = vector.broadcast %cst_170 : f32 to vector<16x128xf32>
    %400 = arith.addf %398, %399 : vector<16x128xf32>
    %401 = vector.extract_strided_slice %384 {offsets = [0, 256], sizes = [16, 128], strides = [1, 1]} : vector<16x512xf32> to vector<16x128xf32>
    %402 = math.tanh %401 : vector<16x128xf32>
    %403 = vector.extract_strided_slice %384 {offsets = [0, 384], sizes = [16, 128], strides = [1, 1]} : vector<16x512xf32> to vector<16x128xf32>
    %cst_171 = arith.constant 5.000000e-01 : f32
    %404 = vector.broadcast %cst_171 : f32 to vector<16x128xf32>
    %405 = arith.mulf %404, %403 : vector<16x128xf32>
    %406 = math.tanh %405 : vector<16x128xf32>
    %cst_172 = arith.constant 5.000000e-01 : f32
    %407 = vector.broadcast %cst_172 : f32 to vector<16x128xf32>
    %408 = arith.mulf %407, %406 : vector<16x128xf32>
    %cst_173 = arith.constant 5.000000e-01 : f32
    %409 = vector.broadcast %cst_173 : f32 to vector<16x128xf32>
    %410 = arith.addf %408, %409 : vector<16x128xf32>
    %411 = arith.mulf %400, %378 : vector<16x128xf32>
    %412 = arith.mulf %392, %402 : vector<16x128xf32>
    %413 = arith.addf %411, %412 : vector<16x128xf32>
    %414 = math.tanh %413 : vector<16x128xf32>
    %415 = arith.mulf %410, %414 : vector<16x128xf32>
    %416 = arith.truncf %415 : vector<16x128xf32> to vector<16x128xbf16>
    %417 = arith.index_cast %c0_i32_161 : i32 to index
    %c0_174 = arith.constant 0 : index
    %c0_175 = arith.constant 0 : index
    %418 = vector.load %arg12[%417, %c0_174, %c0_175] : memref<8x16x128xbf16, #tpu.memory_space<vmem>>, vector<1x16x128xbf16>
    %419 = vector.shape_cast %418 : vector<1x16x128xbf16> to vector<16x128xbf16>
    %420 = vector.shape_cast %416 : vector<16x128xbf16> to vector<1x16x128xbf16>
    tpu.vector_store %arg12[%417, %c0_174, %c0_175], %420 {strides = array<i32>} : memref<8x16x128xbf16, #tpu.memory_space<vmem>>, vector<1x16x128xbf16>,
    %c1_i32_176 = arith.constant 1 : i32
    %421 = arith.index_cast %c1_i32_176 : i32 to index
    %c0_177 = arith.constant 0 : index
    %c0_178 = arith.constant 0 : index
    %422 = vector.load %arg13[%421, %c0_177, %c0_178] : memref<8x16x512xf32, #tpu.memory_space<vmem>>, vector<1x16x512xf32>
    %423 = vector.shape_cast %422 : vector<1x16x512xf32> to vector<16x512xf32>
    %424 = arith.truncf %415 : vector<16x128xf32> to vector<16x128xbf16>
    %cst_179 = arith.constant dense<0.000000e+00> : vector<16x512xf32>
    %425 = tpu.matmul %424, %374, %cst_179 {dimension_numbers = #tpu.dot_dimension_numbers<[1], [0], [0], [1], [0, 0, 1, 1], [], []>} : vector<16x128xbf16>, vector<128x512xbf16>, vector<16x512xf32> -> vector<16x512xf32>
    %426 = arith.addf %423, %425 : vector<16x512xf32>
    %427 = vector.extract_strided_slice %426 {offsets = [0, 0], sizes = [16, 128], strides = [1, 1]} : vector<16x512xf32> to vector<16x128xf32>
    %cst_180 = arith.constant 5.000000e-01 : f32
    %428 = vector.broadcast %cst_180 : f32 to vector<16x128xf32>
    %429 = arith.mulf %428, %427 : vector<16x128xf32>
    %430 = math.tanh %429 : vector<16x128xf32>
    %cst_181 = arith.constant 5.000000e-01 : f32
    %431 = vector.broadcast %cst_181 : f32 to vector<16x128xf32>
    %432 = arith.mulf %431, %430 : vector<16x128xf32>
    %cst_182 = arith.constant 5.000000e-01 : f32
    %433 = vector.broadcast %cst_182 : f32 to vector<16x128xf32>
    %434 = arith.addf %432, %433 : vector<16x128xf32>
    %435 = vector.extract_strided_slice %426 {offsets = [0, 128], sizes = [16, 128], strides = [1, 1]} : vector<16x512xf32> to vector<16x128xf32>
    %cst_183 = arith.constant 5.000000e-01 : f32
    %436 = vector.broadcast %cst_183 : f32 to vector<16x128xf32>
    %437 = arith.mulf %436, %435 : vector<16x128xf32>
    %438 = math.tanh %437 : vector<16x128xf32>
    %cst_184 = arith.constant 5.000000e-01 : f32
    %439 = vector.broadcast %cst_184 : f32 to vector<16x128xf32>
    %440 = arith.mulf %439, %438 : vector<16x128xf32>
    %cst_185 = arith.constant 5.000000e-01 : f32
    %441 = vector.broadcast %cst_185 : f32 to vector<16x128xf32>
    %442 = arith.addf %440, %441 : vector<16x128xf32>
    %443 = vector.extract_strided_slice %426 {offsets = [0, 256], sizes = [16, 128], strides = [1, 1]} : vector<16x512xf32> to vector<16x128xf32>
    %444 = math.tanh %443 : vector<16x128xf32>
    %445 = vector.extract_strided_slice %426 {offsets = [0, 384], sizes = [16, 128], strides = [1, 1]} : vector<16x512xf32> to vector<16x128xf32>
    %cst_186 = arith.constant 5.000000e-01 : f32
    %446 = vector.broadcast %cst_186 : f32 to vector<16x128xf32>
    %447 = arith.mulf %446, %445 : vector<16x128xf32>
    %448 = math.tanh %447 : vector<16x128xf32>
    %cst_187 = arith.constant 5.000000e-01 : f32
    %449 = vector.broadcast %cst_187 : f32 to vector<16x128xf32>
    %450 = arith.mulf %449, %448 : vector<16x128xf32>
    %cst_188 = arith.constant 5.000000e-01 : f32
    %451 = vector.broadcast %cst_188 : f32 to vector<16x128xf32>
    %452 = arith.addf %450, %451 : vector<16x128xf32>
    %453 = arith.mulf %442, %413 : vector<16x128xf32>
    %454 = arith.mulf %434, %444 : vector<16x128xf32>
    %455 = arith.addf %453, %454 : vector<16x128xf32>
    %456 = math.tanh %455 : vector<16x128xf32>
    %457 = arith.mulf %452, %456 : vector<16x128xf32>
    %458 = arith.truncf %457 : vector<16x128xf32> to vector<16x128xbf16>
    %459 = arith.index_cast %c1_i32_176 : i32 to index
    %c0_189 = arith.constant 0 : index
    %c0_190 = arith.constant 0 : index
    %460 = vector.load %arg12[%459, %c0_189, %c0_190] : memref<8x16x128xbf16, #tpu.memory_space<vmem>>, vector<1x16x128xbf16>
    %461 = vector.shape_cast %460 : vector<1x16x128xbf16> to vector<16x128xbf16>
    %462 = vector.shape_cast %458 : vector<16x128xbf16> to vector<1x16x128xbf16>
    tpu.vector_store %arg12[%459, %c0_189, %c0_190], %462 {strides = array<i32>} : memref<8x16x128xbf16, #tpu.memory_space<vmem>>, vector<1x16x128xbf16>,
    %c2_i32_191 = arith.constant 2 : i32
    %463 = arith.index_cast %c2_i32_191 : i32 to index
    %c0_192 = arith.constant 0 : index
    %c0_193 = arith.constant 0 : index
    %464 = vector.load %arg13[%463, %c0_192, %c0_193] : memref<8x16x512xf32, #tpu.memory_space<vmem>>, vector<1x16x512xf32>
    %465 = vector.shape_cast %464 : vector<1x16x512xf32> to vector<16x512xf32>
    %466 = arith.truncf %457 : vector<16x128xf32> to vector<16x128xbf16>
    %cst_194 = arith.constant dense<0.000000e+00> : vector<16x512xf32>
    %467 = tpu.matmul %466, %374, %cst_194 {dimension_numbers = #tpu.dot_dimension_numbers<[1], [0], [0], [1], [0, 0, 1, 1], [], []>} : vector<16x128xbf16>, vector<128x512xbf16>, vector<16x512xf32> -> vector<16x512xf32>
    %468 = arith.addf %465, %467 : vector<16x512xf32>
    %469 = vector.extract_strided_slice %468 {offsets = [0, 0], sizes = [16, 128], strides = [1, 1]} : vector<16x512xf32> to vector<16x128xf32>
    %cst_195 = arith.constant 5.000000e-01 : f32
    %470 = vector.broadcast %cst_195 : f32 to vector<16x128xf32>
    %471 = arith.mulf %470, %469 : vector<16x128xf32>
    %472 = math.tanh %471 : vector<16x128xf32>
    %cst_196 = arith.constant 5.000000e-01 : f32
    %473 = vector.broadcast %cst_196 : f32 to vector<16x128xf32>
    %474 = arith.mulf %473, %472 : vector<16x128xf32>
    %cst_197 = arith.constant 5.000000e-01 : f32
    %475 = vector.broadcast %cst_197 : f32 to vector<16x128xf32>
    %476 = arith.addf %474, %475 : vector<16x128xf32>
    %477 = vector.extract_strided_slice %468 {offsets = [0, 128], sizes = [16, 128], strides = [1, 1]} : vector<16x512xf32> to vector<16x128xf32>
    %cst_198 = arith.constant 5.000000e-01 : f32
    %478 = vector.broadcast %cst_198 : f32 to vector<16x128xf32>
    %479 = arith.mulf %478, %477 : vector<16x128xf32>
    %480 = math.tanh %479 : vector<16x128xf32>
    %cst_199 = arith.constant 5.000000e-01 : f32
    %481 = vector.broadcast %cst_199 : f32 to vector<16x128xf32>
    %482 = arith.mulf %481, %480 : vector<16x128xf32>
    %cst_200 = arith.constant 5.000000e-01 : f32
    %483 = vector.broadcast %cst_200 : f32 to vector<16x128xf32>
    %484 = arith.addf %482, %483 : vector<16x128xf32>
    %485 = vector.extract_strided_slice %468 {offsets = [0, 256], sizes = [16, 128], strides = [1, 1]} : vector<16x512xf32> to vector<16x128xf32>
    %486 = math.tanh %485 : vector<16x128xf32>
    %487 = vector.extract_strided_slice %468 {offsets = [0, 384], sizes = [16, 128], strides = [1, 1]} : vector<16x512xf32> to vector<16x128xf32>
    %cst_201 = arith.constant 5.000000e-01 : f32
    %488 = vector.broadcast %cst_201 : f32 to vector<16x128xf32>
    %489 = arith.mulf %488, %487 : vector<16x128xf32>
    %490 = math.tanh %489 : vector<16x128xf32>
    %cst_202 = arith.constant 5.000000e-01 : f32
    %491 = vector.broadcast %cst_202 : f32 to vector<16x128xf32>
    %492 = arith.mulf %491, %490 : vector<16x128xf32>
    %cst_203 = arith.constant 5.000000e-01 : f32
    %493 = vector.broadcast %cst_203 : f32 to vector<16x128xf32>
    %494 = arith.addf %492, %493 : vector<16x128xf32>
    %495 = arith.mulf %484, %455 : vector<16x128xf32>
    %496 = arith.mulf %476, %486 : vector<16x128xf32>
    %497 = arith.addf %495, %496 : vector<16x128xf32>
    %498 = math.tanh %497 : vector<16x128xf32>
    %499 = arith.mulf %494, %498 : vector<16x128xf32>
    %500 = arith.truncf %499 : vector<16x128xf32> to vector<16x128xbf16>
    %501 = arith.index_cast %c2_i32_191 : i32 to index
    %c0_204 = arith.constant 0 : index
    %c0_205 = arith.constant 0 : index
    %502 = vector.load %arg12[%501, %c0_204, %c0_205] : memref<8x16x128xbf16, #tpu.memory_space<vmem>>, vector<1x16x128xbf16>
    %503 = vector.shape_cast %502 : vector<1x16x128xbf16> to vector<16x128xbf16>
    %504 = vector.shape_cast %500 : vector<16x128xbf16> to vector<1x16x128xbf16>
    tpu.vector_store %arg12[%501, %c0_204, %c0_205], %504 {strides = array<i32>} : memref<8x16x128xbf16, #tpu.memory_space<vmem>>, vector<1x16x128xbf16>,
    %c3_i32_206 = arith.constant 3 : i32
    %505 = arith.index_cast %c3_i32_206 : i32 to index
    %c0_207 = arith.constant 0 : index
    %c0_208 = arith.constant 0 : index
    %506 = vector.load %arg13[%505, %c0_207, %c0_208] : memref<8x16x512xf32, #tpu.memory_space<vmem>>, vector<1x16x512xf32>
    %507 = vector.shape_cast %506 : vector<1x16x512xf32> to vector<16x512xf32>
    %508 = arith.truncf %499 : vector<16x128xf32> to vector<16x128xbf16>
    %cst_209 = arith.constant dense<0.000000e+00> : vector<16x512xf32>
    %509 = tpu.matmul %508, %374, %cst_209 {dimension_numbers = #tpu.dot_dimension_numbers<[1], [0], [0], [1], [0, 0, 1, 1], [], []>} : vector<16x128xbf16>, vector<128x512xbf16>, vector<16x512xf32> -> vector<16x512xf32>
    %510 = arith.addf %507, %509 : vector<16x512xf32>
    %511 = vector.extract_strided_slice %510 {offsets = [0, 0], sizes = [16, 128], strides = [1, 1]} : vector<16x512xf32> to vector<16x128xf32>
    %cst_210 = arith.constant 5.000000e-01 : f32
    %512 = vector.broadcast %cst_210 : f32 to vector<16x128xf32>
    %513 = arith.mulf %512, %511 : vector<16x128xf32>
    %514 = math.tanh %513 : vector<16x128xf32>
    %cst_211 = arith.constant 5.000000e-01 : f32
    %515 = vector.broadcast %cst_211 : f32 to vector<16x128xf32>
    %516 = arith.mulf %515, %514 : vector<16x128xf32>
    %cst_212 = arith.constant 5.000000e-01 : f32
    %517 = vector.broadcast %cst_212 : f32 to vector<16x128xf32>
    %518 = arith.addf %516, %517 : vector<16x128xf32>
    %519 = vector.extract_strided_slice %510 {offsets = [0, 128], sizes = [16, 128], strides = [1, 1]} : vector<16x512xf32> to vector<16x128xf32>
    %cst_213 = arith.constant 5.000000e-01 : f32
    %520 = vector.broadcast %cst_213 : f32 to vector<16x128xf32>
    %521 = arith.mulf %520, %519 : vector<16x128xf32>
    %522 = math.tanh %521 : vector<16x128xf32>
    %cst_214 = arith.constant 5.000000e-01 : f32
    %523 = vector.broadcast %cst_214 : f32 to vector<16x128xf32>
    %524 = arith.mulf %523, %522 : vector<16x128xf32>
    %cst_215 = arith.constant 5.000000e-01 : f32
    %525 = vector.broadcast %cst_215 : f32 to vector<16x128xf32>
    %526 = arith.addf %524, %525 : vector<16x128xf32>
    %527 = vector.extract_strided_slice %510 {offsets = [0, 256], sizes = [16, 128], strides = [1, 1]} : vector<16x512xf32> to vector<16x128xf32>
    %528 = math.tanh %527 : vector<16x128xf32>
    %529 = vector.extract_strided_slice %510 {offsets = [0, 384], sizes = [16, 128], strides = [1, 1]} : vector<16x512xf32> to vector<16x128xf32>
    %cst_216 = arith.constant 5.000000e-01 : f32
    %530 = vector.broadcast %cst_216 : f32 to vector<16x128xf32>
    %531 = arith.mulf %530, %529 : vector<16x128xf32>
    %532 = math.tanh %531 : vector<16x128xf32>
    %cst_217 = arith.constant 5.000000e-01 : f32
    %533 = vector.broadcast %cst_217 : f32 to vector<16x128xf32>
    %534 = arith.mulf %533, %532 : vector<16x128xf32>
    %cst_218 = arith.constant 5.000000e-01 : f32
    %535 = vector.broadcast %cst_218 : f32 to vector<16x128xf32>
    %536 = arith.addf %534, %535 : vector<16x128xf32>
    %537 = arith.mulf %526, %497 : vector<16x128xf32>
    %538 = arith.mulf %518, %528 : vector<16x128xf32>
    %539 = arith.addf %537, %538 : vector<16x128xf32>
    %540 = math.tanh %539 : vector<16x128xf32>
    %541 = arith.mulf %536, %540 : vector<16x128xf32>
    %542 = arith.truncf %541 : vector<16x128xf32> to vector<16x128xbf16>
    %543 = arith.index_cast %c3_i32_206 : i32 to index
    %c0_219 = arith.constant 0 : index
    %c0_220 = arith.constant 0 : index
    %544 = vector.load %arg12[%543, %c0_219, %c0_220] : memref<8x16x128xbf16, #tpu.memory_space<vmem>>, vector<1x16x128xbf16>
    %545 = vector.shape_cast %544 : vector<1x16x128xbf16> to vector<16x128xbf16>
    %546 = vector.shape_cast %542 : vector<16x128xbf16> to vector<1x16x128xbf16>
    tpu.vector_store %arg12[%543, %c0_219, %c0_220], %546 {strides = array<i32>} : memref<8x16x128xbf16, #tpu.memory_space<vmem>>, vector<1x16x128xbf16>,
    %c4_i32_221 = arith.constant 4 : i32
    %547 = arith.index_cast %c4_i32_221 : i32 to index
    %c0_222 = arith.constant 0 : index
    %c0_223 = arith.constant 0 : index
    %548 = vector.load %arg13[%547, %c0_222, %c0_223] : memref<8x16x512xf32, #tpu.memory_space<vmem>>, vector<1x16x512xf32>
    %549 = vector.shape_cast %548 : vector<1x16x512xf32> to vector<16x512xf32>
    %550 = arith.truncf %541 : vector<16x128xf32> to vector<16x128xbf16>
    %cst_224 = arith.constant dense<0.000000e+00> : vector<16x512xf32>
    %551 = tpu.matmul %550, %374, %cst_224 {dimension_numbers = #tpu.dot_dimension_numbers<[1], [0], [0], [1], [0, 0, 1, 1], [], []>} : vector<16x128xbf16>, vector<128x512xbf16>, vector<16x512xf32> -> vector<16x512xf32>
    %552 = arith.addf %549, %551 : vector<16x512xf32>
    %553 = vector.extract_strided_slice %552 {offsets = [0, 0], sizes = [16, 128], strides = [1, 1]} : vector<16x512xf32> to vector<16x128xf32>
    %cst_225 = arith.constant 5.000000e-01 : f32
    %554 = vector.broadcast %cst_225 : f32 to vector<16x128xf32>
    %555 = arith.mulf %554, %553 : vector<16x128xf32>
    %556 = math.tanh %555 : vector<16x128xf32>
    %cst_226 = arith.constant 5.000000e-01 : f32
    %557 = vector.broadcast %cst_226 : f32 to vector<16x128xf32>
    %558 = arith.mulf %557, %556 : vector<16x128xf32>
    %cst_227 = arith.constant 5.000000e-01 : f32
    %559 = vector.broadcast %cst_227 : f32 to vector<16x128xf32>
    %560 = arith.addf %558, %559 : vector<16x128xf32>
    %561 = vector.extract_strided_slice %552 {offsets = [0, 128], sizes = [16, 128], strides = [1, 1]} : vector<16x512xf32> to vector<16x128xf32>
    %cst_228 = arith.constant 5.000000e-01 : f32
    %562 = vector.broadcast %cst_228 : f32 to vector<16x128xf32>
    %563 = arith.mulf %562, %561 : vector<16x128xf32>
    %564 = math.tanh %563 : vector<16x128xf32>
    %cst_229 = arith.constant 5.000000e-01 : f32
    %565 = vector.broadcast %cst_229 : f32 to vector<16x128xf32>
    %566 = arith.mulf %565, %564 : vector<16x128xf32>
    %cst_230 = arith.constant 5.000000e-01 : f32
    %567 = vector.broadcast %cst_230 : f32 to vector<16x128xf32>
    %568 = arith.addf %566, %567 : vector<16x128xf32>
    %569 = vector.extract_strided_slice %552 {offsets = [0, 256], sizes = [16, 128], strides = [1, 1]} : vector<16x512xf32> to vector<16x128xf32>
    %570 = math.tanh %569 : vector<16x128xf32>
    %571 = vector.extract_strided_slice %552 {offsets = [0, 384], sizes = [16, 128], strides = [1, 1]} : vector<16x512xf32> to vector<16x128xf32>
    %cst_231 = arith.constant 5.000000e-01 : f32
    %572 = vector.broadcast %cst_231 : f32 to vector<16x128xf32>
    %573 = arith.mulf %572, %571 : vector<16x128xf32>
    %574 = math.tanh %573 : vector<16x128xf32>
    %cst_232 = arith.constant 5.000000e-01 : f32
    %575 = vector.broadcast %cst_232 : f32 to vector<16x128xf32>
    %576 = arith.mulf %575, %574 : vector<16x128xf32>
    %cst_233 = arith.constant 5.000000e-01 : f32
    %577 = vector.broadcast %cst_233 : f32 to vector<16x128xf32>
    %578 = arith.addf %576, %577 : vector<16x128xf32>
    %579 = arith.mulf %568, %539 : vector<16x128xf32>
    %580 = arith.mulf %560, %570 : vector<16x128xf32>
    %581 = arith.addf %579, %580 : vector<16x128xf32>
    %582 = math.tanh %581 : vector<16x128xf32>
    %583 = arith.mulf %578, %582 : vector<16x128xf32>
    %584 = arith.truncf %583 : vector<16x128xf32> to vector<16x128xbf16>
    %585 = arith.index_cast %c4_i32_221 : i32 to index
    %c0_234 = arith.constant 0 : index
    %c0_235 = arith.constant 0 : index
    %586 = vector.load %arg12[%585, %c0_234, %c0_235] : memref<8x16x128xbf16, #tpu.memory_space<vmem>>, vector<1x16x128xbf16>
    %587 = vector.shape_cast %586 : vector<1x16x128xbf16> to vector<16x128xbf16>
    %588 = vector.shape_cast %584 : vector<16x128xbf16> to vector<1x16x128xbf16>
    tpu.vector_store %arg12[%585, %c0_234, %c0_235], %588 {strides = array<i32>} : memref<8x16x128xbf16, #tpu.memory_space<vmem>>, vector<1x16x128xbf16>,
    %c5_i32_236 = arith.constant 5 : i32
    %589 = arith.index_cast %c5_i32_236 : i32 to index
    %c0_237 = arith.constant 0 : index
    %c0_238 = arith.constant 0 : index
    %590 = vector.load %arg13[%589, %c0_237, %c0_238] : memref<8x16x512xf32, #tpu.memory_space<vmem>>, vector<1x16x512xf32>
    %591 = vector.shape_cast %590 : vector<1x16x512xf32> to vector<16x512xf32>
    %592 = arith.truncf %583 : vector<16x128xf32> to vector<16x128xbf16>
    %cst_239 = arith.constant dense<0.000000e+00> : vector<16x512xf32>
    %593 = tpu.matmul %592, %374, %cst_239 {dimension_numbers = #tpu.dot_dimension_numbers<[1], [0], [0], [1], [0, 0, 1, 1], [], []>} : vector<16x128xbf16>, vector<128x512xbf16>, vector<16x512xf32> -> vector<16x512xf32>
    %594 = arith.addf %591, %593 : vector<16x512xf32>
    %595 = vector.extract_strided_slice %594 {offsets = [0, 0], sizes = [16, 128], strides = [1, 1]} : vector<16x512xf32> to vector<16x128xf32>
    %cst_240 = arith.constant 5.000000e-01 : f32
    %596 = vector.broadcast %cst_240 : f32 to vector<16x128xf32>
    %597 = arith.mulf %596, %595 : vector<16x128xf32>
    %598 = math.tanh %597 : vector<16x128xf32>
    %cst_241 = arith.constant 5.000000e-01 : f32
    %599 = vector.broadcast %cst_241 : f32 to vector<16x128xf32>
    %600 = arith.mulf %599, %598 : vector<16x128xf32>
    %cst_242 = arith.constant 5.000000e-01 : f32
    %601 = vector.broadcast %cst_242 : f32 to vector<16x128xf32>
    %602 = arith.addf %600, %601 : vector<16x128xf32>
    %603 = vector.extract_strided_slice %594 {offsets = [0, 128], sizes = [16, 128], strides = [1, 1]} : vector<16x512xf32> to vector<16x128xf32>
    %cst_243 = arith.constant 5.000000e-01 : f32
    %604 = vector.broadcast %cst_243 : f32 to vector<16x128xf32>
    %605 = arith.mulf %604, %603 : vector<16x128xf32>
    %606 = math.tanh %605 : vector<16x128xf32>
    %cst_244 = arith.constant 5.000000e-01 : f32
    %607 = vector.broadcast %cst_244 : f32 to vector<16x128xf32>
    %608 = arith.mulf %607, %606 : vector<16x128xf32>
    %cst_245 = arith.constant 5.000000e-01 : f32
    %609 = vector.broadcast %cst_245 : f32 to vector<16x128xf32>
    %610 = arith.addf %608, %609 : vector<16x128xf32>
    %611 = vector.extract_strided_slice %594 {offsets = [0, 256], sizes = [16, 128], strides = [1, 1]} : vector<16x512xf32> to vector<16x128xf32>
    %612 = math.tanh %611 : vector<16x128xf32>
    %613 = vector.extract_strided_slice %594 {offsets = [0, 384], sizes = [16, 128], strides = [1, 1]} : vector<16x512xf32> to vector<16x128xf32>
    %cst_246 = arith.constant 5.000000e-01 : f32
    %614 = vector.broadcast %cst_246 : f32 to vector<16x128xf32>
    %615 = arith.mulf %614, %613 : vector<16x128xf32>
    %616 = math.tanh %615 : vector<16x128xf32>
    %cst_247 = arith.constant 5.000000e-01 : f32
    %617 = vector.broadcast %cst_247 : f32 to vector<16x128xf32>
    %618 = arith.mulf %617, %616 : vector<16x128xf32>
    %cst_248 = arith.constant 5.000000e-01 : f32
    %619 = vector.broadcast %cst_248 : f32 to vector<16x128xf32>
    %620 = arith.addf %618, %619 : vector<16x128xf32>
    %621 = arith.mulf %610, %581 : vector<16x128xf32>
    %622 = arith.mulf %602, %612 : vector<16x128xf32>
    %623 = arith.addf %621, %622 : vector<16x128xf32>
    %624 = math.tanh %623 : vector<16x128xf32>
    %625 = arith.mulf %620, %624 : vector<16x128xf32>
    %626 = arith.truncf %625 : vector<16x128xf32> to vector<16x128xbf16>
    %627 = arith.index_cast %c5_i32_236 : i32 to index
    %c0_249 = arith.constant 0 : index
    %c0_250 = arith.constant 0 : index
    %628 = vector.load %arg12[%627, %c0_249, %c0_250] : memref<8x16x128xbf16, #tpu.memory_space<vmem>>, vector<1x16x128xbf16>
    %629 = vector.shape_cast %628 : vector<1x16x128xbf16> to vector<16x128xbf16>
    %630 = vector.shape_cast %626 : vector<16x128xbf16> to vector<1x16x128xbf16>
    tpu.vector_store %arg12[%627, %c0_249, %c0_250], %630 {strides = array<i32>} : memref<8x16x128xbf16, #tpu.memory_space<vmem>>, vector<1x16x128xbf16>,
    %c6_i32_251 = arith.constant 6 : i32
    %631 = arith.index_cast %c6_i32_251 : i32 to index
    %c0_252 = arith.constant 0 : index
    %c0_253 = arith.constant 0 : index
    %632 = vector.load %arg13[%631, %c0_252, %c0_253] : memref<8x16x512xf32, #tpu.memory_space<vmem>>, vector<1x16x512xf32>
    %633 = vector.shape_cast %632 : vector<1x16x512xf32> to vector<16x512xf32>
    %634 = arith.truncf %625 : vector<16x128xf32> to vector<16x128xbf16>
    %cst_254 = arith.constant dense<0.000000e+00> : vector<16x512xf32>
    %635 = tpu.matmul %634, %374, %cst_254 {dimension_numbers = #tpu.dot_dimension_numbers<[1], [0], [0], [1], [0, 0, 1, 1], [], []>} : vector<16x128xbf16>, vector<128x512xbf16>, vector<16x512xf32> -> vector<16x512xf32>
    %636 = arith.addf %633, %635 : vector<16x512xf32>
    %637 = vector.extract_strided_slice %636 {offsets = [0, 0], sizes = [16, 128], strides = [1, 1]} : vector<16x512xf32> to vector<16x128xf32>
    %cst_255 = arith.constant 5.000000e-01 : f32
    %638 = vector.broadcast %cst_255 : f32 to vector<16x128xf32>
    %639 = arith.mulf %638, %637 : vector<16x128xf32>
    %640 = math.tanh %639 : vector<16x128xf32>
    %cst_256 = arith.constant 5.000000e-01 : f32
    %641 = vector.broadcast %cst_256 : f32 to vector<16x128xf32>
    %642 = arith.mulf %641, %640 : vector<16x128xf32>
    %cst_257 = arith.constant 5.000000e-01 : f32
    %643 = vector.broadcast %cst_257 : f32 to vector<16x128xf32>
    %644 = arith.addf %642, %643 : vector<16x128xf32>
    %645 = vector.extract_strided_slice %636 {offsets = [0, 128], sizes = [16, 128], strides = [1, 1]} : vector<16x512xf32> to vector<16x128xf32>
    %cst_258 = arith.constant 5.000000e-01 : f32
    %646 = vector.broadcast %cst_258 : f32 to vector<16x128xf32>
    %647 = arith.mulf %646, %645 : vector<16x128xf32>
    %648 = math.tanh %647 : vector<16x128xf32>
    %cst_259 = arith.constant 5.000000e-01 : f32
    %649 = vector.broadcast %cst_259 : f32 to vector<16x128xf32>
    %650 = arith.mulf %649, %648 : vector<16x128xf32>
    %cst_260 = arith.constant 5.000000e-01 : f32
    %651 = vector.broadcast %cst_260 : f32 to vector<16x128xf32>
    %652 = arith.addf %650, %651 : vector<16x128xf32>
    %653 = vector.extract_strided_slice %636 {offsets = [0, 256], sizes = [16, 128], strides = [1, 1]} : vector<16x512xf32> to vector<16x128xf32>
    %654 = math.tanh %653 : vector<16x128xf32>
    %655 = vector.extract_strided_slice %636 {offsets = [0, 384], sizes = [16, 128], strides = [1, 1]} : vector<16x512xf32> to vector<16x128xf32>
    %cst_261 = arith.constant 5.000000e-01 : f32
    %656 = vector.broadcast %cst_261 : f32 to vector<16x128xf32>
    %657 = arith.mulf %656, %655 : vector<16x128xf32>
    %658 = math.tanh %657 : vector<16x128xf32>
    %cst_262 = arith.constant 5.000000e-01 : f32
    %659 = vector.broadcast %cst_262 : f32 to vector<16x128xf32>
    %660 = arith.mulf %659, %658 : vector<16x128xf32>
    %cst_263 = arith.constant 5.000000e-01 : f32
    %661 = vector.broadcast %cst_263 : f32 to vector<16x128xf32>
    %662 = arith.addf %660, %661 : vector<16x128xf32>
    %663 = arith.mulf %652, %623 : vector<16x128xf32>
    %664 = arith.mulf %644, %654 : vector<16x128xf32>
    %665 = arith.addf %663, %664 : vector<16x128xf32>
    %666 = math.tanh %665 : vector<16x128xf32>
    %667 = arith.mulf %662, %666 : vector<16x128xf32>
    %668 = arith.truncf %667 : vector<16x128xf32> to vector<16x128xbf16>
    %669 = arith.index_cast %c6_i32_251 : i32 to index
    %c0_264 = arith.constant 0 : index
    %c0_265 = arith.constant 0 : index
    %670 = vector.load %arg12[%669, %c0_264, %c0_265] : memref<8x16x128xbf16, #tpu.memory_space<vmem>>, vector<1x16x128xbf16>
    %671 = vector.shape_cast %670 : vector<1x16x128xbf16> to vector<16x128xbf16>
    %672 = vector.shape_cast %668 : vector<16x128xbf16> to vector<1x16x128xbf16>
    tpu.vector_store %arg12[%669, %c0_264, %c0_265], %672 {strides = array<i32>} : memref<8x16x128xbf16, #tpu.memory_space<vmem>>, vector<1x16x128xbf16>,
    %c7_i32_266 = arith.constant 7 : i32
    %673 = arith.index_cast %c7_i32_266 : i32 to index
    %c0_267 = arith.constant 0 : index
    %c0_268 = arith.constant 0 : index
    %674 = vector.load %arg13[%673, %c0_267, %c0_268] : memref<8x16x512xf32, #tpu.memory_space<vmem>>, vector<1x16x512xf32>
    %675 = vector.shape_cast %674 : vector<1x16x512xf32> to vector<16x512xf32>
    %676 = arith.truncf %667 : vector<16x128xf32> to vector<16x128xbf16>
    %cst_269 = arith.constant dense<0.000000e+00> : vector<16x512xf32>
    %677 = tpu.matmul %676, %374, %cst_269 {dimension_numbers = #tpu.dot_dimension_numbers<[1], [0], [0], [1], [0, 0, 1, 1], [], []>} : vector<16x128xbf16>, vector<128x512xbf16>, vector<16x512xf32> -> vector<16x512xf32>
    %678 = arith.addf %675, %677 : vector<16x512xf32>
    %679 = vector.extract_strided_slice %678 {offsets = [0, 0], sizes = [16, 128], strides = [1, 1]} : vector<16x512xf32> to vector<16x128xf32>
    %cst_270 = arith.constant 5.000000e-01 : f32
    %680 = vector.broadcast %cst_270 : f32 to vector<16x128xf32>
    %681 = arith.mulf %680, %679 : vector<16x128xf32>
    %682 = math.tanh %681 : vector<16x128xf32>
    %cst_271 = arith.constant 5.000000e-01 : f32
    %683 = vector.broadcast %cst_271 : f32 to vector<16x128xf32>
    %684 = arith.mulf %683, %682 : vector<16x128xf32>
    %cst_272 = arith.constant 5.000000e-01 : f32
    %685 = vector.broadcast %cst_272 : f32 to vector<16x128xf32>
    %686 = arith.addf %684, %685 : vector<16x128xf32>
    %687 = vector.extract_strided_slice %678 {offsets = [0, 128], sizes = [16, 128], strides = [1, 1]} : vector<16x512xf32> to vector<16x128xf32>
    %cst_273 = arith.constant 5.000000e-01 : f32
    %688 = vector.broadcast %cst_273 : f32 to vector<16x128xf32>
    %689 = arith.mulf %688, %687 : vector<16x128xf32>
    %690 = math.tanh %689 : vector<16x128xf32>
    %cst_274 = arith.constant 5.000000e-01 : f32
    %691 = vector.broadcast %cst_274 : f32 to vector<16x128xf32>
    %692 = arith.mulf %691, %690 : vector<16x128xf32>
    %cst_275 = arith.constant 5.000000e-01 : f32
    %693 = vector.broadcast %cst_275 : f32 to vector<16x128xf32>
    %694 = arith.addf %692, %693 : vector<16x128xf32>
    %695 = vector.extract_strided_slice %678 {offsets = [0, 256], sizes = [16, 128], strides = [1, 1]} : vector<16x512xf32> to vector<16x128xf32>
    %696 = math.tanh %695 : vector<16x128xf32>
    %697 = vector.extract_strided_slice %678 {offsets = [0, 384], sizes = [16, 128], strides = [1, 1]} : vector<16x512xf32> to vector<16x128xf32>
    %cst_276 = arith.constant 5.000000e-01 : f32
    %698 = vector.broadcast %cst_276 : f32 to vector<16x128xf32>
    %699 = arith.mulf %698, %697 : vector<16x128xf32>
    %700 = math.tanh %699 : vector<16x128xf32>
    %cst_277 = arith.constant 5.000000e-01 : f32
    %701 = vector.broadcast %cst_277 : f32 to vector<16x128xf32>
    %702 = arith.mulf %701, %700 : vector<16x128xf32>
    %cst_278 = arith.constant 5.000000e-01 : f32
    %703 = vector.broadcast %cst_278 : f32 to vector<16x128xf32>
    %704 = arith.addf %702, %703 : vector<16x128xf32>
    %705 = arith.mulf %694, %665 : vector<16x128xf32>
    %706 = arith.mulf %686, %696 : vector<16x128xf32>
    %707 = arith.addf %705, %706 : vector<16x128xf32>
    %708 = math.tanh %707 : vector<16x128xf32>
    %709 = arith.mulf %704, %708 : vector<16x128xf32>
    %710 = arith.truncf %709 : vector<16x128xf32> to vector<16x128xbf16>
    %711 = arith.index_cast %c7_i32_266 : i32 to index
    %c0_279 = arith.constant 0 : index
    %c0_280 = arith.constant 0 : index
    %712 = vector.load %arg12[%711, %c0_279, %c0_280] : memref<8x16x128xbf16, #tpu.memory_space<vmem>>, vector<1x16x128xbf16>
    %713 = vector.shape_cast %712 : vector<1x16x128xbf16> to vector<16x128xbf16>
    %714 = vector.shape_cast %710 : vector<16x128xbf16> to vector<1x16x128xbf16>
    tpu.vector_store %arg12[%711, %c0_279, %c0_280], %714 {strides = array<i32>} : memref<8x16x128xbf16, #tpu.memory_space<vmem>>, vector<1x16x128xbf16>,
    %c8_i32_281 = arith.constant 8 : i32
    %c1_282 = arith.constant 1 : index
    %c0_283 = arith.constant 0 : index
    %c0_284 = arith.constant 0 : index
    %715 = vector.load %arg10[%c1_282, %c0_283, %c0_284] : memref<2x16x128xf32, #tpu.memory_space<vmem>>, vector<1x16x128xf32>
    %716 = vector.shape_cast %715 : vector<1x16x128xf32> to vector<16x128xf32>
    %717 = vector.shape_cast %709 : vector<16x128xf32> to vector<1x16x128xf32>
    tpu.vector_store %arg10[%c1_282, %c0_283, %c0_284], %717 {strides = array<i32>} : memref<2x16x128xf32, #tpu.memory_space<vmem>>, vector<1x16x128xf32>,
    %c1_285 = arith.constant 1 : index
    %c0_286 = arith.constant 0 : index
    %c0_287 = arith.constant 0 : index
    %718 = vector.load %arg11[%c1_285, %c0_286, %c0_287] : memref<2x16x128xf32, #tpu.memory_space<vmem>>, vector<1x16x128xf32>
    %719 = vector.shape_cast %718 : vector<1x16x128xf32> to vector<16x128xf32>
    %720 = vector.shape_cast %707 : vector<16x128xf32> to vector<1x16x128xf32>
    tpu.vector_store %arg11[%c1_285, %c0_286, %c0_287], %720 {strides = array<i32>} : memref<2x16x128xf32, #tpu.memory_space<vmem>>, vector<1x16x128xf32>,
    %c0_288 = arith.constant 0 : index
    %c0_289 = arith.constant 0 : index
    %c0_290 = arith.constant 0 : index
    %721 = vector.load %arg12[%c0_288, %c0_289, %c0_290] : memref<8x16x128xbf16, #tpu.memory_space<vmem>>, vector<8x16x128xbf16>
    %722 = vector.shape_cast %721 : vector<8x16x128xbf16> to vector<128x128xbf16>
    %c0_291 = arith.constant 0 : index
    %c0_292 = arith.constant 0 : index
    %723 = vector.load %arg7[%c0_291, %c0_292] : memref<128x128xbf16, #tpu.memory_space<vmem>>, vector<128x128xbf16>
    %cst_293 = arith.constant dense<0.000000e+00> : vector<128x128xf32>
    %724 = tpu.matmul %722, %723, %cst_293 {dimension_numbers = #tpu.dot_dimension_numbers<[1], [0], [0], [1], [0, 0, 1, 1], [], []>} : vector<128x128xbf16>, vector<128x128xbf16>, vector<128x128xf32> -> vector<128x128xf32>
    %c0_294 = arith.constant 0 : index
    %c0_295 = arith.constant 0 : index
    %725 = vector.load %arg8[%c0_294, %c0_295] : memref<1x128xf32, #tpu.memory_space<vmem>>, vector<1x128xf32>
    %726 = vector.broadcast %725 : vector<1x128xf32> to vector<128x128xf32>
    %727 = arith.addf %724, %726 : vector<128x128xf32>
    %728 = vector.shape_cast %727 : vector<128x128xf32> to vector<8x16x128xf32>
    %c0_296 = arith.constant 0 : index
    %c0_297 = arith.constant 0 : index
    %c0_298 = arith.constant 0 : index
    %729 = vector.load %arg9[%c0_296, %c0_297, %c0_298] : memref<8x16x128xf32, #tpu.memory_space<vmem>>, vector<8x16x128xf32>
    tpu.vector_store %arg9[%c0_296, %c0_297, %c0_298], %728 {strides = array<i32>} : memref<8x16x128xf32, #tpu.memory_space<vmem>>, vector<8x16x128xf32>,
    return
  }
  func.func @transform_0(%arg0: i32) -> (i32, i32, i32) {
    %c0_i32 = arith.constant 0 : i32
    %c0_i32_0 = arith.constant 0 : i32
    %c0_i32_1 = arith.constant 0 : i32
    return %arg0, %c0_i32, %c0_i32_0 : i32, i32, i32
  }
  func.func @transform_1(%arg0: i32) -> (i32, i32, i32) {
    %c0_i32 = arith.constant 0 : i32
    %c0_i32_0 = arith.constant 0 : i32
    %c0_i32_1 = arith.constant 0 : i32
    %c0_i32_2 = arith.constant 0 : i32
    return %c0_i32, %c0_i32_0, %c0_i32_1 : i32, i32, i32
  }
  func.func @transform_2(%arg0: i32) -> (i32, i32, i32) {
    %c0_i32 = arith.constant 0 : i32
    %c0_i32_0 = arith.constant 0 : i32
    %c0_i32_1 = arith.constant 0 : i32
    %c0_i32_2 = arith.constant 0 : i32
    return %c0_i32, %c0_i32_0, %c0_i32_1 : i32, i32, i32
  }
  func.func @transform_3(%arg0: i32) -> (i32, i32, i32) {
    %c0_i32 = arith.constant 0 : i32
    %c0_i32_0 = arith.constant 0 : i32
    %c0_i32_1 = arith.constant 0 : i32
    %c0_i32_2 = arith.constant 0 : i32
    return %c0_i32, %c0_i32_0, %c0_i32_1 : i32, i32, i32
  }
  func.func @transform_4(%arg0: i32) -> (i32, i32, i32) {
    %c0_i32 = arith.constant 0 : i32
    %c0_i32_0 = arith.constant 0 : i32
    %c0_i32_1 = arith.constant 0 : i32
    %c0_i32_2 = arith.constant 0 : i32
    return %c0_i32, %c0_i32_0, %c0_i32_1 : i32, i32, i32
  }
  func.func @transform_5(%arg0: i32) -> (i32, i32, i32) {
    %c0_i32 = arith.constant 0 : i32
    %c0_i32_0 = arith.constant 0 : i32
    %c0_i32_1 = arith.constant 0 : i32
    %c0_i32_2 = arith.constant 0 : i32
    return %c0_i32, %c0_i32_0, %c0_i32_1 : i32, i32, i32
  }
  func.func @transform_6(%arg0: i32) -> (i32, i32) {
    %c0_i32 = arith.constant 0 : i32
    %c0_i32_0 = arith.constant 0 : i32
    %c0_i32_1 = arith.constant 0 : i32
    return %c0_i32, %c0_i32_0 : i32, i32
  }
  func.func @transform_7(%arg0: i32) -> (i32, i32) {
    %c0_i32 = arith.constant 0 : i32
    %c0_i32_0 = arith.constant 0 : i32
    %c0_i32_1 = arith.constant 0 : i32
    return %c0_i32, %c0_i32_0 : i32, i32
  }
  func.func @transform_8(%arg0: i32) -> (i32, i32, i32) {
    %c0_i32 = arith.constant 0 : i32
    %c0_i32_0 = arith.constant 0 : i32
    %c0_i32_1 = arith.constant 0 : i32
    return %arg0, %c0_i32, %c0_i32_0 : i32, i32, i32
  }
  func.func @transform_9(%arg0: i32) -> (i32, i32, i32) {
    %c0_i32 = arith.constant 0 : i32
    %c0_i32_0 = arith.constant 0 : i32
    %c0_i32_1 = arith.constant 0 : i32
    %c0_i32_2 = arith.constant 0 : i32
    return %c0_i32, %c0_i32_0, %c0_i32_1 : i32, i32, i32
  }
  func.func @transform_10(%arg0: i32) -> (i32, i32, i32) {
    %c0_i32 = arith.constant 0 : i32
    %c0_i32_0 = arith.constant 0 : i32
    %c0_i32_1 = arith.constant 0 : i32
    %c0_i32_2 = arith.constant 0 : i32
    return %c0_i32, %c0_i32_0, %c0_i32_1 : i32, i32, i32
  }
}

</mosaic_0001>

<llo_original>
// kernel: tpu_custom_call.1
$region0: #{tpu_custom_call.1}
  #allocation0 [shape = 'u32[]', space=smem, size = 0x4, offset = 0x4, fixed_abs, tag = 'smem constant byte address 0x4 - core index']
  #allocation1 [shape = 'u32[144,128]{1,0:T(1,128)}', space=vmem, size = 0x12000, scoped, tag = 'internal scratch']
  #allocation2 [shape = 'bf16[8,16,128]{2,1,0:T(16,128)(2,1)}', space=vmem, size = 0x8000, scoped, tag = 'scratch operand']
  #allocation3 [shape = 'f32[8,16,512]{2,1,0:T(8,128)}', space=vmem, size = 0x40000, scoped, tag = 'scratch operand']
  %s0 = inlined_call_operand.hbm [shape: bf16[8,16,128], index: 0, kind: input, shape index: {}]
  %s1 = inlined_call_operand.hbm [shape: bf16[2,128,512], index: 1, kind: input, shape index: {}]
  %s2 = inlined_call_operand.hbm [shape: bf16[2,128,512], index: 2, kind: input, shape index: {}]
  %s3 = inlined_call_operand.vmem [shape: f32[2,1,512], index: 3, kind: input, shape index: {}]
  %s4 = inlined_call_operand.hbm [shape: f32[2,16,128], index: 4, kind: input, shape index: {}]
  %s5 = inlined_call_operand.hbm [shape: f32[2,16,128], index: 5, kind: input, shape index: {}]
  %s6 = inlined_call_operand.hbm [shape: bf16[128,128], index: 6, kind: input, shape index: {}]
  %s7 = inlined_call_operand.vmem [shape: f32[1,128], index: 7, kind: input, shape index: {}]
  %s8 = inlined_call_operand.hbm [shape: f32[8,16,128], index: 8, kind: output, shape index: {0}]
  %s9 = inlined_call_operand.hbm [shape: f32[2,16,128], index: 9, kind: output, shape index: {1}]
  %s10 = inlined_call_operand.hbm [shape: f32[2,16,128], index: 10, kind: output, shape index: {2}]
  %11 = xla_tuple %s8, %s9, %s10
  %s12 = sld [smem:[#allocation0]]
  $region86: #{tpu_custom_call.1} parent=0
    _
  %s14 = ssub.s32 1, %s12
  %s15 = scalar_select 0, %s14, %s12
  $region1: #{tpu_custom_call.1} parent=0
    #allocation4 [shape = 'u8[32768]{0}', space=vmem, size = 0x8000, scoped, tag = 'input window, operand 0, single buffered']
    #allocation5 [shape = 's32[1]{0}', space=sflag, size = 0x4, scoped, tag = 'scoped memory for tpu_custom_call.1']
    #allocation6 [shape = 's32[1]{0}', space=sflag, size = 0x4, scoped, tag = 'scoped memory for tpu_custom_call.1']
    #allocation7 [shape = 'u8[262144]{0}', space=vmem, size = 0x40000, scoped, tag = 'input window, operand 1, single buffered']
    #allocation8 [shape = 's32[1]{0}', space=sflag, size = 0x4, scoped, tag = 'scoped memory for tpu_custom_call.1']
    #allocation9 [shape = 'u8[262144]{0}', space=vmem, size = 0x40000, scoped, tag = 'input window, operand 2, single buffered']
    #allocation10 [shape = 'u8[16384]{0}', space=vmem, size = 0x4000, scoped, tag = 'input window, operand 4, single buffered']
    #allocation11 [shape = 's32[1]{0}', space=sflag, size = 0x4, scoped, tag = 'scoped memory for tpu_custom_call.1']
    #allocation12 [shape = 'u8[16384]{0}', space=vmem, size = 0x4000, scoped, tag = 'input window, operand 5, single buffered']
    #allocation13 [shape = 'u8[32768]{0}', space=vmem, size = 0x8000, scoped, tag = 'input window, operand 6, single buffered']
    #allocation14 [shape = 's32[1]{0}', space=sflag, size = 0x4, scoped, tag = 'scoped memory for tpu_custom_call.1']
    #allocation15 [shape = 'u8[65536]{0}', space=vmem, size = 0x10000, scoped, tag = 'output window, operand 0, single buffered']
    #allocation16 [shape = 'u8[16384]{0}', space=vmem, size = 0x4000, scoped, tag = 'output window, operand 1, single buffered']
    #allocation17 [shape = 's32[1]{0}', space=sflag, size = 0x4, scoped, tag = 'scoped memory for tpu_custom_call.1']
    #allocation18 [shape = 'u8[16384]{0}', space=vmem, size = 0x4000, scoped, tag = 'output window, operand 2, single buffered']
    %16 = vsyncpa [#allocation5], 0
    %17 = vsyncpa [#allocation8], 0
    %18 = vsyncpa [#allocation11], 0
    %19 = vsyncpa [#allocation14], 0
    %20 = vsyncpa [#allocation6], 0
    %21 = vsyncpa [#allocation17], 0
    // Predicated region
    $region2: #{tpu_custom_call.1} parent=1 // pred_check
      _
    $region3: #{tpu_custom_call.1} parent=1 // pred_check_branch
      %23 = sbr.rel (0) target = $region5
    $region4: #{tpu_custom_call.1} parent=1 // pred_region
      %s25 = ssub.s32 1024, 1024
      %26 = vsyncadd [#allocation5], %s25
      %s27 = sshll.u32 [#allocation4], 4
      %s28 = int_to_ptr.vmem [resolvable:$true] %s27
      %33 = dma.hbm_to_vmem [thread:$0]  %s0, 1024, %s28, [#allocation5], 64, 64, 4
    $region5: #{tpu_custom_call.1} parent=1 // pred_fallthru
      _
    // Predicated region
    $region6: #{tpu_custom_call.1} parent=1 // pred_check
      _
    $region7: #{tpu_custom_call.1} parent=1 // pred_check_branch
      %35 = sbr.rel (0) target = $region9
    $region8: #{tpu_custom_call.1} parent=1 // pred_region
      %s37 = ssub.s32 8192, 8192
      %38 = vsyncadd [#allocation8], %s37
      %s39 = sshll.u32 [#allocation7], 4
      %s40 = int_to_ptr.vmem [resolvable:$true] %s39
      %45 = dma.hbm_to_vmem [thread:$0]  %s1, 8192, %s40, [#allocation8], 256, 256, 16
    $region9: #{tpu_custom_call.1} parent=1 // pred_fallthru
      _
    // Predicated region
    $region10: #{tpu_custom_call.1} parent=1 // pred_check
      _
    $region11: #{tpu_custom_call.1} parent=1 // pred_check_branch
      %47 = sbr.rel (0) target = $region13
    $region12: #{tpu_custom_call.1} parent=1 // pred_region
      %s49 = ssub.s32 8192, 8192
      %50 = vsyncadd [#allocation8], %s49
      %s51 = sshll.u32 [#allocation9], 4
      %s52 = int_to_ptr.vmem [resolvable:$true] %s51
      %57 = dma.hbm_to_vmem [thread:$0]  %s2, 8192, %s52, [#allocation8], 256, 256, 16
    $region13: #{tpu_custom_call.1} parent=1 // pred_fallthru
      _
    // Predicated region
    $region14: #{tpu_custom_call.1} parent=1 // pred_check
      _
    $region15: #{tpu_custom_call.1} parent=1 // pred_check_branch
      %59 = sbr.rel (0) target = $region17
    $region16: #{tpu_custom_call.1} parent=1 // pred_region
      _
    $region17: #{tpu_custom_call.1} parent=1 // pred_fallthru
      _
    // Predicated region
    $region18: #{tpu_custom_call.1} parent=1 // pred_check
      _
    $region19: #{tpu_custom_call.1} parent=1 // pred_check_branch
      %61 = sbr.rel (0) target = $region21
    $region20: #{tpu_custom_call.1} parent=1 // pred_region
      %s63 = ssub.s32 512, 512
      %64 = vsyncadd [#allocation11], %s63
      %s65 = sshll.u32 [#allocation10], 4
      %s66 = int_to_ptr.vmem [resolvable:$true] %s65
      %71 = dma.hbm_to_vmem [thread:$0]  %s4, 512, %s66, [#allocation11], 128, 128, 8
    $region21: #{tpu_custom_call.1} parent=1 // pred_fallthru
      _
    // Predicated region
    $region22: #{tpu_custom_call.1} parent=1 // pred_check
      _
    $region23: #{tpu_custom_call.1} parent=1 // pred_check_branch
      %73 = sbr.rel (0) target = $region25
    $region24: #{tpu_custom_call.1} parent=1 // pred_region
      %s75 = ssub.s32 512, 512
      %76 = vsyncadd [#allocation11], %s75
      %s77 = sshll.u32 [#allocation12], 4
      %s78 = int_to_ptr.vmem [resolvable:$true] %s77
      %83 = dma.hbm_to_vmem [thread:$0]  %s5, 512, %s78, [#allocation11], 128, 128, 8
    $region25: #{tpu_custom_call.1} parent=1 // pred_fallthru
      _
    // Predicated region
    $region26: #{tpu_custom_call.1} parent=1 // pred_check
      _
    $region27: #{tpu_custom_call.1} parent=1 // pred_check_branch
      %85 = sbr.rel (0) target = $region29
    $region28: #{tpu_custom_call.1} parent=1 // pred_region
      %s87 = ssub.s32 1024, 1024
      %88 = vsyncadd [#allocation14], %s87
      %s89 = sshll.u32 [#allocation13], 4
      %s90 = int_to_ptr.vmem [resolvable:$true] %s89
      %95 = dma.hbm_to_vmem [thread:$0]  %s6, 1024, %s90, [#allocation14], 64, 64, 4
    $region29: #{tpu_custom_call.1} parent=1 // pred_fallthru
      _
    // Predicated region
    $region30: #{tpu_custom_call.1} parent=1 // pred_check
      _
    $region31: #{tpu_custom_call.1} parent=1 // pred_check_branch
      %97 = sbr.rel (0) target = $region33
    $region32: #{tpu_custom_call.1} parent=1 // pred_region
      _
    $region33: #{tpu_custom_call.1} parent=1 // pred_fallthru
      _
    // Predicated region
    $region34: #{tpu_custom_call.1} parent=1 // pred_check
      _
    $region35: #{tpu_custom_call.1} parent=1 // pred_check_branch
      %99 = sbr.rel (0) target = $region37
    $region36: #{tpu_custom_call.1} parent=1 // pred_region
      %100 = dma.done [#allocation5], 1024
    $region37: #{tpu_custom_call.1} parent=1 // pred_fallthru
      _
    // Predicated region
    $region38: #{tpu_custom_call.1} parent=1 // pred_check
      _
    $region39: #{tpu_custom_call.1} parent=1 // pred_check_branch
      %102 = sbr.rel (0) target = $region41
    $region40: #{tpu_custom_call.1} parent=1 // pred_region
      %103 = dma.done [#allocation8], 8192
    $region41: #{tpu_custom_call.1} parent=1 // pred_fallthru
      _
    // Predicated region
    $region42: #{tpu_custom_call.1} parent=1 // pred_check
      _
    $region43: #{tpu_custom_call.1} parent=1 // pred_check_branch
      %105 = sbr.rel (0) target = $region45
    $region44: #{tpu_custom_call.1} parent=1 // pred_region
      %106 = dma.done [#allocation8], 8192
    $region45: #{tpu_custom_call.1} parent=1 // pred_fallthru
      _
    // Predicated region
    $region46: #{tpu_custom_call.1} parent=1 // pred_check
      _
    $region47: #{tpu_custom_call.1} parent=1 // pred_check_branch
      %108 = sbr.rel (0) target = $region49
    $region48: #{tpu_custom_call.1} parent=1 // pred_region
      %109 = dma.done [#allocation11], 512
    $region49: #{tpu_custom_call.1} parent=1 // pred_fallthru
      _
    // Predicated region
    $region50: #{tpu_custom_call.1} parent=1 // pred_check
      _
    $region51: #{tpu_custom_call.1} parent=1 // pred_check_branch
      %111 = sbr.rel (0) target = $region53
    $region52: #{tpu_custom_call.1} parent=1 // pred_region
      %112 = dma.done [#allocation11], 512
    $region53: #{tpu_custom_call.1} parent=1 // pred_fallthru
      _
    // Predicated region
    $region54: #{tpu_custom_call.1} parent=1 // pred_check
      _
    $region55: #{tpu_custom_call.1} parent=1 // pred_check_branch
      %114 = sbr.rel (0) target = $region57
    $region56: #{tpu_custom_call.1} parent=1 // pred_region
      %115 = dma.done [#allocation14], 1024
    $region57: #{tpu_custom_call.1} parent=1 // pred_fallthru
      _
    %p117 = scmp.eq.s32.totalorder 0, 0
    // Predicated region
    $region58: #{tpu_custom_call.1} parent=1 // pred_check
      %p118 = pneg %p117
    $region59: #{tpu_custom_call.1} parent=1 // pred_check_branch
      %120 = sbr.rel (%p118) target = $region61
    $region60: #{tpu_custom_call.1} parent=1 // pred_region
      %v121 = vld [vmem:[#allocation10] sm:$0xff]
      %v122 = vld [vmem:[#allocation10 + $0x8] sm:$0xff]
      %v123 = vld [vmem:[#allocation10 + $0x10] sm:$0xff]
      %v124 = vld [vmem:[#allocation10 + $0x18] sm:$0xff]
      %125 = vst [vmem:[#allocation16] sm:$0xff] %v121
      %126 = vst [vmem:[#allocation16 + $0x8] sm:$0xff] %v122
      %127 = vst [vmem:[#allocation16 + $0x10] sm:$0xff] %v123
      %128 = vst [vmem:[#allocation16 + $0x18] sm:$0xff] %v124
      %v129 = vld [vmem:[#allocation12] sm:$0xff]
      %v130 = vld [vmem:[#allocation12 + $0x8] sm:$0xff]
      %v131 = vld [vmem:[#allocation12 + $0x10] sm:$0xff]
      %v132 = vld [vmem:[#allocation12 + $0x18] sm:$0xff]
      %133 = vst [vmem:[#allocation18] sm:$0xff] %v129
      %134 = vst [vmem:[#allocation18 + $0x8] sm:$0xff] %v130
      %135 = vst [vmem:[#allocation18 + $0x10] sm:$0xff] %v131
      %136 = vst [vmem:[#allocation18 + $0x18] sm:$0xff] %v132
    $region61: #{tpu_custom_call.1} parent=1 // pred_fallthru
      _
    %v137 = vld [vmem:[#allocation4] sm:$0xf]
    %v138 = vld [vmem:[#allocation4 + $0x4] sm:$0xf]
    %v139 = vld [vmem:[#allocation4 + $0x8] sm:$0xf]
    %v140 = vld [vmem:[#allocation4 + $0xc] sm:$0xf]
    %v141 = vld [vmem:[#allocation4 + $0x10] sm:$0xf]
    %v142 = vld [vmem:[#allocation4 + $0x14] sm:$0xf]
    %v143 = vld [vmem:[#allocation4 + $0x18] sm:$0xf]
    %v144 = vld [vmem:[#allocation4 + $0x1c] sm:$0xf]
    %v145 = vld [vmem:[#allocation4 + $0x20] sm:$0xf]
    %v146 = vld [vmem:[#allocation4 + $0x24] sm:$0xf]
    %v147 = vld [vmem:[#allocation4 + $0x28] sm:$0xf]
    %v148 = vld [vmem:[#allocation4 + $0x2c] sm:$0xf]
    %v149 = vld [vmem:[#allocation4 + $0x30] sm:$0xf]
    %v150 = vld [vmem:[#allocation4 + $0x34] sm:$0xf]
    %v151 = vld [vmem:[#allocation4 + $0x38] sm:$0xf]
    %v152 = vld [vmem:[#allocation4 + $0x3c] sm:$0xf]
    %v153 = vld [vmem:[#allocation7] sm:$0xff]
    %v154 = vld [vmem:[#allocation7 + $0x8] sm:$0xff]
    %v155 = vld [vmem:[#allocation7 + $0x10] sm:$0xff]
    %v156 = vld [vmem:[#allocation7 + $0x18] sm:$0xff]
    %v157 = vld [vmem:[#allocation7 + $0x20] sm:$0xff]
    %v158 = vld [vmem:[#allocation7 + $0x28] sm:$0xff]
    %v159 = vld [vmem:[#allocation7 + $0x30] sm:$0xff]
    %v160 = vld [vmem:[#allocation7 + $0x38] sm:$0xff]
    %v161 = vld [vmem:[#allocation7 + $0x40] sm:$0xff]
    %v162 = vld [vmem:[#allocation7 + $0x48] sm:$0xff]
    %v163 = vld [vmem:[#allocation7 + $0x50] sm:$0xff]
    %v164 = vld [vmem:[#allocation7 + $0x58] sm:$0xff]
    %v165 = vld [vmem:[#allocation7 + $0x60] sm:$0xff]
    %v166 = vld [vmem:[#allocation7 + $0x68] sm:$0xff]
    %v167 = vld [vmem:[#allocation7 + $0x70] sm:$0xff]
    %v168 = vld [vmem:[#allocation7 + $0x78] sm:$0xff]
    %v169 = vld [vmem:[#allocation7 + $0x80] sm:$0xff]
    %v170 = vld [vmem:[#allocation7 + $0x88] sm:$0xff]
    %v171 = vld [vmem:[#allocation7 + $0x90] sm:$0xff]
    %v172 = vld [vmem:[#allocation7 + $0x98] sm:$0xff]
    %v173 = vld [vmem:[#allocation7 + $0xa0] sm:$0xff]
    %v174 = vld [vmem:[#allocation7 + $0xa8] sm:$0xff]
    %v175 = vld [vmem:[#allocation7 + $0xb0] sm:$0xff]
    %v176 = vld [vmem:[#allocation7 + $0xb8] sm:$0xff]
    %v177 = vld [vmem:[#allocation7 + $0xc0] sm:$0xff]
    %v178 = vld [vmem:[#allocation7 + $0xc8] sm:$0xff]
    %v179 = vld [vmem:[#allocation7 + $0xd0] sm:$0xff]
    %v180 = vld [vmem:[#allocation7 + $0xd8] sm:$0xff]
    %v181 = vld [vmem:[#allocation7 + $0xe0] sm:$0xff]
    %v182 = vld [vmem:[#allocation7 + $0xe8] sm:$0xff]
    %v183 = vld [vmem:[#allocation7 + $0xf0] sm:$0xff]
    %v184 = vld [vmem:[#allocation7 + $0xf8] sm:$0xff]
    %v185 = vld [vmem:[%s3] sm:$0xf]
    %v187 = vlaneseq
    %v188 = vshrl.u32 %v187, 7
    %v189 = vsub.s32 0, %v188
    %v190 = vrot.slane %v185, %v189
    %v191 = vlaneseq
    %v192 = vshrl.u32 %v191, 7
    %v193 = vsub.s32 1, %v192
    %v194 = vrot.slane %v185, %v193
    %v195 = vlaneseq
    %v196 = vshrl.u32 %v195, 7
    %v197 = vsub.s32 2, %v196
    %v198 = vrot.slane %v185, %v197
    %v199 = vlaneseq
    %v200 = vshrl.u32 %v199, 7
    %v201 = vsub.s32 3, %v200
    %v202 = vrot.slane %v185, %v201
    %v223 = vunpack.c.l.b16 %v137
    %v224 = vunpack.c.l.b16 %v138
    %v225 = vunpack.c.l.b16 %v139
    %v226 = vunpack.c.l.b16 %v140
    %v227 = vunpack.c.l.b16 %v141
    %v228 = vunpack.c.l.b16 %v142
    %v229 = vunpack.c.l.b16 %v143
    %v230 = vunpack.c.l.b16 %v144
    %v231 = vunpack.c.l.b16 %v145
    %v232 = vunpack.c.l.b16 %v146
    %v233 = vunpack.c.l.b16 %v147
    %v234 = vunpack.c.l.b16 %v148
    %v235 = vunpack.c.l.b16 %v149
    %v236 = vunpack.c.l.b16 %v150
    %v237 = vunpack.c.l.b16 %v151
    %v238 = vunpack.c.l.b16 %v152
    %v239 = vpack.c.b16 %v224, %v223
    %v240 = vpack.c.b16 %v226, %v225
    %v241 = vpack.c.b16 %v228, %v227
    %v242 = vpack.c.b16 %v230, %v229
    %v243 = vpack.c.b16 %v232, %v231
    %v244 = vpack.c.b16 %v234, %v233
    %v245 = vpack.c.b16 %v236, %v235
    %v246 = vpack.c.b16 %v238, %v237
    %v287 = vunpack.c.l.b16 %v153
    %v288 = vunpack.c.h.b16 %v153
    %v289 = vunpack.c.l.b16 %v154
    %v290 = vunpack.c.h.b16 %v154
    %v291 = vunpack.c.l.b16 %v155
    %v292 = vunpack.c.h.b16 %v155
    %v293 = vunpack.c.l.b16 %v156
    %v294 = vunpack.c.h.b16 %v156
    %v295 = vunpack.c.l.b16 %v157
    %v296 = vunpack.c.h.b16 %v157
    %v297 = vunpack.c.l.b16 %v158
    %v298 = vunpack.c.h.b16 %v158
    %v299 = vunpack.c.l.b16 %v159
    %v300 = vunpack.c.h.b16 %v159
    %v301 = vunpack.c.l.b16 %v160
    %v302 = vunpack.c.h.b16 %v160
    %v303 = vunpack.c.l.b16 %v161
    %v304 = vunpack.c.h.b16 %v161
    %v305 = vunpack.c.l.b16 %v162
    %v306 = vunpack.c.h.b16 %v162
    %v307 = vunpack.c.l.b16 %v163
    %v308 = vunpack.c.h.b16 %v163
    %v309 = vunpack.c.l.b16 %v164
    %v310 = vunpack.c.h.b16 %v164
    %v311 = vunpack.c.l.b16 %v165
    %v312 = vunpack.c.h.b16 %v165
    %v313 = vunpack.c.l.b16 %v166
    %v314 = vunpack.c.h.b16 %v166
    %v315 = vunpack.c.l.b16 %v167
    %v316 = vunpack.c.h.b16 %v167
    %v317 = vunpack.c.l.b16 %v168
    %v318 = vunpack.c.h.b16 %v168
    %v319 = vunpack.c.l.b16 %v169
    %v320 = vunpack.c.h.b16 %v169
    %v321 = vunpack.c.l.b16 %v170
    %v322 = vunpack.c.h.b16 %v170
    %v323 = vunpack.c.l.b16 %v171
    %v324 = vunpack.c.h.b16 %v171
    %v325 = vunpack.c.l.b16 %v172
    %v326 = vunpack.c.h.b16 %v172
    %v327 = vunpack.c.l.b16 %v173
    %v328 = vunpack.c.h.b16 %v173
    %v329 = vunpack.c.l.b16 %v174
    %v330 = vunpack.c.h.b16 %v174
    %v331 = vunpack.c.l.b16 %v175
    %v332 = vunpack.c.h.b16 %v175
    %v333 = vunpack.c.l.b16 %v176
    %v334 = vunpack.c.h.b16 %v176
    %v335 = vunpack.c.l.b16 %v177
    %v336 = vunpack.c.h.b16 %v177
    %v337 = vunpack.c.l.b16 %v178
    %v338 = vunpack.c.h.b16 %v178
    %v339 = vunpack.c.l.b16 %v179
    %v340 = vunpack.c.h.b16 %v179
    %v341 = vunpack.c.l.b16 %v180
    %v342 = vunpack.c.h.b16 %v180
    %v343 = vunpack.c.l.b16 %v181
    %v344 = vunpack.c.h.b16 %v181
    %v345 = vunpack.c.l.b16 %v182
    %v346 = vunpack.c.h.b16 %v182
    %v347 = vunpack.c.l.b16 %v183
    %v348 = vunpack.c.h.b16 %v183
    %v349 = vunpack.c.l.b16 %v184
    %v350 = vunpack.c.h.b16 %v184
    %v351 = vpack.c.b16 %v291, %v287
    %v352 = vpack.c.b16 %v292, %v288
    %v353 = vpack.c.b16 %v293, %v289
    %v354 = vpack.c.b16 %v294, %v290
    %v355 = vpack.c.b16 %v299, %v295
    %v356 = vpack.c.b16 %v300, %v296
    %v357 = vpack.c.b16 %v301, %v297
    %v358 = vpack.c.b16 %v302, %v298
    %v359 = vpack.c.b16 %v307, %v303
    %v360 = vpack.c.b16 %v308, %v304
    %v361 = vpack.c.b16 %v309, %v305
    %v362 = vpack.c.b16 %v310, %v306
    %v363 = vpack.c.b16 %v315, %v311
    %v364 = vpack.c.b16 %v316, %v312
    %v365 = vpack.c.b16 %v317, %v313
    %v366 = vpack.c.b16 %v318, %v314
    %v367 = vpack.c.b16 %v323, %v319
    %v368 = vpack.c.b16 %v324, %v320
    %v369 = vpack.c.b16 %v325, %v321
    %v370 = vpack.c.b16 %v326, %v322
    %v371 = vpack.c.b16 %v331, %v327
    %v372 = vpack.c.b16 %v332, %v328
    %v373 = vpack.c.b16 %v333, %v329
    %v374 = vpack.c.b16 %v334, %v330
    %v375 = vpack.c.b16 %v339, %v335
    %v376 = vpack.c.b16 %v340, %v336
    %v377 = vpack.c.b16 %v341, %v337
    %v378 = vpack.c.b16 %v342, %v338
    %v379 = vpack.c.b16 %v347, %v343
    %v380 = vpack.c.b16 %v348, %v344
    %v381 = vpack.c.b16 %v349, %v345
    %v382 = vpack.c.b16 %v350, %v346
    %415 = vmatprep.subr.bf16.mxu0 %v352
    %416 = vmatpush1.bf16.msra.mxu0 %v351
    %417 = vmatprep.subr.bf16.mxu0 %v356
    %418 = vmatpush1.bf16.msra.mxu0 %v355
    %419 = vmatprep.subr.bf16.mxu0 %v360
    %420 = vmatpush1.bf16.msra.mxu0 %v359
    %421 = vmatprep.subr.bf16.mxu0 %v364
    %422 = vmatpush1.bf16.msra.mxu0 %v363
    %423 = vmatprep.subr.bf16.mxu0 %v368
    %424 = vmatpush1.bf16.msra.mxu0 %v367
    %425 = vmatprep.subr.bf16.mxu0 %v372
    %426 = vmatpush1.bf16.msra.mxu0 %v371
    %427 = vmatprep.subr.bf16.mxu0 %v376
    %428 = vmatpush1.bf16.msra.mxu0 %v375
    %429 = vmatprep.subr.bf16.mxu0 %v380
    %430 = vmatpush1.bf16.msra.mxu0 %v379
    %431 = vmatprep.subr.bf16.mxu0 0
    %432 = vmatpush1.bf16.msra.mxu0 0
    %433 = vmatprep.subr.bf16.mxu0 0
    %434 = vmatpush1.bf16.msra.mxu0 0
    %435 = vmatprep.subr.bf16.mxu0 0
    %436 = vmatpush1.bf16.msra.mxu0 0
    %437 = vmatprep.subr.bf16.mxu0 0
    %438 = vmatpush1.bf16.msra.mxu0 0
    %439 = vmatprep.subr.bf16.mxu0 0
    %440 = vmatpush1.bf16.msra.mxu0 0
    %441 = vmatprep.subr.bf16.mxu0 0
    %442 = vmatpush1.bf16.msra.mxu0 0
    %443 = vmatprep.subr.bf16.mxu0 0
    %444 = vmatpush1.bf16.msra.mxu0 0
    %445 = vmatprep.subr.bf16.mxu0 0
    %446 = vmatpush1.bf16.msra.mxu0 0
    %447 = vmatprep.mubr.bf16.mxu0 0
    %448 = vmatmul.mubr.bf16.gmra.mrb[0].mxu0 %v239
    %v449 = vpop.f32.mrb[0].mxu0
    %v450 = vadd.f32 %v190, %v449
    %v451 = vpop.f32.mrb[0].mxu0
    %v452 = vadd.f32 %v194, %v451
    %v453 = vpop.f32.mrb[0].mxu0
    %v454 = vadd.f32 %v190, %v453
    %v455 = vpop.f32.mrb[0].mxu0
    %v456 = vadd.f32 %v194, %v455
    %457 = vmatprep.mubr.bf16.mxu0 0
    %458 = vmatmul.mubr.bf16.gmra.mrb[0].mxu0 %v240
    %v459 = vpop.f32.mrb[0].mxu0
    %v460 = vadd.f32 %v190, %v459
    %v461 = vpop.f32.mrb[0].mxu0
    %v462 = vadd.f32 %v194, %v461
    %v463 = vpop.f32.mrb[0].mxu0
    %v464 = vadd.f32 %v190, %v463
    %v465 = vpop.f32.mrb[0].mxu0
    %v466 = vadd.f32 %v194, %v465
    %467 = vmatprep.mubr.bf16.mxu0 0
    %468 = vmatmul.mubr.bf16.gmra.mrb[0].mxu0 %v241
    %v469 = vpop.f32.mrb[0].mxu0
    %v470 = vadd.f32 %v190, %v469
    %v471 = vpop.f32.mrb[0].mxu0
    %v472 = vadd.f32 %v194, %v471
    %v473 = vpop.f32.mrb[0].mxu0
    %v474 = vadd.f32 %v190, %v473
    %v475 = vpop.f32.mrb[0].mxu0
    %v476 = vadd.f32 %v194, %v475
    %477 = vmatprep.mubr.bf16.mxu0 0
    %478 = vmatmul.mubr.bf16.gmra.mrb[0].mxu0 %v242
    %v479 = vpop.f32.mrb[0].mxu0
    %v480 = vadd.f32 %v190, %v479
    %v481 = vpop.f32.mrb[0].mxu0
    %v482 = vadd.f32 %v194, %v481
    %v483 = vpop.f32.mrb[0].mxu0
    %v484 = vadd.f32 %v190, %v483
    %v485 = vpop.f32.mrb[0].mxu0
    %v486 = vadd.f32 %v194, %v485
    %487 = vmatprep.mubr.bf16.mxu0 0
    %488 = vmatmul.mubr.bf16.gmra.mrb[0].mxu0 %v243
    %v489 = vpop.f32.mrb[0].mxu0
    %v490 = vadd.f32 %v190, %v489
    %v491 = vpop.f32.mrb[0].mxu0
    %v492 = vadd.f32 %v194, %v491
    %v493 = vpop.f32.mrb[0].mxu0
    %v494 = vadd.f32 %v190, %v493
    %v495 = vpop.f32.mrb[0].mxu0
    %v496 = vadd.f32 %v194, %v495
    %497 = vmatprep.mubr.bf16.mxu0 0
    %498 = vmatmul.mubr.bf16.gmra.mrb[0].mxu0 %v244
    %v499 = vpop.f32.mrb[0].mxu0
    %v500 = vadd.f32 %v190, %v499
    %v501 = vpop.f32.mrb[0].mxu0
    %v502 = vadd.f32 %v194, %v501
    %v503 = vpop.f32.mrb[0].mxu0
    %v504 = vadd.f32 %v190, %v503
    %v505 = vpop.f32.mrb[0].mxu0
    %v506 = vadd.f32 %v194, %v505
    %507 = vmatprep.mubr.bf16.mxu0 0
    %508 = vmatmul.mubr.bf16.gmra.mrb[0].mxu0 %v245
    %v509 = vpop.f32.mrb[0].mxu0
    %v510 = vadd.f32 %v190, %v509
    %v511 = vpop.f32.mrb[0].mxu0
    %v512 = vadd.f32 %v194, %v511
    %v513 = vpop.f32.mrb[0].mxu0
    %v514 = vadd.f32 %v190, %v513
    %v515 = vpop.f32.mrb[0].mxu0
    %v516 = vadd.f32 %v194, %v515
    %517 = vmatprep.mubr.bf16.mxu0 0
    %518 = vmatmul.mubr.bf16.gmra.mrb[0].mxu0 %v246
    %v519 = vpop.f32.mrb[0].mxu0
    %v520 = vadd.f32 %v190, %v519
    %v521 = vpop.f32.mrb[0].mxu0
    %v522 = vadd.f32 %v194, %v521
    %v523 = vpop.f32.mrb[0].mxu0
    %v524 = vadd.f32 %v190, %v523
    %v525 = vpop.f32.mrb[0].mxu0
    %v526 = vadd.f32 %v194, %v525
    %527 = vdwg.mxu0
    %528 = vmatprep.subr.bf16.mxu0 %v354
    %529 = vmatpush1.bf16.msra.mxu0 %v353
    %530 = vmatprep.subr.bf16.mxu0 %v358
    %531 = vmatpush1.bf16.msra.mxu0 %v357
    %532 = vmatprep.subr.bf16.mxu0 %v362
    %533 = vmatpush1.bf16.msra.mxu0 %v361
    %534 = vmatprep.subr.bf16.mxu0 %v366
    %535 = vmatpush1.bf16.msra.mxu0 %v365
    %536 = vmatprep.subr.bf16.mxu0 %v370
    %537 = vmatpush1.bf16.msra.mxu0 %v369
    %538 = vmatprep.subr.bf16.mxu0 %v374
    %539 = vmatpush1.bf16.msra.mxu0 %v373
    %540 = vmatprep.subr.bf16.mxu0 %v378
    %541 = vmatpush1.bf16.msra.mxu0 %v377
    %542 = vmatprep.subr.bf16.mxu0 %v382
    %543 = vmatpush1.bf16.msra.mxu0 %v381
    %544 = vmatprep.subr.bf16.mxu0 0
    %545 = vmatpush1.bf16.msra.mxu0 0
    %546 = vmatprep.subr.bf16.mxu0 0
    %547 = vmatpush1.bf16.msra.mxu0 0
    %548 = vmatprep.subr.bf16.mxu0 0
    %549 = vmatpush1.bf16.msra.mxu0 0
    %550 = vmatprep.subr.bf16.mxu0 0
    %551 = vmatpush1.bf16.msra.mxu0 0
    %552 = vmatprep.subr.bf16.mxu0 0
    %553 = vmatpush1.bf16.msra.mxu0 0
    %554 = vmatprep.subr.bf16.mxu0 0
    %555 = vmatpush1.bf16.msra.mxu0 0
    %556 = vmatprep.subr.bf16.mxu0 0
    %557 = vmatpush1.bf16.msra.mxu0 0
    %558 = vmatprep.subr.bf16.mxu0 0
    %559 = vmatpush1.bf16.msra.mxu0 0
    %560 = vmatprep.mubr.bf16.mxu0 0
    %561 = vmatmul.mubr.bf16.gmra.mrb[0].mxu0 %v239
    %v562 = vpop.f32.mrb[0].mxu0
    %v563 = vadd.f32 %v198, %v562
    %v564 = vpop.f32.mrb[0].mxu0
    %v565 = vadd.f32 %v202, %v564
    %v566 = vpop.f32.mrb[0].mxu0
    %v567 = vadd.f32 %v198, %v566
    %v568 = vpop.f32.mrb[0].mxu0
    %v569 = vadd.f32 %v202, %v568
    %570 = vmatprep.mubr.bf16.mxu0 0
    %571 = vmatmul.mubr.bf16.gmra.mrb[0].mxu0 %v240
    %v572 = vpop.f32.mrb[0].mxu0
    %v573 = vadd.f32 %v198, %v572
    %v574 = vpop.f32.mrb[0].mxu0
    %v575 = vadd.f32 %v202, %v574
    %v576 = vpop.f32.mrb[0].mxu0
    %v577 = vadd.f32 %v198, %v576
    %v578 = vpop.f32.mrb[0].mxu0
    %v579 = vadd.f32 %v202, %v578
    %580 = vmatprep.mubr.bf16.mxu0 0
    %581 = vmatmul.mubr.bf16.gmra.mrb[0].mxu0 %v241
    %v582 = vpop.f32.mrb[0].mxu0
    %v583 = vadd.f32 %v198, %v582
    %v584 = vpop.f32.mrb[0].mxu0
    %v585 = vadd.f32 %v202, %v584
    %v586 = vpop.f32.mrb[0].mxu0
    %v587 = vadd.f32 %v198, %v586
    %v588 = vpop.f32.mrb[0].mxu0
    %v589 = vadd.f32 %v202, %v588
    %590 = vmatprep.mubr.bf16.mxu0 0
    %591 = vmatmul.mubr.bf16.gmra.mrb[0].mxu0 %v242
    %v592 = vpop.f32.mrb[0].mxu0
    %v593 = vadd.f32 %v198, %v592
    %v594 = vpop.f32.mrb[0].mxu0
    %v595 = vadd.f32 %v202, %v594
    %v596 = vpop.f32.mrb[0].mxu0
    %v597 = vadd.f32 %v198, %v596
    %v598 = vpop.f32.mrb[0].mxu0
    %v599 = vadd.f32 %v202, %v598
    %600 = vmatprep.mubr.bf16.mxu0 0
    %601 = vmatmul.mubr.bf16.gmra.mrb[0].mxu0 %v243
    %v602 = vpop.f32.mrb[0].mxu0
    %v603 = vadd.f32 %v198, %v602
    %v604 = vpop.f32.mrb[0].mxu0
    %v605 = vadd.f32 %v202, %v604
    %v606 = vpop.f32.mrb[0].mxu0
    %v607 = vadd.f32 %v198, %v606
    %v608 = vpop.f32.mrb[0].mxu0
    %v609 = vadd.f32 %v202, %v608
    %610 = vmatprep.mubr.bf16.mxu0 0
    %611 = vmatmul.mubr.bf16.gmra.mrb[0].mxu0 %v244
    %v612 = vpop.f32.mrb[0].mxu0
    %v613 = vadd.f32 %v198, %v612
    %v614 = vpop.f32.mrb[0].mxu0
    %v615 = vadd.f32 %v202, %v614
    %v616 = vpop.f32.mrb[0].mxu0
    %v617 = vadd.f32 %v198, %v616
    %v618 = vpop.f32.mrb[0].mxu0
    %v619 = vadd.f32 %v202, %v618
    %620 = vmatprep.mubr.bf16.mxu0 0
    %621 = vmatmul.mubr.bf16.gmra.mrb[0].mxu0 %v245
    %v622 = vpop.f32.mrb[0].mxu0
    %v623 = vadd.f32 %v198, %v622
    %v624 = vpop.f32.mrb[0].mxu0
    %v625 = vadd.f32 %v202, %v624
    %v626 = vpop.f32.mrb[0].mxu0
    %v627 = vadd.f32 %v198, %v626
    %v628 = vpop.f32.mrb[0].mxu0
    %v629 = vadd.f32 %v202, %v628
    %630 = vmatprep.mubr.bf16.mxu0 0
    %631 = vmatmul.mubr.bf16.gmra.mrb[0].mxu0 %v246
    %v632 = vpop.f32.mrb[0].mxu0
    %v633 = vadd.f32 %v198, %v632
    %v634 = vpop.f32.mrb[0].mxu0
    %v635 = vadd.f32 %v202, %v634
    %v636 = vpop.f32.mrb[0].mxu0
    %v637 = vadd.f32 %v198, %v636
    %v638 = vpop.f32.mrb[0].mxu0
    %v639 = vadd.f32 %v202, %v638
    %640 = vdwg.mxu0
    %641 = vst [vmem:[#allocation3] sm:$0xff] %v450
    %642 = vst [vmem:[#allocation3 + $0x8] sm:$0xff] %v452
    %643 = vst [vmem:[#allocation3 + $0x10] sm:$0xff] %v563
    %644 = vst [vmem:[#allocation3 + $0x18] sm:$0xff] %v565
    %645 = vst [vmem:[#allocation3 + $0x20] sm:$0xff] %v454
    %646 = vst [vmem:[#allocation3 + $0x28] sm:$0xff] %v456
    %647 = vst [vmem:[#allocation3 + $0x30] sm:$0xff] %v567
    %648 = vst [vmem:[#allocation3 + $0x38] sm:$0xff] %v569
    %649 = vst [vmem:[#allocation3 + $0x40] sm:$0xff] %v460
    %650 = vst [vmem:[#allocation3 + $0x48] sm:$0xff] %v462
    %651 = vst [vmem:[#allocation3 + $0x50] sm:$0xff] %v573
    %652 = vst [vmem:[#allocation3 + $0x58] sm:$0xff] %v575
    %653 = vst [vmem:[#allocation3 + $0x60] sm:$0xff] %v464
    %654 = vst [vmem:[#allocation3 + $0x68] sm:$0xff] %v466
    %655 = vst [vmem:[#allocation3 + $0x70] sm:$0xff] %v577
    %656 = vst [vmem:[#allocation3 + $0x78] sm:$0xff] %v579
    %657 = vst [vmem:[#allocation3 + $0x80] sm:$0xff] %v470
    %658 = vst [vmem:[#allocation3 + $0x88] sm:$0xff] %v472
    %659 = vst [vmem:[#allocation3 + $0x90] sm:$0xff] %v583
    %660 = vst [vmem:[#allocation3 + $0x98] sm:$0xff] %v585
    %661 = vst [vmem:[#allocation3 + $0xa0] sm:$0xff] %v474
    %662 = vst [vmem:[#allocation3 + $0xa8] sm:$0xff] %v476
    %663 = vst [vmem:[#allocation3 + $0xb0] sm:$0xff] %v587
    %664 = vst [vmem:[#allocation3 + $0xb8] sm:$0xff] %v589
    %665 = vst [vmem:[#allocation3 + $0xc0] sm:$0xff] %v480
    %666 = vst [vmem:[#allocation3 + $0xc8] sm:$0xff] %v482
    %667 = vst [vmem:[#allocation3 + $0xd0] sm:$0xff] %v593
    %668 = vst [vmem:[#allocation3 + $0xd8] sm:$0xff] %v595
    %669 = vst [vmem:[#allocation3 + $0xe0] sm:$0xff] %v484
    %670 = vst [vmem:[#allocation3 + $0xe8] sm:$0xff] %v486
    %671 = vst [vmem:[#allocation3 + $0xf0] sm:$0xff] %v597
    %672 = vst [vmem:[#allocation3 + $0xf8] sm:$0xff] %v599
    %673 = vst [vmem:[#allocation3 + $0x100] sm:$0xff] %v490
    %674 = vst [vmem:[#allocation3 + $0x108] sm:$0xff] %v492
    %675 = vst [vmem:[#allocation3 + $0x110] sm:$0xff] %v603
    %676 = vst [vmem:[#allocation3 + $0x118] sm:$0xff] %v605
    %677 = vst [vmem:[#allocation3 + $0x120] sm:$0xff] %v494
    %678 = vst [vmem:[#allocation3 + $0x128] sm:$0xff] %v496
    %679 = vst [vmem:[#allocation3 + $0x130] sm:$0xff] %v607
    %680 = vst [vmem:[#allocation3 + $0x138] sm:$0xff] %v609
    %681 = vst [vmem:[#allocation3 + $0x140] sm:$0xff] %v500
    %682 = vst [vmem:[#allocation3 + $0x148] sm:$0xff] %v502
    %683 = vst [vmem:[#allocation3 + $0x150] sm:$0xff] %v613
    %684 = vst [vmem:[#allocation3 + $0x158] sm:$0xff] %v615
    %685 = vst [vmem:[#allocation3 + $0x160] sm:$0xff] %v504
    %686 = vst [vmem:[#allocation3 + $0x168] sm:$0xff] %v506
    %687 = vst [vmem:[#allocation3 + $0x170] sm:$0xff] %v617
    %688 = vst [vmem:[#allocation3 + $0x178] sm:$0xff] %v619
    %689 = vst [vmem:[#allocation3 + $0x180] sm:$0xff] %v510
    %690 = vst [vmem:[#allocation3 + $0x188] sm:$0xff] %v512
    %691 = vst [vmem:[#allocation3 + $0x190] sm:$0xff] %v623
    %692 = vst [vmem:[#allocation3 + $0x198] sm:$0xff] %v625
    %693 = vst [vmem:[#allocation3 + $0x1a0] sm:$0xff] %v514
    %694 = vst [vmem:[#allocation3 + $0x1a8] sm:$0xff] %v516
    %695 = vst [vmem:[#allocation3 + $0x1b0] sm:$0xff] %v627
    %696 = vst [vmem:[#allocation3 + $0x1b8] sm:$0xff] %v629
    %697 = vst [vmem:[#allocation3 + $0x1c0] sm:$0xff] %v520
    %698 = vst [vmem:[#allocation3 + $0x1c8] sm:$0xff] %v522
    %699 = vst [vmem:[#allocation3 + $0x1d0] sm:$0xff] %v633
    %700 = vst [vmem:[#allocation3 + $0x1d8] sm:$0xff] %v635
    %701 = vst [vmem:[#allocation3 + $0x1e0] sm:$0xff] %v524
    %702 = vst [vmem:[#allocation3 + $0x1e8] sm:$0xff] %v526
    %703 = vst [vmem:[#allocation3 + $0x1f0] sm:$0xff] %v637
    %704 = vst [vmem:[#allocation3 + $0x1f8] sm:$0xff] %v639
    %v705 = vld [vmem:[#allocation9] sm:$0xff]
    %v706 = vld [vmem:[#allocation9 + $0x8] sm:$0xff]
    %v707 = vld [vmem:[#allocation9 + $0x10] sm:$0xff]
    %v708 = vld [vmem:[#allocation9 + $0x18] sm:$0xff]
    %v709 = vld [vmem:[#allocation9 + $0x20] sm:$0xff]
    %v710 = vld [vmem:[#allocation9 + $0x28] sm:$0xff]
    %v711 = vld [vmem:[#allocation9 + $0x30] sm:$0xff]
    %v712 = vld [vmem:[#allocation9 + $0x38] sm:$0xff]
    %v713 = vld [vmem:[#allocation9 + $0x40] sm:$0xff]
    %v714 = vld [vmem:[#allocation9 + $0x48] sm:$0xff]
    %v715 = vld [vmem:[#allocation9 + $0x50] sm:$0xff]
    %v716 = vld [vmem:[#allocation9 + $0x58] sm:$0xff]
    %v717 = vld [vmem:[#allocation9 + $0x60] sm:$0xff]
    %v718 = vld [vmem:[#allocation9 + $0x68] sm:$0xff]
    %v719 = vld [vmem:[#allocation9 + $0x70] sm:$0xff]
    %v720 = vld [vmem:[#allocation9 + $0x78] sm:$0xff]
    %v721 = vld [vmem:[#allocation9 + $0x80] sm:$0xff]
    %v722 = vld [vmem:[#allocation9 + $0x88] sm:$0xff]
    %v723 = vld [vmem:[#allocation9 + $0x90] sm:$0xff]
    %v724 = vld [vmem:[#allocation9 + $0x98] sm:$0xff]
    %v725 = vld [vmem:[#allocation9 + $0xa0] sm:$0xff]
    %v726 = vld [vmem:[#allocation9 + $0xa8] sm:$0xff]
    %v727 = vld [vmem:[#allocation9 + $0xb0] sm:$0xff]
    %v728 = vld [vmem:[#allocation9 + $0xb8] sm:$0xff]
    %v729 = vld [vmem:[#allocation9 + $0xc0] sm:$0xff]
    %v730 = vld [vmem:[#allocation9 + $0xc8] sm:$0xff]
    %v731 = vld [vmem:[#allocation9 + $0xd0] sm:$0xff]
    %v732 = vld [vmem:[#allocation9 + $0xd8] sm:$0xff]
    %v733 = vld [vmem:[#allocation9 + $0xe0] sm:$0xff]
    %v734 = vld [vmem:[#allocation9 + $0xe8] sm:$0xff]
    %v735 = vld [vmem:[#allocation9 + $0xf0] sm:$0xff]
    %v736 = vld [vmem:[#allocation9 + $0xf8] sm:$0xff]
    %v737 = vld [vmem:[#allocation16] sm:$0xff]
    %v738 = vld [vmem:[#allocation16 + $0x8] sm:$0xff]
    %v739 = vld [vmem:[#allocation18] sm:$0xff]
    %v740 = vld [vmem:[#allocation18 + $0x8] sm:$0xff]
    %v741 = vld [vmem:[#allocation3] sm:$0xff]
    %v742 = vld [vmem:[#allocation3 + $0x8] sm:$0xff]
    %v743 = vld [vmem:[#allocation3 + $0x10] sm:$0xff]
    %v744 = vld [vmem:[#allocation3 + $0x18] sm:$0xff]
    %v745 = vld [vmem:[#allocation3 + $0x20] sm:$0xff]
    %v746 = vld [vmem:[#allocation3 + $0x28] sm:$0xff]
    %v747 = vld [vmem:[#allocation3 + $0x30] sm:$0xff]
    %v748 = vld [vmem:[#allocation3 + $0x38] sm:$0xff]
    %v749 = vpack.c.bf16 %v738, %v737
    %v782 = vunpack.c.l.b16 %v705
    %v783 = vunpack.c.h.b16 %v705
    %v784 = vunpack.c.l.b16 %v706
    %v785 = vunpack.c.h.b16 %v706
    %v786 = vunpack.c.l.b16 %v707
    %v787 = vunpack.c.h.b16 %v707
    %v788 = vunpack.c.l.b16 %v708
    %v789 = vunpack.c.h.b16 %v708
    %v790 = vunpack.c.l.b16 %v709
    %v791 = vunpack.c.h.b16 %v709
    %v792 = vunpack.c.l.b16 %v710
    %v793 = vunpack.c.h.b16 %v710
    %v794 = vunpack.c.l.b16 %v711
    %v795 = vunpack.c.h.b16 %v711
    %v796 = vunpack.c.l.b16 %v712
    %v797 = vunpack.c.h.b16 %v712
    %v798 = vunpack.c.l.b16 %v713
    %v799 = vunpack.c.h.b16 %v713
    %v800 = vunpack.c.l.b16 %v714
    %v801 = vunpack.c.h.b16 %v714
    %v802 = vunpack.c.l.b16 %v715
    %v803 = vunpack.c.h.b16 %v715
    %v804 = vunpack.c.l.b16 %v716
    %v805 = vunpack.c.h.b16 %v716
    %v806 = vunpack.c.l.b16 %v717
    %v807 = vunpack.c.h.b16 %v717
    %v808 = vunpack.c.l.b16 %v718
    %v809 = vunpack.c.h.b16 %v718
    %v810 = vunpack.c.l.b16 %v719
    %v811 = vunpack.c.h.b16 %v719
    %v812 = vunpack.c.l.b16 %v720
    %v813 = vunpack.c.h.b16 %v720
    %v814 = vunpack.c.l.b16 %v721
    %v815 = vunpack.c.h.b16 %v721
    %v816 = vunpack.c.l.b16 %v722
    %v817 = vunpack.c.h.b16 %v722
    %v818 = vunpack.c.l.b16 %v723
    %v819 = vunpack.c.h.b16 %v723
    %v820 = vunpack.c.l.b16 %v724
    %v821 = vunpack.c.h.b16 %v724
    %v822 = vunpack.c.l.b16 %v725
    %v823 = vunpack.c.h.b16 %v725
    %v824 = vunpack.c.l.b16 %v726
    %v825 = vunpack.c.h.b16 %v726
    %v826 = vunpack.c.l.b16 %v727
    %v827 = vunpack.c.h.b16 %v727
    %v828 = vunpack.c.l.b16 %v728
    %v829 = vunpack.c.h.b16 %v728
    %v830 = vunpack.c.l.b16 %v729
    %v831 = vunpack.c.h.b16 %v729
    %v832 = vunpack.c.l.b16 %v730
    %v833 = vunpack.c.h.b16 %v730
    %v834 = vunpack.c.l.b16 %v731
    %v835 = vunpack.c.h.b16 %v731
    %v836 = vunpack.c.l.b16 %v732
    %v837 = vunpack.c.h.b16 %v732
    %v838 = vunpack.c.l.b16 %v733
    %v839 = vunpack.c.h.b16 %v733
    %v840 = vunpack.c.l.b16 %v734
    %v841 = vunpack.c.h.b16 %v734
    %v842 = vunpack.c.l.b16 %v735
    %v843 = vunpack.c.h.b16 %v735
    %v844 = vunpack.c.l.b16 %v736
    %v845 = vunpack.c.h.b16 %v736
    %v846 = vpack.c.b16 %v786, %v782
    %v847 = vpack.c.b16 %v787, %v783
    %v848 = vpack.c.b16 %v788, %v784
    %v849 = vpack.c.b16 %v789, %v785
    %v850 = vpack.c.b16 %v794, %v790
    %v851 = vpack.c.b16 %v795, %v791
    %v852 = vpack.c.b16 %v796, %v792
    %v853 = vpack.c.b16 %v797, %v793
    %v854 = vpack.c.b16 %v802, %v798
    %v855 = vpack.c.b16 %v803, %v799
    %v856 = vpack.c.b16 %v804, %v800
    %v857 = vpack.c.b16 %v805, %v801
    %v858 = vpack.c.b16 %v810, %v806
    %v859 = vpack.c.b16 %v811, %v807
    %v860 = vpack.c.b16 %v812, %v808
    %v861 = vpack.c.b16 %v813, %v809
    %v862 = vpack.c.b16 %v818, %v814
    %v863 = vpack.c.b16 %v819, %v815
    %v864 = vpack.c.b16 %v820, %v816
    %v865 = vpack.c.b16 %v821, %v817
    %v866 = vpack.c.b16 %v826, %v822
    %v867 = vpack.c.b16 %v827, %v823
    %v868 = vpack.c.b16 %v828, %v824
    %v869 = vpack.c.b16 %v829, %v825
    %v870 = vpack.c.b16 %v834, %v830
    %v871 = vpack.c.b16 %v835, %v831
    %v872 = vpack.c.b16 %v836, %v832
    %v873 = vpack.c.b16 %v837, %v833
    %v874 = vpack.c.b16 %v842, %v838
    %v875 = vpack.c.b16 %v843, %v839
    %v876 = vpack.c.b16 %v844, %v840
    %v877 = vpack.c.b16 %v845, %v841
    %910 = vmatprep.subr.bf16.mxu0 %v847
    %911 = vmatpush1.bf16.msra.mxu0 %v846
    %912 = vmatprep.subr.bf16.mxu0 %v851
    %913 = vmatpush1.bf16.msra.mxu0 %v850
    %914 = vmatprep.subr.bf16.mxu0 %v855
    %915 = vmatpush1.bf16.msra.mxu0 %v854
    %916 = vmatprep.subr.bf16.mxu0 %v859
    %917 = vmatpush1.bf16.msra.mxu0 %v858
    %918 = vmatprep.subr.bf16.mxu0 %v863
    %919 = vmatpush1.bf16.msra.mxu0 %v862
    %920 = vmatprep.subr.bf16.mxu0 %v867
    %921 = vmatpush1.bf16.msra.mxu0 %v866
    %922 = vmatprep.subr.bf16.mxu0 %v871
    %923 = vmatpush1.bf16.msra.mxu0 %v870
    %924 = vmatprep.subr.bf16.mxu0 %v875
    %925 = vmatpush1.bf16.msra.mxu0 %v874
    %926 = vmatprep.subr.bf16.mxu0 0
    %927 = vmatpush1.bf16.msra.mxu0 0
    %928 = vmatprep.subr.bf16.mxu0 0
    %929 = vmatpush1.bf16.msra.mxu0 0
    %930 = vmatprep.subr.bf16.mxu0 0
    %931 = vmatpush1.bf16.msra.mxu0 0
    %932 = vmatprep.subr.bf16.mxu0 0
    %933 = vmatpush1.bf16.msra.mxu0 0
    %934 = vmatprep.subr.bf16.mxu0 0
    %935 = vmatpush1.bf16.msra.mxu0 0
    %936 = vmatprep.subr.bf16.mxu0 0
    %937 = vmatpush1.bf16.msra.mxu0 0
    %938 = vmatprep.subr.bf16.mxu0 0
    %939 = vmatpush1.bf16.msra.mxu0 0
    %940 = vmatprep.subr.bf16.mxu0 0
    %941 = vmatpush1.bf16.msra.mxu0 0
    %942 = vmatprep.mubr.bf16.mxu0 0
    %943 = vmatmul.mubr.bf16.gmra.mrb[0].mxu0 %v749
    %v944 = vpop.f32.mrb[0].mxu0
    %v945 = vadd.f32 0.0, %v944
    %v946 = vpop.f32.mrb[0].mxu0
    %v947 = vadd.f32 0.0, %v946
    %v948 = vpop.f32.mrb[0].mxu0
    %v949 = vadd.f32 0.0, %v948
    %v950 = vpop.f32.mrb[0].mxu0
    %v951 = vadd.f32 0.0, %v950
    %952 = vdwg.mxu0
    %953 = vmatprep.subr.bf16.mxu0 %v849
    %954 = vmatpush1.bf16.msra.mxu0 %v848
    %955 = vmatprep.subr.bf16.mxu0 %v853
    %956 = vmatpush1.bf16.msra.mxu0 %v852
    %957 = vmatprep.subr.bf16.mxu0 %v857
    %958 = vmatpush1.bf16.msra.mxu0 %v856
    %959 = vmatprep.subr.bf16.mxu0 %v861
    %960 = vmatpush1.bf16.msra.mxu0 %v860
    %961 = vmatprep.subr.bf16.mxu0 %v865
    %962 = vmatpush1.bf16.msra.mxu0 %v864
    %963 = vmatprep.subr.bf16.mxu0 %v869
    %964 = vmatpush1.bf16.msra.mxu0 %v868
    %965 = vmatprep.subr.bf16.mxu0 %v873
    %966 = vmatpush1.bf16.msra.mxu0 %v872
    %967 = vmatprep.subr.bf16.mxu0 %v877
    %968 = vmatpush1.bf16.msra.mxu0 %v876
    %969 = vmatprep.subr.bf16.mxu0 0
    %970 = vmatpush1.bf16.msra.mxu0 0
    %971 = vmatprep.subr.bf16.mxu0 0
    %972 = vmatpush1.bf16.msra.mxu0 0
    %973 = vmatprep.subr.bf16.mxu0 0
    %974 = vmatpush1.bf16.msra.mxu0 0
    %975 = vmatprep.subr.bf16.mxu0 0
    %976 = vmatpush1.bf16.msra.mxu0 0
    %977 = vmatprep.subr.bf16.mxu0 0
    %978 = vmatpush1.bf16.msra.mxu0 0
    %979 = vmatprep.subr.bf16.mxu0 0
    %980 = vmatpush1.bf16.msra.mxu0 0
    %981 = vmatprep.subr.bf16.mxu0 0
    %982 = vmatpush1.bf16.msra.mxu0 0
    %983 = vmatprep.subr.bf16.mxu0 0
    %984 = vmatpush1.bf16.msra.mxu0 0
    %985 = vmatprep.mubr.bf16.mxu0 0
    %986 = vmatmul.mubr.bf16.gmra.mrb[0].mxu0 %v749
    %v987 = vpop.f32.mrb[0].mxu0
    %v988 = vadd.f32 0.0, %v987
    %v989 = vpop.f32.mrb[0].mxu0
    %v990 = vadd.f32 0.0, %v989
    %v991 = vpop.f32.mrb[0].mxu0
    %v992 = vadd.f32 0.0, %v991
    %v993 = vpop.f32.mrb[0].mxu0
    %v994 = vadd.f32 0.0, %v993
    %995 = vdwg.mxu0
    %v996 = vadd.f32 %v741, %v945
    %v997 = vadd.f32 %v742, %v947
    %v998 = vadd.f32 %v743, %v988
    %v999 = vadd.f32 %v744, %v990
    %v1000 = vadd.f32 %v745, %v949
    %v1001 = vadd.f32 %v746, %v951
    %v1002 = vadd.f32 %v747, %v992
    %v1003 = vadd.f32 %v748, %v994
    %v1004 = vmul.f32 %v996, 0.5
    %v1005 = vmul.f32 %v1000, 0.5
    %v1006 = vtanh.pop %v1004
    %v1007 = vtanh.pop %v1005
    %v1008 = vmul.f32 %v1006, 0.5
    %v1009 = vmul.f32 %v1007, 0.5
    %v1010 = vadd.f32 %v1008, 0.5
    %v1011 = vadd.f32 %v1009, 0.5
    %v1012 = vmul.f32 %v997, 0.5
    %v1013 = vmul.f32 %v1001, 0.5
    %v1014 = vtanh.pop %v1012
    %v1015 = vtanh.pop %v1013
    %v1016 = vmul.f32 %v1014, 0.5
    %v1017 = vmul.f32 %v1015, 0.5
    %v1018 = vadd.f32 %v1016, 0.5
    %v1019 = vadd.f32 %v1017, 0.5
    %v1020 = vtanh.pop %v998
    %v1021 = vtanh.pop %v1002
    %v1022 = vmul.f32 %v999, 0.5
    %v1023 = vmul.f32 %v1003, 0.5
    %v1024 = vtanh.pop %v1022
    %v1025 = vtanh.pop %v1023
    %v1026 = vmul.f32 %v1024, 0.5
    %v1027 = vmul.f32 %v1025, 0.5
    %v1028 = vadd.f32 %v1026, 0.5
    %v1029 = vadd.f32 %v1027, 0.5
    %v1030 = vmul.f32 %v1018, %v739
    %v1031 = vmul.f32 %v1019, %v740
    %v1032 = vmul.f32 %v1010, %v1020
    %v1033 = vmul.f32 %v1011, %v1021
    %v1034 = vadd.f32 %v1030, %v1032
    %v1035 = vadd.f32 %v1031, %v1033
    %v1036 = vtanh.pop %v1034
    %v1037 = vtanh.pop %v1035
    %v1038 = vmul.f32 %v1028, %v1036
    %v1039 = vmul.f32 %v1029, %v1037
    %v1040 = vpack.c.bf16 %v1039, %v1038
    %1041 = vst [vmem:[#allocation2] sm:$0xff] %v1040
    %s1042 = scalar_lea.vmem [#allocation3], 64
    %v1043 = vld [vmem:[%s1042] sm:$0xff]
    %v1044 = vld [vmem:[%s1042 + $0x8] sm:$0xff]
    %v1045 = vld [vmem:[%s1042 + $0x10] sm:$0xff]
    %v1046 = vld [vmem:[%s1042 + $0x18] sm:$0xff]
    %v1047 = vld [vmem:[%s1042 + $0x20] sm:$0xff]
    %v1048 = vld [vmem:[%s1042 + $0x28] sm:$0xff]
    %v1049 = vld [vmem:[%s1042 + $0x30] sm:$0xff]
    %v1050 = vld [vmem:[%s1042 + $0x38] sm:$0xff]
    %1051 = vmatprep.subr.bf16.mxu0 %v847
    %1052 = vmatpush1.bf16.msra.mxu0 %v846
    %1053 = vmatprep.subr.bf16.mxu0 %v851
    %1054 = vmatpush1.bf16.msra.mxu0 %v850
    %1055 = vmatprep.subr.bf16.mxu0 %v855
    %1056 = vmatpush1.bf16.msra.mxu0 %v854
    %1057 = vmatprep.subr.bf16.mxu0 %v859
    %1058 = vmatpush1.bf16.msra.mxu0 %v858
    %1059 = vmatprep.subr.bf16.mxu0 %v863
    %1060 = vmatpush1.bf16.msra.mxu0 %v862
    %1061 = vmatprep.subr.bf16.mxu0 %v867
    %1062 = vmatpush1.bf16.msra.mxu0 %v866
    %1063 = vmatprep.subr.bf16.mxu0 %v871
    %1064 = vmatpush1.bf16.msra.mxu0 %v870
    %1065 = vmatprep.subr.bf16.mxu0 %v875
    %1066 = vmatpush1.bf16.msra.mxu0 %v874
    %1067 = vmatprep.subr.bf16.mxu0 0
    %1068 = vmatpush1.bf16.msra.mxu0 0
    %1069 = vmatprep.subr.bf16.mxu0 0
    %1070 = vmatpush1.bf16.msra.mxu0 0
    %1071 = vmatprep.subr.bf16.mxu0 0
    %1072 = vmatpush1.bf16.msra.mxu0 0
    %1073 = vmatprep.subr.bf16.mxu0 0
    %1074 = vmatpush1.bf16.msra.mxu0 0
    %1075 = vmatprep.subr.bf16.mxu0 0
    %1076 = vmatpush1.bf16.msra.mxu0 0
    %1077 = vmatprep.subr.bf16.mxu0 0
    %1078 = vmatpush1.bf16.msra.mxu0 0
    %1079 = vmatprep.subr.bf16.mxu0 0
    %1080 = vmatpush1.bf16.msra.mxu0 0
    %1081 = vmatprep.subr.bf16.mxu0 0
    %1082 = vmatpush1.bf16.msra.mxu0 0
    %1083 = vmatprep.mubr.bf16.mxu0 0
    %1084 = vmatmul.mubr.bf16.gmra.mrb[0].mxu0 %v1040
    %v1085 = vpop.f32.mrb[0].mxu0
    %v1086 = vadd.f32 0.0, %v1085
    %v1087 = vpop.f32.mrb[0].mxu0
    %v1088 = vadd.f32 0.0, %v1087
    %v1089 = vpop.f32.mrb[0].mxu0
    %v1090 = vadd.f32 0.0, %v1089
    %v1091 = vpop.f32.mrb[0].mxu0
    %v1092 = vadd.f32 0.0, %v1091
    %1093 = vdwg.mxu0
    %1094 = vmatprep.subr.bf16.mxu0 %v849
    %1095 = vmatpush1.bf16.msra.mxu0 %v848
    %1096 = vmatprep.subr.bf16.mxu0 %v853
    %1097 = vmatpush1.bf16.msra.mxu0 %v852
    %1098 = vmatprep.subr.bf16.mxu0 %v857
    %1099 = vmatpush1.bf16.msra.mxu0 %v856
    %1100 = vmatprep.subr.bf16.mxu0 %v861
    %1101 = vmatpush1.bf16.msra.mxu0 %v860
    %1102 = vmatprep.subr.bf16.mxu0 %v865
    %1103 = vmatpush1.bf16.msra.mxu0 %v864
    %1104 = vmatprep.subr.bf16.mxu0 %v869
    %1105 = vmatpush1.bf16.msra.mxu0 %v868
    %1106 = vmatprep.subr.bf16.mxu0 %v873
    %1107 = vmatpush1.bf16.msra.mxu0 %v872
    %1108 = vmatprep.subr.bf16.mxu0 %v877
    %1109 = vmatpush1.bf16.msra.mxu0 %v876
    %1110 = vmatprep.subr.bf16.mxu0 0
    %1111 = vmatpush1.bf16.msra.mxu0 0
    %1112 = vmatprep.subr.bf16.mxu0 0
    %1113 = vmatpush1.bf16.msra.mxu0 0
    %1114 = vmatprep.subr.bf16.mxu0 0
    %1115 = vmatpush1.bf16.msra.mxu0 0
    %1116 = vmatprep.subr.bf16.mxu0 0
    %1117 = vmatpush1.bf16.msra.mxu0 0
    %1118 = vmatprep.subr.bf16.mxu0 0
    %1119 = vmatpush1.bf16.msra.mxu0 0
    %1120 = vmatprep.subr.bf16.mxu0 0
    %1121 = vmatpush1.bf16.msra.mxu0 0
    %1122 = vmatprep.subr.bf16.mxu0 0
    %1123 = vmatpush1.bf16.msra.mxu0 0
    %1124 = vmatprep.subr.bf16.mxu0 0
    %1125 = vmatpush1.bf16.msra.mxu0 0
    %1126 = vmatprep.mubr.bf16.mxu0 0
    %1127 = vmatmul.mubr.bf16.gmra.mrb[0].mxu0 %v1040
    %v1128 = vpop.f32.mrb[0].mxu0
    %v1129 = vadd.f32 0.0, %v1128
    %v1130 = vpop.f32.mrb[0].mxu0
    %v1131 = vadd.f32 0.0, %v1130
    %v1132 = vpop.f32.mrb[0].mxu0
    %v1133 = vadd.f32 0.0, %v1132
    %v1134 = vpop.f32.mrb[0].mxu0
    %v1135 = vadd.f32 0.0, %v1134
    %1136 = vdwg.mxu0
    %v1137 = vadd.f32 %v1043, %v1086
    %v1138 = vadd.f32 %v1044, %v1088
    %v1139 = vadd.f32 %v1045, %v1129
    %v1140 = vadd.f32 %v1046, %v1131
    %v1141 = vadd.f32 %v1047, %v1090
    %v1142 = vadd.f32 %v1048, %v1092
    %v1143 = vadd.f32 %v1049, %v1133
    %v1144 = vadd.f32 %v1050, %v1135
    %v1145 = vmul.f32 %v1137, 0.5
    %v1146 = vmul.f32 %v1141, 0.5
    %v1147 = vtanh.pop %v1145
    %v1148 = vtanh.pop %v1146
    %v1149 = vmul.f32 %v1147, 0.5
    %v1150 = vmul.f32 %v1148, 0.5
    %v1151 = vadd.f32 %v1149, 0.5
    %v1152 = vadd.f32 %v1150, 0.5
    %v1153 = vmul.f32 %v1138, 0.5
    %v1154 = vmul.f32 %v1142, 0.5
    %v1155 = vtanh.pop %v1153
    %v1156 = vtanh.pop %v1154
    %v1157 = vmul.f32 %v1155, 0.5
    %v1158 = vmul.f32 %v1156, 0.5
    %v1159 = vadd.f32 %v1157, 0.5
    %v1160 = vadd.f32 %v1158, 0.5
    %v1161 = vtanh.pop %v1139
    %v1162 = vtanh.pop %v1143
    %v1163 = vmul.f32 %v1140, 0.5
    %v1164 = vmul.f32 %v1144, 0.5
    %v1165 = vtanh.pop %v1163
    %v1166 = vtanh.pop %v1164
    %v1167 = vmul.f32 %v1165, 0.5
    %v1168 = vmul.f32 %v1166, 0.5
    %v1169 = vadd.f32 %v1167, 0.5
    %v1170 = vadd.f32 %v1168, 0.5
    %v1171 = vmul.f32 %v1159, %v1034
    %v1172 = vmul.f32 %v1160, %v1035
    %v1173 = vmul.f32 %v1151, %v1161
    %v1174 = vmul.f32 %v1152, %v1162
    %v1175 = vadd.f32 %v1171, %v1173
    %v1176 = vadd.f32 %v1172, %v1174
    %v1177 = vtanh.pop %v1175
    %v1178 = vtanh.pop %v1176
    %v1179 = vmul.f32 %v1169, %v1177
    %v1180 = vmul.f32 %v1170, %v1178
    %v1181 = vpack.c.bf16 %v1180, %v1179
    %s1182 = scalar_lea.vmem [#allocation2], 8
    %1183 = vst [vmem:[%s1182] sm:$0xff] %v1181
    %s1184 = scalar_lea.vmem [#allocation3], 128
    %v1185 = vld [vmem:[%s1184] sm:$0xff]
    %v1186 = vld [vmem:[%s1184 + $0x8] sm:$0xff]
    %v1187 = vld [vmem:[%s1184 + $0x10] sm:$0xff]
    %v1188 = vld [vmem:[%s1184 + $0x18] sm:$0xff]
    %v1189 = vld [vmem:[%s1184 + $0x20] sm:$0xff]
    %v1190 = vld [vmem:[%s1184 + $0x28] sm:$0xff]
    %v1191 = vld [vmem:[%s1184 + $0x30] sm:$0xff]
    %v1192 = vld [vmem:[%s1184 + $0x38] sm:$0xff]
    %1193 = vmatprep.subr.bf16.mxu0 %v847
    %1194 = vmatpush1.bf16.msra.mxu0 %v846
    %1195 = vmatprep.subr.bf16.mxu0 %v851
    %1196 = vmatpush1.bf16.msra.mxu0 %v850
    %1197 = vmatprep.subr.bf16.mxu0 %v855
    %1198 = vmatpush1.bf16.msra.mxu0 %v854
    %1199 = vmatprep.subr.bf16.mxu0 %v859
    %1200 = vmatpush1.bf16.msra.mxu0 %v858
    %1201 = vmatprep.subr.bf16.mxu0 %v863
    %1202 = vmatpush1.bf16.msra.mxu0 %v862
    %1203 = vmatprep.subr.bf16.mxu0 %v867
    %1204 = vmatpush1.bf16.msra.mxu0 %v866
    %1205 = vmatprep.subr.bf16.mxu0 %v871
    %1206 = vmatpush1.bf16.msra.mxu0 %v870
    %1207 = vmatprep.subr.bf16.mxu0 %v875
    %1208 = vmatpush1.bf16.msra.mxu0 %v874
    %1209 = vmatprep.subr.bf16.mxu0 0
    %1210 = vmatpush1.bf16.msra.mxu0 0
    %1211 = vmatprep.subr.bf16.mxu0 0
    %1212 = vmatpush1.bf16.msra.mxu0 0
    %1213 = vmatprep.subr.bf16.mxu0 0
    %1214 = vmatpush1.bf16.msra.mxu0 0
    %1215 = vmatprep.subr.bf16.mxu0 0
    %1216 = vmatpush1.bf16.msra.mxu0 0
    %1217 = vmatprep.subr.bf16.mxu0 0
    %1218 = vmatpush1.bf16.msra.mxu0 0
    %1219 = vmatprep.subr.bf16.mxu0 0
    %1220 = vmatpush1.bf16.msra.mxu0 0
    %1221 = vmatprep.subr.bf16.mxu0 0
    %1222 = vmatpush1.bf16.msra.mxu0 0
    %1223 = vmatprep.subr.bf16.mxu0 0
    %1224 = vmatpush1.bf16.msra.mxu0 0
    %1225 = vmatprep.mubr.bf16.mxu0 0
    %1226 = vmatmul.mubr.bf16.gmra.mrb[0].mxu0 %v1181
    %v1227 = vpop.f32.mrb[0].mxu0
    %v1228 = vadd.f32 0.0, %v1227
    %v1229 = vpop.f32.mrb[0].mxu0
    %v1230 = vadd.f32 0.0, %v1229
    %v1231 = vpop.f32.mrb[0].mxu0
    %v1232 = vadd.f32 0.0, %v1231
    %v1233 = vpop.f32.mrb[0].mxu0
    %v1234 = vadd.f32 0.0, %v1233
    %1235 = vdwg.mxu0
    %1236 = vmatprep.subr.bf16.mxu0 %v849
    %1237 = vmatpush1.bf16.msra.mxu0 %v848
    %1238 = vmatprep.subr.bf16.mxu0 %v853
    %1239 = vmatpush1.bf16.msra.mxu0 %v852
    %1240 = vmatprep.subr.bf16.mxu0 %v857
    %1241 = vmatpush1.bf16.msra.mxu0 %v856
    %1242 = vmatprep.subr.bf16.mxu0 %v861
    %1243 = vmatpush1.bf16.msra.mxu0 %v860
    %1244 = vmatprep.subr.bf16.mxu0 %v865
    %1245 = vmatpush1.bf16.msra.mxu0 %v864
    %1246 = vmatprep.subr.bf16.mxu0 %v869
    %1247 = vmatpush1.bf16.msra.mxu0 %v868
    %1248 = vmatprep.subr.bf16.mxu0 %v873
    %1249 = vmatpush1.bf16.msra.mxu0 %v872
    %1250 = vmatprep.subr.bf16.mxu0 %v877
    %1251 = vmatpush1.bf16.msra.mxu0 %v876
    %1252 = vmatprep.subr.bf16.mxu0 0
    %1253 = vmatpush1.bf16.msra.mxu0 0
    %1254 = vmatprep.subr.bf16.mxu0 0
    %1255 = vmatpush1.bf16.msra.mxu0 0
    %1256 = vmatprep.subr.bf16.mxu0 0
    %1257 = vmatpush1.bf16.msra.mxu0 0
    %1258 = vmatprep.subr.bf16.mxu0 0
    %1259 = vmatpush1.bf16.msra.mxu0 0
    %1260 = vmatprep.subr.bf16.mxu0 0
    %1261 = vmatpush1.bf16.msra.mxu0 0
    %1262 = vmatprep.subr.bf16.mxu0 0
    %1263 = vmatpush1.bf16.msra.mxu0 0
    %1264 = vmatprep.subr.bf16.mxu0 0
    %1265 = vmatpush1.bf16.msra.mxu0 0
    %1266 = vmatprep.subr.bf16.mxu0 0
    %1267 = vmatpush1.bf16.msra.mxu0 0
    %1268 = vmatprep.mubr.bf16.mxu0 0
    %1269 = vmatmul.mubr.bf16.gmra.mrb[0].mxu0 %v1181
    %v1270 = vpop.f32.mrb[0].mxu0
    %v1271 = vadd.f32 0.0, %v1270
    %v1272 = vpop.f32.mrb[0].mxu0
    %v1273 = vadd.f32 0.0, %v1272
    %v1274 = vpop.f32.mrb[0].mxu0
    %v1275 = vadd.f32 0.0, %v1274
    %v1276 = vpop.f32.mrb[0].mxu0
    %v1277 = vadd.f32 0.0, %v1276
    %1278 = vdwg.mxu0
    %v1279 = vadd.f32 %v1185, %v1228
    %v1280 = vadd.f32 %v1186, %v1230
    %v1281 = vadd.f32 %v1187, %v1271
    %v1282 = vadd.f32 %v1188, %v1273
    %v1283 = vadd.f32 %v1189, %v1232
    %v1284 = vadd.f32 %v1190, %v1234
    %v1285 = vadd.f32 %v1191, %v1275
    %v1286 = vadd.f32 %v1192, %v1277
    %v1287 = vmul.f32 %v1279, 0.5
    %v1288 = vmul.f32 %v1283, 0.5
    %v1289 = vtanh.pop %v1287
    %v1290 = vtanh.pop %v1288
    %v1291 = vmul.f32 %v1289, 0.5
    %v1292 = vmul.f32 %v1290, 0.5
    %v1293 = vadd.f32 %v1291, 0.5
    %v1294 = vadd.f32 %v1292, 0.5
    %v1295 = vmul.f32 %v1280, 0.5
    %v1296 = vmul.f32 %v1284, 0.5
    %v1297 = vtanh.pop %v1295
    %v1298 = vtanh.pop %v1296
    %v1299 = vmul.f32 %v1297, 0.5
    %v1300 = vmul.f32 %v1298, 0.5
    %v1301 = vadd.f32 %v1299, 0.5
    %v1302 = vadd.f32 %v1300, 0.5
    %v1303 = vtanh.pop %v1281
    %v1304 = vtanh.pop %v1285
    %v1305 = vmul.f32 %v1282, 0.5
    %v1306 = vmul.f32 %v1286, 0.5
    %v1307 = vtanh.pop %v1305
    %v1308 = vtanh.pop %v1306
    %v1309 = vmul.f32 %v1307, 0.5
    %v1310 = vmul.f32 %v1308, 0.5
    %v1311 = vadd.f32 %v1309, 0.5
    %v1312 = vadd.f32 %v1310, 0.5
    %v1313 = vmul.f32 %v1301, %v1175
    %v1314 = vmul.f32 %v1302, %v1176
    %v1315 = vmul.f32 %v1293, %v1303
    %v1316 = vmul.f32 %v1294, %v1304
    %v1317 = vadd.f32 %v1313, %v1315
    %v1318 = vadd.f32 %v1314, %v1316
    %v1319 = vtanh.pop %v1317
    %v1320 = vtanh.pop %v1318
    %v1321 = vmul.f32 %v1311, %v1319
    %v1322 = vmul.f32 %v1312, %v1320
    %v1323 = vpack.c.bf16 %v1322, %v1321
    %s1324 = scalar_lea.vmem [#allocation2], 16
    %1325 = vst [vmem:[%s1324] sm:$0xff] %v1323
    %s1326 = scalar_lea.vmem [#allocation3], 192
    %v1327 = vld [vmem:[%s1326] sm:$0xff]
    %v1328 = vld [vmem:[%s1326 + $0x8] sm:$0xff]
    %v1329 = vld [vmem:[%s1326 + $0x10] sm:$0xff]
    %v1330 = vld [vmem:[%s1326 + $0x18] sm:$0xff]
    %v1331 = vld [vmem:[%s1326 + $0x20] sm:$0xff]
    %v1332 = vld [vmem:[%s1326 + $0x28] sm:$0xff]
    %v1333 = vld [vmem:[%s1326 + $0x30] sm:$0xff]
    %v1334 = vld [vmem:[%s1326 + $0x38] sm:$0xff]
    %1335 = vmatprep.subr.bf16.mxu0 %v847
    %1336 = vmatpush1.bf16.msra.mxu0 %v846
    %1337 = vmatprep.subr.bf16.mxu0 %v851
    %1338 = vmatpush1.bf16.msra.mxu0 %v850
    %1339 = vmatprep.subr.bf16.mxu0 %v855
    %1340 = vmatpush1.bf16.msra.mxu0 %v854
    %1341 = vmatprep.subr.bf16.mxu0 %v859
    %1342 = vmatpush1.bf16.msra.mxu0 %v858
    %1343 = vmatprep.subr.bf16.mxu0 %v863
    %1344 = vmatpush1.bf16.msra.mxu0 %v862
    %1345 = vmatprep.subr.bf16.mxu0 %v867
    %1346 = vmatpush1.bf16.msra.mxu0 %v866
    %1347 = vmatprep.subr.bf16.mxu0 %v871
    %1348 = vmatpush1.bf16.msra.mxu0 %v870
    %1349 = vmatprep.subr.bf16.mxu0 %v875
    %1350 = vmatpush1.bf16.msra.mxu0 %v874
    %1351 = vmatprep.subr.bf16.mxu0 0
    %1352 = vmatpush1.bf16.msra.mxu0 0
    %1353 = vmatprep.subr.bf16.mxu0 0
    %1354 = vmatpush1.bf16.msra.mxu0 0
    %1355 = vmatprep.subr.bf16.mxu0 0
    %1356 = vmatpush1.bf16.msra.mxu0 0
    %1357 = vmatprep.subr.bf16.mxu0 0
    %1358 = vmatpush1.bf16.msra.mxu0 0
    %1359 = vmatprep.subr.bf16.mxu0 0
    %1360 = vmatpush1.bf16.msra.mxu0 0
    %1361 = vmatprep.subr.bf16.mxu0 0
    %1362 = vmatpush1.bf16.msra.mxu0 0
    %1363 = vmatprep.subr.bf16.mxu0 0
    %1364 = vmatpush1.bf16.msra.mxu0 0
    %1365 = vmatprep.subr.bf16.mxu0 0
    %1366 = vmatpush1.bf16.msra.mxu0 0
    %1367 = vmatprep.mubr.bf16.mxu0 0
    %1368 = vmatmul.mubr.bf16.gmra.mrb[0].mxu0 %v1323
    %v1369 = vpop.f32.mrb[0].mxu0
    %v1370 = vadd.f32 0.0, %v1369
    %v1371 = vpop.f32.mrb[0].mxu0
    %v1372 = vadd.f32 0.0, %v1371
    %v1373 = vpop.f32.mrb[0].mxu0
    %v1374 = vadd.f32 0.0, %v1373
    %v1375 = vpop.f32.mrb[0].mxu0
    %v1376 = vadd.f32 0.0, %v1375
    %1377 = vdwg.mxu0
    %1378 = vmatprep.subr.bf16.mxu0 %v849
    %1379 = vmatpush1.bf16.msra.mxu0 %v848
    %1380 = vmatprep.subr.bf16.mxu0 %v853
    %1381 = vmatpush1.bf16.msra.mxu0 %v852
    %1382 = vmatprep.subr.bf16.mxu0 %v857
    %1383 = vmatpush1.bf16.msra.mxu0 %v856
    %1384 = vmatprep.subr.bf16.mxu0 %v861
    %1385 = vmatpush1.bf16.msra.mxu0 %v860
    %1386 = vmatprep.subr.bf16.mxu0 %v865
    %1387 = vmatpush1.bf16.msra.mxu0 %v864
    %1388 = vmatprep.subr.bf16.mxu0 %v869
    %1389 = vmatpush1.bf16.msra.mxu0 %v868
    %1390 = vmatprep.subr.bf16.mxu0 %v873
    %1391 = vmatpush1.bf16.msra.mxu0 %v872
    %1392 = vmatprep.subr.bf16.mxu0 %v877
    %1393 = vmatpush1.bf16.msra.mxu0 %v876
    %1394 = vmatprep.subr.bf16.mxu0 0
    %1395 = vmatpush1.bf16.msra.mxu0 0
    %1396 = vmatprep.subr.bf16.mxu0 0
    %1397 = vmatpush1.bf16.msra.mxu0 0
    %1398 = vmatprep.subr.bf16.mxu0 0
    %1399 = vmatpush1.bf16.msra.mxu0 0
    %1400 = vmatprep.subr.bf16.mxu0 0
    %1401 = vmatpush1.bf16.msra.mxu0 0
    %1402 = vmatprep.subr.bf16.mxu0 0
    %1403 = vmatpush1.bf16.msra.mxu0 0
    %1404 = vmatprep.subr.bf16.mxu0 0
    %1405 = vmatpush1.bf16.msra.mxu0 0
    %1406 = vmatprep.subr.bf16.mxu0 0
    %1407 = vmatpush1.bf16.msra.mxu0 0
    %1408 = vmatprep.subr.bf16.mxu0 0
    %1409 = vmatpush1.bf16.msra.mxu0 0
    %1410 = vmatprep.mubr.bf16.mxu0 0
    %1411 = vmatmul.mubr.bf16.gmra.mrb[0].mxu0 %v1323
    %v1412 = vpop.f32.mrb[0].mxu0
    %v1413 = vadd.f32 0.0, %v1412
    %v1414 = vpop.f32.mrb[0].mxu0
    %v1415 = vadd.f32 0.0, %v1414
    %v1416 = vpop.f32.mrb[0].mxu0
    %v1417 = vadd.f32 0.0, %v1416
    %v1418 = vpop.f32.mrb[0].mxu0
    %v1419 = vadd.f32 0.0, %v1418
    %1420 = vdwg.mxu0
    %v1421 = vadd.f32 %v1327, %v1370
    %v1422 = vadd.f32 %v1328, %v1372
    %v1423 = vadd.f32 %v1329, %v1413
    %v1424 = vadd.f32 %v1330, %v1415
    %v1425 = vadd.f32 %v1331, %v1374
    %v1426 = vadd.f32 %v1332, %v1376
    %v1427 = vadd.f32 %v1333, %v1417
    %v1428 = vadd.f32 %v1334, %v1419
    %v1429 = vmul.f32 %v1421, 0.5
    %v1430 = vmul.f32 %v1425, 0.5
    %v1431 = vtanh.pop %v1429
    %v1432 = vtanh.pop %v1430
    %v1433 = vmul.f32 %v1431, 0.5
    %v1434 = vmul.f32 %v1432, 0.5
    %v1435 = vadd.f32 %v1433, 0.5
    %v1436 = vadd.f32 %v1434, 0.5
    %v1437 = vmul.f32 %v1422, 0.5
    %v1438 = vmul.f32 %v1426, 0.5
    %v1439 = vtanh.pop %v1437
    %v1440 = vtanh.pop %v1438
    %v1441 = vmul.f32 %v1439, 0.5
    %v1442 = vmul.f32 %v1440, 0.5
    %v1443 = vadd.f32 %v1441, 0.5
    %v1444 = vadd.f32 %v1442, 0.5
    %v1445 = vtanh.pop %v1423
    %v1446 = vtanh.pop %v1427
    %v1447 = vmul.f32 %v1424, 0.5
    %v1448 = vmul.f32 %v1428, 0.5
    %v1449 = vtanh.pop %v1447
    %v1450 = vtanh.pop %v1448
    %v1451 = vmul.f32 %v1449, 0.5
    %v1452 = vmul.f32 %v1450, 0.5
    %v1453 = vadd.f32 %v1451, 0.5
    %v1454 = vadd.f32 %v1452, 0.5
    %v1455 = vmul.f32 %v1443, %v1317
    %v1456 = vmul.f32 %v1444, %v1318
    %v1457 = vmul.f32 %v1435, %v1445
    %v1458 = vmul.f32 %v1436, %v1446
    %v1459 = vadd.f32 %v1455, %v1457
    %v1460 = vadd.f32 %v1456, %v1458
    %v1461 = vtanh.pop %v1459
    %v1462 = vtanh.pop %v1460
    %v1463 = vmul.f32 %v1453, %v1461
    %v1464 = vmul.f32 %v1454, %v1462
    %v1465 = vpack.c.bf16 %v1464, %v1463
    %s1466 = scalar_lea.vmem [#allocation2], 24
    %1467 = vst [vmem:[%s1466] sm:$0xff] %v1465
    %s1468 = scalar_lea.vmem [#allocation3], 256
    %v1469 = vld [vmem:[%s1468] sm:$0xff]
    %v1470 = vld [vmem:[%s1468 + $0x8] sm:$0xff]
    %v1471 = vld [vmem:[%s1468 + $0x10] sm:$0xff]
    %v1472 = vld [vmem:[%s1468 + $0x18] sm:$0xff]
    %v1473 = vld [vmem:[%s1468 + $0x20] sm:$0xff]
    %v1474 = vld [vmem:[%s1468 + $0x28] sm:$0xff]
    %v1475 = vld [vmem:[%s1468 + $0x30] sm:$0xff]
    %v1476 = vld [vmem:[%s1468 + $0x38] sm:$0xff]
    %1477 = vmatprep.subr.bf16.mxu0 %v847
    %1478 = vmatpush1.bf16.msra.mxu0 %v846
    %1479 = vmatprep.subr.bf16.mxu0 %v851
    %1480 = vmatpush1.bf16.msra.mxu0 %v850
    %1481 = vmatprep.subr.bf16.mxu0 %v855
    %1482 = vmatpush1.bf16.msra.mxu0 %v854
    %1483 = vmatprep.subr.bf16.mxu0 %v859
    %1484 = vmatpush1.bf16.msra.mxu0 %v858
    %1485 = vmatprep.subr.bf16.mxu0 %v863
    %1486 = vmatpush1.bf16.msra.mxu0 %v862
    %1487 = vmatprep.subr.bf16.mxu0 %v867
    %1488 = vmatpush1.bf16.msra.mxu0 %v866
    %1489 = vmatprep.subr.bf16.mxu0 %v871
    %1490 = vmatpush1.bf16.msra.mxu0 %v870
    %1491 = vmatprep.subr.bf16.mxu0 %v875
    %1492 = vmatpush1.bf16.msra.mxu0 %v874
    %1493 = vmatprep.subr.bf16.mxu0 0
    %1494 = vmatpush1.bf16.msra.mxu0 0
    %1495 = vmatprep.subr.bf16.mxu0 0
    %1496 = vmatpush1.bf16.msra.mxu0 0
    %1497 = vmatprep.subr.bf16.mxu0 0
    %1498 = vmatpush1.bf16.msra.mxu0 0
    %1499 = vmatprep.subr.bf16.mxu0 0
    %1500 = vmatpush1.bf16.msra.mxu0 0
    %1501 = vmatprep.subr.bf16.mxu0 0
    %1502 = vmatpush1.bf16.msra.mxu0 0
    %1503 = vmatprep.subr.bf16.mxu0 0
    %1504 = vmatpush1.bf16.msra.mxu0 0
    %1505 = vmatprep.subr.bf16.mxu0 0
    %1506 = vmatpush1.bf16.msra.mxu0 0
    %1507 = vmatprep.subr.bf16.mxu0 0
    %1508 = vmatpush1.bf16.msra.mxu0 0
    %1509 = vmatprep.mubr.bf16.mxu0 0
    %1510 = vmatmul.mubr.bf16.gmra.mrb[0].mxu0 %v1465
    %v1511 = vpop.f32.mrb[0].mxu0
    %v1512 = vadd.f32 0.0, %v1511
    %v1513 = vpop.f32.mrb[0].mxu0
    %v1514 = vadd.f32 0.0, %v1513
    %v1515 = vpop.f32.mrb[0].mxu0
    %v1516 = vadd.f32 0.0, %v1515
    %v1517 = vpop.f32.mrb[0].mxu0
    %v1518 = vadd.f32 0.0, %v1517
    %1519 = vdwg.mxu0
    %1520 = vmatprep.subr.bf16.mxu0 %v849
    %1521 = vmatpush1.bf16.msra.mxu0 %v848
    %1522 = vmatprep.subr.bf16.mxu0 %v853
    %1523 = vmatpush1.bf16.msra.mxu0 %v852
    %1524 = vmatprep.subr.bf16.mxu0 %v857
    %1525 = vmatpush1.bf16.msra.mxu0 %v856
    %1526 = vmatprep.subr.bf16.mxu0 %v861
    %1527 = vmatpush1.bf16.msra.mxu0 %v860
    %1528 = vmatprep.subr.bf16.mxu0 %v865
    %1529 = vmatpush1.bf16.msra.mxu0 %v864
    %1530 = vmatprep.subr.bf16.mxu0 %v869
    %1531 = vmatpush1.bf16.msra.mxu0 %v868
    %1532 = vmatprep.subr.bf16.mxu0 %v873
    %1533 = vmatpush1.bf16.msra.mxu0 %v872
    %1534 = vmatprep.subr.bf16.mxu0 %v877
    %1535 = vmatpush1.bf16.msra.mxu0 %v876
    %1536 = vmatprep.subr.bf16.mxu0 0
    %1537 = vmatpush1.bf16.msra.mxu0 0
    %1538 = vmatprep.subr.bf16.mxu0 0
    %1539 = vmatpush1.bf16.msra.mxu0 0
    %1540 = vmatprep.subr.bf16.mxu0 0
    %1541 = vmatpush1.bf16.msra.mxu0 0
    %1542 = vmatprep.subr.bf16.mxu0 0
    %1543 = vmatpush1.bf16.msra.mxu0 0
    %1544 = vmatprep.subr.bf16.mxu0 0
    %1545 = vmatpush1.bf16.msra.mxu0 0
    %1546 = vmatprep.subr.bf16.mxu0 0
    %1547 = vmatpush1.bf16.msra.mxu0 0
    %1548 = vmatprep.subr.bf16.mxu0 0
    %1549 = vmatpush1.bf16.msra.mxu0 0
    %1550 = vmatprep.subr.bf16.mxu0 0
    %1551 = vmatpush1.bf16.msra.mxu0 0
    %1552 = vmatprep.mubr.bf16.mxu0 0
    %1553 = vmatmul.mubr.bf16.gmra.mrb[0].mxu0 %v1465
    %v1554 = vpop.f32.mrb[0].mxu0
    %v1555 = vadd.f32 0.0, %v1554
    %v1556 = vpop.f32.mrb[0].mxu0
    %v1557 = vadd.f32 0.0, %v1556
    %v1558 = vpop.f32.mrb[0].mxu0
    %v1559 = vadd.f32 0.0, %v1558
    %v1560 = vpop.f32.mrb[0].mxu0
    %v1561 = vadd.f32 0.0, %v1560
    %1562 = vdwg.mxu0
    %v1563 = vadd.f32 %v1469, %v1512
    %v1564 = vadd.f32 %v1470, %v1514
    %v1565 = vadd.f32 %v1471, %v1555
    %v1566 = vadd.f32 %v1472, %v1557
    %v1567 = vadd.f32 %v1473, %v1516
    %v1568 = vadd.f32 %v1474, %v1518
    %v1569 = vadd.f32 %v1475, %v1559
    %v1570 = vadd.f32 %v1476, %v1561
    %v1571 = vmul.f32 %v1563, 0.5
    %v1572 = vmul.f32 %v1567, 0.5
    %v1573 = vtanh.pop %v1571
    %v1574 = vtanh.pop %v1572
    %v1575 = vmul.f32 %v1573, 0.5
    %v1576 = vmul.f32 %v1574, 0.5
    %v1577 = vadd.f32 %v1575, 0.5
    %v1578 = vadd.f32 %v1576, 0.5
    %v1579 = vmul.f32 %v1564, 0.5
    %v1580 = vmul.f32 %v1568, 0.5
    %v1581 = vtanh.pop %v1579
    %v1582 = vtanh.pop %v1580
    %v1583 = vmul.f32 %v1581, 0.5
    %v1584 = vmul.f32 %v1582, 0.5
    %v1585 = vadd.f32 %v1583, 0.5
    %v1586 = vadd.f32 %v1584, 0.5
    %v1587 = vtanh.pop %v1565
    %v1588 = vtanh.pop %v1569
    %v1589 = vmul.f32 %v1566, 0.5
    %v1590 = vmul.f32 %v1570, 0.5
    %v1591 = vtanh.pop %v1589
    %v1592 = vtanh.pop %v1590
    %v1593 = vmul.f32 %v1591, 0.5
    %v1594 = vmul.f32 %v1592, 0.5
    %v1595 = vadd.f32 %v1593, 0.5
    %v1596 = vadd.f32 %v1594, 0.5
    %v1597 = vmul.f32 %v1585, %v1459
    %v1598 = vmul.f32 %v1586, %v1460
    %v1599 = vmul.f32 %v1577, %v1587
    %v1600 = vmul.f32 %v1578, %v1588
    %v1601 = vadd.f32 %v1597, %v1599
    %v1602 = vadd.f32 %v1598, %v1600
    %v1603 = vtanh.pop %v1601
    %v1604 = vtanh.pop %v1602
    %v1605 = vmul.f32 %v1595, %v1603
    %v1606 = vmul.f32 %v1596, %v1604
    %v1607 = vpack.c.bf16 %v1606, %v1605
    %s1608 = scalar_lea.vmem [#allocation2], 32
    %1609 = vst [vmem:[%s1608] sm:$0xff] %v1607
    %s1610 = scalar_lea.vmem [#allocation3], 320
    %v1611 = vld [vmem:[%s1610] sm:$0xff]
    %v1612 = vld [vmem:[%s1610 + $0x8] sm:$0xff]
    %v1613 = vld [vmem:[%s1610 + $0x10] sm:$0xff]
    %v1614 = vld [vmem:[%s1610 + $0x18] sm:$0xff]
    %v1615 = vld [vmem:[%s1610 + $0x20] sm:$0xff]
    %v1616 = vld [vmem:[%s1610 + $0x28] sm:$0xff]
    %v1617 = vld [vmem:[%s1610 + $0x30] sm:$0xff]
    %v1618 = vld [vmem:[%s1610 + $0x38] sm:$0xff]
    %1619 = vmatprep.subr.bf16.mxu0 %v847
    %1620 = vmatpush1.bf16.msra.mxu0 %v846
    %1621 = vmatprep.subr.bf16.mxu0 %v851
    %1622 = vmatpush1.bf16.msra.mxu0 %v850
    %1623 = vmatprep.subr.bf16.mxu0 %v855
    %1624 = vmatpush1.bf16.msra.mxu0 %v854
    %1625 = vmatprep.subr.bf16.mxu0 %v859
    %1626 = vmatpush1.bf16.msra.mxu0 %v858
    %1627 = vmatprep.subr.bf16.mxu0 %v863
    %1628 = vmatpush1.bf16.msra.mxu0 %v862
    %1629 = vmatprep.subr.bf16.mxu0 %v867
    %1630 = vmatpush1.bf16.msra.mxu0 %v866
    %1631 = vmatprep.subr.bf16.mxu0 %v871
    %1632 = vmatpush1.bf16.msra.mxu0 %v870
    %1633 = vmatprep.subr.bf16.mxu0 %v875
    %1634 = vmatpush1.bf16.msra.mxu0 %v874
    %1635 = vmatprep.subr.bf16.mxu0 0
    %1636 = vmatpush1.bf16.msra.mxu0 0
    %1637 = vmatprep.subr.bf16.mxu0 0
    %1638 = vmatpush1.bf16.msra.mxu0 0
    %1639 = vmatprep.subr.bf16.mxu0 0
    %1640 = vmatpush1.bf16.msra.mxu0 0
    %1641 = vmatprep.subr.bf16.mxu0 0
    %1642 = vmatpush1.bf16.msra.mxu0 0
    %1643 = vmatprep.subr.bf16.mxu0 0
    %1644 = vmatpush1.bf16.msra.mxu0 0
    %1645 = vmatprep.subr.bf16.mxu0 0
    %1646 = vmatpush1.bf16.msra.mxu0 0
    %1647 = vmatprep.subr.bf16.mxu0 0
    %1648 = vmatpush1.bf16.msra.mxu0 0
    %1649 = vmatprep.subr.bf16.mxu0 0
    %1650 = vmatpush1.bf16.msra.mxu0 0
    %1651 = vmatprep.mubr.bf16.mxu0 0
    %1652 = vmatmul.mubr.bf16.gmra.mrb[0].mxu0 %v1607
    %v1653 = vpop.f32.mrb[0].mxu0
    %v1654 = vadd.f32 0.0, %v1653
    %v1655 = vpop.f32.mrb[0].mxu0
    %v1656 = vadd.f32 0.0, %v1655
    %v1657 = vpop.f32.mrb[0].mxu0
    %v1658 = vadd.f32 0.0, %v1657
    %v1659 = vpop.f32.mrb[0].mxu0
    %v1660 = vadd.f32 0.0, %v1659
    %1661 = vdwg.mxu0
    %1662 = vmatprep.subr.bf16.mxu0 %v849
    %1663 = vmatpush1.bf16.msra.mxu0 %v848
    %1664 = vmatprep.subr.bf16.mxu0 %v853
    %1665 = vmatpush1.bf16.msra.mxu0 %v852
    %1666 = vmatprep.subr.bf16.mxu0 %v857
    %1667 = vmatpush1.bf16.msra.mxu0 %v856
    %1668 = vmatprep.subr.bf16.mxu0 %v861
    %1669 = vmatpush1.bf16.msra.mxu0 %v860
    %1670 = vmatprep.subr.bf16.mxu0 %v865
    %1671 = vmatpush1.bf16.msra.mxu0 %v864
    %1672 = vmatprep.subr.bf16.mxu0 %v869
    %1673 = vmatpush1.bf16.msra.mxu0 %v868
    %1674 = vmatprep.subr.bf16.mxu0 %v873
    %1675 = vmatpush1.bf16.msra.mxu0 %v872
    %1676 = vmatprep.subr.bf16.mxu0 %v877
    %1677 = vmatpush1.bf16.msra.mxu0 %v876
    %1678 = vmatprep.subr.bf16.mxu0 0
    %1679 = vmatpush1.bf16.msra.mxu0 0
    %1680 = vmatprep.subr.bf16.mxu0 0
    %1681 = vmatpush1.bf16.msra.mxu0 0
    %1682 = vmatprep.subr.bf16.mxu0 0
    %1683 = vmatpush1.bf16.msra.mxu0 0
    %1684 = vmatprep.subr.bf16.mxu0 0
    %1685 = vmatpush1.bf16.msra.mxu0 0
    %1686 = vmatprep.subr.bf16.mxu0 0
    %1687 = vmatpush1.bf16.msra.mxu0 0
    %1688 = vmatprep.subr.bf16.mxu0 0
    %1689 = vmatpush1.bf16.msra.mxu0 0
    %1690 = vmatprep.subr.bf16.mxu0 0
    %1691 = vmatpush1.bf16.msra.mxu0 0
    %1692 = vmatprep.subr.bf16.mxu0 0
    %1693 = vmatpush1.bf16.msra.mxu0 0
    %1694 = vmatprep.mubr.bf16.mxu0 0
    %1695 = vmatmul.mubr.bf16.gmra.mrb[0].mxu0 %v1607
    %v1696 = vpop.f32.mrb[0].mxu0
    %v1697 = vadd.f32 0.0, %v1696
    %v1698 = vpop.f32.mrb[0].mxu0
    %v1699 = vadd.f32 0.0, %v1698
    %v1700 = vpop.f32.mrb[0].mxu0
    %v1701 = vadd.f32 0.0, %v1700
    %v1702 = vpop.f32.mrb[0].mxu0
    %v1703 = vadd.f32 0.0, %v1702
    %1704 = vdwg.mxu0
    %v1705 = vadd.f32 %v1611, %v1654
    %v1706 = vadd.f32 %v1612, %v1656
    %v1707 = vadd.f32 %v1613, %v1697
    %v1708 = vadd.f32 %v1614, %v1699
    %v1709 = vadd.f32 %v1615, %v1658
    %v1710 = vadd.f32 %v1616, %v1660
    %v1711 = vadd.f32 %v1617, %v1701
    %v1712 = vadd.f32 %v1618, %v1703
    %v1713 = vmul.f32 %v1705, 0.5
    %v1714 = vmul.f32 %v1709, 0.5
    %v1715 = vtanh.pop %v1713
    %v1716 = vtanh.pop %v1714
    %v1717 = vmul.f32 %v1715, 0.5
    %v1718 = vmul.f32 %v1716, 0.5
    %v1719 = vadd.f32 %v1717, 0.5
    %v1720 = vadd.f32 %v1718, 0.5
    %v1721 = vmul.f32 %v1706, 0.5
    %v1722 = vmul.f32 %v1710, 0.5
    %v1723 = vtanh.pop %v1721
    %v1724 = vtanh.pop %v1722
    %v1725 = vmul.f32 %v1723, 0.5
    %v1726 = vmul.f32 %v1724, 0.5
    %v1727 = vadd.f32 %v1725, 0.5
    %v1728 = vadd.f32 %v1726, 0.5
    %v1729 = vtanh.pop %v1707
    %v1730 = vtanh.pop %v1711
    %v1731 = vmul.f32 %v1708, 0.5
    %v1732 = vmul.f32 %v1712, 0.5
    %v1733 = vtanh.pop %v1731
    %v1734 = vtanh.pop %v1732
    %v1735 = vmul.f32 %v1733, 0.5
    %v1736 = vmul.f32 %v1734, 0.5
    %v1737 = vadd.f32 %v1735, 0.5
    %v1738 = vadd.f32 %v1736, 0.5
    %v1739 = vmul.f32 %v1727, %v1601
    %v1740 = vmul.f32 %v1728, %v1602
    %v1741 = vmul.f32 %v1719, %v1729
    %v1742 = vmul.f32 %v1720, %v1730
    %v1743 = vadd.f32 %v1739, %v1741
    %v1744 = vadd.f32 %v1740, %v1742
    %v1745 = vtanh.pop %v1743
    %v1746 = vtanh.pop %v1744
    %v1747 = vmul.f32 %v1737, %v1745
    %v1748 = vmul.f32 %v1738, %v1746
    %v1749 = vpack.c.bf16 %v1748, %v1747
    %s1750 = scalar_lea.vmem [#allocation2], 40
    %1751 = vst [vmem:[%s1750] sm:$0xff] %v1749
    %s1752 = scalar_lea.vmem [#allocation3], 384
    %v1753 = vld [vmem:[%s1752] sm:$0xff]
    %v1754 = vld [vmem:[%s1752 + $0x8] sm:$0xff]
    %v1755 = vld [vmem:[%s1752 + $0x10] sm:$0xff]
    %v1756 = vld [vmem:[%s1752 + $0x18] sm:$0xff]
    %v1757 = vld [vmem:[%s1752 + $0x20] sm:$0xff]
    %v1758 = vld [vmem:[%s1752 + $0x28] sm:$0xff]
    %v1759 = vld [vmem:[%s1752 + $0x30] sm:$0xff]
    %v1760 = vld [vmem:[%s1752 + $0x38] sm:$0xff]
    %1761 = vmatprep.subr.bf16.mxu0 %v847
    %1762 = vmatpush1.bf16.msra.mxu0 %v846
    %1763 = vmatprep.subr.bf16.mxu0 %v851
    %1764 = vmatpush1.bf16.msra.mxu0 %v850
    %1765 = vmatprep.subr.bf16.mxu0 %v855
    %1766 = vmatpush1.bf16.msra.mxu0 %v854
    %1767 = vmatprep.subr.bf16.mxu0 %v859
    %1768 = vmatpush1.bf16.msra.mxu0 %v858
    %1769 = vmatprep.subr.bf16.mxu0 %v863
    %1770 = vmatpush1.bf16.msra.mxu0 %v862
    %1771 = vmatprep.subr.bf16.mxu0 %v867
    %1772 = vmatpush1.bf16.msra.mxu0 %v866
    %1773 = vmatprep.subr.bf16.mxu0 %v871
    %1774 = vmatpush1.bf16.msra.mxu0 %v870
    %1775 = vmatprep.subr.bf16.mxu0 %v875
    %1776 = vmatpush1.bf16.msra.mxu0 %v874
    %1777 = vmatprep.subr.bf16.mxu0 0
    %1778 = vmatpush1.bf16.msra.mxu0 0
    %1779 = vmatprep.subr.bf16.mxu0 0
    %1780 = vmatpush1.bf16.msra.mxu0 0
    %1781 = vmatprep.subr.bf16.mxu0 0
    %1782 = vmatpush1.bf16.msra.mxu0 0
    %1783 = vmatprep.subr.bf16.mxu0 0
    %1784 = vmatpush1.bf16.msra.mxu0 0
    %1785 = vmatprep.subr.bf16.mxu0 0
    %1786 = vmatpush1.bf16.msra.mxu0 0
    %1787 = vmatprep.subr.bf16.mxu0 0
    %1788 = vmatpush1.bf16.msra.mxu0 0
    %1789 = vmatprep.subr.bf16.mxu0 0
    %1790 = vmatpush1.bf16.msra.mxu0 0
    %1791 = vmatprep.subr.bf16.mxu0 0
    %1792 = vmatpush1.bf16.msra.mxu0 0
    %1793 = vmatprep.mubr.bf16.mxu0 0
    %1794 = vmatmul.mubr.bf16.gmra.mrb[0].mxu0 %v1749
    %v1795 = vpop.f32.mrb[0].mxu0
    %v1796 = vadd.f32 0.0, %v1795
    %v1797 = vpop.f32.mrb[0].mxu0
    %v1798 = vadd.f32 0.0, %v1797
    %v1799 = vpop.f32.mrb[0].mxu0
    %v1800 = vadd.f32 0.0, %v1799
    %v1801 = vpop.f32.mrb[0].mxu0
    %v1802 = vadd.f32 0.0, %v1801
    %1803 = vdwg.mxu0
    %1804 = vmatprep.subr.bf16.mxu0 %v849
    %1805 = vmatpush1.bf16.msra.mxu0 %v848
    %1806 = vmatprep.subr.bf16.mxu0 %v853
    %1807 = vmatpush1.bf16.msra.mxu0 %v852
    %1808 = vmatprep.subr.bf16.mxu0 %v857
    %1809 = vmatpush1.bf16.msra.mxu0 %v856
    %1810 = vmatprep.subr.bf16.mxu0 %v861
    %1811 = vmatpush1.bf16.msra.mxu0 %v860
    %1812 = vmatprep.subr.bf16.mxu0 %v865
    %1813 = vmatpush1.bf16.msra.mxu0 %v864
    %1814 = vmatprep.subr.bf16.mxu0 %v869
    %1815 = vmatpush1.bf16.msra.mxu0 %v868
    %1816 = vmatprep.subr.bf16.mxu0 %v873
    %1817 = vmatpush1.bf16.msra.mxu0 %v872
    %1818 = vmatprep.subr.bf16.mxu0 %v877
    %1819 = vmatpush1.bf16.msra.mxu0 %v876
    %1820 = vmatprep.subr.bf16.mxu0 0
    %1821 = vmatpush1.bf16.msra.mxu0 0
    %1822 = vmatprep.subr.bf16.mxu0 0
    %1823 = vmatpush1.bf16.msra.mxu0 0
    %1824 = vmatprep.subr.bf16.mxu0 0
    %1825 = vmatpush1.bf16.msra.mxu0 0
    %1826 = vmatprep.subr.bf16.mxu0 0
    %1827 = vmatpush1.bf16.msra.mxu0 0
    %1828 = vmatprep.subr.bf16.mxu0 0
    %1829 = vmatpush1.bf16.msra.mxu0 0
    %1830 = vmatprep.subr.bf16.mxu0 0
    %1831 = vmatpush1.bf16.msra.mxu0 0
    %1832 = vmatprep.subr.bf16.mxu0 0
    %1833 = vmatpush1.bf16.msra.mxu0 0
    %1834 = vmatprep.subr.bf16.mxu0 0
    %1835 = vmatpush1.bf16.msra.mxu0 0
    %1836 = vmatprep.mubr.bf16.mxu0 0
    %1837 = vmatmul.mubr.bf16.gmra.mrb[0].mxu0 %v1749
    %v1838 = vpop.f32.mrb[0].mxu0
    %v1839 = vadd.f32 0.0, %v1838
    %v1840 = vpop.f32.mrb[0].mxu0
    %v1841 = vadd.f32 0.0, %v1840
    %v1842 = vpop.f32.mrb[0].mxu0
    %v1843 = vadd.f32 0.0, %v1842
    %v1844 = vpop.f32.mrb[0].mxu0
    %v1845 = vadd.f32 0.0, %v1844
    %1846 = vdwg.mxu0
    %v1847 = vadd.f32 %v1753, %v1796
    %v1848 = vadd.f32 %v1754, %v1798
    %v1849 = vadd.f32 %v1755, %v1839
    %v1850 = vadd.f32 %v1756, %v1841
    %v1851 = vadd.f32 %v1757, %v1800
    %v1852 = vadd.f32 %v1758, %v1802
    %v1853 = vadd.f32 %v1759, %v1843
    %v1854 = vadd.f32 %v1760, %v1845
    %v1855 = vmul.f32 %v1847, 0.5
    %v1856 = vmul.f32 %v1851, 0.5
    %v1857 = vtanh.pop %v1855
    %v1858 = vtanh.pop %v1856
    %v1859 = vmul.f32 %v1857, 0.5
    %v1860 = vmul.f32 %v1858, 0.5
    %v1861 = vadd.f32 %v1859, 0.5
    %v1862 = vadd.f32 %v1860, 0.5
    %v1863 = vmul.f32 %v1848, 0.5
    %v1864 = vmul.f32 %v1852, 0.5
    %v1865 = vtanh.pop %v1863
    %v1866 = vtanh.pop %v1864
    %v1867 = vmul.f32 %v1865, 0.5
    %v1868 = vmul.f32 %v1866, 0.5
    %v1869 = vadd.f32 %v1867, 0.5
    %v1870 = vadd.f32 %v1868, 0.5
    %v1871 = vtanh.pop %v1849
    %v1872 = vtanh.pop %v1853
    %v1873 = vmul.f32 %v1850, 0.5
    %v1874 = vmul.f32 %v1854, 0.5
    %v1875 = vtanh.pop %v1873
    %v1876 = vtanh.pop %v1874
    %v1877 = vmul.f32 %v1875, 0.5
    %v1878 = vmul.f32 %v1876, 0.5
    %v1879 = vadd.f32 %v1877, 0.5
    %v1880 = vadd.f32 %v1878, 0.5
    %v1881 = vmul.f32 %v1869, %v1743
    %v1882 = vmul.f32 %v1870, %v1744
    %v1883 = vmul.f32 %v1861, %v1871
    %v1884 = vmul.f32 %v1862, %v1872
    %v1885 = vadd.f32 %v1881, %v1883
    %v1886 = vadd.f32 %v1882, %v1884
    %v1887 = vtanh.pop %v1885
    %v1888 = vtanh.pop %v1886
    %v1889 = vmul.f32 %v1879, %v1887
    %v1890 = vmul.f32 %v1880, %v1888
    %v1891 = vpack.c.bf16 %v1890, %v1889
    %s1892 = scalar_lea.vmem [#allocation2], 48
    %1893 = vst [vmem:[%s1892] sm:$0xff] %v1891
    %s1894 = scalar_lea.vmem [#allocation3], 448
    %v1895 = vld [vmem:[%s1894] sm:$0xff]
    %v1896 = vld [vmem:[%s1894 + $0x8] sm:$0xff]
    %v1897 = vld [vmem:[%s1894 + $0x10] sm:$0xff]
    %v1898 = vld [vmem:[%s1894 + $0x18] sm:$0xff]
    %v1899 = vld [vmem:[%s1894 + $0x20] sm:$0xff]
    %v1900 = vld [vmem:[%s1894 + $0x28] sm:$0xff]
    %v1901 = vld [vmem:[%s1894 + $0x30] sm:$0xff]
    %v1902 = vld [vmem:[%s1894 + $0x38] sm:$0xff]
    %1903 = vmatprep.subr.bf16.mxu0 %v847
    %1904 = vmatpush1.bf16.msra.mxu0 %v846
    %1905 = vmatprep.subr.bf16.mxu0 %v851
    %1906 = vmatpush1.bf16.msra.mxu0 %v850
    %1907 = vmatprep.subr.bf16.mxu0 %v855
    %1908 = vmatpush1.bf16.msra.mxu0 %v854
    %1909 = vmatprep.subr.bf16.mxu0 %v859
    %1910 = vmatpush1.bf16.msra.mxu0 %v858
    %1911 = vmatprep.subr.bf16.mxu0 %v863
    %1912 = vmatpush1.bf16.msra.mxu0 %v862
    %1913 = vmatprep.subr.bf16.mxu0 %v867
    %1914 = vmatpush1.bf16.msra.mxu0 %v866
    %1915 = vmatprep.subr.bf16.mxu0 %v871
    %1916 = vmatpush1.bf16.msra.mxu0 %v870
    %1917 = vmatprep.subr.bf16.mxu0 %v875
    %1918 = vmatpush1.bf16.msra.mxu0 %v874
    %1919 = vmatprep.subr.bf16.mxu0 0
    %1920 = vmatpush1.bf16.msra.mxu0 0
    %1921 = vmatprep.subr.bf16.mxu0 0
    %1922 = vmatpush1.bf16.msra.mxu0 0
    %1923 = vmatprep.subr.bf16.mxu0 0
    %1924 = vmatpush1.bf16.msra.mxu0 0
    %1925 = vmatprep.subr.bf16.mxu0 0
    %1926 = vmatpush1.bf16.msra.mxu0 0
    %1927 = vmatprep.subr.bf16.mxu0 0
    %1928 = vmatpush1.bf16.msra.mxu0 0
    %1929 = vmatprep.subr.bf16.mxu0 0
    %1930 = vmatpush1.bf16.msra.mxu0 0
    %1931 = vmatprep.subr.bf16.mxu0 0
    %1932 = vmatpush1.bf16.msra.mxu0 0
    %1933 = vmatprep.subr.bf16.mxu0 0
    %1934 = vmatpush1.bf16.msra.mxu0 0
    %1935 = vmatprep.mubr.bf16.mxu0 0
    %1936 = vmatmul.mubr.bf16.gmra.mrb[0].mxu0 %v1891
    %v1937 = vpop.f32.mrb[0].mxu0
    %v1938 = vadd.f32 0.0, %v1937
    %v1939 = vpop.f32.mrb[0].mxu0
    %v1940 = vadd.f32 0.0, %v1939
    %v1941 = vpop.f32.mrb[0].mxu0
    %v1942 = vadd.f32 0.0, %v1941
    %v1943 = vpop.f32.mrb[0].mxu0
    %v1944 = vadd.f32 0.0, %v1943
    %1945 = vdwg.mxu0
    %1946 = vmatprep.subr.bf16.mxu0 %v849
    %1947 = vmatpush1.bf16.msra.mxu0 %v848
    %1948 = vmatprep.subr.bf16.mxu0 %v853
    %1949 = vmatpush1.bf16.msra.mxu0 %v852
    %1950 = vmatprep.subr.bf16.mxu0 %v857
    %1951 = vmatpush1.bf16.msra.mxu0 %v856
    %1952 = vmatprep.subr.bf16.mxu0 %v861
    %1953 = vmatpush1.bf16.msra.mxu0 %v860
    %1954 = vmatprep.subr.bf16.mxu0 %v865
    %1955 = vmatpush1.bf16.msra.mxu0 %v864
    %1956 = vmatprep.subr.bf16.mxu0 %v869
    %1957 = vmatpush1.bf16.msra.mxu0 %v868
    %1958 = vmatprep.subr.bf16.mxu0 %v873
    %1959 = vmatpush1.bf16.msra.mxu0 %v872
    %1960 = vmatprep.subr.bf16.mxu0 %v877
    %1961 = vmatpush1.bf16.msra.mxu0 %v876
    %1962 = vmatprep.subr.bf16.mxu0 0
    %1963 = vmatpush1.bf16.msra.mxu0 0
    %1964 = vmatprep.subr.bf16.mxu0 0
    %1965 = vmatpush1.bf16.msra.mxu0 0
    %1966 = vmatprep.subr.bf16.mxu0 0
    %1967 = vmatpush1.bf16.msra.mxu0 0
    %1968 = vmatprep.subr.bf16.mxu0 0
    %1969 = vmatpush1.bf16.msra.mxu0 0
    %1970 = vmatprep.subr.bf16.mxu0 0
    %1971 = vmatpush1.bf16.msra.mxu0 0
    %1972 = vmatprep.subr.bf16.mxu0 0
    %1973 = vmatpush1.bf16.msra.mxu0 0
    %1974 = vmatprep.subr.bf16.mxu0 0
    %1975 = vmatpush1.bf16.msra.mxu0 0
    %1976 = vmatprep.subr.bf16.mxu0 0
    %1977 = vmatpush1.bf16.msra.mxu0 0
    %1978 = vmatprep.mubr.bf16.mxu0 0
    %1979 = vmatmul.mubr.bf16.gmra.mrb[0].mxu0 %v1891
    %v1980 = vpop.f32.mrb[0].mxu0
    %v1981 = vadd.f32 0.0, %v1980
    %v1982 = vpop.f32.mrb[0].mxu0
    %v1983 = vadd.f32 0.0, %v1982
    %v1984 = vpop.f32.mrb[0].mxu0
    %v1985 = vadd.f32 0.0, %v1984
    %v1986 = vpop.f32.mrb[0].mxu0
    %v1987 = vadd.f32 0.0, %v1986
    %1988 = vdwg.mxu0
    %v1989 = vadd.f32 %v1895, %v1938
    %v1990 = vadd.f32 %v1896, %v1940
    %v1991 = vadd.f32 %v1897, %v1981
    %v1992 = vadd.f32 %v1898, %v1983
    %v1993 = vadd.f32 %v1899, %v1942
    %v1994 = vadd.f32 %v1900, %v1944
    %v1995 = vadd.f32 %v1901, %v1985
    %v1996 = vadd.f32 %v1902, %v1987
    %v1997 = vmul.f32 %v1989, 0.5
    %v1998 = vmul.f32 %v1993, 0.5
    %v1999 = vtanh.pop %v1997
    %v2000 = vtanh.pop %v1998
    %v2001 = vmul.f32 %v1999, 0.5
    %v2002 = vmul.f32 %v2000, 0.5
    %v2003 = vadd.f32 %v2001, 0.5
    %v2004 = vadd.f32 %v2002, 0.5
    %v2005 = vmul.f32 %v1990, 0.5
    %v2006 = vmul.f32 %v1994, 0.5
    %v2007 = vtanh.pop %v2005
    %v2008 = vtanh.pop %v2006
    %v2009 = vmul.f32 %v2007, 0.5
    %v2010 = vmul.f32 %v2008, 0.5
    %v2011 = vadd.f32 %v2009, 0.5
    %v2012 = vadd.f32 %v2010, 0.5
    %v2013 = vtanh.pop %v1991
    %v2014 = vtanh.pop %v1995
    %v2015 = vmul.f32 %v1992, 0.5
    %v2016 = vmul.f32 %v1996, 0.5
    %v2017 = vtanh.pop %v2015
    %v2018 = vtanh.pop %v2016
    %v2019 = vmul.f32 %v2017, 0.5
    %v2020 = vmul.f32 %v2018, 0.5
    %v2021 = vadd.f32 %v2019, 0.5
    %v2022 = vadd.f32 %v2020, 0.5
    %v2023 = vmul.f32 %v2011, %v1885
    %v2024 = vmul.f32 %v2012, %v1886
    %v2025 = vmul.f32 %v2003, %v2013
    %v2026 = vmul.f32 %v2004, %v2014
    %v2027 = vadd.f32 %v2023, %v2025
    %v2028 = vadd.f32 %v2024, %v2026
    %v2029 = vtanh.pop %v2027
    %v2030 = vtanh.pop %v2028
    %v2031 = vmul.f32 %v2021, %v2029
    %v2032 = vmul.f32 %v2022, %v2030
    %v2033 = vpack.c.bf16 %v2032, %v2031
    %s2034 = scalar_lea.vmem [#allocation2], 56
    %2035 = vst [vmem:[%s2034] sm:$0xff] %v2033
    %2036 = vst [vmem:[#allocation16] sm:$0xff] %v2031
    %2037 = vst [vmem:[#allocation16 + $0x8] sm:$0xff] %v2032
    %2038 = vst [vmem:[#allocation18] sm:$0xff] %v2027
    %2039 = vst [vmem:[#allocation18 + $0x8] sm:$0xff] %v2028
    %v2040 = vld [vmem:[#allocation2] sm:$0xff]
    %v2041 = vld [vmem:[#allocation2 + $0x8] sm:$0xff]
    %v2042 = vld [vmem:[#allocation2 + $0x10] sm:$0xff]
    %v2043 = vld [vmem:[#allocation2 + $0x18] sm:$0xff]
    %v2044 = vld [vmem:[#allocation2 + $0x20] sm:$0xff]
    %v2045 = vld [vmem:[#allocation2 + $0x28] sm:$0xff]
    %v2046 = vld [vmem:[#allocation2 + $0x30] sm:$0xff]
    %v2047 = vld [vmem:[#allocation2 + $0x38] sm:$0xff]
    %s2048 = scalar_lea.vmem [#allocation7], 256
    %v2049 = vld [vmem:[%s2048] sm:$0xff]
    %v2050 = vld [vmem:[%s2048 + $0x8] sm:$0xff]
    %v2051 = vld [vmem:[%s2048 + $0x10] sm:$0xff]
    %v2052 = vld [vmem:[%s2048 + $0x18] sm:$0xff]
    %v2053 = vld [vmem:[%s2048 + $0x20] sm:$0xff]
    %v2054 = vld [vmem:[%s2048 + $0x28] sm:$0xff]
    %v2055 = vld [vmem:[%s2048 + $0x30] sm:$0xff]
    %v2056 = vld [vmem:[%s2048 + $0x38] sm:$0xff]
    %v2057 = vld [vmem:[%s2048 + $0x40] sm:$0xff]
    %v2058 = vld [vmem:[%s2048 + $0x48] sm:$0xff]
    %v2059 = vld [vmem:[%s2048 + $0x50] sm:$0xff]
    %v2060 = vld [vmem:[%s2048 + $0x58] sm:$0xff]
    %v2061 = vld [vmem:[%s2048 + $0x60] sm:$0xff]
    %v2062 = vld [vmem:[%s2048 + $0x68] sm:$0xff]
    %v2063 = vld [vmem:[%s2048 + $0x70] sm:$0xff]
    %v2064 = vld [vmem:[%s2048 + $0x78] sm:$0xff]
    %v2065 = vld [vmem:[%s2048 + $0x80] sm:$0xff]
    %v2066 = vld [vmem:[%s2048 + $0x88] sm:$0xff]
    %v2067 = vld [vmem:[%s2048 + $0x90] sm:$0xff]
    %v2068 = vld [vmem:[%s2048 + $0x98] sm:$0xff]
    %v2069 = vld [vmem:[%s2048 + $0xa0] sm:$0xff]
    %v2070 = vld [vmem:[%s2048 + $0xa8] sm:$0xff]
    %v2071 = vld [vmem:[%s2048 + $0xb0] sm:$0xff]
    %v2072 = vld [vmem:[%s2048 + $0xb8] sm:$0xff]
    %v2073 = vld [vmem:[%s2048 + $0xc0] sm:$0xff]
    %v2074 = vld [vmem:[%s2048 + $0xc8] sm:$0xff]
    %v2075 = vld [vmem:[%s2048 + $0xd0] sm:$0xff]
    %v2076 = vld [vmem:[%s2048 + $0xd8] sm:$0xff]
    %v2077 = vld [vmem:[%s2048 + $0xe0] sm:$0xff]
    %v2078 = vld [vmem:[%s2048 + $0xe8] sm:$0xff]
    %v2079 = vld [vmem:[%s2048 + $0xf0] sm:$0xff]
    %v2080 = vld [vmem:[%s2048 + $0xf8] sm:$0xff]
    %s2081 = scalar_lea.vmem %s3, 4
    %v2082 = vld [vmem:[%s2081] sm:$0xf]
    %v2084 = vlaneseq
    %v2085 = vshrl.u32 %v2084, 7
    %v2086 = vsub.s32 0, %v2085
    %v2087 = vrot.slane %v2082, %v2086
    %v2088 = vlaneseq
    %v2089 = vshrl.u32 %v2088, 7
    %v2090 = vsub.s32 1, %v2089
    %v2091 = vrot.slane %v2082, %v2090
    %v2092 = vlaneseq
    %v2093 = vshrl.u32 %v2092, 7
    %v2094 = vsub.s32 2, %v2093
    %v2095 = vrot.slane %v2082, %v2094
    %v2096 = vlaneseq
    %v2097 = vshrl.u32 %v2096, 7
    %v2098 = vsub.s32 3, %v2097
    %v2099 = vrot.slane %v2082, %v2098
    %v2136 = vunpack.c.l.b16 %v2049
    %v2137 = vunpack.c.h.b16 %v2049
    %v2138 = vunpack.c.l.b16 %v2050
    %v2139 = vunpack.c.h.b16 %v2050
    %v2140 = vunpack.c.l.b16 %v2051
    %v2141 = vunpack.c.h.b16 %v2051
    %v2142 = vunpack.c.l.b16 %v2052
    %v2143 = vunpack.c.h.b16 %v2052
    %v2144 = vunpack.c.l.b16 %v2053
    %v2145 = vunpack.c.h.b16 %v2053
    %v2146 = vunpack.c.l.b16 %v2054
    %v2147 = vunpack.c.h.b16 %v2054
    %v2148 = vunpack.c.l.b16 %v2055
    %v2149 = vunpack.c.h.b16 %v2055
    %v2150 = vunpack.c.l.b16 %v2056
    %v2151 = vunpack.c.h.b16 %v2056
    %v2152 = vunpack.c.l.b16 %v2057
    %v2153 = vunpack.c.h.b16 %v2057
    %v2154 = vunpack.c.l.b16 %v2058
    %v2155 = vunpack.c.h.b16 %v2058
    %v2156 = vunpack.c.l.b16 %v2059
    %v2157 = vunpack.c.h.b16 %v2059
    %v2158 = vunpack.c.l.b16 %v2060
    %v2159 = vunpack.c.h.b16 %v2060
    %v2160 = vunpack.c.l.b16 %v2061
    %v2161 = vunpack.c.h.b16 %v2061
    %v2162 = vunpack.c.l.b16 %v2062
    %v2163 = vunpack.c.h.b16 %v2062
    %v2164 = vunpack.c.l.b16 %v2063
    %v2165 = vunpack.c.h.b16 %v2063
    %v2166 = vunpack.c.l.b16 %v2064
    %v2167 = vunpack.c.h.b16 %v2064
    %v2168 = vunpack.c.l.b16 %v2065
    %v2169 = vunpack.c.h.b16 %v2065
    %v2170 = vunpack.c.l.b16 %v2066
    %v2171 = vunpack.c.h.b16 %v2066
    %v2172 = vunpack.c.l.b16 %v2067
    %v2173 = vunpack.c.h.b16 %v2067
    %v2174 = vunpack.c.l.b16 %v2068
    %v2175 = vunpack.c.h.b16 %v2068
    %v2176 = vunpack.c.l.b16 %v2069
    %v2177 = vunpack.c.h.b16 %v2069
    %v2178 = vunpack.c.l.b16 %v2070
    %v2179 = vunpack.c.h.b16 %v2070
    %v2180 = vunpack.c.l.b16 %v2071
    %v2181 = vunpack.c.h.b16 %v2071
    %v2182 = vunpack.c.l.b16 %v2072
    %v2183 = vunpack.c.h.b16 %v2072
    %v2184 = vunpack.c.l.b16 %v2073
    %v2185 = vunpack.c.h.b16 %v2073
    %v2186 = vunpack.c.l.b16 %v2074
    %v2187 = vunpack.c.h.b16 %v2074
    %v2188 = vunpack.c.l.b16 %v2075
    %v2189 = vunpack.c.h.b16 %v2075
    %v2190 = vunpack.c.l.b16 %v2076
    %v2191 = vunpack.c.h.b16 %v2076
    %v2192 = vunpack.c.l.b16 %v2077
    %v2193 = vunpack.c.h.b16 %v2077
    %v2194 = vunpack.c.l.b16 %v2078
    %v2195 = vunpack.c.h.b16 %v2078
    %v2196 = vunpack.c.l.b16 %v2079
    %v2197 = vunpack.c.h.b16 %v2079
    %v2198 = vunpack.c.l.b16 %v2080
    %v2199 = vunpack.c.h.b16 %v2080
    %v2200 = vpack.c.b16 %v2140, %v2136
    %v2201 = vpack.c.b16 %v2141, %v2137
    %v2202 = vpack.c.b16 %v2142, %v2138
    %v2203 = vpack.c.b16 %v2143, %v2139
    %v2204 = vpack.c.b16 %v2148, %v2144
    %v2205 = vpack.c.b16 %v2149, %v2145
    %v2206 = vpack.c.b16 %v2150, %v2146
    %v2207 = vpack.c.b16 %v2151, %v2147
    %v2208 = vpack.c.b16 %v2156, %v2152
    %v2209 = vpack.c.b16 %v2157, %v2153
    %v2210 = vpack.c.b16 %v2158, %v2154
    %v2211 = vpack.c.b16 %v2159, %v2155
    %v2212 = vpack.c.b16 %v2164, %v2160
    %v2213 = vpack.c.b16 %v2165, %v2161
    %v2214 = vpack.c.b16 %v2166, %v2162
    %v2215 = vpack.c.b16 %v2167, %v2163
    %v2216 = vpack.c.b16 %v2172, %v2168
    %v2217 = vpack.c.b16 %v2173, %v2169
    %v2218 = vpack.c.b16 %v2174, %v2170
    %v2219 = vpack.c.b16 %v2175, %v2171
    %v2220 = vpack.c.b16 %v2180, %v2176
    %v2221 = vpack.c.b16 %v2181, %v2177
    %v2222 = vpack.c.b16 %v2182, %v2178
    %v2223 = vpack.c.b16 %v2183, %v2179
    %v2224 = vpack.c.b16 %v2188, %v2184
    %v2225 = vpack.c.b16 %v2189, %v2185
    %v2226 = vpack.c.b16 %v2190, %v2186
    %v2227 = vpack.c.b16 %v2191, %v2187
    %v2228 = vpack.c.b16 %v2196, %v2192
    %v2229 = vpack.c.b16 %v2197, %v2193
    %v2230 = vpack.c.b16 %v2198, %v2194
    %v2231 = vpack.c.b16 %v2199, %v2195
    %2264 = vmatprep.subr.bf16.mxu0 %v2201
    %2265 = vmatpush1.bf16.msra.mxu0 %v2200
    %2266 = vmatprep.subr.bf16.mxu0 %v2205
    %2267 = vmatpush1.bf16.msra.mxu0 %v2204
    %2268 = vmatprep.subr.bf16.mxu0 %v2209
    %2269 = vmatpush1.bf16.msra.mxu0 %v2208
    %2270 = vmatprep.subr.bf16.mxu0 %v2213
    %2271 = vmatpush1.bf16.msra.mxu0 %v2212
    %2272 = vmatprep.subr.bf16.mxu0 %v2217
    %2273 = vmatpush1.bf16.msra.mxu0 %v2216
    %2274 = vmatprep.subr.bf16.mxu0 %v2221
    %2275 = vmatpush1.bf16.msra.mxu0 %v2220
    %2276 = vmatprep.subr.bf16.mxu0 %v2225
    %2277 = vmatpush1.bf16.msra.mxu0 %v2224
    %2278 = vmatprep.subr.bf16.mxu0 %v2229
    %2279 = vmatpush1.bf16.msra.mxu0 %v2228
    %2280 = vmatprep.subr.bf16.mxu0 0
    %2281 = vmatpush1.bf16.msra.mxu0 0
    %2282 = vmatprep.subr.bf16.mxu0 0
    %2283 = vmatpush1.bf16.msra.mxu0 0
    %2284 = vmatprep.subr.bf16.mxu0 0
    %2285 = vmatpush1.bf16.msra.mxu0 0
    %2286 = vmatprep.subr.bf16.mxu0 0
    %2287 = vmatpush1.bf16.msra.mxu0 0
    %2288 = vmatprep.subr.bf16.mxu0 0
    %2289 = vmatpush1.bf16.msra.mxu0 0
    %2290 = vmatprep.subr.bf16.mxu0 0
    %2291 = vmatpush1.bf16.msra.mxu0 0
    %2292 = vmatprep.subr.bf16.mxu0 0
    %2293 = vmatpush1.bf16.msra.mxu0 0
    %2294 = vmatprep.subr.bf16.mxu0 0
    %2295 = vmatpush1.bf16.msra.mxu0 0
    %2296 = vmatprep.mubr.bf16.mxu0 0
    %2297 = vmatmul.mubr.bf16.gmra.mrb[0].mxu0 %v2040
    %v2298 = vpop.f32.mrb[0].mxu0
    %v2299 = vadd.f32 %v2087, %v2298
    %v2300 = vpop.f32.mrb[0].mxu0
    %v2301 = vadd.f32 %v2091, %v2300
    %v2302 = vpop.f32.mrb[0].mxu0
    %v2303 = vadd.f32 %v2087, %v2302
    %v2304 = vpop.f32.mrb[0].mxu0
    %v2305 = vadd.f32 %v2091, %v2304
    %2306 = vmatprep.mubr.bf16.mxu0 0
    %2307 = vmatmul.mubr.bf16.gmra.mrb[0].mxu0 %v2041
    %v2308 = vpop.f32.mrb[0].mxu0
    %v2309 = vadd.f32 %v2087, %v2308
    %v2310 = vpop.f32.mrb[0].mxu0
    %v2311 = vadd.f32 %v2091, %v2310
    %v2312 = vpop.f32.mrb[0].mxu0
    %v2313 = vadd.f32 %v2087, %v2312
    %v2314 = vpop.f32.mrb[0].mxu0
    %v2315 = vadd.f32 %v2091, %v2314
    %2316 = vmatprep.mubr.bf16.mxu0 0
    %2317 = vmatmul.mubr.bf16.gmra.mrb[0].mxu0 %v2042
    %v2318 = vpop.f32.mrb[0].mxu0
    %v2319 = vadd.f32 %v2087, %v2318
    %v2320 = vpop.f32.mrb[0].mxu0
    %v2321 = vadd.f32 %v2091, %v2320
    %v2322 = vpop.f32.mrb[0].mxu0
    %v2323 = vadd.f32 %v2087, %v2322
    %v2324 = vpop.f32.mrb[0].mxu0
    %v2325 = vadd.f32 %v2091, %v2324
    %2326 = vmatprep.mubr.bf16.mxu0 0
    %2327 = vmatmul.mubr.bf16.gmra.mrb[0].mxu0 %v2043
    %v2328 = vpop.f32.mrb[0].mxu0
    %v2329 = vadd.f32 %v2087, %v2328
    %v2330 = vpop.f32.mrb[0].mxu0
    %v2331 = vadd.f32 %v2091, %v2330
    %v2332 = vpop.f32.mrb[0].mxu0
    %v2333 = vadd.f32 %v2087, %v2332
    %v2334 = vpop.f32.mrb[0].mxu0
    %v2335 = vadd.f32 %v2091, %v2334
    %2336 = vmatprep.mubr.bf16.mxu0 0
    %2337 = vmatmul.mubr.bf16.gmra.mrb[0].mxu0 %v2044
    %v2338 = vpop.f32.mrb[0].mxu0
    %v2339 = vadd.f32 %v2087, %v2338
    %v2340 = vpop.f32.mrb[0].mxu0
    %v2341 = vadd.f32 %v2091, %v2340
    %v2342 = vpop.f32.mrb[0].mxu0
    %v2343 = vadd.f32 %v2087, %v2342
    %v2344 = vpop.f32.mrb[0].mxu0
    %v2345 = vadd.f32 %v2091, %v2344
    %2346 = vmatprep.mubr.bf16.mxu0 0
    %2347 = vmatmul.mubr.bf16.gmra.mrb[0].mxu0 %v2045
    %v2348 = vpop.f32.mrb[0].mxu0
    %v2349 = vadd.f32 %v2087, %v2348
    %v2350 = vpop.f32.mrb[0].mxu0
    %v2351 = vadd.f32 %v2091, %v2350
    %v2352 = vpop.f32.mrb[0].mxu0
    %v2353 = vadd.f32 %v2087, %v2352
    %v2354 = vpop.f32.mrb[0].mxu0
    %v2355 = vadd.f32 %v2091, %v2354
    %2356 = vmatprep.mubr.bf16.mxu0 0
    %2357 = vmatmul.mubr.bf16.gmra.mrb[0].mxu0 %v2046
    %v2358 = vpop.f32.mrb[0].mxu0
    %v2359 = vadd.f32 %v2087, %v2358
    %v2360 = vpop.f32.mrb[0].mxu0
    %v2361 = vadd.f32 %v2091, %v2360
    %v2362 = vpop.f32.mrb[0].mxu0
    %v2363 = vadd.f32 %v2087, %v2362
    %v2364 = vpop.f32.mrb[0].mxu0
    %v2365 = vadd.f32 %v2091, %v2364
    %2366 = vmatprep.mubr.bf16.mxu0 0
    %2367 = vmatmul.mubr.bf16.gmra.mrb[0].mxu0 %v2047
    %v2368 = vpop.f32.mrb[0].mxu0
    %v2369 = vadd.f32 %v2087, %v2368
    %v2370 = vpop.f32.mrb[0].mxu0
    %v2371 = vadd.f32 %v2091, %v2370
    %v2372 = vpop.f32.mrb[0].mxu0
    %v2373 = vadd.f32 %v2087, %v2372
    %v2374 = vpop.f32.mrb[0].mxu0
    %v2375 = vadd.f32 %v2091, %v2374
    %2376 = vdwg.mxu0
    %2377 = vmatprep.subr.bf16.mxu0 %v2203
    %2378 = vmatpush1.bf16.msra.mxu0 %v2202
    %2379 = vmatprep.subr.bf16.mxu0 %v2207
    %2380 = vmatpush1.bf16.msra.mxu0 %v2206
    %2381 = vmatprep.subr.bf16.mxu0 %v2211
    %2382 = vmatpush1.bf16.msra.mxu0 %v2210
    %2383 = vmatprep.subr.bf16.mxu0 %v2215
    %2384 = vmatpush1.bf16.msra.mxu0 %v2214
    %2385 = vmatprep.subr.bf16.mxu0 %v2219
    %2386 = vmatpush1.bf16.msra.mxu0 %v2218
    %2387 = vmatprep.subr.bf16.mxu0 %v2223
    %2388 = vmatpush1.bf16.msra.mxu0 %v2222
    %2389 = vmatprep.subr.bf16.mxu0 %v2227
    %2390 = vmatpush1.bf16.msra.mxu0 %v2226
    %2391 = vmatprep.subr.bf16.mxu0 %v2231
    %2392 = vmatpush1.bf16.msra.mxu0 %v2230
    %2393 = vmatprep.subr.bf16.mxu0 0
    %2394 = vmatpush1.bf16.msra.mxu0 0
    %2395 = vmatprep.subr.bf16.mxu0 0
    %2396 = vmatpush1.bf16.msra.mxu0 0
    %2397 = vmatprep.subr.bf16.mxu0 0
    %2398 = vmatpush1.bf16.msra.mxu0 0
    %2399 = vmatprep.subr.bf16.mxu0 0
    %2400 = vmatpush1.bf16.msra.mxu0 0
    %2401 = vmatprep.subr.bf16.mxu0 0
    %2402 = vmatpush1.bf16.msra.mxu0 0
    %2403 = vmatprep.subr.bf16.mxu0 0
    %2404 = vmatpush1.bf16.msra.mxu0 0
    %2405 = vmatprep.subr.bf16.mxu0 0
    %2406 = vmatpush1.bf16.msra.mxu0 0
    %2407 = vmatprep.subr.bf16.mxu0 0
    %2408 = vmatpush1.bf16.msra.mxu0 0
    %2409 = vmatprep.mubr.bf16.mxu0 0
    %2410 = vmatmul.mubr.bf16.gmra.mrb[0].mxu0 %v2040
    %v2411 = vpop.f32.mrb[0].mxu0
    %v2412 = vadd.f32 %v2095, %v2411
    %v2413 = vpop.f32.mrb[0].mxu0
    %v2414 = vadd.f32 %v2099, %v2413
    %v2415 = vpop.f32.mrb[0].mxu0
    %v2416 = vadd.f32 %v2095, %v2415
    %v2417 = vpop.f32.mrb[0].mxu0
    %v2418 = vadd.f32 %v2099, %v2417
    %2419 = vmatprep.mubr.bf16.mxu0 0
    %2420 = vmatmul.mubr.bf16.gmra.mrb[0].mxu0 %v2041
    %v2421 = vpop.f32.mrb[0].mxu0
    %v2422 = vadd.f32 %v2095, %v2421
    %v2423 = vpop.f32.mrb[0].mxu0
    %v2424 = vadd.f32 %v2099, %v2423
    %v2425 = vpop.f32.mrb[0].mxu0
    %v2426 = vadd.f32 %v2095, %v2425
    %v2427 = vpop.f32.mrb[0].mxu0
    %v2428 = vadd.f32 %v2099, %v2427
    %2429 = vmatprep.mubr.bf16.mxu0 0
    %2430 = vmatmul.mubr.bf16.gmra.mrb[0].mxu0 %v2042
    %v2431 = vpop.f32.mrb[0].mxu0
    %v2432 = vadd.f32 %v2095, %v2431
    %v2433 = vpop.f32.mrb[0].mxu0
    %v2434 = vadd.f32 %v2099, %v2433
    %v2435 = vpop.f32.mrb[0].mxu0
    %v2436 = vadd.f32 %v2095, %v2435
    %v2437 = vpop.f32.mrb[0].mxu0
    %v2438 = vadd.f32 %v2099, %v2437
    %2439 = vmatprep.mubr.bf16.mxu0 0
    %2440 = vmatmul.mubr.bf16.gmra.mrb[0].mxu0 %v2043
    %v2441 = vpop.f32.mrb[0].mxu0
    %v2442 = vadd.f32 %v2095, %v2441
    %v2443 = vpop.f32.mrb[0].mxu0
    %v2444 = vadd.f32 %v2099, %v2443
    %v2445 = vpop.f32.mrb[0].mxu0
    %v2446 = vadd.f32 %v2095, %v2445
    %v2447 = vpop.f32.mrb[0].mxu0
    %v2448 = vadd.f32 %v2099, %v2447
    %2449 = vmatprep.mubr.bf16.mxu0 0
    %2450 = vmatmul.mubr.bf16.gmra.mrb[0].mxu0 %v2044
    %v2451 = vpop.f32.mrb[0].mxu0
    %v2452 = vadd.f32 %v2095, %v2451
    %v2453 = vpop.f32.mrb[0].mxu0
    %v2454 = vadd.f32 %v2099, %v2453
    %v2455 = vpop.f32.mrb[0].mxu0
    %v2456 = vadd.f32 %v2095, %v2455
    %v2457 = vpop.f32.mrb[0].mxu0
    %v2458 = vadd.f32 %v2099, %v2457
    %2459 = vmatprep.mubr.bf16.mxu0 0
    %2460 = vmatmul.mubr.bf16.gmra.mrb[0].mxu0 %v2045
    %v2461 = vpop.f32.mrb[0].mxu0
    %v2462 = vadd.f32 %v2095, %v2461
    %v2463 = vpop.f32.mrb[0].mxu0
    %v2464 = vadd.f32 %v2099, %v2463
    %v2465 = vpop.f32.mrb[0].mxu0
    %v2466 = vadd.f32 %v2095, %v2465
    %v2467 = vpop.f32.mrb[0].mxu0
    %v2468 = vadd.f32 %v2099, %v2467
    %2469 = vmatprep.mubr.bf16.mxu0 0
    %2470 = vmatmul.mubr.bf16.gmra.mrb[0].mxu0 %v2046
    %v2471 = vpop.f32.mrb[0].mxu0
    %v2472 = vadd.f32 %v2095, %v2471
    %v2473 = vpop.f32.mrb[0].mxu0
    %v2474 = vadd.f32 %v2099, %v2473
    %v2475 = vpop.f32.mrb[0].mxu0
    %v2476 = vadd.f32 %v2095, %v2475
    %v2477 = vpop.f32.mrb[0].mxu0
    %v2478 = vadd.f32 %v2099, %v2477
    %2479 = vmatprep.mubr.bf16.mxu0 0
    %2480 = vmatmul.mubr.bf16.gmra.mrb[0].mxu0 %v2047
    %v2481 = vpop.f32.mrb[0].mxu0
    %v2482 = vadd.f32 %v2095, %v2481
    %v2483 = vpop.f32.mrb[0].mxu0
    %v2484 = vadd.f32 %v2099, %v2483
    %v2485 = vpop.f32.mrb[0].mxu0
    %v2486 = vadd.f32 %v2095, %v2485
    %v2487 = vpop.f32.mrb[0].mxu0
    %v2488 = vadd.f32 %v2099, %v2487
    %2489 = vdwg.mxu0
    %2490 = vst [vmem:[#allocation3] sm:$0xff] %v2299
    %2491 = vst [vmem:[#allocation3 + $0x8] sm:$0xff] %v2301
    %2492 = vst [vmem:[#allocation3 + $0x10] sm:$0xff] %v2412
    %2493 = vst [vmem:[#allocation3 + $0x18] sm:$0xff] %v2414
    %2494 = vst [vmem:[#allocation3 + $0x20] sm:$0xff] %v2303
    %2495 = vst [vmem:[#allocation3 + $0x28] sm:$0xff] %v2305
    %2496 = vst [vmem:[#allocation3 + $0x30] sm:$0xff] %v2416
    %2497 = vst [vmem:[#allocation3 + $0x38] sm:$0xff] %v2418
    %2498 = vst [vmem:[#allocation3 + $0x40] sm:$0xff] %v2309
    %2499 = vst [vmem:[#allocation3 + $0x48] sm:$0xff] %v2311
    %2500 = vst [vmem:[#allocation3 + $0x50] sm:$0xff] %v2422
    %2501 = vst [vmem:[#allocation3 + $0x58] sm:$0xff] %v2424
    %2502 = vst [vmem:[#allocation3 + $0x60] sm:$0xff] %v2313
    %2503 = vst [vmem:[#allocation3 + $0x68] sm:$0xff] %v2315
    %2504 = vst [vmem:[#allocation3 + $0x70] sm:$0xff] %v2426
    %2505 = vst [vmem:[#allocation3 + $0x78] sm:$0xff] %v2428
    %2506 = vst [vmem:[#allocation3 + $0x80] sm:$0xff] %v2319
    %2507 = vst [vmem:[#allocation3 + $0x88] sm:$0xff] %v2321
    %2508 = vst [vmem:[#allocation3 + $0x90] sm:$0xff] %v2432
    %2509 = vst [vmem:[#allocation3 + $0x98] sm:$0xff] %v2434
    %2510 = vst [vmem:[#allocation3 + $0xa0] sm:$0xff] %v2323
    %2511 = vst [vmem:[#allocation3 + $0xa8] sm:$0xff] %v2325
    %2512 = vst [vmem:[#allocation3 + $0xb0] sm:$0xff] %v2436
    %2513 = vst [vmem:[#allocation3 + $0xb8] sm:$0xff] %v2438
    %2514 = vst [vmem:[#allocation3 + $0xc0] sm:$0xff] %v2329
    %2515 = vst [vmem:[#allocation3 + $0xc8] sm:$0xff] %v2331
    %2516 = vst [vmem:[#allocation3 + $0xd0] sm:$0xff] %v2442
    %2517 = vst [vmem:[#allocation3 + $0xd8] sm:$0xff] %v2444
    %2518 = vst [vmem:[#allocation3 + $0xe0] sm:$0xff] %v2333
    %2519 = vst [vmem:[#allocation3 + $0xe8] sm:$0xff] %v2335
    %2520 = vst [vmem:[#allocation3 + $0xf0] sm:$0xff] %v2446
    %2521 = vst [vmem:[#allocation3 + $0xf8] sm:$0xff] %v2448
    %2522 = vst [vmem:[#allocation3 + $0x100] sm:$0xff] %v2339
    %2523 = vst [vmem:[#allocation3 + $0x108] sm:$0xff] %v2341
    %2524 = vst [vmem:[#allocation3 + $0x110] sm:$0xff] %v2452
    %2525 = vst [vmem:[#allocation3 + $0x118] sm:$0xff] %v2454
    %2526 = vst [vmem:[#allocation3 + $0x120] sm:$0xff] %v2343
    %2527 = vst [vmem:[#allocation3 + $0x128] sm:$0xff] %v2345
    %2528 = vst [vmem:[#allocation3 + $0x130] sm:$0xff] %v2456
    %2529 = vst [vmem:[#allocation3 + $0x138] sm:$0xff] %v2458
    %2530 = vst [vmem:[#allocation3 + $0x140] sm:$0xff] %v2349
    %2531 = vst [vmem:[#allocation3 + $0x148] sm:$0xff] %v2351
    %2532 = vst [vmem:[#allocation3 + $0x150] sm:$0xff] %v2462
    %2533 = vst [vmem:[#allocation3 + $0x158] sm:$0xff] %v2464
    %2534 = vst [vmem:[#allocation3 + $0x160] sm:$0xff] %v2353
    %2535 = vst [vmem:[#allocation3 + $0x168] sm:$0xff] %v2355
    %2536 = vst [vmem:[#allocation3 + $0x170] sm:$0xff] %v2466
    %2537 = vst [vmem:[#allocation3 + $0x178] sm:$0xff] %v2468
    %2538 = vst [vmem:[#allocation3 + $0x180] sm:$0xff] %v2359
    %2539 = vst [vmem:[#allocation3 + $0x188] sm:$0xff] %v2361
    %2540 = vst [vmem:[#allocation3 + $0x190] sm:$0xff] %v2472
    %2541 = vst [vmem:[#allocation3 + $0x198] sm:$0xff] %v2474
    %2542 = vst [vmem:[#allocation3 + $0x1a0] sm:$0xff] %v2363
    %2543 = vst [vmem:[#allocation3 + $0x1a8] sm:$0xff] %v2365
    %2544 = vst [vmem:[#allocation3 + $0x1b0] sm:$0xff] %v2476
    %2545 = vst [vmem:[#allocation3 + $0x1b8] sm:$0xff] %v2478
    %2546 = vst [vmem:[#allocation3 + $0x1c0] sm:$0xff] %v2369
    %2547 = vst [vmem:[#allocation3 + $0x1c8] sm:$0xff] %v2371
    %2548 = vst [vmem:[#allocation3 + $0x1d0] sm:$0xff] %v2482
    %2549 = vst [vmem:[#allocation3 + $0x1d8] sm:$0xff] %v2484
    %2550 = vst [vmem:[#allocation3 + $0x1e0] sm:$0xff] %v2373
    %2551 = vst [vmem:[#allocation3 + $0x1e8] sm:$0xff] %v2375
    %2552 = vst [vmem:[#allocation3 + $0x1f0] sm:$0xff] %v2486
    %2553 = vst [vmem:[#allocation3 + $0x1f8] sm:$0xff] %v2488
    %s2554 = scalar_lea.vmem [#allocation9], 256
    %v2555 = vld [vmem:[%s2554] sm:$0xff]
    %v2556 = vld [vmem:[%s2554 + $0x8] sm:$0xff]
    %v2557 = vld [vmem:[%s2554 + $0x10] sm:$0xff]
    %v2558 = vld [vmem:[%s2554 + $0x18] sm:$0xff]
    %v2559 = vld [vmem:[%s2554 + $0x20] sm:$0xff]
    %v2560 = vld [vmem:[%s2554 + $0x28] sm:$0xff]
    %v2561 = vld [vmem:[%s2554 + $0x30] sm:$0xff]
    %v2562 = vld [vmem:[%s2554 + $0x38] sm:$0xff]
    %v2563 = vld [vmem:[%s2554 + $0x40] sm:$0xff]
    %v2564 = vld [vmem:[%s2554 + $0x48] sm:$0xff]
    %v2565 = vld [vmem:[%s2554 + $0x50] sm:$0xff]
    %v2566 = vld [vmem:[%s2554 + $0x58] sm:$0xff]
    %v2567 = vld [vmem:[%s2554 + $0x60] sm:$0xff]
    %v2568 = vld [vmem:[%s2554 + $0x68] sm:$0xff]
    %v2569 = vld [vmem:[%s2554 + $0x70] sm:$0xff]
    %v2570 = vld [vmem:[%s2554 + $0x78] sm:$0xff]
    %v2571 = vld [vmem:[%s2554 + $0x80] sm:$0xff]
    %v2572 = vld [vmem:[%s2554 + $0x88] sm:$0xff]
    %v2573 = vld [vmem:[%s2554 + $0x90] sm:$0xff]
    %v2574 = vld [vmem:[%s2554 + $0x98] sm:$0xff]
    %v2575 = vld [vmem:[%s2554 + $0xa0] sm:$0xff]
    %v2576 = vld [vmem:[%s2554 + $0xa8] sm:$0xff]
    %v2577 = vld [vmem:[%s2554 + $0xb0] sm:$0xff]
    %v2578 = vld [vmem:[%s2554 + $0xb8] sm:$0xff]
    %v2579 = vld [vmem:[%s2554 + $0xc0] sm:$0xff]
    %v2580 = vld [vmem:[%s2554 + $0xc8] sm:$0xff]
    %v2581 = vld [vmem:[%s2554 + $0xd0] sm:$0xff]
    %v2582 = vld [vmem:[%s2554 + $0xd8] sm:$0xff]
    %v2583 = vld [vmem:[%s2554 + $0xe0] sm:$0xff]
    %v2584 = vld [vmem:[%s2554 + $0xe8] sm:$0xff]
    %v2585 = vld [vmem:[%s2554 + $0xf0] sm:$0xff]
    %v2586 = vld [vmem:[%s2554 + $0xf8] sm:$0xff]
    %s2587 = scalar_lea.vmem [#allocation16], 16
    %v2588 = vld [vmem:[%s2587] sm:$0xff]
    %v2589 = vld [vmem:[%s2587 + $0x8] sm:$0xff]
    %s2590 = scalar_lea.vmem [#allocation18], 16
    %v2591 = vld [vmem:[%s2590] sm:$0xff]
    %v2592 = vld [vmem:[%s2590 + $0x8] sm:$0xff]
    %v2593 = vld [vmem:[#allocation3] sm:$0xff]
    %v2594 = vld [vmem:[#allocation3 + $0x8] sm:$0xff]
    %v2595 = vld [vmem:[#allocation3 + $0x10] sm:$0xff]
    %v2596 = vld [vmem:[#allocation3 + $0x18] sm:$0xff]
    %v2597 = vld [vmem:[#allocation3 + $0x20] sm:$0xff]
    %v2598 = vld [vmem:[#allocation3 + $0x28] sm:$0xff]
    %v2599 = vld [vmem:[#allocation3 + $0x30] sm:$0xff]
    %v2600 = vld [vmem:[#allocation3 + $0x38] sm:$0xff]
    %v2601 = vpack.c.bf16 %v2589, %v2588
    %v2634 = vunpack.c.l.b16 %v2555
    %v2635 = vunpack.c.h.b16 %v2555
    %v2636 = vunpack.c.l.b16 %v2556
    %v2637 = vunpack.c.h.b16 %v2556
    %v2638 = vunpack.c.l.b16 %v2557
    %v2639 = vunpack.c.h.b16 %v2557
    %v2640 = vunpack.c.l.b16 %v2558
    %v2641 = vunpack.c.h.b16 %v2558
    %v2642 = vunpack.c.l.b16 %v2559
    %v2643 = vunpack.c.h.b16 %v2559
    %v2644 = vunpack.c.l.b16 %v2560
    %v2645 = vunpack.c.h.b16 %v2560
    %v2646 = vunpack.c.l.b16 %v2561
    %v2647 = vunpack.c.h.b16 %v2561
    %v2648 = vunpack.c.l.b16 %v2562
    %v2649 = vunpack.c.h.b16 %v2562
    %v2650 = vunpack.c.l.b16 %v2563
    %v2651 = vunpack.c.h.b16 %v2563
    %v2652 = vunpack.c.l.b16 %v2564
    %v2653 = vunpack.c.h.b16 %v2564
    %v2654 = vunpack.c.l.b16 %v2565
    %v2655 = vunpack.c.h.b16 %v2565
    %v2656 = vunpack.c.l.b16 %v2566
    %v2657 = vunpack.c.h.b16 %v2566
    %v2658 = vunpack.c.l.b16 %v2567
    %v2659 = vunpack.c.h.b16 %v2567
    %v2660 = vunpack.c.l.b16 %v2568
    %v2661 = vunpack.c.h.b16 %v2568
    %v2662 = vunpack.c.l.b16 %v2569
    %v2663 = vunpack.c.h.b16 %v2569
    %v2664 = vunpack.c.l.b16 %v2570
    %v2665 = vunpack.c.h.b16 %v2570
    %v2666 = vunpack.c.l.b16 %v2571
    %v2667 = vunpack.c.h.b16 %v2571
    %v2668 = vunpack.c.l.b16 %v2572
    %v2669 = vunpack.c.h.b16 %v2572
    %v2670 = vunpack.c.l.b16 %v2573
    %v2671 = vunpack.c.h.b16 %v2573
    %v2672 = vunpack.c.l.b16 %v2574
    %v2673 = vunpack.c.h.b16 %v2574
    %v2674 = vunpack.c.l.b16 %v2575
    %v2675 = vunpack.c.h.b16 %v2575
    %v2676 = vunpack.c.l.b16 %v2576
    %v2677 = vunpack.c.h.b16 %v2576
    %v2678 = vunpack.c.l.b16 %v2577
    %v2679 = vunpack.c.h.b16 %v2577
    %v2680 = vunpack.c.l.b16 %v2578
    %v2681 = vunpack.c.h.b16 %v2578
    %v2682 = vunpack.c.l.b16 %v2579
    %v2683 = vunpack.c.h.b16 %v2579
    %v2684 = vunpack.c.l.b16 %v2580
    %v2685 = vunpack.c.h.b16 %v2580
    %v2686 = vunpack.c.l.b16 %v2581
    %v2687 = vunpack.c.h.b16 %v2581
    %v2688 = vunpack.c.l.b16 %v2582
    %v2689 = vunpack.c.h.b16 %v2582
    %v2690 = vunpack.c.l.b16 %v2583
    %v2691 = vunpack.c.h.b16 %v2583
    %v2692 = vunpack.c.l.b16 %v2584
    %v2693 = vunpack.c.h.b16 %v2584
    %v2694 = vunpack.c.l.b16 %v2585
    %v2695 = vunpack.c.h.b16 %v2585
    %v2696 = vunpack.c.l.b16 %v2586
    %v2697 = vunpack.c.h.b16 %v2586
    %v2698 = vpack.c.b16 %v2638, %v2634
    %v2699 = vpack.c.b16 %v2639, %v2635
    %v2700 = vpack.c.b16 %v2640, %v2636
    %v2701 = vpack.c.b16 %v2641, %v2637
    %v2702 = vpack.c.b16 %v2646, %v2642
    %v2703 = vpack.c.b16 %v2647, %v2643
    %v2704 = vpack.c.b16 %v2648, %v2644
    %v2705 = vpack.c.b16 %v2649, %v2645
    %v2706 = vpack.c.b16 %v2654, %v2650
    %v2707 = vpack.c.b16 %v2655, %v2651
    %v2708 = vpack.c.b16 %v2656, %v2652
    %v2709 = vpack.c.b16 %v2657, %v2653
    %v2710 = vpack.c.b16 %v2662, %v2658
    %v2711 = vpack.c.b16 %v2663, %v2659
    %v2712 = vpack.c.b16 %v2664, %v2660
    %v2713 = vpack.c.b16 %v2665, %v2661
    %v2714 = vpack.c.b16 %v2670, %v2666
    %v2715 = vpack.c.b16 %v2671, %v2667
    %v2716 = vpack.c.b16 %v2672, %v2668
    %v2717 = vpack.c.b16 %v2673, %v2669
    %v2718 = vpack.c.b16 %v2678, %v2674
    %v2719 = vpack.c.b16 %v2679, %v2675
    %v2720 = vpack.c.b16 %v2680, %v2676
    %v2721 = vpack.c.b16 %v2681, %v2677
    %v2722 = vpack.c.b16 %v2686, %v2682
    %v2723 = vpack.c.b16 %v2687, %v2683
    %v2724 = vpack.c.b16 %v2688, %v2684
    %v2725 = vpack.c.b16 %v2689, %v2685
    %v2726 = vpack.c.b16 %v2694, %v2690
    %v2727 = vpack.c.b16 %v2695, %v2691
    %v2728 = vpack.c.b16 %v2696, %v2692
    %v2729 = vpack.c.b16 %v2697, %v2693
    %2762 = vmatprep.subr.bf16.mxu0 %v2699
    %2763 = vmatpush1.bf16.msra.mxu0 %v2698
    %2764 = vmatprep.subr.bf16.mxu0 %v2703
    %2765 = vmatpush1.bf16.msra.mxu0 %v2702
    %2766 = vmatprep.subr.bf16.mxu0 %v2707
    %2767 = vmatpush1.bf16.msra.mxu0 %v2706
    %2768 = vmatprep.subr.bf16.mxu0 %v2711
    %2769 = vmatpush1.bf16.msra.mxu0 %v2710
    %2770 = vmatprep.subr.bf16.mxu0 %v2715
    %2771 = vmatpush1.bf16.msra.mxu0 %v2714
    %2772 = vmatprep.subr.bf16.mxu0 %v2719
    %2773 = vmatpush1.bf16.msra.mxu0 %v2718
    %2774 = vmatprep.subr.bf16.mxu0 %v2723
    %2775 = vmatpush1.bf16.msra.mxu0 %v2722
    %2776 = vmatprep.subr.bf16.mxu0 %v2727
    %2777 = vmatpush1.bf16.msra.mxu0 %v2726
    %2778 = vmatprep.subr.bf16.mxu0 0
    %2779 = vmatpush1.bf16.msra.mxu0 0
    %2780 = vmatprep.subr.bf16.mxu0 0
    %2781 = vmatpush1.bf16.msra.mxu0 0
    %2782 = vmatprep.subr.bf16.mxu0 0
    %2783 = vmatpush1.bf16.msra.mxu0 0
    %2784 = vmatprep.subr.bf16.mxu0 0
    %2785 = vmatpush1.bf16.msra.mxu0 0
    %2786 = vmatprep.subr.bf16.mxu0 0
    %2787 = vmatpush1.bf16.msra.mxu0 0
    %2788 = vmatprep.subr.bf16.mxu0 0
    %2789 = vmatpush1.bf16.msra.mxu0 0
    %2790 = vmatprep.subr.bf16.mxu0 0
    %2791 = vmatpush1.bf16.msra.mxu0 0
    %2792 = vmatprep.subr.bf16.mxu0 0
    %2793 = vmatpush1.bf16.msra.mxu0 0
    %2794 = vmatprep.mubr.bf16.mxu0 0
    %2795 = vmatmul.mubr.bf16.gmra.mrb[0].mxu0 %v2601
    %v2796 = vpop.f32.mrb[0].mxu0
    %v2797 = vadd.f32 0.0, %v2796
    %v2798 = vpop.f32.mrb[0].mxu0
    %v2799 = vadd.f32 0.0, %v2798
    %v2800 = vpop.f32.mrb[0].mxu0
    %v2801 = vadd.f32 0.0, %v2800
    %v2802 = vpop.f32.mrb[0].mxu0
    %v2803 = vadd.f32 0.0, %v2802
    %2804 = vdwg.mxu0
    %2805 = vmatprep.subr.bf16.mxu0 %v2701
    %2806 = vmatpush1.bf16.msra.mxu0 %v2700
    %2807 = vmatprep.subr.bf16.mxu0 %v2705
    %2808 = vmatpush1.bf16.msra.mxu0 %v2704
    %2809 = vmatprep.subr.bf16.mxu0 %v2709
    %2810 = vmatpush1.bf16.msra.mxu0 %v2708
    %2811 = vmatprep.subr.bf16.mxu0 %v2713
    %2812 = vmatpush1.bf16.msra.mxu0 %v2712
    %2813 = vmatprep.subr.bf16.mxu0 %v2717
    %2814 = vmatpush1.bf16.msra.mxu0 %v2716
    %2815 = vmatprep.subr.bf16.mxu0 %v2721
    %2816 = vmatpush1.bf16.msra.mxu0 %v2720
    %2817 = vmatprep.subr.bf16.mxu0 %v2725
    %2818 = vmatpush1.bf16.msra.mxu0 %v2724
    %2819 = vmatprep.subr.bf16.mxu0 %v2729
    %2820 = vmatpush1.bf16.msra.mxu0 %v2728
    %2821 = vmatprep.subr.bf16.mxu0 0
    %2822 = vmatpush1.bf16.msra.mxu0 0
    %2823 = vmatprep.subr.bf16.mxu0 0
    %2824 = vmatpush1.bf16.msra.mxu0 0
    %2825 = vmatprep.subr.bf16.mxu0 0
    %2826 = vmatpush1.bf16.msra.mxu0 0
    %2827 = vmatprep.subr.bf16.mxu0 0
    %2828 = vmatpush1.bf16.msra.mxu0 0
    %2829 = vmatprep.subr.bf16.mxu0 0
    %2830 = vmatpush1.bf16.msra.mxu0 0
    %2831 = vmatprep.subr.bf16.mxu0 0
    %2832 = vmatpush1.bf16.msra.mxu0 0
    %2833 = vmatprep.subr.bf16.mxu0 0
    %2834 = vmatpush1.bf16.msra.mxu0 0
    %2835 = vmatprep.subr.bf16.mxu0 0
    %2836 = vmatpush1.bf16.msra.mxu0 0
    %2837 = vmatprep.mubr.bf16.mxu0 0
    %2838 = vmatmul.mubr.bf16.gmra.mrb[0].mxu0 %v2601
    %v2839 = vpop.f32.mrb[0].mxu0
    %v2840 = vadd.f32 0.0, %v2839
    %v2841 = vpop.f32.mrb[0].mxu0
    %v2842 = vadd.f32 0.0, %v2841
    %v2843 = vpop.f32.mrb[0].mxu0
    %v2844 = vadd.f32 0.0, %v2843
    %v2845 = vpop.f32.mrb[0].mxu0
    %v2846 = vadd.f32 0.0, %v2845
    %2847 = vdwg.mxu0
    %v2848 = vadd.f32 %v2593, %v2797
    %v2849 = vadd.f32 %v2594, %v2799
    %v2850 = vadd.f32 %v2595, %v2840
    %v2851 = vadd.f32 %v2596, %v2842
    %v2852 = vadd.f32 %v2597, %v2801
    %v2853 = vadd.f32 %v2598, %v2803
    %v2854 = vadd.f32 %v2599, %v2844
    %v2855 = vadd.f32 %v2600, %v2846
    %v2856 = vmul.f32 %v2848, 0.5
    %v2857 = vmul.f32 %v2852, 0.5
    %v2858 = vtanh.pop %v2856
    %v2859 = vtanh.pop %v2857
    %v2860 = vmul.f32 %v2858, 0.5
    %v2861 = vmul.f32 %v2859, 0.5
    %v2862 = vadd.f32 %v2860, 0.5
    %v2863 = vadd.f32 %v2861, 0.5
    %v2864 = vmul.f32 %v2849, 0.5
    %v2865 = vmul.f32 %v2853, 0.5
    %v2866 = vtanh.pop %v2864
    %v2867 = vtanh.pop %v2865
    %v2868 = vmul.f32 %v2866, 0.5
    %v2869 = vmul.f32 %v2867, 0.5
    %v2870 = vadd.f32 %v2868, 0.5
    %v2871 = vadd.f32 %v2869, 0.5
    %v2872 = vtanh.pop %v2850
    %v2873 = vtanh.pop %v2854
    %v2874 = vmul.f32 %v2851, 0.5
    %v2875 = vmul.f32 %v2855, 0.5
    %v2876 = vtanh.pop %v2874
    %v2877 = vtanh.pop %v2875
    %v2878 = vmul.f32 %v2876, 0.5
    %v2879 = vmul.f32 %v2877, 0.5
    %v2880 = vadd.f32 %v2878, 0.5
    %v2881 = vadd.f32 %v2879, 0.5
    %v2882 = vmul.f32 %v2870, %v2591
    %v2883 = vmul.f32 %v2871, %v2592
    %v2884 = vmul.f32 %v2862, %v2872
    %v2885 = vmul.f32 %v2863, %v2873
    %v2886 = vadd.f32 %v2882, %v2884
    %v2887 = vadd.f32 %v2883, %v2885
    %v2888 = vtanh.pop %v2886
    %v2889 = vtanh.pop %v2887
    %v2890 = vmul.f32 %v2880, %v2888
    %v2891 = vmul.f32 %v2881, %v2889
    %v2892 = vpack.c.bf16 %v2891, %v2890
    %2893 = vst [vmem:[#allocation2] sm:$0xff] %v2892
    %v2894 = vld [vmem:[%s1042] sm:$0xff]
    %v2895 = vld [vmem:[%s1042 + $0x8] sm:$0xff]
    %v2896 = vld [vmem:[%s1042 + $0x10] sm:$0xff]
    %v2897 = vld [vmem:[%s1042 + $0x18] sm:$0xff]
    %v2898 = vld [vmem:[%s1042 + $0x20] sm:$0xff]
    %v2899 = vld [vmem:[%s1042 + $0x28] sm:$0xff]
    %v2900 = vld [vmem:[%s1042 + $0x30] sm:$0xff]
    %v2901 = vld [vmem:[%s1042 + $0x38] sm:$0xff]
    %2902 = vmatprep.subr.bf16.mxu0 %v2699
    %2903 = vmatpush1.bf16.msra.mxu0 %v2698
    %2904 = vmatprep.subr.bf16.mxu0 %v2703
    %2905 = vmatpush1.bf16.msra.mxu0 %v2702
    %2906 = vmatprep.subr.bf16.mxu0 %v2707
    %2907 = vmatpush1.bf16.msra.mxu0 %v2706
    %2908 = vmatprep.subr.bf16.mxu0 %v2711
    %2909 = vmatpush1.bf16.msra.mxu0 %v2710
    %2910 = vmatprep.subr.bf16.mxu0 %v2715
    %2911 = vmatpush1.bf16.msra.mxu0 %v2714
    %2912 = vmatprep.subr.bf16.mxu0 %v2719
    %2913 = vmatpush1.bf16.msra.mxu0 %v2718
    %2914 = vmatprep.subr.bf16.mxu0 %v2723
    %2915 = vmatpush1.bf16.msra.mxu0 %v2722
    %2916 = vmatprep.subr.bf16.mxu0 %v2727
    %2917 = vmatpush1.bf16.msra.mxu0 %v2726
    %2918 = vmatprep.subr.bf16.mxu0 0
    %2919 = vmatpush1.bf16.msra.mxu0 0
    %2920 = vmatprep.subr.bf16.mxu0 0
    %2921 = vmatpush1.bf16.msra.mxu0 0
    %2922 = vmatprep.subr.bf16.mxu0 0
    %2923 = vmatpush1.bf16.msra.mxu0 0
    %2924 = vmatprep.subr.bf16.mxu0 0
    %2925 = vmatpush1.bf16.msra.mxu0 0
    %2926 = vmatprep.subr.bf16.mxu0 0
    %2927 = vmatpush1.bf16.msra.mxu0 0
    %2928 = vmatprep.subr.bf16.mxu0 0
    %2929 = vmatpush1.bf16.msra.mxu0 0
    %2930 = vmatprep.subr.bf16.mxu0 0
    %2931 = vmatpush1.bf16.msra.mxu0 0
    %2932 = vmatprep.subr.bf16.mxu0 0
    %2933 = vmatpush1.bf16.msra.mxu0 0
    %2934 = vmatprep.mubr.bf16.mxu0 0
    %2935 = vmatmul.mubr.bf16.gmra.mrb[0].mxu0 %v2892
    %v2936 = vpop.f32.mrb[0].mxu0
    %v2937 = vadd.f32 0.0, %v2936
    %v2938 = vpop.f32.mrb[0].mxu0
    %v2939 = vadd.f32 0.0, %v2938
    %v2940 = vpop.f32.mrb[0].mxu0
    %v2941 = vadd.f32 0.0, %v2940
    %v2942 = vpop.f32.mrb[0].mxu0
    %v2943 = vadd.f32 0.0, %v2942
    %2944 = vdwg.mxu0
    %2945 = vmatprep.subr.bf16.mxu0 %v2701
    %2946 = vmatpush1.bf16.msra.mxu0 %v2700
    %2947 = vmatprep.subr.bf16.mxu0 %v2705
    %2948 = vmatpush1.bf16.msra.mxu0 %v2704
    %2949 = vmatprep.subr.bf16.mxu0 %v2709
    %2950 = vmatpush1.bf16.msra.mxu0 %v2708
    %2951 = vmatprep.subr.bf16.mxu0 %v2713
    %2952 = vmatpush1.bf16.msra.mxu0 %v2712
    %2953 = vmatprep.subr.bf16.mxu0 %v2717
    %2954 = vmatpush1.bf16.msra.mxu0 %v2716
    %2955 = vmatprep.subr.bf16.mxu0 %v2721
    %2956 = vmatpush1.bf16.msra.mxu0 %v2720
    %2957 = vmatprep.subr.bf16.mxu0 %v2725
    %2958 = vmatpush1.bf16.msra.mxu0 %v2724
    %2959 = vmatprep.subr.bf16.mxu0 %v2729
    %2960 = vmatpush1.bf16.msra.mxu0 %v2728
    %2961 = vmatprep.subr.bf16.mxu0 0
    %2962 = vmatpush1.bf16.msra.mxu0 0
    %2963 = vmatprep.subr.bf16.mxu0 0
    %2964 = vmatpush1.bf16.msra.mxu0 0
    %2965 = vmatprep.subr.bf16.mxu0 0
    %2966 = vmatpush1.bf16.msra.mxu0 0
    %2967 = vmatprep.subr.bf16.mxu0 0
    %2968 = vmatpush1.bf16.msra.mxu0 0
    %2969 = vmatprep.subr.bf16.mxu0 0
    %2970 = vmatpush1.bf16.msra.mxu0 0
    %2971 = vmatprep.subr.bf16.mxu0 0
    %2972 = vmatpush1.bf16.msra.mxu0 0
    %2973 = vmatprep.subr.bf16.mxu0 0
    %2974 = vmatpush1.bf16.msra.mxu0 0
    %2975 = vmatprep.subr.bf16.mxu0 0
    %2976 = vmatpush1.bf16.msra.mxu0 0
    %2977 = vmatprep.mubr.bf16.mxu0 0
    %2978 = vmatmul.mubr.bf16.gmra.mrb[0].mxu0 %v2892
    %v2979 = vpop.f32.mrb[0].mxu0
    %v2980 = vadd.f32 0.0, %v2979
    %v2981 = vpop.f32.mrb[0].mxu0
    %v2982 = vadd.f32 0.0, %v2981
    %v2983 = vpop.f32.mrb[0].mxu0
    %v2984 = vadd.f32 0.0, %v2983
    %v2985 = vpop.f32.mrb[0].mxu0
    %v2986 = vadd.f32 0.0, %v2985
    %2987 = vdwg.mxu0
    %v2988 = vadd.f32 %v2894, %v2937
    %v2989 = vadd.f32 %v2895, %v2939
    %v2990 = vadd.f32 %v2896, %v2980
    %v2991 = vadd.f32 %v2897, %v2982
    %v2992 = vadd.f32 %v2898, %v2941
    %v2993 = vadd.f32 %v2899, %v2943
    %v2994 = vadd.f32 %v2900, %v2984
    %v2995 = vadd.f32 %v2901, %v2986
    %v2996 = vmul.f32 %v2988, 0.5
    %v2997 = vmul.f32 %v2992, 0.5
    %v2998 = vtanh.pop %v2996
    %v2999 = vtanh.pop %v2997
    %v3000 = vmul.f32 %v2998, 0.5
    %v3001 = vmul.f32 %v2999, 0.5
    %v3002 = vadd.f32 %v3000, 0.5
    %v3003 = vadd.f32 %v3001, 0.5
    %v3004 = vmul.f32 %v2989, 0.5
    %v3005 = vmul.f32 %v2993, 0.5
    %v3006 = vtanh.pop %v3004
    %v3007 = vtanh.pop %v3005
    %v3008 = vmul.f32 %v3006, 0.5
    %v3009 = vmul.f32 %v3007, 0.5
    %v3010 = vadd.f32 %v3008, 0.5
    %v3011 = vadd.f32 %v3009, 0.5
    %v3012 = vtanh.pop %v2990
    %v3013 = vtanh.pop %v2994
    %v3014 = vmul.f32 %v2991, 0.5
    %v3015 = vmul.f32 %v2995, 0.5
    %v3016 = vtanh.pop %v3014
    %v3017 = vtanh.pop %v3015
    %v3018 = vmul.f32 %v3016, 0.5
    %v3019 = vmul.f32 %v3017, 0.5
    %v3020 = vadd.f32 %v3018, 0.5
    %v3021 = vadd.f32 %v3019, 0.5
    %v3022 = vmul.f32 %v3010, %v2886
    %v3023 = vmul.f32 %v3011, %v2887
    %v3024 = vmul.f32 %v3002, %v3012
    %v3025 = vmul.f32 %v3003, %v3013
    %v3026 = vadd.f32 %v3022, %v3024
    %v3027 = vadd.f32 %v3023, %v3025
    %v3028 = vtanh.pop %v3026
    %v3029 = vtanh.pop %v3027
    %v3030 = vmul.f32 %v3020, %v3028
    %v3031 = vmul.f32 %v3021, %v3029
    %v3032 = vpack.c.bf16 %v3031, %v3030
    %3033 = vst [vmem:[%s1182] sm:$0xff] %v3032
    %v3034 = vld [vmem:[%s1184] sm:$0xff]
    %v3035 = vld [vmem:[%s1184 + $0x8] sm:$0xff]
    %v3036 = vld [vmem:[%s1184 + $0x10] sm:$0xff]
    %v3037 = vld [vmem:[%s1184 + $0x18] sm:$0xff]
    %v3038 = vld [vmem:[%s1184 + $0x20] sm:$0xff]
    %v3039 = vld [vmem:[%s1184 + $0x28] sm:$0xff]
    %v3040 = vld [vmem:[%s1184 + $0x30] sm:$0xff]
    %v3041 = vld [vmem:[%s1184 + $0x38] sm:$0xff]
    %3042 = vmatprep.subr.bf16.mxu0 %v2699
    %3043 = vmatpush1.bf16.msra.mxu0 %v2698
    %3044 = vmatprep.subr.bf16.mxu0 %v2703
    %3045 = vmatpush1.bf16.msra.mxu0 %v2702
    %3046 = vmatprep.subr.bf16.mxu0 %v2707
    %3047 = vmatpush1.bf16.msra.mxu0 %v2706
    %3048 = vmatprep.subr.bf16.mxu0 %v2711
    %3049 = vmatpush1.bf16.msra.mxu0 %v2710
    %3050 = vmatprep.subr.bf16.mxu0 %v2715
    %3051 = vmatpush1.bf16.msra.mxu0 %v2714
    %3052 = vmatprep.subr.bf16.mxu0 %v2719
    %3053 = vmatpush1.bf16.msra.mxu0 %v2718
    %3054 = vmatprep.subr.bf16.mxu0 %v2723
    %3055 = vmatpush1.bf16.msra.mxu0 %v2722
    %3056 = vmatprep.subr.bf16.mxu0 %v2727
    %3057 = vmatpush1.bf16.msra.mxu0 %v2726
    %3058 = vmatprep.subr.bf16.mxu0 0
    %3059 = vmatpush1.bf16.msra.mxu0 0
    %3060 = vmatprep.subr.bf16.mxu0 0
    %3061 = vmatpush1.bf16.msra.mxu0 0
    %3062 = vmatprep.subr.bf16.mxu0 0
    %3063 = vmatpush1.bf16.msra.mxu0 0
    %3064 = vmatprep.subr.bf16.mxu0 0
    %3065 = vmatpush1.bf16.msra.mxu0 0
    %3066 = vmatprep.subr.bf16.mxu0 0
    %3067 = vmatpush1.bf16.msra.mxu0 0
    %3068 = vmatprep.subr.bf16.mxu0 0
    %3069 = vmatpush1.bf16.msra.mxu0 0
    %3070 = vmatprep.subr.bf16.mxu0 0
    %3071 = vmatpush1.bf16.msra.mxu0 0
    %3072 = vmatprep.subr.bf16.mxu0 0
    %3073 = vmatpush1.bf16.msra.mxu0 0
    %3074 = vmatprep.mubr.bf16.mxu0 0
    %3075 = vmatmul.mubr.bf16.gmra.mrb[0].mxu0 %v3032
    %v3076 = vpop.f32.mrb[0].mxu0
    %v3077 = vadd.f32 0.0, %v3076
    %v3078 = vpop.f32.mrb[0].mxu0
    %v3079 = vadd.f32 0.0, %v3078
    %v3080 = vpop.f32.mrb[0].mxu0
    %v3081 = vadd.f32 0.0, %v3080
    %v3082 = vpop.f32.mrb[0].mxu0
    %v3083 = vadd.f32 0.0, %v3082
    %3084 = vdwg.mxu0
    %3085 = vmatprep.subr.bf16.mxu0 %v2701
    %3086 = vmatpush1.bf16.msra.mxu0 %v2700
    %3087 = vmatprep.subr.bf16.mxu0 %v2705
    %3088 = vmatpush1.bf16.msra.mxu0 %v2704
    %3089 = vmatprep.subr.bf16.mxu0 %v2709
    %3090 = vmatpush1.bf16.msra.mxu0 %v2708
    %3091 = vmatprep.subr.bf16.mxu0 %v2713
    %3092 = vmatpush1.bf16.msra.mxu0 %v2712
    %3093 = vmatprep.subr.bf16.mxu0 %v2717
    %3094 = vmatpush1.bf16.msra.mxu0 %v2716
    %3095 = vmatprep.subr.bf16.mxu0 %v2721
    %3096 = vmatpush1.bf16.msra.mxu0 %v2720
    %3097 = vmatprep.subr.bf16.mxu0 %v2725
    %3098 = vmatpush1.bf16.msra.mxu0 %v2724
    %3099 = vmatprep.subr.bf16.mxu0 %v2729
    %3100 = vmatpush1.bf16.msra.mxu0 %v2728
    %3101 = vmatprep.subr.bf16.mxu0 0
    %3102 = vmatpush1.bf16.msra.mxu0 0
    %3103 = vmatprep.subr.bf16.mxu0 0
    %3104 = vmatpush1.bf16.msra.mxu0 0
    %3105 = vmatprep.subr.bf16.mxu0 0
    %3106 = vmatpush1.bf16.msra.mxu0 0
    %3107 = vmatprep.subr.bf16.mxu0 0
    %3108 = vmatpush1.bf16.msra.mxu0 0
    %3109 = vmatprep.subr.bf16.mxu0 0
    %3110 = vmatpush1.bf16.msra.mxu0 0
    %3111 = vmatprep.subr.bf16.mxu0 0
    %3112 = vmatpush1.bf16.msra.mxu0 0
    %3113 = vmatprep.subr.bf16.mxu0 0
    %3114 = vmatpush1.bf16.msra.mxu0 0
    %3115 = vmatprep.subr.bf16.mxu0 0
    %3116 = vmatpush1.bf16.msra.mxu0 0
    %3117 = vmatprep.mubr.bf16.mxu0 0
    %3118 = vmatmul.mubr.bf16.gmra.mrb[0].mxu0 %v3032
    %v3119 = vpop.f32.mrb[0].mxu0
    %v3120 = vadd.f32 0.0, %v3119
    %v3121 = vpop.f32.mrb[0].mxu0
    %v3122 = vadd.f32 0.0, %v3121
    %v3123 = vpop.f32.mrb[0].mxu0
    %v3124 = vadd.f32 0.0, %v3123
    %v3125 = vpop.f32.mrb[0].mxu0
    %v3126 = vadd.f32 0.0, %v3125
    %3127 = vdwg.mxu0
    %v3128 = vadd.f32 %v3034, %v3077
    %v3129 = vadd.f32 %v3035, %v3079
    %v3130 = vadd.f32 %v3036, %v3120
    %v3131 = vadd.f32 %v3037, %v3122
    %v3132 = vadd.f32 %v3038, %v3081
    %v3133 = vadd.f32 %v3039, %v3083
    %v3134 = vadd.f32 %v3040, %v3124
    %v3135 = vadd.f32 %v3041, %v3126
    %v3136 = vmul.f32 %v3128, 0.5
    %v3137 = vmul.f32 %v3132, 0.5
    %v3138 = vtanh.pop %v3136
    %v3139 = vtanh.pop %v3137
    %v3140 = vmul.f32 %v3138, 0.5
    %v3141 = vmul.f32 %v3139, 0.5
    %v3142 = vadd.f32 %v3140, 0.5
    %v3143 = vadd.f32 %v3141, 0.5
    %v3144 = vmul.f32 %v3129, 0.5
    %v3145 = vmul.f32 %v3133, 0.5
    %v3146 = vtanh.pop %v3144
    %v3147 = vtanh.pop %v3145
    %v3148 = vmul.f32 %v3146, 0.5
    %v3149 = vmul.f32 %v3147, 0.5
    %v3150 = vadd.f32 %v3148, 0.5
    %v3151 = vadd.f32 %v3149, 0.5
    %v3152 = vtanh.pop %v3130
    %v3153 = vtanh.pop %v3134
    %v3154 = vmul.f32 %v3131, 0.5
    %v3155 = vmul.f32 %v3135, 0.5
    %v3156 = vtanh.pop %v3154
    %v3157 = vtanh.pop %v3155
    %v3158 = vmul.f32 %v3156, 0.5
    %v3159 = vmul.f32 %v3157, 0.5
    %v3160 = vadd.f32 %v3158, 0.5
    %v3161 = vadd.f32 %v3159, 0.5
    %v3162 = vmul.f32 %v3150, %v3026
    %v3163 = vmul.f32 %v3151, %v3027
    %v3164 = vmul.f32 %v3142, %v3152
    %v3165 = vmul.f32 %v3143, %v3153
    %v3166 = vadd.f32 %v3162, %v3164
    %v3167 = vadd.f32 %v3163, %v3165
    %v3168 = vtanh.pop %v3166
    %v3169 = vtanh.pop %v3167
    %v3170 = vmul.f32 %v3160, %v3168
    %v3171 = vmul.f32 %v3161, %v3169
    %v3172 = vpack.c.bf16 %v3171, %v3170
    %3173 = vst [vmem:[%s1324] sm:$0xff] %v3172
    %v3174 = vld [vmem:[%s1326] sm:$0xff]
    %v3175 = vld [vmem:[%s1326 + $0x8] sm:$0xff]
    %v3176 = vld [vmem:[%s1326 + $0x10] sm:$0xff]
    %v3177 = vld [vmem:[%s1326 + $0x18] sm:$0xff]
    %v3178 = vld [vmem:[%s1326 + $0x20] sm:$0xff]
    %v3179 = vld [vmem:[%s1326 + $0x28] sm:$0xff]
    %v3180 = vld [vmem:[%s1326 + $0x30] sm:$0xff]
    %v3181 = vld [vmem:[%s1326 + $0x38] sm:$0xff]
    %3182 = vmatprep.subr.bf16.mxu0 %v2699
    %3183 = vmatpush1.bf16.msra.mxu0 %v2698
    %3184 = vmatprep.subr.bf16.mxu0 %v2703
    %3185 = vmatpush1.bf16.msra.mxu0 %v2702
    %3186 = vmatprep.subr.bf16.mxu0 %v2707
    %3187 = vmatpush1.bf16.msra.mxu0 %v2706
    %3188 = vmatprep.subr.bf16.mxu0 %v2711
    %3189 = vmatpush1.bf16.msra.mxu0 %v2710
    %3190 = vmatprep.subr.bf16.mxu0 %v2715
    %3191 = vmatpush1.bf16.msra.mxu0 %v2714
    %3192 = vmatprep.subr.bf16.mxu0 %v2719
    %3193 = vmatpush1.bf16.msra.mxu0 %v2718
    %3194 = vmatprep.subr.bf16.mxu0 %v2723
    %3195 = vmatpush1.bf16.msra.mxu0 %v2722
    %3196 = vmatprep.subr.bf16.mxu0 %v2727
    %3197 = vmatpush1.bf16.msra.mxu0 %v2726
    %3198 = vmatprep.subr.bf16.mxu0 0
    %3199 = vmatpush1.bf16.msra.mxu0 0
    %3200 = vmatprep.subr.bf16.mxu0 0
    %3201 = vmatpush1.bf16.msra.mxu0 0
    %3202 = vmatprep.subr.bf16.mxu0 0
    %3203 = vmatpush1.bf16.msra.mxu0 0
    %3204 = vmatprep.subr.bf16.mxu0 0
    %3205 = vmatpush1.bf16.msra.mxu0 0
    %3206 = vmatprep.subr.bf16.mxu0 0
    %3207 = vmatpush1.bf16.msra.mxu0 0
    %3208 = vmatprep.subr.bf16.mxu0 0
    %3209 = vmatpush1.bf16.msra.mxu0 0
    %3210 = vmatprep.subr.bf16.mxu0 0
    %3211 = vmatpush1.bf16.msra.mxu0 0
    %3212 = vmatprep.subr.bf16.mxu0 0
    %3213 = vmatpush1.bf16.msra.mxu0 0
    %3214 = vmatprep.mubr.bf16.mxu0 0
    %3215 = vmatmul.mubr.bf16.gmra.mrb[0].mxu0 %v3172
    %v3216 = vpop.f32.mrb[0].mxu0
    %v3217 = vadd.f32 0.0, %v3216
    %v3218 = vpop.f32.mrb[0].mxu0
    %v3219 = vadd.f32 0.0, %v3218
    %v3220 = vpop.f32.mrb[0].mxu0
    %v3221 = vadd.f32 0.0, %v3220
    %v3222 = vpop.f32.mrb[0].mxu0
    %v3223 = vadd.f32 0.0, %v3222
    %3224 = vdwg.mxu0
    %3225 = vmatprep.subr.bf16.mxu0 %v2701
    %3226 = vmatpush1.bf16.msra.mxu0 %v2700
    %3227 = vmatprep.subr.bf16.mxu0 %v2705
    %3228 = vmatpush1.bf16.msra.mxu0 %v2704
    %3229 = vmatprep.subr.bf16.mxu0 %v2709
    %3230 = vmatpush1.bf16.msra.mxu0 %v2708
    %3231 = vmatprep.subr.bf16.mxu0 %v2713
    %3232 = vmatpush1.bf16.msra.mxu0 %v2712
    %3233 = vmatprep.subr.bf16.mxu0 %v2717
    %3234 = vmatpush1.bf16.msra.mxu0 %v2716
    %3235 = vmatprep.subr.bf16.mxu0 %v2721
    %3236 = vmatpush1.bf16.msra.mxu0 %v2720
    %3237 = vmatprep.subr.bf16.mxu0 %v2725
    %3238 = vmatpush1.bf16.msra.mxu0 %v2724
    %3239 = vmatprep.subr.bf16.mxu0 %v2729
    %3240 = vmatpush1.bf16.msra.mxu0 %v2728
    %3241 = vmatprep.subr.bf16.mxu0 0
    %3242 = vmatpush1.bf16.msra.mxu0 0
    %3243 = vmatprep.subr.bf16.mxu0 0
    %3244 = vmatpush1.bf16.msra.mxu0 0
    %3245 = vmatprep.subr.bf16.mxu0 0
    %3246 = vmatpush1.bf16.msra.mxu0 0
    %3247 = vmatprep.subr.bf16.mxu0 0
    %3248 = vmatpush1.bf16.msra.mxu0 0
    %3249 = vmatprep.subr.bf16.mxu0 0
    %3250 = vmatpush1.bf16.msra.mxu0 0
    %3251 = vmatprep.subr.bf16.mxu0 0
    %3252 = vmatpush1.bf16.msra.mxu0 0
    %3253 = vmatprep.subr.bf16.mxu0 0
    %3254 = vmatpush1.bf16.msra.mxu0 0
    %3255 = vmatprep.subr.bf16.mxu0 0
    %3256 = vmatpush1.bf16.msra.mxu0 0
    %3257 = vmatprep.mubr.bf16.mxu0 0
    %3258 = vmatmul.mubr.bf16.gmra.mrb[0].mxu0 %v3172
    %v3259 = vpop.f32.mrb[0].mxu0
    %v3260 = vadd.f32 0.0, %v3259
    %v3261 = vpop.f32.mrb[0].mxu0
    %v3262 = vadd.f32 0.0, %v3261
    %v3263 = vpop.f32.mrb[0].mxu0
    %v3264 = vadd.f32 0.0, %v3263
    %v3265 = vpop.f32.mrb[0].mxu0
    %v3266 = vadd.f32 0.0, %v3265
    %3267 = vdwg.mxu0
    %v3268 = vadd.f32 %v3174, %v3217
    %v3269 = vadd.f32 %v3175, %v3219
    %v3270 = vadd.f32 %v3176, %v3260
    %v3271 = vadd.f32 %v3177, %v3262
    %v3272 = vadd.f32 %v3178, %v3221
    %v3273 = vadd.f32 %v3179, %v3223
    %v3274 = vadd.f32 %v3180, %v3264
    %v3275 = vadd.f32 %v3181, %v3266
    %v3276 = vmul.f32 %v3268, 0.5
    %v3277 = vmul.f32 %v3272, 0.5
    %v3278 = vtanh.pop %v3276
    %v3279 = vtanh.pop %v3277
    %v3280 = vmul.f32 %v3278, 0.5
    %v3281 = vmul.f32 %v3279, 0.5
    %v3282 = vadd.f32 %v3280, 0.5
    %v3283 = vadd.f32 %v3281, 0.5
    %v3284 = vmul.f32 %v3269, 0.5
    %v3285 = vmul.f32 %v3273, 0.5
    %v3286 = vtanh.pop %v3284
    %v3287 = vtanh.pop %v3285
    %v3288 = vmul.f32 %v3286, 0.5
    %v3289 = vmul.f32 %v3287, 0.5
    %v3290 = vadd.f32 %v3288, 0.5
    %v3291 = vadd.f32 %v3289, 0.5
    %v3292 = vtanh.pop %v3270
    %v3293 = vtanh.pop %v3274
    %v3294 = vmul.f32 %v3271, 0.5
    %v3295 = vmul.f32 %v3275, 0.5
    %v3296 = vtanh.pop %v3294
    %v3297 = vtanh.pop %v3295
    %v3298 = vmul.f32 %v3296, 0.5
    %v3299 = vmul.f32 %v3297, 0.5
    %v3300 = vadd.f32 %v3298, 0.5
    %v3301 = vadd.f32 %v3299, 0.5
    %v3302 = vmul.f32 %v3290, %v3166
    %v3303 = vmul.f32 %v3291, %v3167
    %v3304 = vmul.f32 %v3282, %v3292
    %v3305 = vmul.f32 %v3283, %v3293
    %v3306 = vadd.f32 %v3302, %v3304
    %v3307 = vadd.f32 %v3303, %v3305
    %v3308 = vtanh.pop %v3306
    %v3309 = vtanh.pop %v3307
    %v3310 = vmul.f32 %v3300, %v3308
    %v3311 = vmul.f32 %v3301, %v3309
    %v3312 = vpack.c.bf16 %v3311, %v3310
    %3313 = vst [vmem:[%s1466] sm:$0xff] %v3312
    %v3314 = vld [vmem:[%s1468] sm:$0xff]
    %v3315 = vld [vmem:[%s1468 + $0x8] sm:$0xff]
    %v3316 = vld [vmem:[%s1468 + $0x10] sm:$0xff]
    %v3317 = vld [vmem:[%s1468 + $0x18] sm:$0xff]
    %v3318 = vld [vmem:[%s1468 + $0x20] sm:$0xff]
    %v3319 = vld [vmem:[%s1468 + $0x28] sm:$0xff]
    %v3320 = vld [vmem:[%s1468 + $0x30] sm:$0xff]
    %v3321 = vld [vmem:[%s1468 + $0x38] sm:$0xff]
    %3322 = vmatprep.subr.bf16.mxu0 %v2699
    %3323 = vmatpush1.bf16.msra.mxu0 %v2698
    %3324 = vmatprep.subr.bf16.mxu0 %v2703
    %3325 = vmatpush1.bf16.msra.mxu0 %v2702
    %3326 = vmatprep.subr.bf16.mxu0 %v2707
    %3327 = vmatpush1.bf16.msra.mxu0 %v2706
    %3328 = vmatprep.subr.bf16.mxu0 %v2711
    %3329 = vmatpush1.bf16.msra.mxu0 %v2710
    %3330 = vmatprep.subr.bf16.mxu0 %v2715
    %3331 = vmatpush1.bf16.msra.mxu0 %v2714
    %3332 = vmatprep.subr.bf16.mxu0 %v2719
    %3333 = vmatpush1.bf16.msra.mxu0 %v2718
    %3334 = vmatprep.subr.bf16.mxu0 %v2723
    %3335 = vmatpush1.bf16.msra.mxu0 %v2722
    %3336 = vmatprep.subr.bf16.mxu0 %v2727
    %3337 = vmatpush1.bf16.msra.mxu0 %v2726
    %3338 = vmatprep.subr.bf16.mxu0 0
    %3339 = vmatpush1.bf16.msra.mxu0 0
    %3340 = vmatprep.subr.bf16.mxu0 0
    %3341 = vmatpush1.bf16.msra.mxu0 0
    %3342 = vmatprep.subr.bf16.mxu0 0
    %3343 = vmatpush1.bf16.msra.mxu0 0
    %3344 = vmatprep.subr.bf16.mxu0 0
    %3345 = vmatpush1.bf16.msra.mxu0 0
    %3346 = vmatprep.subr.bf16.mxu0 0
    %3347 = vmatpush1.bf16.msra.mxu0 0
    %3348 = vmatprep.subr.bf16.mxu0 0
    %3349 = vmatpush1.bf16.msra.mxu0 0
    %3350 = vmatprep.subr.bf16.mxu0 0
    %3351 = vmatpush1.bf16.msra.mxu0 0
    %3352 = vmatprep.subr.bf16.mxu0 0
    %3353 = vmatpush1.bf16.msra.mxu0 0
    %3354 = vmatprep.mubr.bf16.mxu0 0
    %3355 = vmatmul.mubr.bf16.gmra.mrb[0].mxu0 %v3312
    %v3356 = vpop.f32.mrb[0].mxu0
    %v3357 = vadd.f32 0.0, %v3356
    %v3358 = vpop.f32.mrb[0].mxu0
    %v3359 = vadd.f32 0.0, %v3358
    %v3360 = vpop.f32.mrb[0].mxu0
    %v3361 = vadd.f32 0.0, %v3360
    %v3362 = vpop.f32.mrb[0].mxu0
    %v3363 = vadd.f32 0.0, %v3362
    %3364 = vdwg.mxu0
    %3365 = vmatprep.subr.bf16.mxu0 %v2701
    %3366 = vmatpush1.bf16.msra.mxu0 %v2700
    %3367 = vmatprep.subr.bf16.mxu0 %v2705
    %3368 = vmatpush1.bf16.msra.mxu0 %v2704
    %3369 = vmatprep.subr.bf16.mxu0 %v2709
    %3370 = vmatpush1.bf16.msra.mxu0 %v2708
    %3371 = vmatprep.subr.bf16.mxu0 %v2713
    %3372 = vmatpush1.bf16.msra.mxu0 %v2712
    %3373 = vmatprep.subr.bf16.mxu0 %v2717
    %3374 = vmatpush1.bf16.msra.mxu0 %v2716
    %3375 = vmatprep.subr.bf16.mxu0 %v2721
    %3376 = vmatpush1.bf16.msra.mxu0 %v2720
    %3377 = vmatprep.subr.bf16.mxu0 %v2725
    %3378 = vmatpush1.bf16.msra.mxu0 %v2724
    %3379 = vmatprep.subr.bf16.mxu0 %v2729
    %3380 = vmatpush1.bf16.msra.mxu0 %v2728
    %3381 = vmatprep.subr.bf16.mxu0 0
    %3382 = vmatpush1.bf16.msra.mxu0 0
    %3383 = vmatprep.subr.bf16.mxu0 0
    %3384 = vmatpush1.bf16.msra.mxu0 0
    %3385 = vmatprep.subr.bf16.mxu0 0
    %3386 = vmatpush1.bf16.msra.mxu0 0
    %3387 = vmatprep.subr.bf16.mxu0 0
    %3388 = vmatpush1.bf16.msra.mxu0 0
    %3389 = vmatprep.subr.bf16.mxu0 0
    %3390 = vmatpush1.bf16.msra.mxu0 0
    %3391 = vmatprep.subr.bf16.mxu0 0
    %3392 = vmatpush1.bf16.msra.mxu0 0
    %3393 = vmatprep.subr.bf16.mxu0 0
    %3394 = vmatpush1.bf16.msra.mxu0 0
    %3395 = vmatprep.subr.bf16.mxu0 0
    %3396 = vmatpush1.bf16.msra.mxu0 0
    %3397 = vmatprep.mubr.bf16.mxu0 0
    %3398 = vmatmul.mubr.bf16.gmra.mrb[0].mxu0 %v3312
    %v3399 = vpop.f32.mrb[0].mxu0
    %v3400 = vadd.f32 0.0, %v3399
    %v3401 = vpop.f32.mrb[0].mxu0
    %v3402 = vadd.f32 0.0, %v3401
    %v3403 = vpop.f32.mrb[0].mxu0
    %v3404 = vadd.f32 0.0, %v3403
    %v3405 = vpop.f32.mrb[0].mxu0
    %v3406 = vadd.f32 0.0, %v3405
    %3407 = vdwg.mxu0
    %v3408 = vadd.f32 %v3314, %v3357
    %v3409 = vadd.f32 %v3315, %v3359
    %v3410 = vadd.f32 %v3316, %v3400
    %v3411 = vadd.f32 %v3317, %v3402
    %v3412 = vadd.f32 %v3318, %v3361
    %v3413 = vadd.f32 %v3319, %v3363
    %v3414 = vadd.f32 %v3320, %v3404
    %v3415 = vadd.f32 %v3321, %v3406
    %v3416 = vmul.f32 %v3408, 0.5
    %v3417 = vmul.f32 %v3412, 0.5
    %v3418 = vtanh.pop %v3416
    %v3419 = vtanh.pop %v3417
    %v3420 = vmul.f32 %v3418, 0.5
    %v3421 = vmul.f32 %v3419, 0.5
    %v3422 = vadd.f32 %v3420, 0.5
    %v3423 = vadd.f32 %v3421, 0.5
    %v3424 = vmul.f32 %v3409, 0.5
    %v3425 = vmul.f32 %v3413, 0.5
    %v3426 = vtanh.pop %v3424
    %v3427 = vtanh.pop %v3425
    %v3428 = vmul.f32 %v3426, 0.5
    %v3429 = vmul.f32 %v3427, 0.5
    %v3430 = vadd.f32 %v3428, 0.5
    %v3431 = vadd.f32 %v3429, 0.5
    %v3432 = vtanh.pop %v3410
    %v3433 = vtanh.pop %v3414
    %v3434 = vmul.f32 %v3411, 0.5
    %v3435 = vmul.f32 %v3415, 0.5
    %v3436 = vtanh.pop %v3434
    %v3437 = vtanh.pop %v3435
    %v3438 = vmul.f32 %v3436, 0.5
    %v3439 = vmul.f32 %v3437, 0.5
    %v3440 = vadd.f32 %v3438, 0.5
    %v3441 = vadd.f32 %v3439, 0.5
    %v3442 = vmul.f32 %v3430, %v3306
    %v3443 = vmul.f32 %v3431, %v3307
    %v3444 = vmul.f32 %v3422, %v3432
    %v3445 = vmul.f32 %v3423, %v3433
    %v3446 = vadd.f32 %v3442, %v3444
    %v3447 = vadd.f32 %v3443, %v3445
    %v3448 = vtanh.pop %v3446
    %v3449 = vtanh.pop %v3447
    %v3450 = vmul.f32 %v3440, %v3448
    %v3451 = vmul.f32 %v3441, %v3449
    %v3452 = vpack.c.bf16 %v3451, %v3450
    %3453 = vst [vmem:[%s1608] sm:$0xff] %v3452
    %v3454 = vld [vmem:[%s1610] sm:$0xff]
    %v3455 = vld [vmem:[%s1610 + $0x8] sm:$0xff]
    %v3456 = vld [vmem:[%s1610 + $0x10] sm:$0xff]
    %v3457 = vld [vmem:[%s1610 + $0x18] sm:$0xff]
    %v3458 = vld [vmem:[%s1610 + $0x20] sm:$0xff]
    %v3459 = vld [vmem:[%s1610 + $0x28] sm:$0xff]
    %v3460 = vld [vmem:[%s1610 + $0x30] sm:$0xff]
    %v3461 = vld [vmem:[%s1610 + $0x38] sm:$0xff]
    %3462 = vmatprep.subr.bf16.mxu0 %v2699
    %3463 = vmatpush1.bf16.msra.mxu0 %v2698
    %3464 = vmatprep.subr.bf16.mxu0 %v2703
    %3465 = vmatpush1.bf16.msra.mxu0 %v2702
    %3466 = vmatprep.subr.bf16.mxu0 %v2707
    %3467 = vmatpush1.bf16.msra.mxu0 %v2706
    %3468 = vmatprep.subr.bf16.mxu0 %v2711
    %3469 = vmatpush1.bf16.msra.mxu0 %v2710
    %3470 = vmatprep.subr.bf16.mxu0 %v2715
    %3471 = vmatpush1.bf16.msra.mxu0 %v2714
    %3472 = vmatprep.subr.bf16.mxu0 %v2719
    %3473 = vmatpush1.bf16.msra.mxu0 %v2718
    %3474 = vmatprep.subr.bf16.mxu0 %v2723
    %3475 = vmatpush1.bf16.msra.mxu0 %v2722
    %3476 = vmatprep.subr.bf16.mxu0 %v2727
    %3477 = vmatpush1.bf16.msra.mxu0 %v2726
    %3478 = vmatprep.subr.bf16.mxu0 0
    %3479 = vmatpush1.bf16.msra.mxu0 0
    %3480 = vmatprep.subr.bf16.mxu0 0
    %3481 = vmatpush1.bf16.msra.mxu0 0
    %3482 = vmatprep.subr.bf16.mxu0 0
    %3483 = vmatpush1.bf16.msra.mxu0 0
    %3484 = vmatprep.subr.bf16.mxu0 0
    %3485 = vmatpush1.bf16.msra.mxu0 0
    %3486 = vmatprep.subr.bf16.mxu0 0
    %3487 = vmatpush1.bf16.msra.mxu0 0
    %3488 = vmatprep.subr.bf16.mxu0 0
    %3489 = vmatpush1.bf16.msra.mxu0 0
    %3490 = vmatprep.subr.bf16.mxu0 0
    %3491 = vmatpush1.bf16.msra.mxu0 0
    %3492 = vmatprep.subr.bf16.mxu0 0
    %3493 = vmatpush1.bf16.msra.mxu0 0
    %3494 = vmatprep.mubr.bf16.mxu0 0
    %3495 = vmatmul.mubr.bf16.gmra.mrb[0].mxu0 %v3452
    %v3496 = vpop.f32.mrb[0].mxu0
    %v3497 = vadd.f32 0.0, %v3496
    %v3498 = vpop.f32.mrb[0].mxu0
    %v3499 = vadd.f32 0.0, %v3498
    %v3500 = vpop.f32.mrb[0].mxu0
    %v3501 = vadd.f32 0.0, %v3500
    %v3502 = vpop.f32.mrb[0].mxu0
    %v3503 = vadd.f32 0.0, %v3502
    %3504 = vdwg.mxu0
    %3505 = vmatprep.subr.bf16.mxu0 %v2701
    %3506 = vmatpush1.bf16.msra.mxu0 %v2700
    %3507 = vmatprep.subr.bf16.mxu0 %v2705
    %3508 = vmatpush1.bf16.msra.mxu0 %v2704
    %3509 = vmatprep.subr.bf16.mxu0 %v2709
    %3510 = vmatpush1.bf16.msra.mxu0 %v2708
    %3511 = vmatprep.subr.bf16.mxu0 %v2713
    %3512 = vmatpush1.bf16.msra.mxu0 %v2712
    %3513 = vmatprep.subr.bf16.mxu0 %v2717
    %3514 = vmatpush1.bf16.msra.mxu0 %v2716
    %3515 = vmatprep.subr.bf16.mxu0 %v2721
    %3516 = vmatpush1.bf16.msra.mxu0 %v2720
    %3517 = vmatprep.subr.bf16.mxu0 %v2725
    %3518 = vmatpush1.bf16.msra.mxu0 %v2724
    %3519 = vmatprep.subr.bf16.mxu0 %v2729
    %3520 = vmatpush1.bf16.msra.mxu0 %v2728
    %3521 = vmatprep.subr.bf16.mxu0 0
    %3522 = vmatpush1.bf16.msra.mxu0 0
    %3523 = vmatprep.subr.bf16.mxu0 0
    %3524 = vmatpush1.bf16.msra.mxu0 0
    %3525 = vmatprep.subr.bf16.mxu0 0
    %3526 = vmatpush1.bf16.msra.mxu0 0
    %3527 = vmatprep.subr.bf16.mxu0 0
    %3528 = vmatpush1.bf16.msra.mxu0 0
    %3529 = vmatprep.subr.bf16.mxu0 0
    %3530 = vmatpush1.bf16.msra.mxu0 0
    %3531 = vmatprep.subr.bf16.mxu0 0
    %3532 = vmatpush1.bf16.msra.mxu0 0
    %3533 = vmatprep.subr.bf16.mxu0 0
    %3534 = vmatpush1.bf16.msra.mxu0 0
    %3535 = vmatprep.subr.bf16.mxu0 0
    %3536 = vmatpush1.bf16.msra.mxu0 0
    %3537 = vmatprep.mubr.bf16.mxu0 0
    %3538 = vmatmul.mubr.bf16.gmra.mrb[0].mxu0 %v3452
    %v3539 = vpop.f32.mrb[0].mxu0
    %v3540 = vadd.f32 0.0, %v3539
    %v3541 = vpop.f32.mrb[0].mxu0
    %v3542 = vadd.f32 0.0, %v3541
    %v3543 = vpop.f32.mrb[0].mxu0
    %v3544 = vadd.f32 0.0, %v3543
    %v3545 = vpop.f32.mrb[0].mxu0
    %v3546 = vadd.f32 0.0, %v3545
    %3547 = vdwg.mxu0
    %v3548 = vadd.f32 %v3454, %v3497
    %v3549 = vadd.f32 %v3455, %v3499
    %v3550 = vadd.f32 %v3456, %v3540
    %v3551 = vadd.f32 %v3457, %v3542
    %v3552 = vadd.f32 %v3458, %v3501
    %v3553 = vadd.f32 %v3459, %v3503
    %v3554 = vadd.f32 %v3460, %v3544
    %v3555 = vadd.f32 %v3461, %v3546
    %v3556 = vmul.f32 %v3548, 0.5
    %v3557 = vmul.f32 %v3552, 0.5
    %v3558 = vtanh.pop %v3556
    %v3559 = vtanh.pop %v3557
    %v3560 = vmul.f32 %v3558, 0.5
    %v3561 = vmul.f32 %v3559, 0.5
    %v3562 = vadd.f32 %v3560, 0.5
    %v3563 = vadd.f32 %v3561, 0.5
    %v3564 = vmul.f32 %v3549, 0.5
    %v3565 = vmul.f32 %v3553, 0.5
    %v3566 = vtanh.pop %v3564
    %v3567 = vtanh.pop %v3565
    %v3568 = vmul.f32 %v3566, 0.5
    %v3569 = vmul.f32 %v3567, 0.5
    %v3570 = vadd.f32 %v3568, 0.5
    %v3571 = vadd.f32 %v3569, 0.5
    %v3572 = vtanh.pop %v3550
    %v3573 = vtanh.pop %v3554
    %v3574 = vmul.f32 %v3551, 0.5
    %v3575 = vmul.f32 %v3555, 0.5
    %v3576 = vtanh.pop %v3574
    %v3577 = vtanh.pop %v3575
    %v3578 = vmul.f32 %v3576, 0.5
    %v3579 = vmul.f32 %v3577, 0.5
    %v3580 = vadd.f32 %v3578, 0.5
    %v3581 = vadd.f32 %v3579, 0.5
    %v3582 = vmul.f32 %v3570, %v3446
    %v3583 = vmul.f32 %v3571, %v3447
    %v3584 = vmul.f32 %v3562, %v3572
    %v3585 = vmul.f32 %v3563, %v3573
    %v3586 = vadd.f32 %v3582, %v3584
    %v3587 = vadd.f32 %v3583, %v3585
    %v3588 = vtanh.pop %v3586
    %v3589 = vtanh.pop %v3587
    %v3590 = vmul.f32 %v3580, %v3588
    %v3591 = vmul.f32 %v3581, %v3589
    %v3592 = vpack.c.bf16 %v3591, %v3590
    %3593 = vst [vmem:[%s1750] sm:$0xff] %v3592
    %v3594 = vld [vmem:[%s1752] sm:$0xff]
    %v3595 = vld [vmem:[%s1752 + $0x8] sm:$0xff]
    %v3596 = vld [vmem:[%s1752 + $0x10] sm:$0xff]
    %v3597 = vld [vmem:[%s1752 + $0x18] sm:$0xff]
    %v3598 = vld [vmem:[%s1752 + $0x20] sm:$0xff]
    %v3599 = vld [vmem:[%s1752 + $0x28] sm:$0xff]
    %v3600 = vld [vmem:[%s1752 + $0x30] sm:$0xff]
    %v3601 = vld [vmem:[%s1752 + $0x38] sm:$0xff]
    %3602 = vmatprep.subr.bf16.mxu0 %v2699
    %3603 = vmatpush1.bf16.msra.mxu0 %v2698
    %3604 = vmatprep.subr.bf16.mxu0 %v2703
    %3605 = vmatpush1.bf16.msra.mxu0 %v2702
    %3606 = vmatprep.subr.bf16.mxu0 %v2707
    %3607 = vmatpush1.bf16.msra.mxu0 %v2706
    %3608 = vmatprep.subr.bf16.mxu0 %v2711
    %3609 = vmatpush1.bf16.msra.mxu0 %v2710
    %3610 = vmatprep.subr.bf16.mxu0 %v2715
    %3611 = vmatpush1.bf16.msra.mxu0 %v2714
    %3612 = vmatprep.subr.bf16.mxu0 %v2719
    %3613 = vmatpush1.bf16.msra.mxu0 %v2718
    %3614 = vmatprep.subr.bf16.mxu0 %v2723
    %3615 = vmatpush1.bf16.msra.mxu0 %v2722
    %3616 = vmatprep.subr.bf16.mxu0 %v2727
    %3617 = vmatpush1.bf16.msra.mxu0 %v2726
    %3618 = vmatprep.subr.bf16.mxu0 0
    %3619 = vmatpush1.bf16.msra.mxu0 0
    %3620 = vmatprep.subr.bf16.mxu0 0
    %3621 = vmatpush1.bf16.msra.mxu0 0
    %3622 = vmatprep.subr.bf16.mxu0 0
    %3623 = vmatpush1.bf16.msra.mxu0 0
    %3624 = vmatprep.subr.bf16.mxu0 0
    %3625 = vmatpush1.bf16.msra.mxu0 0
    %3626 = vmatprep.subr.bf16.mxu0 0
    %3627 = vmatpush1.bf16.msra.mxu0 0
    %3628 = vmatprep.subr.bf16.mxu0 0
    %3629 = vmatpush1.bf16.msra.mxu0 0
    %3630 = vmatprep.subr.bf16.mxu0 0
    %3631 = vmatpush1.bf16.msra.mxu0 0
    %3632 = vmatprep.subr.bf16.mxu0 0
    %3633 = vmatpush1.bf16.msra.mxu0 0
    %3634 = vmatprep.mubr.bf16.mxu0 0
    %3635 = vmatmul.mubr.bf16.gmra.mrb[0].mxu0 %v3592
    %v3636 = vpop.f32.mrb[0].mxu0
    %v3637 = vadd.f32 0.0, %v3636
    %v3638 = vpop.f32.mrb[0].mxu0
    %v3639 = vadd.f32 0.0, %v3638
    %v3640 = vpop.f32.mrb[0].mxu0
    %v3641 = vadd.f32 0.0, %v3640
    %v3642 = vpop.f32.mrb[0].mxu0
    %v3643 = vadd.f32 0.0, %v3642
    %3644 = vdwg.mxu0
    %3645 = vmatprep.subr.bf16.mxu0 %v2701
    %3646 = vmatpush1.bf16.msra.mxu0 %v2700
    %3647 = vmatprep.subr.bf16.mxu0 %v2705
    %3648 = vmatpush1.bf16.msra.mxu0 %v2704
    %3649 = vmatprep.subr.bf16.mxu0 %v2709
    %3650 = vmatpush1.bf16.msra.mxu0 %v2708
    %3651 = vmatprep.subr.bf16.mxu0 %v2713
    %3652 = vmatpush1.bf16.msra.mxu0 %v2712
    %3653 = vmatprep.subr.bf16.mxu0 %v2717
    %3654 = vmatpush1.bf16.msra.mxu0 %v2716
    %3655 = vmatprep.subr.bf16.mxu0 %v2721
    %3656 = vmatpush1.bf16.msra.mxu0 %v2720
    %3657 = vmatprep.subr.bf16.mxu0 %v2725
    %3658 = vmatpush1.bf16.msra.mxu0 %v2724
    %3659 = vmatprep.subr.bf16.mxu0 %v2729
    %3660 = vmatpush1.bf16.msra.mxu0 %v2728
    %3661 = vmatprep.subr.bf16.mxu0 0
    %3662 = vmatpush1.bf16.msra.mxu0 0
    %3663 = vmatprep.subr.bf16.mxu0 0
    %3664 = vmatpush1.bf16.msra.mxu0 0
    %3665 = vmatprep.subr.bf16.mxu0 0
    %3666 = vmatpush1.bf16.msra.mxu0 0
    %3667 = vmatprep.subr.bf16.mxu0 0
    %3668 = vmatpush1.bf16.msra.mxu0 0
    %3669 = vmatprep.subr.bf16.mxu0 0
    %3670 = vmatpush1.bf16.msra.mxu0 0
    %3671 = vmatprep.subr.bf16.mxu0 0
    %3672 = vmatpush1.bf16.msra.mxu0 0
    %3673 = vmatprep.subr.bf16.mxu0 0
    %3674 = vmatpush1.bf16.msra.mxu0 0
    %3675 = vmatprep.subr.bf16.mxu0 0
    %3676 = vmatpush1.bf16.msra.mxu0 0
    %3677 = vmatprep.mubr.bf16.mxu0 0
    %3678 = vmatmul.mubr.bf16.gmra.mrb[0].mxu0 %v3592
    %v3679 = vpop.f32.mrb[0].mxu0
    %v3680 = vadd.f32 0.0, %v3679
    %v3681 = vpop.f32.mrb[0].mxu0
    %v3682 = vadd.f32 0.0, %v3681
    %v3683 = vpop.f32.mrb[0].mxu0
    %v3684 = vadd.f32 0.0, %v3683
    %v3685 = vpop.f32.mrb[0].mxu0
    %v3686 = vadd.f32 0.0, %v3685
    %3687 = vdwg.mxu0
    %v3688 = vadd.f32 %v3594, %v3637
    %v3689 = vadd.f32 %v3595, %v3639
    %v3690 = vadd.f32 %v3596, %v3680
    %v3691 = vadd.f32 %v3597, %v3682
    %v3692 = vadd.f32 %v3598, %v3641
    %v3693 = vadd.f32 %v3599, %v3643
    %v3694 = vadd.f32 %v3600, %v3684
    %v3695 = vadd.f32 %v3601, %v3686
    %v3696 = vmul.f32 %v3688, 0.5
    %v3697 = vmul.f32 %v3692, 0.5
    %v3698 = vtanh.pop %v3696
    %v3699 = vtanh.pop %v3697
    %v3700 = vmul.f32 %v3698, 0.5
    %v3701 = vmul.f32 %v3699, 0.5
    %v3702 = vadd.f32 %v3700, 0.5
    %v3703 = vadd.f32 %v3701, 0.5
    %v3704 = vmul.f32 %v3689, 0.5
    %v3705 = vmul.f32 %v3693, 0.5
    %v3706 = vtanh.pop %v3704
    %v3707 = vtanh.pop %v3705
    %v3708 = vmul.f32 %v3706, 0.5
    %v3709 = vmul.f32 %v3707, 0.5
    %v3710 = vadd.f32 %v3708, 0.5
    %v3711 = vadd.f32 %v3709, 0.5
    %v3712 = vtanh.pop %v3690
    %v3713 = vtanh.pop %v3694
    %v3714 = vmul.f32 %v3691, 0.5
    %v3715 = vmul.f32 %v3695, 0.5
    %v3716 = vtanh.pop %v3714
    %v3717 = vtanh.pop %v3715
    %v3718 = vmul.f32 %v3716, 0.5
    %v3719 = vmul.f32 %v3717, 0.5
    %v3720 = vadd.f32 %v3718, 0.5
    %v3721 = vadd.f32 %v3719, 0.5
    %v3722 = vmul.f32 %v3710, %v3586
    %v3723 = vmul.f32 %v3711, %v3587
    %v3724 = vmul.f32 %v3702, %v3712
    %v3725 = vmul.f32 %v3703, %v3713
    %v3726 = vadd.f32 %v3722, %v3724
    %v3727 = vadd.f32 %v3723, %v3725
    %v3728 = vtanh.pop %v3726
    %v3729 = vtanh.pop %v3727
    %v3730 = vmul.f32 %v3720, %v3728
    %v3731 = vmul.f32 %v3721, %v3729
    %v3732 = vpack.c.bf16 %v3731, %v3730
    %3733 = vst [vmem:[%s1892] sm:$0xff] %v3732
    %v3734 = vld [vmem:[%s1894] sm:$0xff]
    %v3735 = vld [vmem:[%s1894 + $0x8] sm:$0xff]
    %v3736 = vld [vmem:[%s1894 + $0x10] sm:$0xff]
    %v3737 = vld [vmem:[%s1894 + $0x18] sm:$0xff]
    %v3738 = vld [vmem:[%s1894 + $0x20] sm:$0xff]
    %v3739 = vld [vmem:[%s1894 + $0x28] sm:$0xff]
    %v3740 = vld [vmem:[%s1894 + $0x30] sm:$0xff]
    %v3741 = vld [vmem:[%s1894 + $0x38] sm:$0xff]
    %3742 = vmatprep.subr.bf16.mxu0 %v2699
    %3743 = vmatpush1.bf16.msra.mxu0 %v2698
    %3744 = vmatprep.subr.bf16.mxu0 %v2703
    %3745 = vmatpush1.bf16.msra.mxu0 %v2702
    %3746 = vmatprep.subr.bf16.mxu0 %v2707
    %3747 = vmatpush1.bf16.msra.mxu0 %v2706
    %3748 = vmatprep.subr.bf16.mxu0 %v2711
    %3749 = vmatpush1.bf16.msra.mxu0 %v2710
    %3750 = vmatprep.subr.bf16.mxu0 %v2715
    %3751 = vmatpush1.bf16.msra.mxu0 %v2714
    %3752 = vmatprep.subr.bf16.mxu0 %v2719
    %3753 = vmatpush1.bf16.msra.mxu0 %v2718
    %3754 = vmatprep.subr.bf16.mxu0 %v2723
    %3755 = vmatpush1.bf16.msra.mxu0 %v2722
    %3756 = vmatprep.subr.bf16.mxu0 %v2727
    %3757 = vmatpush1.bf16.msra.mxu0 %v2726
    %3758 = vmatprep.subr.bf16.mxu0 0
    %3759 = vmatpush1.bf16.msra.mxu0 0
    %3760 = vmatprep.subr.bf16.mxu0 0
    %3761 = vmatpush1.bf16.msra.mxu0 0
    %3762 = vmatprep.subr.bf16.mxu0 0
    %3763 = vmatpush1.bf16.msra.mxu0 0
    %3764 = vmatprep.subr.bf16.mxu0 0
    %3765 = vmatpush1.bf16.msra.mxu0 0
    %3766 = vmatprep.subr.bf16.mxu0 0
    %3767 = vmatpush1.bf16.msra.mxu0 0
    %3768 = vmatprep.subr.bf16.mxu0 0
    %3769 = vmatpush1.bf16.msra.mxu0 0
    %3770 = vmatprep.subr.bf16.mxu0 0
    %3771 = vmatpush1.bf16.msra.mxu0 0
    %3772 = vmatprep.subr.bf16.mxu0 0
    %3773 = vmatpush1.bf16.msra.mxu0 0
    %3774 = vmatprep.mubr.bf16.mxu0 0
    %3775 = vmatmul.mubr.bf16.gmra.mrb[0].mxu0 %v3732
    %v3776 = vpop.f32.mrb[0].mxu0
    %v3777 = vadd.f32 0.0, %v3776
    %v3778 = vpop.f32.mrb[0].mxu0
    %v3779 = vadd.f32 0.0, %v3778
    %v3780 = vpop.f32.mrb[0].mxu0
    %v3781 = vadd.f32 0.0, %v3780
    %v3782 = vpop.f32.mrb[0].mxu0
    %v3783 = vadd.f32 0.0, %v3782
    %3784 = vdwg.mxu0
    %3785 = vmatprep.subr.bf16.mxu0 %v2701
    %3786 = vmatpush1.bf16.msra.mxu0 %v2700
    %3787 = vmatprep.subr.bf16.mxu0 %v2705
    %3788 = vmatpush1.bf16.msra.mxu0 %v2704
    %3789 = vmatprep.subr.bf16.mxu0 %v2709
    %3790 = vmatpush1.bf16.msra.mxu0 %v2708
    %3791 = vmatprep.subr.bf16.mxu0 %v2713
    %3792 = vmatpush1.bf16.msra.mxu0 %v2712
    %3793 = vmatprep.subr.bf16.mxu0 %v2717
    %3794 = vmatpush1.bf16.msra.mxu0 %v2716
    %3795 = vmatprep.subr.bf16.mxu0 %v2721
    %3796 = vmatpush1.bf16.msra.mxu0 %v2720
    %3797 = vmatprep.subr.bf16.mxu0 %v2725
    %3798 = vmatpush1.bf16.msra.mxu0 %v2724
    %3799 = vmatprep.subr.bf16.mxu0 %v2729
    %3800 = vmatpush1.bf16.msra.mxu0 %v2728
    %3801 = vmatprep.subr.bf16.mxu0 0
    %3802 = vmatpush1.bf16.msra.mxu0 0
    %3803 = vmatprep.subr.bf16.mxu0 0
    %3804 = vmatpush1.bf16.msra.mxu0 0
    %3805 = vmatprep.subr.bf16.mxu0 0
    %3806 = vmatpush1.bf16.msra.mxu0 0
    %3807 = vmatprep.subr.bf16.mxu0 0
    %3808 = vmatpush1.bf16.msra.mxu0 0
    %3809 = vmatprep.subr.bf16.mxu0 0
    %3810 = vmatpush1.bf16.msra.mxu0 0
    %3811 = vmatprep.subr.bf16.mxu0 0
    %3812 = vmatpush1.bf16.msra.mxu0 0
    %3813 = vmatprep.subr.bf16.mxu0 0
    %3814 = vmatpush1.bf16.msra.mxu0 0
    %3815 = vmatprep.subr.bf16.mxu0 0
    %3816 = vmatpush1.bf16.msra.mxu0 0
    %3817 = vmatprep.mubr.bf16.mxu0 0
    %3818 = vmatmul.mubr.bf16.gmra.mrb[0].mxu0 %v3732
    %v3819 = vpop.f32.mrb[0].mxu0
    %v3820 = vadd.f32 0.0, %v3819
    %v3821 = vpop.f32.mrb[0].mxu0
    %v3822 = vadd.f32 0.0, %v3821
    %v3823 = vpop.f32.mrb[0].mxu0
    %v3824 = vadd.f32 0.0, %v3823
    %v3825 = vpop.f32.mrb[0].mxu0
    %v3826 = vadd.f32 0.0, %v3825
    %3827 = vdwg.mxu0
    %v3828 = vadd.f32 %v3734, %v3777
    %v3829 = vadd.f32 %v3735, %v3779
    %v3830 = vadd.f32 %v3736, %v3820
    %v3831 = vadd.f32 %v3737, %v3822
    %v3832 = vadd.f32 %v3738, %v3781
    %v3833 = vadd.f32 %v3739, %v3783
    %v3834 = vadd.f32 %v3740, %v3824
    %v3835 = vadd.f32 %v3741, %v3826
    %v3836 = vmul.f32 %v3828, 0.5
    %v3837 = vmul.f32 %v3832, 0.5
    %v3838 = vtanh.pop %v3836
    %v3839 = vtanh.pop %v3837
    %v3840 = vmul.f32 %v3838, 0.5
    %v3841 = vmul.f32 %v3839, 0.5
    %v3842 = vadd.f32 %v3840, 0.5
    %v3843 = vadd.f32 %v3841, 0.5
    %v3844 = vmul.f32 %v3829, 0.5
    %v3845 = vmul.f32 %v3833, 0.5
    %v3846 = vtanh.pop %v3844
    %v3847 = vtanh.pop %v3845
    %v3848 = vmul.f32 %v3846, 0.5
    %v3849 = vmul.f32 %v3847, 0.5
    %v3850 = vadd.f32 %v3848, 0.5
    %v3851 = vadd.f32 %v3849, 0.5
    %v3852 = vtanh.pop %v3830
    %v3853 = vtanh.pop %v3834
    %v3854 = vmul.f32 %v3831, 0.5
    %v3855 = vmul.f32 %v3835, 0.5
    %v3856 = vtanh.pop %v3854
    %v3857 = vtanh.pop %v3855
    %v3858 = vmul.f32 %v3856, 0.5
    %v3859 = vmul.f32 %v3857, 0.5
    %v3860 = vadd.f32 %v3858, 0.5
    %v3861 = vadd.f32 %v3859, 0.5
    %v3862 = vmul.f32 %v3850, %v3726
    %v3863 = vmul.f32 %v3851, %v3727
    %v3864 = vmul.f32 %v3842, %v3852
    %v3865 = vmul.f32 %v3843, %v3853
    %v3866 = vadd.f32 %v3862, %v3864
    %v3867 = vadd.f32 %v3863, %v3865
    %v3868 = vtanh.pop %v3866
    %v3869 = vtanh.pop %v3867
    %v3870 = vmul.f32 %v3860, %v3868
    %v3871 = vmul.f32 %v3861, %v3869
    %v3872 = vpack.c.bf16 %v3871, %v3870
    %3873 = vst [vmem:[%s2034] sm:$0xff] %v3872
    %3874 = vst [vmem:[%s2587] sm:$0xff] %v3870
    %3875 = vst [vmem:[%s2587 + $0x8] sm:$0xff] %v3871
    %3876 = vst [vmem:[%s2590] sm:$0xff] %v3866
    %3877 = vst [vmem:[%s2590 + $0x8] sm:$0xff] %v3867
    %v3878 = vld [vmem:[#allocation2] sm:$0xff]
    %v3879 = vld [vmem:[#allocation2 + $0x8] sm:$0xff]
    %v3880 = vld [vmem:[#allocation2 + $0x10] sm:$0xff]
    %v3881 = vld [vmem:[#allocation2 + $0x18] sm:$0xff]
    %v3882 = vld [vmem:[#allocation2 + $0x20] sm:$0xff]
    %v3883 = vld [vmem:[#allocation2 + $0x28] sm:$0xff]
    %v3884 = vld [vmem:[#allocation2 + $0x30] sm:$0xff]
    %v3885 = vld [vmem:[#allocation2 + $0x38] sm:$0xff]
    %v3886 = vld [vmem:[#allocation13] sm:$0xf]
    %v3887 = vld [vmem:[#allocation13 + $0x4] sm:$0xf]
    %v3888 = vld [vmem:[#allocation13 + $0x8] sm:$0xf]
    %v3889 = vld [vmem:[#allocation13 + $0xc] sm:$0xf]
    %v3890 = vld [vmem:[#allocation13 + $0x10] sm:$0xf]
    %v3891 = vld [vmem:[#allocation13 + $0x14] sm:$0xf]
    %v3892 = vld [vmem:[#allocation13 + $0x18] sm:$0xf]
    %v3893 = vld [vmem:[#allocation13 + $0x1c] sm:$0xf]
    %v3894 = vld [vmem:[#allocation13 + $0x20] sm:$0xf]
    %v3895 = vld [vmem:[#allocation13 + $0x24] sm:$0xf]
    %v3896 = vld [vmem:[#allocation13 + $0x28] sm:$0xf]
    %v3897 = vld [vmem:[#allocation13 + $0x2c] sm:$0xf]
    %v3898 = vld [vmem:[#allocation13 + $0x30] sm:$0xf]
    %v3899 = vld [vmem:[#allocation13 + $0x34] sm:$0xf]
    %v3900 = vld [vmem:[#allocation13 + $0x38] sm:$0xf]
    %v3901 = vld [vmem:[#allocation13 + $0x3c] sm:$0xf]
    %v3902 = vld [vmem:[%s7] sm:$0x1]
    %v3904 = vlaneseq
    %v3905 = vshrl.u32 %v3904, 7
    %v3906 = vsub.s32 0, %v3905
    %v3907 = vrot.slane %v3902, %v3906
    %v3925 = vunpack.c.l.b16 %v3886
    %v3926 = vunpack.c.l.b16 %v3887
    %v3927 = vunpack.c.l.b16 %v3888
    %v3928 = vunpack.c.l.b16 %v3889
    %v3929 = vunpack.c.l.b16 %v3890
    %v3930 = vunpack.c.l.b16 %v3891
    %v3931 = vunpack.c.l.b16 %v3892
    %v3932 = vunpack.c.l.b16 %v3893
    %v3933 = vunpack.c.l.b16 %v3894
    %v3934 = vunpack.c.l.b16 %v3895
    %v3935 = vunpack.c.l.b16 %v3896
    %v3936 = vunpack.c.l.b16 %v3897
    %v3937 = vunpack.c.l.b16 %v3898
    %v3938 = vunpack.c.l.b16 %v3899
    %v3939 = vunpack.c.l.b16 %v3900
    %v3940 = vunpack.c.l.b16 %v3901
    %v3941 = vpack.c.b16 %v3926, %v3925
    %v3942 = vpack.c.b16 %v3928, %v3927
    %v3943 = vpack.c.b16 %v3930, %v3929
    %v3944 = vpack.c.b16 %v3932, %v3931
    %v3945 = vpack.c.b16 %v3934, %v3933
    %v3946 = vpack.c.b16 %v3936, %v3935
    %v3947 = vpack.c.b16 %v3938, %v3937
    %v3948 = vpack.c.b16 %v3940, %v3939
    %3957 = vmatprep.subr.bf16.mxu0 0
    %3958 = vmatpush1.bf16.msra.mxu0 %v3941
    %3959 = vmatprep.subr.bf16.mxu0 0
    %3960 = vmatpush1.bf16.msra.mxu0 %v3942
    %3961 = vmatprep.subr.bf16.mxu0 0
    %3962 = vmatpush1.bf16.msra.mxu0 %v3943
    %3963 = vmatprep.subr.bf16.mxu0 0
    %3964 = vmatpush1.bf16.msra.mxu0 %v3944
    %3965 = vmatprep.subr.bf16.mxu0 0
    %3966 = vmatpush1.bf16.msra.mxu0 %v3945
    %3967 = vmatprep.subr.bf16.mxu0 0
    %3968 = vmatpush1.bf16.msra.mxu0 %v3946
    %3969 = vmatprep.subr.bf16.mxu0 0
    %3970 = vmatpush1.bf16.msra.mxu0 %v3947
    %3971 = vmatprep.subr.bf16.mxu0 0
    %3972 = vmatpush1.bf16.msra.mxu0 %v3948
    %3973 = vmatprep.subr.bf16.mxu0 0
    %3974 = vmatpush1.bf16.msra.mxu0 0
    %3975 = vmatprep.subr.bf16.mxu0 0
    %3976 = vmatpush1.bf16.msra.mxu0 0
    %3977 = vmatprep.subr.bf16.mxu0 0
    %3978 = vmatpush1.bf16.msra.mxu0 0
    %3979 = vmatprep.subr.bf16.mxu0 0
    %3980 = vmatpush1.bf16.msra.mxu0 0
    %3981 = vmatprep.subr.bf16.mxu0 0
    %3982 = vmatpush1.bf16.msra.mxu0 0
    %3983 = vmatprep.subr.bf16.mxu0 0
    %3984 = vmatpush1.bf16.msra.mxu0 0
    %3985 = vmatprep.subr.bf16.mxu0 0
    %3986 = vmatpush1.bf16.msra.mxu0 0
    %3987 = vmatprep.subr.bf16.mxu0 0
    %3988 = vmatpush1.bf16.msra.mxu0 0
    %3989 = vmatprep.mubr.bf16.mxu0 0
    %3990 = vmatmul.mubr.bf16.gmra.mrb[0].mxu0 %v3878
    %v3991 = vpop.f32.mrb[0].mxu0
    %v3992 = vadd.f32 %v3907, %v3991
    %v3993 = vpop.f32.mrb[0].mxu0
    %v3994 = vpop.f32.mrb[0].mxu0
    %v3995 = vadd.f32 %v3907, %v3994
    %v3996 = vpop.f32.mrb[0].mxu0
    %3997 = vmatprep.mubr.bf16.mxu0 0
    %3998 = vmatmul.mubr.bf16.gmra.mrb[0].mxu0 %v3879
    %v3999 = vpop.f32.mrb[0].mxu0
    %v4000 = vadd.f32 %v3907, %v3999
    %v4001 = vpop.f32.mrb[0].mxu0
    %v4002 = vpop.f32.mrb[0].mxu0
    %v4003 = vadd.f32 %v3907, %v4002
    %v4004 = vpop.f32.mrb[0].mxu0
    %4005 = vmatprep.mubr.bf16.mxu0 0
    %4006 = vmatmul.mubr.bf16.gmra.mrb[0].mxu0 %v3880
    %v4007 = vpop.f32.mrb[0].mxu0
    %v4008 = vadd.f32 %v3907, %v4007
    %v4009 = vpop.f32.mrb[0].mxu0
    %v4010 = vpop.f32.mrb[0].mxu0
    %v4011 = vadd.f32 %v3907, %v4010
    %v4012 = vpop.f32.mrb[0].mxu0
    %4013 = vmatprep.mubr.bf16.mxu0 0
    %4014 = vmatmul.mubr.bf16.gmra.mrb[0].mxu0 %v3881
    %v4015 = vpop.f32.mrb[0].mxu0
    %v4016 = vadd.f32 %v3907, %v4015
    %v4017 = vpop.f32.mrb[0].mxu0
    %v4018 = vpop.f32.mrb[0].mxu0
    %v4019 = vadd.f32 %v3907, %v4018
    %v4020 = vpop.f32.mrb[0].mxu0
    %4021 = vmatprep.mubr.bf16.mxu0 0
    %4022 = vmatmul.mubr.bf16.gmra.mrb[0].mxu0 %v3882
    %v4023 = vpop.f32.mrb[0].mxu0
    %v4024 = vadd.f32 %v3907, %v4023
    %v4025 = vpop.f32.mrb[0].mxu0
    %v4026 = vpop.f32.mrb[0].mxu0
    %v4027 = vadd.f32 %v3907, %v4026
    %v4028 = vpop.f32.mrb[0].mxu0
    %4029 = vmatprep.mubr.bf16.mxu0 0
    %4030 = vmatmul.mubr.bf16.gmra.mrb[0].mxu0 %v3883
    %v4031 = vpop.f32.mrb[0].mxu0
    %v4032 = vadd.f32 %v3907, %v4031
    %v4033 = vpop.f32.mrb[0].mxu0
    %v4034 = vpop.f32.mrb[0].mxu0
    %v4035 = vadd.f32 %v3907, %v4034
    %v4036 = vpop.f32.mrb[0].mxu0
    %4037 = vmatprep.mubr.bf16.mxu0 0
    %4038 = vmatmul.mubr.bf16.gmra.mrb[0].mxu0 %v3884
    %v4039 = vpop.f32.mrb[0].mxu0
    %v4040 = vadd.f32 %v3907, %v4039
    %v4041 = vpop.f32.mrb[0].mxu0
    %v4042 = vpop.f32.mrb[0].mxu0
    %v4043 = vadd.f32 %v3907, %v4042
    %v4044 = vpop.f32.mrb[0].mxu0
    %4045 = vmatprep.mubr.bf16.mxu0 0
    %4046 = vmatmul.mubr.bf16.gmra.mrb[0].mxu0 %v3885
    %v4047 = vpop.f32.mrb[0].mxu0
    %v4048 = vadd.f32 %v3907, %v4047
    %v4049 = vpop.f32.mrb[0].mxu0
    %v4050 = vpop.f32.mrb[0].mxu0
    %v4051 = vadd.f32 %v3907, %v4050
    %v4052 = vpop.f32.mrb[0].mxu0
    %4053 = vdwg.mxu0
    %4054 = vst [vmem:[#allocation15] sm:$0xff] %v3992
    %4055 = vst [vmem:[#allocation15 + $0x8] sm:$0xff] %v3995
    %4056 = vst [vmem:[#allocation15 + $0x10] sm:$0xff] %v4000
    %4057 = vst [vmem:[#allocation15 + $0x18] sm:$0xff] %v4003
    %4058 = vst [vmem:[#allocation15 + $0x20] sm:$0xff] %v4008
    %4059 = vst [vmem:[#allocation15 + $0x28] sm:$0xff] %v4011
    %4060 = vst [vmem:[#allocation15 + $0x30] sm:$0xff] %v4016
    %4061 = vst [vmem:[#allocation15 + $0x38] sm:$0xff] %v4019
    %4062 = vst [vmem:[#allocation15 + $0x40] sm:$0xff] %v4024
    %4063 = vst [vmem:[#allocation15 + $0x48] sm:$0xff] %v4027
    %4064 = vst [vmem:[#allocation15 + $0x50] sm:$0xff] %v4032
    %4065 = vst [vmem:[#allocation15 + $0x58] sm:$0xff] %v4035
    %4066 = vst [vmem:[#allocation15 + $0x60] sm:$0xff] %v4040
    %4067 = vst [vmem:[#allocation15 + $0x68] sm:$0xff] %v4043
    %4068 = vst [vmem:[#allocation15 + $0x70] sm:$0xff] %v4048
    %4069 = vst [vmem:[#allocation15 + $0x78] sm:$0xff] %v4051
    // Predicated region
    $region62: #{tpu_custom_call.1} parent=1 // pred_check
      _
    $region63: #{tpu_custom_call.1} parent=1 // pred_check_branch
      %4071 = sbr.rel (0) target = $region65
    $region64: #{tpu_custom_call.1} parent=1 // pred_region
      %s4073 = ssub.s32 2048, 2048
      %4074 = vsyncadd [#allocation6], %s4073
      %s4075 = sshll.u32 [#allocation15], 4
      %s4076 = int_to_ptr.vmem [resolvable:$true] %s4075
      %4081 = dma.vmem_to_hbm [thread:$0]  %s4076, 2048, %s8, [#allocation6], 128, 128, 8
    $region65: #{tpu_custom_call.1} parent=1 // pred_fallthru
      _
    // Predicated region
    $region66: #{tpu_custom_call.1} parent=1 // pred_check
      _
    $region67: #{tpu_custom_call.1} parent=1 // pred_check_branch
      %4083 = sbr.rel (0) target = $region69
    $region68: #{tpu_custom_call.1} parent=1 // pred_region
      %s4085 = ssub.s32 512, 512
      %4086 = vsyncadd [#allocation17], %s4085
      %s4087 = sshll.u32 [#allocation16], 4
      %s4088 = int_to_ptr.vmem [resolvable:$true] %s4087
      %4093 = dma.vmem_to_hbm [thread:$0]  %s4088, 512, %s9, [#allocation17], 128, 128, 8
    $region69: #{tpu_custom_call.1} parent=1 // pred_fallthru
      _
    // Predicated region
    $region70: #{tpu_custom_call.1} parent=1 // pred_check
      _
    $region71: #{tpu_custom_call.1} parent=1 // pred_check_branch
      %4095 = sbr.rel (0) target = $region73
    $region72: #{tpu_custom_call.1} parent=1 // pred_region
      %s4097 = ssub.s32 512, 512
      %4098 = vsyncadd [#allocation17], %s4097
      %s4099 = sshll.u32 [#allocation18], 4
      %s4100 = int_to_ptr.vmem [resolvable:$true] %s4099
      %4105 = dma.vmem_to_hbm [thread:$0]  %s4100, 512, %s10, [#allocation17], 128, 128, 8
    $region73: #{tpu_custom_call.1} parent=1 // pred_fallthru
      _
    // Predicated region
    $region74: #{tpu_custom_call.1} parent=1 // pred_check
      _
    $region75: #{tpu_custom_call.1} parent=1 // pred_check_branch
      %4107 = sbr.rel (0) target = $region77
    $region76: #{tpu_custom_call.1} parent=1 // pred_region
      %4108 = dma.done [#allocation6], 2048
    $region77: #{tpu_custom_call.1} parent=1 // pred_fallthru
      _
    // Predicated region
    $region78: #{tpu_custom_call.1} parent=1 // pred_check
      _
    $region79: #{tpu_custom_call.1} parent=1 // pred_check_branch
      %4110 = sbr.rel (0) target = $region81
    $region80: #{tpu_custom_call.1} parent=1 // pred_region
      %4111 = dma.done [#allocation17], 512
    $region81: #{tpu_custom_call.1} parent=1 // pred_fallthru
      _
    // Predicated region
    $region82: #{tpu_custom_call.1} parent=1 // pred_check
      _
    $region83: #{tpu_custom_call.1} parent=1 // pred_check_branch
      %4113 = sbr.rel (0) target = $region85
    $region84: #{tpu_custom_call.1} parent=1 // pred_region
      %4114 = dma.done [#allocation17], 512
    $region85: #{tpu_custom_call.1} parent=1 // pred_fallthru
      _
    %4115 = vsyncpa [#allocation5], 1
    %4116 = vsyncpa [#allocation8], 1
    %4117 = vsyncpa [#allocation11], 1
    %4118 = vsyncpa [#allocation14], 1
    %4119 = vsyncpa [#allocation6], 1
    %4120 = vsyncpa [#allocation17], 1

// kernel: tpu_custom_call.1
$region0: #{tpu_custom_call.1}
  #allocation0 [shape = 'u32[]', space=smem, size = 0x4, offset = 0x4, fixed_abs, tag = 'smem constant byte address 0x4 - core index']
  #allocation1 [shape = 'u32[144,128]{1,0:T(1,128)}', space=vmem, size = 0x12000, scoped, tag = 'internal scratch']
  #allocation2 [shape = 'bf16[8,16,128]{2,1,0:T(16,128)(2,1)}', space=vmem, size = 0x8000, scoped, tag = 'scratch operand']
  #allocation3 [shape = 'f32[8,16,512]{2,1,0:T(8,128)}', space=vmem, size = 0x40000, scoped, tag = 'scratch operand']
  %s0 = inlined_call_operand.hbm [shape: bf16[8,16,128], index: 0, kind: input, shape index: {}]
  %s1 = inlined_call_operand.hbm [shape: bf16[2,128,512], index: 1, kind: input, shape index: {}]
  %s2 = inlined_call_operand.hbm [shape: bf16[2,128,512], index: 2, kind: input, shape index: {}]
  %s3 = inlined_call_operand.vmem [shape: f32[2,1,512], index: 3, kind: input, shape index: {}]
  %s4 = inlined_call_operand.hbm [shape: f32[2,16,128], index: 4, kind: input, shape index: {}]
  %s5 = inlined_call_operand.hbm [shape: f32[2,16,128], index: 5, kind: input, shape index: {}]
  %s6 = inlined_call_operand.hbm [shape: bf16[128,128], index: 6, kind: input, shape index: {}]
  %s7 = inlined_call_operand.vmem [shape: f32[1,128], index: 7, kind: input, shape index: {}]
  %s8 = inlined_call_operand.hbm [shape: f32[8,16,128], index: 8, kind: output, shape index: {0}]
  %s9 = inlined_call_operand.hbm [shape: f32[2,16,128], index: 9, kind: output, shape index: {1}]
  %s10 = inlined_call_operand.hbm [shape: f32[2,16,128], index: 10, kind: output, shape index: {2}]
  %11 = xla_tuple %s8, %s9, %s10
  %s12 = sld [smem:[#allocation0]]
  $region86: #{tpu_custom_call.1} parent=0
    _
  %s14 = ssub.s32 1, %s12
  %s15 = scalar_select 0, %s14, %s12
  $region1: #{tpu_custom_call.1} parent=0
    #allocation4 [shape = 'u8[32768]{0}', space=vmem, size = 0x8000, scoped, tag = 'input window, operand 0, single buffered']
    #allocation5 [shape = 's32[1]{0}', space=sflag, size = 0x4, scoped, tag = 'scoped memory for tpu_custom_call.1']
    #allocation6 [shape = 's32[1]{0}', space=sflag, size = 0x4, scoped, tag = 'scoped memory for tpu_custom_call.1']
    #allocation7 [shape = 'u8[262144]{0}', space=vmem, size = 0x40000, scoped, tag = 'input window, operand 1, single buffered']
    #allocation8 [shape = 's32[1]{0}', space=sflag, size = 0x4, scoped, tag = 'scoped memory for tpu_custom_call.1']
    #allocation9 [shape = 'u8[262144]{0}', space=vmem, size = 0x40000, scoped, tag = 'input window, operand 2, single buffered']
    #allocation10 [shape = 'u8[16384]{0}', space=vmem, size = 0x4000, scoped, tag = 'input window, operand 4, single buffered']
    #allocation11 [shape = 's32[1]{0}', space=sflag, size = 0x4, scoped, tag = 'scoped memory for tpu_custom_call.1']
    #allocation12 [shape = 'u8[16384]{0}', space=vmem, size = 0x4000, scoped, tag = 'input window, operand 5, single buffered']
    #allocation13 [shape = 'u8[32768]{0}', space=vmem, size = 0x8000, scoped, tag = 'input window, operand 6, single buffered']
    #allocation14 [shape = 's32[1]{0}', space=sflag, size = 0x4, scoped, tag = 'scoped memory for tpu_custom_call.1']
    #allocation15 [shape = 'u8[65536]{0}', space=vmem, size = 0x10000, scoped, tag = 'output window, operand 0, single buffered']
    #allocation16 [shape = 'u8[16384]{0}', space=vmem, size = 0x4000, scoped, tag = 'output window, operand 1, single buffered']
    #allocation17 [shape = 's32[1]{0}', space=sflag, size = 0x4, scoped, tag = 'scoped memory for tpu_custom_call.1']
    #allocation18 [shape = 'u8[16384]{0}', space=vmem, size = 0x4000, scoped, tag = 'output window, operand 2, single buffered']
    %16 = vsyncpa [#allocation5], 0
    %17 = vsyncpa [#allocation8], 0
    %18 = vsyncpa [#allocation11], 0
    %19 = vsyncpa [#allocation14], 0
    %20 = vsyncpa [#allocation6], 0
    %21 = vsyncpa [#allocation17], 0
    // Predicated region
    $region2: #{tpu_custom_call.1} parent=1 // pred_check
      _
    $region3: #{tpu_custom_call.1} parent=1 // pred_check_branch
      %23 = sbr.rel (0) target = $region5
    $region4: #{tpu_custom_call.1} parent=1 // pred_region
      %s25 = ssub.s32 1024, 1024
      %26 = vsyncadd [#allocation5], %s25
      %s27 = sshll.u32 [#allocation4], 4
      %s28 = int_to_ptr.vmem [resolvable:$true] %s27
      %33 = dma.hbm_to_vmem [thread:$0]  %s0, 1024, %s28, [#allocation5], 64, 64, 4
    $region5: #{tpu_custom_call.1} parent=1 // pred_fallthru
      _
    // Predicated region
    $region6: #{tpu_custom_call.1} parent=1 // pred_check
      _
    $region7: #{tpu_custom_call.1} parent=1 // pred_check_branch
      %35 = sbr.rel (0) target = $region9
    $region8: #{tpu_custom_call.1} parent=1 // pred_region
      %s37 = ssub.s32 8192, 8192
      %38 = vsyncadd [#allocation8], %s37
      %s39 = sshll.u32 [#allocation7], 4
      %s40 = int_to_ptr.vmem [resolvable:$true] %s39
      %45 = dma.hbm_to_vmem [thread:$0]  %s1, 8192, %s40, [#allocation8], 256, 256, 16
    $region9: #{tpu_custom_call.1} parent=1 // pred_fallthru
      _
    // Predicated region
    $region10: #{tpu_custom_call.1} parent=1 // pred_check
      _
    $region11: #{tpu_custom_call.1} parent=1 // pred_check_branch
      %47 = sbr.rel (0) target = $region13
    $region12: #{tpu_custom_call.1} parent=1 // pred_region
      %s49 = ssub.s32 8192, 8192
      %50 = vsyncadd [#allocation8], %s49
      %s51 = sshll.u32 [#allocation9], 4
      %s52 = int_to_ptr.vmem [resolvable:$true] %s51
      %57 = dma.hbm_to_vmem [thread:$0]  %s2, 8192, %s52, [#allocation8], 256, 256, 16
    $region13: #{tpu_custom_call.1} parent=1 // pred_fallthru
      _
    // Predicated region
    $region14: #{tpu_custom_call.1} parent=1 // pred_check
      _
    $region15: #{tpu_custom_call.1} parent=1 // pred_check_branch
      %59 = sbr.rel (0) target = $region17
    $region16: #{tpu_custom_call.1} parent=1 // pred_region
      _
    $region17: #{tpu_custom_call.1} parent=1 // pred_fallthru
      _
    // Predicated region
    $region18: #{tpu_custom_call.1} parent=1 // pred_check
      _
    $region19: #{tpu_custom_call.1} parent=1 // pred_check_branch
      %61 = sbr.rel (0) target = $region21
    $region20: #{tpu_custom_call.1} parent=1 // pred_region
      %s63 = ssub.s32 512, 512
      %64 = vsyncadd [#allocation11], %s63
      %s65 = sshll.u32 [#allocation10], 4
      %s66 = int_to_ptr.vmem [resolvable:$true] %s65
      %71 = dma.hbm_to_vmem [thread:$0]  %s4, 512, %s66, [#allocation11], 128, 128, 8
    $region21: #{tpu_custom_call.1} parent=1 // pred_fallthru
      _
    // Predicated region
    $region22: #{tpu_custom_call.1} parent=1 // pred_check
      _
    $region23: #{tpu_custom_call.1} parent=1 // pred_check_branch
      %73 = sbr.rel (0) target = $region25
    $region24: #{tpu_custom_call.1} parent=1 // pred_region
      %s75 = ssub.s32 512, 512
      %76 = vsyncadd [#allocation11], %s75
      %s77 = sshll.u32 [#allocation12], 4
      %s78 = int_to_ptr.vmem [resolvable:$true] %s77
      %83 = dma.hbm_to_vmem [thread:$0]  %s5, 512, %s78, [#allocation11], 128, 128, 8
    $region25: #{tpu_custom_call.1} parent=1 // pred_fallthru
      _
    // Predicated region
    $region26: #{tpu_custom_call.1} parent=1 // pred_check
      _
    $region27: #{tpu_custom_call.1} parent=1 // pred_check_branch
      %85 = sbr.rel (0) target = $region29
    $region28: #{tpu_custom_call.1} parent=1 // pred_region
      %s87 = ssub.s32 1024, 1024
      %88 = vsyncadd [#allocation14], %s87
      %s89 = sshll.u32 [#allocation13], 4
      %s90 = int_to_ptr.vmem [resolvable:$true] %s89
      %95 = dma.hbm_to_vmem [thread:$0]  %s6, 1024, %s90, [#allocation14], 64, 64, 4
    $region29: #{tpu_custom_call.1} parent=1 // pred_fallthru
      _
    // Predicated region
    $region30: #{tpu_custom_call.1} parent=1 // pred_check
      _
    $region31: #{tpu_custom_call.1} parent=1 // pred_check_branch
      %97 = sbr.rel (0) target = $region33
    $region32: #{tpu_custom_call.1} parent=1 // pred_region
      _
    $region33: #{tpu_custom_call.1} parent=1 // pred_fallthru
      _
    // Predicated region
    $region34: #{tpu_custom_call.1} parent=1 // pred_check
      _
    $region35: #{tpu_custom_call.1} parent=1 // pred_check_branch
      %99 = sbr.rel (0) target = $region37
    $region36: #{tpu_custom_call.1} parent=1 // pred_region
      %100 = dma.done [#allocation5], 1024
    $region37: #{tpu_custom_call.1} parent=1 // pred_fallthru
      _
    // Predicated region
    $region38: #{tpu_custom_call.1} parent=1 // pred_check
      _
    $region39: #{tpu_custom_call.1} parent=1 // pred_check_branch
      %102 = sbr.rel (0) target = $region41
    $region40: #{tpu_custom_call.1} parent=1 // pred_region
      %103 = dma.done [#allocation8], 8192
    $region41: #{tpu_custom_call.1} parent=1 // pred_fallthru
      _
    // Predicated region
    $region42: #{tpu_custom_call.1} parent=1 // pred_check
      _
    $region43: #{tpu_custom_call.1} parent=1 // pred_check_branch
      %105 = sbr.rel (0) target = $region45
    $region44: #{tpu_custom_call.1} parent=1 // pred_region
      %106 = dma.done [#allocation8], 8192
    $region45: #{tpu_custom_call.1} parent=1 // pred_fallthru
      _
    // Predicated region
    $region46: #{tpu_custom_call.1} parent=1 // pred_check
      _
    $region47: #{tpu_custom_call.1} parent=1 // pred_check_branch
      %108 = sbr.rel (0) target = $region49
    $region48: #{tpu_custom_call.1} parent=1 // pred_region
      %109 = dma.done [#allocation11], 512
    $region49: #{tpu_custom_call.1} parent=1 // pred_fallthru
      _
    // Predicated region
    $region50: #{tpu_custom_call.1} parent=1 // pred_check
      _
    $region51: #{tpu_custom_call.1} parent=1 // pred_check_branch
      %111 = sbr.rel (0) target = $region53
    $region52: #{tpu_custom_call.1} parent=1 // pred_region
      %112 = dma.done [#allocation11], 512
    $region53: #{tpu_custom_call.1} parent=1 // pred_fallthru
      _
    // Predicated region
    $region54: #{tpu_custom_call.1} parent=1 // pred_check
      _
    $region55: #{tpu_custom_call.1} parent=1 // pred_check_branch
      %114 = sbr.rel (0) target = $region57
    $region56: #{tpu_custom_call.1} parent=1 // pred_region
      %115 = dma.done [#allocation14], 1024
    $region57: #{tpu_custom_call.1} parent=1 // pred_fallthru
      _
    %p117 = scmp.eq.s32.totalorder 0, 0
    // Predicated region
    $region58: #{tpu_custom_call.1} parent=1 // pred_check
      %p118 = pneg %p117
    $region59: #{tpu_custom_call.1} parent=1 // pred_check_branch
      %120 = sbr.rel (%p118) target = $region61
    $region60: #{tpu_custom_call.1} parent=1 // pred_region
      %v121 = vld [vmem:[#allocation10] sm:$0xff]
      %v122 = vld [vmem:[#allocation10 + $0x8] sm:$0xff]
      %v123 = vld [vmem:[#allocation10 + $0x10] sm:$0xff]
      %v124 = vld [vmem:[#allocation10 + $0x18] sm:$0xff]
      %125 = vst [vmem:[#allocation16] sm:$0xff] %v121
      %126 = vst [vmem:[#allocation16 + $0x8] sm:$0xff] %v122
      %127 = vst [vmem:[#allocation16 + $0x10] sm:$0xff] %v123
      %128 = vst [vmem:[#allocation16 + $0x18] sm:$0xff] %v124
      %v129 = vld [vmem:[#allocation12] sm:$0xff]
      %v130 = vld [vmem:[#allocation12 + $0x8] sm:$0xff]
      %v131 = vld [vmem:[#allocation12 + $0x10] sm:$0xff]
      %v132 = vld [vmem:[#allocation12 + $0x18] sm:$0xff]
      %133 = vst [vmem:[#allocation18] sm:$0xff] %v129
      %134 = vst [vmem:[#allocation18 + $0x8] sm:$0xff] %v130
      %135 = vst [vmem:[#allocation18 + $0x10] sm:$0xff] %v131
      %136 = vst [vmem:[#allocation18 + $0x18] sm:$0xff] %v132
    $region61: #{tpu_custom_call.1} parent=1 // pred_fallthru
      _
    %v137 = vld [vmem:[#allocation4] sm:$0xf]
    %v138 = vld [vmem:[#allocation4 + $0x4] sm:$0xf]
    %v139 = vld [vmem:[#allocation4 + $0x8] sm:$0xf]
    %v140 = vld [vmem:[#allocation4 + $0xc] sm:$0xf]
    %v141 = vld [vmem:[#allocation4 + $0x10] sm:$0xf]
    %v142 = vld [vmem:[#allocation4 + $0x14] sm:$0xf]
    %v143 = vld [vmem:[#allocation4 + $0x18] sm:$0xf]
    %v144 = vld [vmem:[#allocation4 + $0x1c] sm:$0xf]
    %v145 = vld [vmem:[#allocation4 + $0x20] sm:$0xf]
    %v146 = vld [vmem:[#allocation4 + $0x24] sm:$0xf]
    %v147 = vld [vmem:[#allocation4 + $0x28] sm:$0xf]
    %v148 = vld [vmem:[#allocation4 + $0x2c] sm:$0xf]
    %v149 = vld [vmem:[#allocation4 + $0x30] sm:$0xf]
    %v150 = vld [vmem:[#allocation4 + $0x34] sm:$0xf]
    %v151 = vld [vmem:[#allocation4 + $0x38] sm:$0xf]
    %v152 = vld [vmem:[#allocation4 + $0x3c] sm:$0xf]
    %v153 = vld [vmem:[#allocation7] sm:$0xff]
    %v154 = vld [vmem:[#allocation7 + $0x8] sm:$0xff]
    %v155 = vld [vmem:[#allocation7 + $0x10] sm:$0xff]
    %v156 = vld [vmem:[#allocation7 + $0x18] sm:$0xff]
    %v157 = vld [vmem:[#allocation7 + $0x20] sm:$0xff]
    %v158 = vld [vmem:[#allocation7 + $0x28] sm:$0xff]
    %v159 = vld [vmem:[#allocation7 + $0x30] sm:$0xff]
    %v160 = vld [vmem:[#allocation7 + $0x38] sm:$0xff]
    %v161 = vld [vmem:[#allocation7 + $0x40] sm:$0xff]
    %v162 = vld [vmem:[#allocation7 + $0x48] sm:$0xff]
    %v163 = vld [vmem:[#allocation7 + $0x50] sm:$0xff]
    %v164 = vld [vmem:[#allocation7 + $0x58] sm:$0xff]
    %v165 = vld [vmem:[#allocation7 + $0x60] sm:$0xff]
    %v166 = vld [vmem:[#allocation7 + $0x68] sm:$0xff]
    %v167 = vld [vmem:[#allocation7 + $0x70] sm:$0xff]
    %v168 = vld [vmem:[#allocation7 + $0x78] sm:$0xff]
    %v169 = vld [vmem:[#allocation7 + $0x80] sm:$0xff]
    %v170 = vld [vmem:[#allocation7 + $0x88] sm:$0xff]
    %v171 = vld [vmem:[#allocation7 + $0x90] sm:$0xff]
    %v172 = vld [vmem:[#allocation7 + $0x98] sm:$0xff]
    %v173 = vld [vmem:[#allocation7 + $0xa0] sm:$0xff]
    %v174 = vld [vmem:[#allocation7 + $0xa8] sm:$0xff]
    %v175 = vld [vmem:[#allocation7 + $0xb0] sm:$0xff]
    %v176 = vld [vmem:[#allocation7 + $0xb8] sm:$0xff]
    %v177 = vld [vmem:[#allocation7 + $0xc0] sm:$0xff]
    %v178 = vld [vmem:[#allocation7 + $0xc8] sm:$0xff]
    %v179 = vld [vmem:[#allocation7 + $0xd0] sm:$0xff]
    %v180 = vld [vmem:[#allocation7 + $0xd8] sm:$0xff]
    %v181 = vld [vmem:[#allocation7 + $0xe0] sm:$0xff]
    %v182 = vld [vmem:[#allocation7 + $0xe8] sm:$0xff]
    %v183 = vld [vmem:[#allocation7 + $0xf0] sm:$0xff]
    %v184 = vld [vmem:[#allocation7 + $0xf8] sm:$0xff]
    %v185 = vld [vmem:[%s3] sm:$0xf]
    %v187 = vlaneseq
    %v188 = vshrl.u32 %v187, 7
    %v189 = vsub.s32 0, %v188
    %v190 = vrot.slane %v185, %v189
    %v191 = vlaneseq
    %v192 = vshrl.u32 %v191, 7
    %v193 = vsub.s32 1, %v192
    %v194 = vrot.slane %v185, %v193
    %v195 = vlaneseq
    %v196 = vshrl.u32 %v195, 7
    %v197 = vsub.s32 2, %v196
    %v198 = vrot.slane %v185, %v197
    %v199 = vlaneseq
    %v200 = vshrl.u32 %v199, 7
    %v201 = vsub.s32 3, %v200
    %v202 = vrot.slane %v185, %v201
    %v223 = vunpack.c.l.b16 %v137
    %v224 = vunpack.c.l.b16 %v138
    %v225 = vunpack.c.l.b16 %v139
    %v226 = vunpack.c.l.b16 %v140
    %v227 = vunpack.c.l.b16 %v141
    %v228 = vunpack.c.l.b16 %v142
    %v229 = vunpack.c.l.b16 %v143
    %v230 = vunpack.c.l.b16 %v144
    %v231 = vunpack.c.l.b16 %v145
    %v232 = vunpack.c.l.b16 %v146
    %v233 = vunpack.c.l.b16 %v147
    %v234 = vunpack.c.l.b16 %v148
    %v235 = vunpack.c.l.b16 %v149
    %v236 = vunpack.c.l.b16 %v150
    %v237 = vunpack.c.l.b16 %v151
    %v238 = vunpack.c.l.b16 %v152
    %v239 = vpack.c.b16 %v224, %v223
    %v240 = vpack.c.b16 %v226, %v225
    %v241 = vpack.c.b16 %v228, %v227
    %v242 = vpack.c.b16 %v230, %v229
    %v243 = vpack.c.b16 %v232, %v231
    %v244 = vpack.c.b16 %v234, %v233
    %v245 = vpack.c.b16 %v236, %v235
    %v246 = vpack.c.b16 %v238, %v237
    %v287 = vunpack.c.l.b16 %v153
    %v288 = vunpack.c.h.b16 %v153
    %v289 = vunpack.c.l.b16 %v154
    %v290 = vunpack.c.h.b16 %v154
    %v291 = vunpack.c.l.b16 %v155
    %v292 = vunpack.c.h.b16 %v155
    %v293 = vunpack.c.l.b16 %v156
    %v294 = vunpack.c.h.b16 %v156
    %v295 = vunpack.c.l.b16 %v157
    %v296 = vunpack.c.h.b16 %v157
    %v297 = vunpack.c.l.b16 %v158
    %v298 = vunpack.c.h.b16 %v158
    %v299 = vunpack.c.l.b16 %v159
    %v300 = vunpack.c.h.b16 %v159
    %v301 = vunpack.c.l.b16 %v160
    %v302 = vunpack.c.h.b16 %v160
    %v303 = vunpack.c.l.b16 %v161
    %v304 = vunpack.c.h.b16 %v161
    %v305 = vunpack.c.l.b16 %v162
    %v306 = vunpack.c.h.b16 %v162
    %v307 = vunpack.c.l.b16 %v163
    %v308 = vunpack.c.h.b16 %v163
    %v309 = vunpack.c.l.b16 %v164
    %v310 = vunpack.c.h.b16 %v164
    %v311 = vunpack.c.l.b16 %v165
    %v312 = vunpack.c.h.b16 %v165
    %v313 = vunpack.c.l.b16 %v166
    %v314 = vunpack.c.h.b16 %v166
    %v315 = vunpack.c.l.b16 %v167
    %v316 = vunpack.c.h.b16 %v167
    %v317 = vunpack.c.l.b16 %v168
    %v318 = vunpack.c.h.b16 %v168
    %v319 = vunpack.c.l.b16 %v169
    %v320 = vunpack.c.h.b16 %v169
    %v321 = vunpack.c.l.b16 %v170
    %v322 = vunpack.c.h.b16 %v170
    %v323 = vunpack.c.l.b16 %v171
    %v324 = vunpack.c.h.b16 %v171
    %v325 = vunpack.c.l.b16 %v172
    %v326 = vunpack.c.h.b16 %v172
    %v327 = vunpack.c.l.b16 %v173
    %v328 = vunpack.c.h.b16 %v173
    %v329 = vunpack.c.l.b16 %v174
    %v330 = vunpack.c.h.b16 %v174
    %v331 = vunpack.c.l.b16 %v175
    %v332 = vunpack.c.h.b16 %v175
    %v333 = vunpack.c.l.b16 %v176
    %v334 = vunpack.c.h.b16 %v176
    %v335 = vunpack.c.l.b16 %v177
    %v336 = vunpack.c.h.b16 %v177
    %v337 = vunpack.c.l.b16 %v178
    %v338 = vunpack.c.h.b16 %v178
    %v339 = vunpack.c.l.b16 %v179
    %v340 = vunpack.c.h.b16 %v179
    %v341 = vunpack.c.l.b16 %v180
    %v342 = vunpack.c.h.b16 %v180
    %v343 = vunpack.c.l.b16 %v181
    %v344 = vunpack.c.h.b16 %v181
    %v345 = vunpack.c.l.b16 %v182
    %v346 = vunpack.c.h.b16 %v182
    %v347 = vunpack.c.l.b16 %v183
    %v348 = vunpack.c.h.b16 %v183
    %v349 = vunpack.c.l.b16 %v184
    %v350 = vunpack.c.h.b16 %v184
    %v351 = vpack.c.b16 %v291, %v287
    %v352 = vpack.c.b16 %v292, %v288
    %v353 = vpack.c.b16 %v293, %v289
    %v354 = vpack.c.b16 %v294, %v290
    %v355 = vpack.c.b16 %v299, %v295
    %v356 = vpack.c.b16 %v300, %v296
    %v357 = vpack.c.b16 %v301, %v297
    %v358 = vpack.c.b16 %v302, %v298
    %v359 = vpack.c.b16 %v307, %v303
    %v360 = vpack.c.b16 %v308, %v304
    %v361 = vpack.c.b16 %v309, %v305
    %v362 = vpack.c.b16 %v310, %v306
    %v363 = vpack.c.b16 %v315, %v311
    %v364 = vpack.c.b16 %v316, %v312
    %v365 = vpack.c.b16 %v317, %v313
    %v366 = vpack.c.b16 %v318, %v314
    %v367 = vpack.c.b16 %v323, %v319
    %v368 = vpack.c.b16 %v324, %v320
    %v369 = vpack.c.b16 %v325, %v321
    %v370 = vpack.c.b16 %v326, %v322
    %v371 = vpack.c.b16 %v331, %v327
    %v372 = vpack.c.b16 %v332, %v328
    %v373 = vpack.c.b16 %v333, %v329
    %v374 = vpack.c.b16 %v334, %v330
    %v375 = vpack.c.b16 %v339, %v335
    %v376 = vpack.c.b16 %v340, %v336
    %v377 = vpack.c.b16 %v341, %v337
    %v378 = vpack.c.b16 %v342, %v338
    %v379 = vpack.c.b16 %v347, %v343
    %v380 = vpack.c.b16 %v348, %v344
    %v381 = vpack.c.b16 %v349, %v345
    %v382 = vpack.c.b16 %v350, %v346
    %415 = vmatprep.subr.bf16.mxu0 %v352
    %416 = vmatpush1.bf16.msra.mxu0 %v351
    %417 = vmatprep.subr.bf16.mxu0 %v356
    %418 = vmatpush1.bf16.msra.mxu0 %v355
    %419 = vmatprep.subr.bf16.mxu0 %v360
    %420 = vmatpush1.bf16.msra.mxu0 %v359
    %421 = vmatprep.subr.bf16.mxu0 %v364
    %422 = vmatpush1.bf16.msra.mxu0 %v363
    %423 = vmatprep.subr.bf16.mxu0 %v368
    %424 = vmatpush1.bf16.msra.mxu0 %v367
    %425 = vmatprep.subr.bf16.mxu0 %v372
    %426 = vmatpush1.bf16.msra.mxu0 %v371
    %427 = vmatprep.subr.bf16.mxu0 %v376
    %428 = vmatpush1.bf16.msra.mxu0 %v375
    %429 = vmatprep.subr.bf16.mxu0 %v380
    %430 = vmatpush1.bf16.msra.mxu0 %v379
    %431 = vmatprep.subr.bf16.mxu0 0
    %432 = vmatpush1.bf16.msra.mxu0 0
    %433 = vmatprep.subr.bf16.mxu0 0
    %434 = vmatpush1.bf16.msra.mxu0 0
    %435 = vmatprep.subr.bf16.mxu0 0
    %436 = vmatpush1.bf16.msra.mxu0 0
    %437 = vmatprep.subr.bf16.mxu0 0
    %438 = vmatpush1.bf16.msra.mxu0 0
    %439 = vmatprep.subr.bf16.mxu0 0
    %440 = vmatpush1.bf16.msra.mxu0 0
    %441 = vmatprep.subr.bf16.mxu0 0
    %442 = vmatpush1.bf16.msra.mxu0 0
    %443 = vmatprep.subr.bf16.mxu0 0
    %444 = vmatpush1.bf16.msra.mxu0 0
    %445 = vmatprep.subr.bf16.mxu0 0
    %446 = vmatpush1.bf16.msra.mxu0 0
    %447 = vmatprep.mubr.bf16.mxu0 0
    %448 = vmatmul.mubr.bf16.gmra.mrb[0].mxu0 %v239
    %v449 = vpop.f32.mrb[0].mxu0
    %v450 = vadd.f32 %v190, %v449
    %v451 = vpop.f32.mrb[0].mxu0
    %v452 = vadd.f32 %v194, %v451
    %v453 = vpop.f32.mrb[0].mxu0
    %v454 = vadd.f32 %v190, %v453
    %v455 = vpop.f32.mrb[0].mxu0
    %v456 = vadd.f32 %v194, %v455
    %457 = vmatprep.mubr.bf16.mxu0 0
    %458 = vmatmul.mubr.bf16.gmra.mrb[0].mxu0 %v240
    %v459 = vpop.f32.mrb[0].mxu0
    %v460 = vadd.f32 %v190, %v459
    %v461 = vpop.f32.mrb[0].mxu0
    %v462 = vadd.f32 %v194, %v461
    %v463 = vpop.f32.mrb[0].mxu0
    %v464 = vadd.f32 %v190, %v463
    %v465 = vpop.f32.mrb[0].mxu0
    %v466 = vadd.f32 %v194, %v465
    %467 = vmatprep.mubr.bf16.mxu0 0
    %468 = vmatmul.mubr.bf16.gmra.mrb[0].mxu0 %v241
    %v469 = vpop.f32.mrb[0].mxu0
    %v470 = vadd.f32 %v190, %v469
    %v471 = vpop.f32.mrb[0].mxu0
    %v472 = vadd.f32 %v194, %v471
    %v473 = vpop.f32.mrb[0].mxu0
    %v474 = vadd.f32 %v190, %v473
    %v475 = vpop.f32.mrb[0].mxu0
    %v476 = vadd.f32 %v194, %v475
    %477 = vmatprep.mubr.bf16.mxu0 0
    %478 = vmatmul.mubr.bf16.gmra.mrb[0].mxu0 %v242
    %v479 = vpop.f32.mrb[0].mxu0
    %v480 = vadd.f32 %v190, %v479
    %v481 = vpop.f32.mrb[0].mxu0
    %v482 = vadd.f32 %v194, %v481
    %v483 = vpop.f32.mrb[0].mxu0
    %v484 = vadd.f32 %v190, %v483
    %v485 = vpop.f32.mrb[0].mxu0
    %v486 = vadd.f32 %v194, %v485
    %487 = vmatprep.mubr.bf16.mxu0 0
    %488 = vmatmul.mubr.bf16.gmra.mrb[0].mxu0 %v243
    %v489 = vpop.f32.mrb[0].mxu0
    %v490 = vadd.f32 %v190, %v489
    %v491 = vpop.f32.mrb[0].mxu0
    %v492 = vadd.f32 %v194, %v491
    %v493 = vpop.f32.mrb[0].mxu0
    %v494 = vadd.f32 %v190, %v493
    %v495 = vpop.f32.mrb[0].mxu0
    %v496 = vadd.f32 %v194, %v495
    %497 = vmatprep.mubr.bf16.mxu0 0
    %498 = vmatmul.mubr.bf16.gmra.mrb[0].mxu0 %v244
    %v499 = vpop.f32.mrb[0].mxu0
    %v500 = vadd.f32 %v190, %v499
    %v501 = vpop.f32.mrb[0].mxu0
    %v502 = vadd.f32 %v194, %v501
    %v503 = vpop.f32.mrb[0].mxu0
    %v504 = vadd.f32 %v190, %v503
    %v505 = vpop.f32.mrb[0].mxu0
    %v506 = vadd.f32 %v194, %v505
    %507 = vmatprep.mubr.bf16.mxu0 0
    %508 = vmatmul.mubr.bf16.gmra.mrb[0].mxu0 %v245
    %v509 = vpop.f32.mrb[0].mxu0
    %v510 = vadd.f32 %v190, %v509
    %v511 = vpop.f32.mrb[0].mxu0
    %v512 = vadd.f32 %v194, %v511
    %v513 = vpop.f32.mrb[0].mxu0
    %v514 = vadd.f32 %v190, %v513
    %v515 = vpop.f32.mrb[0].mxu0
    %v516 = vadd.f32 %v194, %v515
    %517 = vmatprep.mubr.bf16.mxu0 0
    %518 = vmatmul.mubr.bf16.gmra.mrb[0].mxu0 %v246
    %v519 = vpop.f32.mrb[0].mxu0
    %v520 = vadd.f32 %v190, %v519
    %v521 = vpop.f32.mrb[0].mxu0
    %v522 = vadd.f32 %v194, %v521
    %v523 = vpop.f32.mrb[0].mxu0
    %v524 = vadd.f32 %v190, %v523
    %v525 = vpop.f32.mrb[0].mxu0
    %v526 = vadd.f32 %v194, %v525
    %527 = vdwg.mxu0
    %528 = vmatprep.subr.bf16.mxu0 %v354
    %529 = vmatpush1.bf16.msra.mxu0 %v353
    %530 = vmatprep.subr.bf16.mxu0 %v358
    %531 = vmatpush1.bf16.msra.mxu0 %v357
    %532 = vmatprep.subr.bf16.mxu0 %v362
    %533 = vmatpush1.bf16.msra.mxu0 %v361
    %534 = vmatprep.subr.bf16.mxu0 %v366
    %535 = vmatpush1.bf16.msra.mxu0 %v365
    %536 = vmatprep.subr.bf16.mxu0 %v370
    %537 = vmatpush1.bf16.msra.mxu0 %v369
    %538 = vmatprep.subr.bf16.mxu0 %v374
    %539 = vmatpush1.bf16.msra.mxu0 %v373
    %540 = vmatprep.subr.bf16.mxu0 %v378
    %541 = vmatpush1.bf16.msra.mxu0 %v377
    %542 = vmatprep.subr.bf16.mxu0 %v382
    %543 = vmatpush1.bf16.msra.mxu0 %v381
    %544 = vmatprep.subr.bf16.mxu0 0
    %545 = vmatpush1.bf16.msra.mxu0 0
    %546 = vmatprep.subr.bf16.mxu0 0
    %547 = vmatpush1.bf16.msra.mxu0 0
    %548 = vmatprep.subr.bf16.mxu0 0
    %549 = vmatpush1.bf16.msra.mxu0 0
    %550 = vmatprep.subr.bf16.mxu0 0
    %551 = vmatpush1.bf16.msra.mxu0 0
    %552 = vmatprep.subr.bf16.mxu0 0
    %553 = vmatpush1.bf16.msra.mxu0 0
    %554 = vmatprep.subr.bf16.mxu0 0
    %555 = vmatpush1.bf16.msra.mxu0 0
    %556 = vmatprep.subr.bf16.mxu0 0
    %557 = vmatpush1.bf16.msra.mxu0 0
    %558 = vmatprep.subr.bf16.mxu0 0
    %559 = vmatpush1.bf16.msra.mxu0 0
    %560 = vmatprep.mubr.bf16.mxu0 0
    %561 = vmatmul.mubr.bf16.gmra.mrb[0].mxu0 %v239
    %v562 = vpop.f32.mrb[0].mxu0
    %v563 = vadd.f32 %v198, %v562
    %v564 = vpop.f32.mrb[0].mxu0
    %v565 = vadd.f32 %v202, %v564
    %v566 = vpop.f32.mrb[0].mxu0
    %v567 = vadd.f32 %v198, %v566
    %v568 = vpop.f32.mrb[0].mxu0
    %v569 = vadd.f32 %v202, %v568
    %570 = vmatprep.mubr.bf16.mxu0 0
    %571 = vmatmul.mubr.bf16.gmra.mrb[0].mxu0 %v240
    %v572 = vpop.f32.mrb[0].mxu0
    %v573 = vadd.f32 %v198, %v572
    %v574 = vpop.f32.mrb[0].mxu0
    %v575 = vadd.f32 %v202, %v574
    %v576 = vpop.f32.mrb[0].mxu0
    %v577 = vadd.f32 %v198, %v576
    %v578 = vpop.f32.mrb[0].mxu0
    %v579 = vadd.f32 %v202, %v578
    %580 = vmatprep.mubr.bf16.mxu0 0
    %581 = vmatmul.mubr.bf16.gmra.mrb[0].mxu0 %v241
    %v582 = vpop.f32.mrb[0].mxu0
    %v583 = vadd.f32 %v198, %v582
    %v584 = vpop.f32.mrb[0].mxu0
    %v585 = vadd.f32 %v202, %v584
    %v586 = vpop.f32.mrb[0].mxu0
    %v587 = vadd.f32 %v198, %v586
    %v588 = vpop.f32.mrb[0].mxu0
    %v589 = vadd.f32 %v202, %v588
    %590 = vmatprep.mubr.bf16.mxu0 0
    %591 = vmatmul.mubr.bf16.gmra.mrb[0].mxu0 %v242
    %v592 = vpop.f32.mrb[0].mxu0
    %v593 = vadd.f32 %v198, %v592
    %v594 = vpop.f32.mrb[0].mxu0
    %v595 = vadd.f32 %v202, %v594
    %v596 = vpop.f32.mrb[0].mxu0
    %v597 = vadd.f32 %v198, %v596
    %v598 = vpop.f32.mrb[0].mxu0
    %v599 = vadd.f32 %v202, %v598
    %600 = vmatprep.mubr.bf16.mxu0 0
    %601 = vmatmul.mubr.bf16.gmra.mrb[0].mxu0 %v243
    %v602 = vpop.f32.mrb[0].mxu0
    %v603 = vadd.f32 %v198, %v602
    %v604 = vpop.f32.mrb[0].mxu0
    %v605 = vadd.f32 %v202, %v604
    %v606 = vpop.f32.mrb[0].mxu0
    %v607 = vadd.f32 %v198, %v606
    %v608 = vpop.f32.mrb[0].mxu0
    %v609 = vadd.f32 %v202, %v608
    %610 = vmatprep.mubr.bf16.mxu0 0
    %611 = vmatmul.mubr.bf16.gmra.mrb[0].mxu0 %v244
    %v612 = vpop.f32.mrb[0].mxu0
    %v613 = vadd.f32 %v198, %v612
    %v614 = vpop.f32.mrb[0].mxu0
    %v615 = vadd.f32 %v202, %v614
    %v616 = vpop.f32.mrb[0].mxu0
    %v617 = vadd.f32 %v198, %v616
    %v618 = vpop.f32.mrb[0].mxu0
    %v619 = vadd.f32 %v202, %v618
    %620 = vmatprep.mubr.bf16.mxu0 0
    %621 = vmatmul.mubr.bf16.gmra.mrb[0].mxu0 %v245
    %v622 = vpop.f32.mrb[0].mxu0
    %v623 = vadd.f32 %v198, %v622
    %v624 = vpop.f32.mrb[0].mxu0
    %v625 = vadd.f32 %v202, %v624
    %v626 = vpop.f32.mrb[0].mxu0
    %v627 = vadd.f32 %v198, %v626
    %v628 = vpop.f32.mrb[0].mxu0
    %v629 = vadd.f32 %v202, %v628
    %630 = vmatprep.mubr.bf16.mxu0 0
    %631 = vmatmul.mubr.bf16.gmra.mrb[0].mxu0 %v246
    %v632 = vpop.f32.mrb[0].mxu0
    %v633 = vadd.f32 %v198, %v632
    %v634 = vpop.f32.mrb[0].mxu0
    %v635 = vadd.f32 %v202, %v634
    %v636 = vpop.f32.mrb[0].mxu0
    %v637 = vadd.f32 %v198, %v636
    %v638 = vpop.f32.mrb[0].mxu0
    %v639 = vadd.f32 %v202, %v638
    %640 = vdwg.mxu0
    %641 = vst [vmem:[#allocation3] sm:$0xff] %v450
    %642 = vst [vmem:[#allocation3 + $0x8] sm:$0xff] %v452
    %643 = vst [vmem:[#allocation3 + $0x10] sm:$0xff] %v563
    %644 = vst [vmem:[#allocation3 + $0x18] sm:$0xff] %v565
    %645 = vst [vmem:[#allocation3 + $0x20] sm:$0xff] %v454
    %646 = vst [vmem:[#allocation3 + $0x28] sm:$0xff] %v456
    %647 = vst [vmem:[#allocation3 + $0x30] sm:$0xff] %v567
    %648 = vst [vmem:[#allocation3 + $0x38] sm:$0xff] %v569
    %649 = vst [vmem:[#allocation3 + $0x40] sm:$0xff] %v460
    %650 = vst [vmem:[#allocation3 + $0x48] sm:$0xff] %v462
    %651 = vst [vmem:[#allocation3 + $0x50] sm:$0xff] %v573
    %652 = vst [vmem:[#allocation3 + $0x58] sm:$0xff] %v575
    %653 = vst [vmem:[#allocation3 + $0x60] sm:$0xff] %v464
    %654 = vst [vmem:[#allocation3 + $0x68] sm:$0xff] %v466
    %655 = vst [vmem:[#allocation3 + $0x70] sm:$0xff] %v577
    %656 = vst [vmem:[#allocation3 + $0x78] sm:$0xff] %v579
    %657 = vst [vmem:[#allocation3 + $0x80] sm:$0xff] %v470
    %658 = vst [vmem:[#allocation3 + $0x88] sm:$0xff] %v472
    %659 = vst [vmem:[#allocation3 + $0x90] sm:$0xff] %v583
    %660 = vst [vmem:[#allocation3 + $0x98] sm:$0xff] %v585
    %661 = vst [vmem:[#allocation3 + $0xa0] sm:$0xff] %v474
    %662 = vst [vmem:[#allocation3 + $0xa8] sm:$0xff] %v476
    %663 = vst [vmem:[#allocation3 + $0xb0] sm:$0xff] %v587
    %664 = vst [vmem:[#allocation3 + $0xb8] sm:$0xff] %v589
    %665 = vst [vmem:[#allocation3 + $0xc0] sm:$0xff] %v480
    %666 = vst [vmem:[#allocation3 + $0xc8] sm:$0xff] %v482
    %667 = vst [vmem:[#allocation3 + $0xd0] sm:$0xff] %v593
    %668 = vst [vmem:[#allocation3 + $0xd8] sm:$0xff] %v595
    %669 = vst [vmem:[#allocation3 + $0xe0] sm:$0xff] %v484
    %670 = vst [vmem:[#allocation3 + $0xe8] sm:$0xff] %v486
    %671 = vst [vmem:[#allocation3 + $0xf0] sm:$0xff] %v597
    %672 = vst [vmem:[#allocation3 + $0xf8] sm:$0xff] %v599
    %673 = vst [vmem:[#allocation3 + $0x100] sm:$0xff] %v490
    %674 = vst [vmem:[#allocation3 + $0x108] sm:$0xff] %v492
    %675 = vst [vmem:[#allocation3 + $0x110] sm:$0xff] %v603
    %676 = vst [vmem:[#allocation3 + $0x118] sm:$0xff] %v605
    %677 = vst [vmem:[#allocation3 + $0x120] sm:$0xff] %v494
    %678 = vst [vmem:[#allocation3 + $0x128] sm:$0xff] %v496
    %679 = vst [vmem:[#allocation3 + $0x130] sm:$0xff] %v607
    %680 = vst [vmem:[#allocation3 + $0x138] sm:$0xff] %v609
    %681 = vst [vmem:[#allocation3 + $0x140] sm:$0xff] %v500
    %682 = vst [vmem:[#allocation3 + $0x148] sm:$0xff] %v502
    %683 = vst [vmem:[#allocation3 + $0x150] sm:$0xff] %v613
    %684 = vst [vmem:[#allocation3 + $0x158] sm:$0xff] %v615
    %685 = vst [vmem:[#allocation3 + $0x160] sm:$0xff] %v504
    %686 = vst [vmem:[#allocation3 + $0x168] sm:$0xff] %v506
    %687 = vst [vmem:[#allocation3 + $0x170] sm:$0xff] %v617
    %688 = vst [vmem:[#allocation3 + $0x178] sm:$0xff] %v619
    %689 = vst [vmem:[#allocation3 + $0x180] sm:$0xff] %v510
    %690 = vst [vmem:[#allocation3 + $0x188] sm:$0xff] %v512
    %691 = vst [vmem:[#allocation3 + $0x190] sm:$0xff] %v623
    %692 = vst [vmem:[#allocation3 + $0x198] sm:$0xff] %v625
    %693 = vst [vmem:[#allocation3 + $0x1a0] sm:$0xff] %v514
    %694 = vst [vmem:[#allocation3 + $0x1a8] sm:$0xff] %v516
    %695 = vst [vmem:[#allocation3 + $0x1b0] sm:$0xff] %v627
    %696 = vst [vmem:[#allocation3 + $0x1b8] sm:$0xff] %v629
    %697 = vst [vmem:[#allocation3 + $0x1c0] sm:$0xff] %v520
    %698 = vst [vmem:[#allocation3 + $0x1c8] sm:$0xff] %v522
    %699 = vst [vmem:[#allocation3 + $0x1d0] sm:$0xff] %v633
    %700 = vst [vmem:[#allocation3 + $0x1d8] sm:$0xff] %v635
    %701 = vst [vmem:[#allocation3 + $0x1e0] sm:$0xff] %v524
    %702 = vst [vmem:[#allocation3 + $0x1e8] sm:$0xff] %v526
    %703 = vst [vmem:[#allocation3 + $0x1f0] sm:$0xff] %v637
    %704 = vst [vmem:[#allocation3 + $0x1f8] sm:$0xff] %v639
    %v705 = vld [vmem:[#allocation9] sm:$0xff]
    %v706 = vld [vmem:[#allocation9 + $0x8] sm:$0xff]
    %v707 = vld [vmem:[#allocation9 + $0x10] sm:$0xff]
    %v708 = vld [vmem:[#allocation9 + $0x18] sm:$0xff]
    %v709 = vld [vmem:[#allocation9 + $0x20] sm:$0xff]
    %v710 = vld [vmem:[#allocation9 + $0x28] sm:$0xff]
    %v711 = vld [vmem:[#allocation9 + $0x30] sm:$0xff]
    %v712 = vld [vmem:[#allocation9 + $0x38] sm:$0xff]
    %v713 = vld [vmem:[#allocation9 + $0x40] sm:$0xff]
    %v714 = vld [vmem:[#allocation9 + $0x48] sm:$0xff]
    %v715 = vld [vmem:[#allocation9 + $0x50] sm:$0xff]
    %v716 = vld [vmem:[#allocation9 + $0x58] sm:$0xff]
    %v717 = vld [vmem:[#allocation9 + $0x60] sm:$0xff]
    %v718 = vld [vmem:[#allocation9 + $0x68] sm:$0xff]
    %v719 = vld [vmem:[#allocation9 + $0x70] sm:$0xff]
    %v720 = vld [vmem:[#allocation9 + $0x78] sm:$0xff]
    %v721 = vld [vmem:[#allocation9 + $0x80] sm:$0xff]
    %v722 = vld [vmem:[#allocation9 + $0x88] sm:$0xff]
    %v723 = vld [vmem:[#allocation9 + $0x90] sm:$0xff]
    %v724 = vld [vmem:[#allocation9 + $0x98] sm:$0xff]
    %v725 = vld [vmem:[#allocation9 + $0xa0] sm:$0xff]
    %v726 = vld [vmem:[#allocation9 + $0xa8] sm:$0xff]
    %v727 = vld [vmem:[#allocation9 + $0xb0] sm:$0xff]
    %v728 = vld [vmem:[#allocation9 + $0xb8] sm:$0xff]
    %v729 = vld [vmem:[#allocation9 + $0xc0] sm:$0xff]
    %v730 = vld [vmem:[#allocation9 + $0xc8] sm:$0xff]
    %v731 = vld [vmem:[#allocation9 + $0xd0] sm:$0xff]
    %v732 = vld [vmem:[#allocation9 + $0xd8] sm:$0xff]
    %v733 = vld [vmem:[#allocation9 + $0xe0] sm:$0xff]
    %v734 = vld [vmem:[#allocation9 + $0xe8] sm:$0xff]
    %v735 = vld [vmem:[#allocation9 + $0xf0] sm:$0xff]
    %v736 = vld [vmem:[#allocation9 + $0xf8] sm:$0xff]
    %v737 = vld [vmem:[#allocation16] sm:$0xff]
    %v738 = vld [vmem:[#allocation16 + $0x8] sm:$0xff]
    %v739 = vld [vmem:[#allocation18] sm:$0xff]
    %v740 = vld [vmem:[#allocation18 + $0x8] sm:$0xff]
    %v741 = vld [vmem:[#allocation3] sm:$0xff]
    %v742 = vld [vmem:[#allocation3 + $0x8] sm:$0xff]
    %v743 = vld [vmem:[#allocation3 + $0x10] sm:$0xff]
    %v744 = vld [vmem:[#allocation3 + $0x18] sm:$0xff]
    %v745 = vld [vmem:[#allocation3 + $0x20] sm:$0xff]
    %v746 = vld [vmem:[#allocation3 + $0x28] sm:$0xff]
    %v747 = vld [vmem:[#allocation3 + $0x30] sm:$0xff]
    %v748 = vld [vmem:[#allocation3 + $0x38] sm:$0xff]
    %v749 = vpack.c.bf16 %v738, %v737
    %v782 = vunpack.c.l.b16 %v705
    %v783 = vunpack.c.h.b16 %v705
    %v784 = vunpack.c.l.b16 %v706
    %v785 = vunpack.c.h.b16 %v706
    %v786 = vunpack.c.l.b16 %v707
    %v787 = vunpack.c.h.b16 %v707
    %v788 = vunpack.c.l.b16 %v708
    %v789 = vunpack.c.h.b16 %v708
    %v790 = vunpack.c.l.b16 %v709
    %v791 = vunpack.c.h.b16 %v709
    %v792 = vunpack.c.l.b16 %v710
    %v793 = vunpack.c.h.b16 %v710
    %v794 = vunpack.c.l.b16 %v711
    %v795 = vunpack.c.h.b16 %v711
    %v796 = vunpack.c.l.b16 %v712
    %v797 = vunpack.c.h.b16 %v712
    %v798 = vunpack.c.l.b16 %v713
    %v799 = vunpack.c.h.b16 %v713
    %v800 = vunpack.c.l.b16 %v714
    %v801 = vunpack.c.h.b16 %v714
    %v802 = vunpack.c.l.b16 %v715
    %v803 = vunpack.c.h.b16 %v715
    %v804 = vunpack.c.l.b16 %v716
    %v805 = vunpack.c.h.b16 %v716
    %v806 = vunpack.c.l.b16 %v717
    %v807 = vunpack.c.h.b16 %v717
    %v808 = vunpack.c.l.b16 %v718
    %v809 = vunpack.c.h.b16 %v718
    %v810 = vunpack.c.l.b16 %v719
    %v811 = vunpack.c.h.b16 %v719
    %v812 = vunpack.c.l.b16 %v720
    %v813 = vunpack.c.h.b16 %v720
    %v814 = vunpack.c.l.b16 %v721
    %v815 = vunpack.c.h.b16 %v721
    %v816 = vunpack.c.l.b16 %v722
    %v817 = vunpack.c.h.b16 %v722
    %v818 = vunpack.c.l.b16 %v723
    %v819 = vunpack.c.h.b16 %v723
    %v820 = vunpack.c.l.b16 %v724
    %v821 = vunpack.c.h.b16 %v724
    %v822 = vunpack.c.l.b16 %v725
    %v823 = vunpack.c.h.b16 %v725
    %v824 = vunpack.c.l.b16 %v726
    %v825 = vunpack.c.h.b16 %v726
    %v826 = vunpack.c.l.b16 %v727
    %v827 = vunpack.c.h.b16 %v727
    %v828 = vunpack.c.l.b16 %v728
    %v829 = vunpack.c.h.b16 %v728
    %v830 = vunpack.c.l.b16 %v729
    %v831 = vunpack.c.h.b16 %v729
    %v832 = vunpack.c.l.b16 %v730
    %v833 = vunpack.c.h.b16 %v730
    %v834 = vunpack.c.l.b16 %v731
    %v835 = vunpack.c.h.b16 %v731
    %v836 = vunpack.c.l.b16 %v732
    %v837 = vunpack.c.h.b16 %v732
    %v838 = vunpack.c.l.b16 %v733
    %v839 = vunpack.c.h.b16 %v733
    %v840 = vunpack.c.l.b16 %v734
    %v841 = vunpack.c.h.b16 %v734
    %v842 = vunpack.c.l.b16 %v735
    %v843 = vunpack.c.h.b16 %v735
    %v844 = vunpack.c.l.b16 %v736
    %v845 = vunpack.c.h.b16 %v736
    %v846 = vpack.c.b16 %v786, %v782
    %v847 = vpack.c.b16 %v787, %v783
    %v848 = vpack.c.b16 %v788, %v784
    %v849 = vpack.c.b16 %v789, %v785
    %v850 = vpack.c.b16 %v794, %v790
    %v851 = vpack.c.b16 %v795, %v791
    %v852 = vpack.c.b16 %v796, %v792
    %v853 = vpack.c.b16 %v797, %v793
    %v854 = vpack.c.b16 %v802, %v798
    %v855 = vpack.c.b16 %v803, %v799
    %v856 = vpack.c.b16 %v804, %v800
    %v857 = vpack.c.b16 %v805, %v801
    %v858 = vpack.c.b16 %v810, %v806
    %v859 = vpack.c.b16 %v811, %v807
    %v860 = vpack.c.b16 %v812, %v808
    %v861 = vpack.c.b16 %v813, %v809
    %v862 = vpack.c.b16 %v818, %v814
    %v863 = vpack.c.b16 %v819, %v815
    %v864 = vpack.c.b16 %v820, %v816
    %v865 = vpack.c.b16 %v821, %v817
    %v866 = vpack.c.b16 %v826, %v822
    %v867 = vpack.c.b16 %v827, %v823
    %v868 = vpack.c.b16 %v828, %v824
    %v869 = vpack.c.b16 %v829, %v825
    %v870 = vpack.c.b16 %v834, %v830
    %v871 = vpack.c.b16 %v835, %v831
    %v872 = vpack.c.b16 %v836, %v832
    %v873 = vpack.c.b16 %v837, %v833
    %v874 = vpack.c.b16 %v842, %v838
    %v875 = vpack.c.b16 %v843, %v839
    %v876 = vpack.c.b16 %v844, %v840
    %v877 = vpack.c.b16 %v845, %v841
    %910 = vmatprep.subr.bf16.mxu0 %v847
    %911 = vmatpush1.bf16.msra.mxu0 %v846
    %912 = vmatprep.subr.bf16.mxu0 %v851
    %913 = vmatpush1.bf16.msra.mxu0 %v850
    %914 = vmatprep.subr.bf16.mxu0 %v855
    %915 = vmatpush1.bf16.msra.mxu0 %v854
    %916 = vmatprep.subr.bf16.mxu0 %v859
    %917 = vmatpush1.bf16.msra.mxu0 %v858
    %918 = vmatprep.subr.bf16.mxu0 %v863
    %919 = vmatpush1.bf16.msra.mxu0 %v862
    %920 = vmatprep.subr.bf16.mxu0 %v867
    %921 = vmatpush1.bf16.msra.mxu0 %v866
    %922 = vmatprep.subr.bf16.mxu0 %v871
    %923 = vmatpush1.bf16.msra.mxu0 %v870
    %924 = vmatprep.subr.bf16.mxu0 %v875
    %925 = vmatpush1.bf16.msra.mxu0 %v874
    %926 = vmatprep.subr.bf16.mxu0 0
    %927 = vmatpush1.bf16.msra.mxu0 0
    %928 = vmatprep.subr.bf16.mxu0 0
    %929 = vmatpush1.bf16.msra.mxu0 0
    %930 = vmatprep.subr.bf16.mxu0 0
    %931 = vmatpush1.bf16.msra.mxu0 0
    %932 = vmatprep.subr.bf16.mxu0 0
    %933 = vmatpush1.bf16.msra.mxu0 0
    %934 = vmatprep.subr.bf16.mxu0 0
    %935 = vmatpush1.bf16.msra.mxu0 0
    %936 = vmatprep.subr.bf16.mxu0 0
    %937 = vmatpush1.bf16.msra.mxu0 0
    %938 = vmatprep.subr.bf16.mxu0 0
    %939 = vmatpush1.bf16.msra.mxu0 0
    %940 = vmatprep.subr.bf16.mxu0 0
    %941 = vmatpush1.bf16.msra.mxu0 0
    %942 = vmatprep.mubr.bf16.mxu0 0
    %943 = vmatmul.mubr.bf16.gmra.mrb[0].mxu0 %v749
    %v944 = vpop.f32.mrb[0].mxu0
    %v945 = vadd.f32 0.0, %v944
    %v946 = vpop.f32.mrb[0].mxu0
    %v947 = vadd.f32 0.0, %v946
    %v948 = vpop.f32.mrb[0].mxu0
    %v949 = vadd.f32 0.0, %v948
    %v950 = vpop.f32.mrb[0].mxu0
    %v951 = vadd.f32 0.0, %v950
    %952 = vdwg.mxu0
    %953 = vmatprep.subr.bf16.mxu0 %v849
    %954 = vmatpush1.bf16.msra.mxu0 %v848
    %955 = vmatprep.subr.bf16.mxu0 %v853
    %956 = vmatpush1.bf16.msra.mxu0 %v852
    %957 = vmatprep.subr.bf16.mxu0 %v857
    %958 = vmatpush1.bf16.msra.mxu0 %v856
    %959 = vmatprep.subr.bf16.mxu0 %v861
    %960 = vmatpush1.bf16.msra.mxu0 %v860
    %961 = vmatprep.subr.bf16.mxu0 %v865
    %962 = vmatpush1.bf16.msra.mxu0 %v864
    %963 = vmatprep.subr.bf16.mxu0 %v869
    %964 = vmatpush1.bf16.msra.mxu0 %v868
    %965 = vmatprep.subr.bf16.mxu0 %v873
    %966 = vmatpush1.bf16.msra.mxu0 %v872
    %967 = vmatprep.subr.bf16.mxu0 %v877
    %968 = vmatpush1.bf16.msra.mxu0 %v876
    %969 = vmatprep.subr.bf16.mxu0 0
    %970 = vmatpush1.bf16.msra.mxu0 0
    %971 = vmatprep.subr.bf16.mxu0 0
    %972 = vmatpush1.bf16.msra.mxu0 0
    %973 = vmatprep.subr.bf16.mxu0 0
    %974 = vmatpush1.bf16.msra.mxu0 0
    %975 = vmatprep.subr.bf16.mxu0 0
    %976 = vmatpush1.bf16.msra.mxu0 0
    %977 = vmatprep.subr.bf16.mxu0 0
    %978 = vmatpush1.bf16.msra.mxu0 0
    %979 = vmatprep.subr.bf16.mxu0 0
    %980 = vmatpush1.bf16.msra.mxu0 0
    %981 = vmatprep.subr.bf16.mxu0 0
    %982 = vmatpush1.bf16.msra.mxu0 0
    %983 = vmatprep.subr.bf16.mxu0 0
    %984 = vmatpush1.bf16.msra.mxu0 0
    %985 = vmatprep.mubr.bf16.mxu0 0
    %986 = vmatmul.mubr.bf16.gmra.mrb[0].mxu0 %v749
    %v987 = vpop.f32.mrb[0].mxu0
    %v988 = vadd.f32 0.0, %v987
    %v989 = vpop.f32.mrb[0].mxu0
    %v990 = vadd.f32 0.0, %v989
    %v991 = vpop.f32.mrb[0].mxu0
    %v992 = vadd.f32 0.0, %v991
    %v993 = vpop.f32.mrb[0].mxu0
    %v994 = vadd.f32 0.0, %v993
    %995 = vdwg.mxu0
    %v996 = vadd.f32 %v741, %v945
    %v997 = vadd.f32 %v742, %v947
    %v998 = vadd.f32 %v743, %v988
    %v999 = vadd.f32 %v744, %v990
    %v1000 = vadd.f32 %v745, %v949
    %v1001 = vadd.f32 %v746, %v951
    %v1002 = vadd.f32 %v747, %v992
    %v1003 = vadd.f32 %v748, %v994
    %v1004 = vmul.f32 %v996, 0.5
    %v1005 = vmul.f32 %v1000, 0.5
    %v1006 = vtanh.pop %v1004
    %v1007 = vtanh.pop %v1005
    %v1008 = vmul.f32 %v1006, 0.5
    %v1009 = vmul.f32 %v1007, 0.5
    %v1010 = vadd.f32 %v1008, 0.5
    %v1011 = vadd.f32 %v1009, 0.5
    %v1012 = vmul.f32 %v997, 0.5
    %v1013 = vmul.f32 %v1001, 0.5
    %v1014 = vtanh.pop %v1012
    %v1015 = vtanh.pop %v1013
    %v1016 = vmul.f32 %v1014, 0.5
    %v1017 = vmul.f32 %v1015, 0.5
    %v1018 = vadd.f32 %v1016, 0.5
    %v1019 = vadd.f32 %v1017, 0.5
    %v1020 = vtanh.pop %v998
    %v1021 = vtanh.pop %v1002
    %v1022 = vmul.f32 %v999, 0.5
    %v1023 = vmul.f32 %v1003, 0.5
    %v1024 = vtanh.pop %v1022
    %v1025 = vtanh.pop %v1023
    %v1026 = vmul.f32 %v1024, 0.5
    %v1027 = vmul.f32 %v1025, 0.5
    %v1028 = vadd.f32 %v1026, 0.5
    %v1029 = vadd.f32 %v1027, 0.5
    %v1030 = vmul.f32 %v1018, %v739
    %v1031 = vmul.f32 %v1019, %v740
    %v1032 = vmul.f32 %v1010, %v1020
    %v1033 = vmul.f32 %v1011, %v1021
    %v1034 = vadd.f32 %v1030, %v1032
    %v1035 = vadd.f32 %v1031, %v1033
    %v1036 = vtanh.pop %v1034
    %v1037 = vtanh.pop %v1035
    %v1038 = vmul.f32 %v1028, %v1036
    %v1039 = vmul.f32 %v1029, %v1037
    %v1040 = vpack.c.bf16 %v1039, %v1038
    %1041 = vst [vmem:[#allocation2] sm:$0xff] %v1040
    %s1042 = scalar_lea.vmem [#allocation3], 64
    %v1043 = vld [vmem:[%s1042] sm:$0xff]
    %v1044 = vld [vmem:[%s1042 + $0x8] sm:$0xff]
    %v1045 = vld [vmem:[%s1042 + $0x10] sm:$0xff]
    %v1046 = vld [vmem:[%s1042 + $0x18] sm:$0xff]
    %v1047 = vld [vmem:[%s1042 + $0x20] sm:$0xff]
    %v1048 = vld [vmem:[%s1042 + $0x28] sm:$0xff]
    %v1049 = vld [vmem:[%s1042 + $0x30] sm:$0xff]
    %v1050 = vld [vmem:[%s1042 + $0x38] sm:$0xff]
    %1051 = vmatprep.subr.bf16.mxu0 %v847
    %1052 = vmatpush1.bf16.msra.mxu0 %v846
    %1053 = vmatprep.subr.bf16.mxu0 %v851
    %1054 = vmatpush1.bf16.msra.mxu0 %v850
    %1055 = vmatprep.subr.bf16.mxu0 %v855
    %1056 = vmatpush1.bf16.msra.mxu0 %v854
    %1057 = vmatprep.subr.bf16.mxu0 %v859
    %1058 = vmatpush1.bf16.msra.mxu0 %v858
    %1059 = vmatprep.subr.bf16.mxu0 %v863
    %1060 = vmatpush1.bf16.msra.mxu0 %v862
    %1061 = vmatprep.subr.bf16.mxu0 %v867
    %1062 = vmatpush1.bf16.msra.mxu0 %v866
    %1063 = vmatprep.subr.bf16.mxu0 %v871
    %1064 = vmatpush1.bf16.msra.mxu0 %v870
    %1065 = vmatprep.subr.bf16.mxu0 %v875
    %1066 = vmatpush1.bf16.msra.mxu0 %v874
    %1067 = vmatprep.subr.bf16.mxu0 0
    %1068 = vmatpush1.bf16.msra.mxu0 0
    %1069 = vmatprep.subr.bf16.mxu0 0
    %1070 = vmatpush1.bf16.msra.mxu0 0
    %1071 = vmatprep.subr.bf16.mxu0 0
    %1072 = vmatpush1.bf16.msra.mxu0 0
    %1073 = vmatprep.subr.bf16.mxu0 0
    %1074 = vmatpush1.bf16.msra.mxu0 0
    %1075 = vmatprep.subr.bf16.mxu0 0
    %1076 = vmatpush1.bf16.msra.mxu0 0
    %1077 = vmatprep.subr.bf16.mxu0 0
    %1078 = vmatpush1.bf16.msra.mxu0 0
    %1079 = vmatprep.subr.bf16.mxu0 0
    %1080 = vmatpush1.bf16.msra.mxu0 0
    %1081 = vmatprep.subr.bf16.mxu0 0
    %1082 = vmatpush1.bf16.msra.mxu0 0
    %1083 = vmatprep.mubr.bf16.mxu0 0
    %1084 = vmatmul.mubr.bf16.gmra.mrb[0].mxu0 %v1040
    %v1085 = vpop.f32.mrb[0].mxu0
    %v1086 = vadd.f32 0.0, %v1085
    %v1087 = vpop.f32.mrb[0].mxu0
    %v1088 = vadd.f32 0.0, %v1087
    %v1089 = vpop.f32.mrb[0].mxu0
    %v1090 = vadd.f32 0.0, %v1089
    %v1091 = vpop.f32.mrb[0].mxu0
    %v1092 = vadd.f32 0.0, %v1091
    %1093 = vdwg.mxu0
    %1094 = vmatprep.subr.bf16.mxu0 %v849
    %1095 = vmatpush1.bf16.msra.mxu0 %v848
    %1096 = vmatprep.subr.bf16.mxu0 %v853
    %1097 = vmatpush1.bf16.msra.mxu0 %v852
    %1098 = vmatprep.subr.bf16.mxu0 %v857
    %1099 = vmatpush1.bf16.msra.mxu0 %v856
    %1100 = vmatprep.subr.bf16.mxu0 %v861
    %1101 = vmatpush1.bf16.msra.mxu0 %v860
    %1102 = vmatprep.subr.bf16.mxu0 %v865
    %1103 = vmatpush1.bf16.msra.mxu0 %v864
    %1104 = vmatprep.subr.bf16.mxu0 %v869
    %1105 = vmatpush1.bf16.msra.mxu0 %v868
    %1106 = vmatprep.subr.bf16.mxu0 %v873
    %1107 = vmatpush1.bf16.msra.mxu0 %v872
    %1108 = vmatprep.subr.bf16.mxu0 %v877
    %1109 = vmatpush1.bf16.msra.mxu0 %v876
    %1110 = vmatprep.subr.bf16.mxu0 0
    %1111 = vmatpush1.bf16.msra.mxu0 0
    %1112 = vmatprep.subr.bf16.mxu0 0
    %1113 = vmatpush1.bf16.msra.mxu0 0
    %1114 = vmatprep.subr.bf16.mxu0 0
    %1115 = vmatpush1.bf16.msra.mxu0 0
    %1116 = vmatprep.subr.bf16.mxu0 0
    %1117 = vmatpush1.bf16.msra.mxu0 0
    %1118 = vmatprep.subr.bf16.mxu0 0
    %1119 = vmatpush1.bf16.msra.mxu0 0
    %1120 = vmatprep.subr.bf16.mxu0 0
    %1121 = vmatpush1.bf16.msra.mxu0 0
    %1122 = vmatprep.subr.bf16.mxu0 0
    %1123 = vmatpush1.bf16.msra.mxu0 0
    %1124 = vmatprep.subr.bf16.mxu0 0
    %1125 = vmatpush1.bf16.msra.mxu0 0
    %1126 = vmatprep.mubr.bf16.mxu0 0
    %1127 = vmatmul.mubr.bf16.gmra.mrb[0].mxu0 %v1040
    %v1128 = vpop.f32.mrb[0].mxu0
    %v1129 = vadd.f32 0.0, %v1128
    %v1130 = vpop.f32.mrb[0].mxu0
    %v1131 = vadd.f32 0.0, %v1130
    %v1132 = vpop.f32.mrb[0].mxu0
    %v1133 = vadd.f32 0.0, %v1132
    %v1134 = vpop.f32.mrb[0].mxu0
    %v1135 = vadd.f32 0.0, %v1134
    %1136 = vdwg.mxu0
    %v1137 = vadd.f32 %v1043, %v1086
    %v1138 = vadd.f32 %v1044, %v1088
    %v1139 = vadd.f32 %v1045, %v1129
    %v1140 = vadd.f32 %v1046, %v1131
    %v1141 = vadd.f32 %v1047, %v1090
    %v1142 = vadd.f32 %v1048, %v1092
    %v1143 = vadd.f32 %v1049, %v1133
    %v1144 = vadd.f32 %v1050, %v1135
    %v1145 = vmul.f32 %v1137, 0.5
    %v1146 = vmul.f32 %v1141, 0.5
    %v1147 = vtanh.pop %v1145
    %v1148 = vtanh.pop %v1146
    %v1149 = vmul.f32 %v1147, 0.5
    %v1150 = vmul.f32 %v1148, 0.5
    %v1151 = vadd.f32 %v1149, 0.5
    %v1152 = vadd.f32 %v1150, 0.5
    %v1153 = vmul.f32 %v1138, 0.5
    %v1154 = vmul.f32 %v1142, 0.5
    %v1155 = vtanh.pop %v1153
    %v1156 = vtanh.pop %v1154
    %v1157 = vmul.f32 %v1155, 0.5
    %v1158 = vmul.f32 %v1156, 0.5
    %v1159 = vadd.f32 %v1157, 0.5
    %v1160 = vadd.f32 %v1158, 0.5
    %v1161 = vtanh.pop %v1139
    %v1162 = vtanh.pop %v1143
    %v1163 = vmul.f32 %v1140, 0.5
    %v1164 = vmul.f32 %v1144, 0.5
    %v1165 = vtanh.pop %v1163
    %v1166 = vtanh.pop %v1164
    %v1167 = vmul.f32 %v1165, 0.5
    %v1168 = vmul.f32 %v1166, 0.5
    %v1169 = vadd.f32 %v1167, 0.5
    %v1170 = vadd.f32 %v1168, 0.5
    %v1171 = vmul.f32 %v1159, %v1034
    %v1172 = vmul.f32 %v1160, %v1035
    %v1173 = vmul.f32 %v1151, %v1161
    %v1174 = vmul.f32 %v1152, %v1162
    %v1175 = vadd.f32 %v1171, %v1173
    %v1176 = vadd.f32 %v1172, %v1174
    %v1177 = vtanh.pop %v1175
    %v1178 = vtanh.pop %v1176
    %v1179 = vmul.f32 %v1169, %v1177
    %v1180 = vmul.f32 %v1170, %v1178
    %v1181 = vpack.c.bf16 %v1180, %v1179
    %s1182 = scalar_lea.vmem [#allocation2], 8
    %1183 = vst [vmem:[%s1182] sm:$0xff] %v1181
    %s1184 = scalar_lea.vmem [#allocation3], 128
    %v1185 = vld [vmem:[%s1184] sm:$0xff]
    %v1186 = vld [vmem:[%s1184 + $0x8] sm:$0xff]
    %v1187 = vld [vmem:[%s1184 + $0x10] sm:$0xff]
    %v1188 = vld [vmem:[%s1184 + $0x18] sm:$0xff]
    %v1189 = vld [vmem:[%s1184 + $0x20] sm:$0xff]
    %v1190 = vld [vmem:[%s1184 + $0x28] sm:$0xff]
    %v1191 = vld [vmem:[%s1184 + $0x30] sm:$0xff]
    %v1192 = vld [vmem:[%s1184 + $0x38] sm:$0xff]
    %1193 = vmatprep.subr.bf16.mxu0 %v847
    %1194 = vmatpush1.bf16.msra.mxu0 %v846
    %1195 = vmatprep.subr.bf16.mxu0 %v851
    %1196 = vmatpush1.bf16.msra.mxu0 %v850
    %1197 = vmatprep.subr.bf16.mxu0 %v855
    %1198 = vmatpush1.bf16.msra.mxu0 %v854
    %1199 = vmatprep.subr.bf16.mxu0 %v859
    %1200 = vmatpush1.bf16.msra.mxu0 %v858
    %1201 = vmatprep.subr.bf16.mxu0 %v863
    %1202 = vmatpush1.bf16.msra.mxu0 %v862
    %1203 = vmatprep.subr.bf16.mxu0 %v867
    %1204 = vmatpush1.bf16.msra.mxu0 %v866
    %1205 = vmatprep.subr.bf16.mxu0 %v871
    %1206 = vmatpush1.bf16.msra.mxu0 %v870
    %1207 = vmatprep.subr.bf16.mxu0 %v875
    %1208 = vmatpush1.bf16.msra.mxu0 %v874
    %1209 = vmatprep.subr.bf16.mxu0 0
    %1210 = vmatpush1.bf16.msra.mxu0 0
    %1211 = vmatprep.subr.bf16.mxu0 0
    %1212 = vmatpush1.bf16.msra.mxu0 0
    %1213 = vmatprep.subr.bf16.mxu0 0
    %1214 = vmatpush1.bf16.msra.mxu0 0
    %1215 = vmatprep.subr.bf16.mxu0 0
    %1216 = vmatpush1.bf16.msra.mxu0 0
    %1217 = vmatprep.subr.bf16.mxu0 0
    %1218 = vmatpush1.bf16.msra.mxu0 0
    %1219 = vmatprep.subr.bf16.mxu0 0
    %1220 = vmatpush1.bf16.msra.mxu0 0
    %1221 = vmatprep.subr.bf16.mxu0 0
    %1222 = vmatpush1.bf16.msra.mxu0 0
    %1223 = vmatprep.subr.bf16.mxu0 0
    %1224 = vmatpush1.bf16.msra.mxu0 0
    %1225 = vmatprep.mubr.bf16.mxu0 0
    %1226 = vmatmul.mubr.bf16.gmra.mrb[0].mxu0 %v1181
    %v1227 = vpop.f32.mrb[0].mxu0
    %v1228 = vadd.f32 0.0, %v1227
    %v1229 = vpop.f32.mrb[0].mxu0
    %v1230 = vadd.f32 0.0, %v1229
    %v1231 = vpop.f32.mrb[0].mxu0
    %v1232 = vadd.f32 0.0, %v1231
    %v1233 = vpop.f32.mrb[0].mxu0
    %v1234 = vadd.f32 0.0, %v1233
    %1235 = vdwg.mxu0
    %1236 = vmatprep.subr.bf16.mxu0 %v849
    %1237 = vmatpush1.bf16.msra.mxu0 %v848
    %1238 = vmatprep.subr.bf16.mxu0 %v853
    %1239 = vmatpush1.bf16.msra.mxu0 %v852
    %1240 = vmatprep.subr.bf16.mxu0 %v857
    %1241 = vmatpush1.bf16.msra.mxu0 %v856
    %1242 = vmatprep.subr.bf16.mxu0 %v861
    %1243 = vmatpush1.bf16.msra.mxu0 %v860
    %1244 = vmatprep.subr.bf16.mxu0 %v865
    %1245 = vmatpush1.bf16.msra.mxu0 %v864
    %1246 = vmatprep.subr.bf16.mxu0 %v869
    %1247 = vmatpush1.bf16.msra.mxu0 %v868
    %1248 = vmatprep.subr.bf16.mxu0 %v873
    %1249 = vmatpush1.bf16.msra.mxu0 %v872
    %1250 = vmatprep.subr.bf16.mxu0 %v877
    %1251 = vmatpush1.bf16.msra.mxu0 %v876
    %1252 = vmatprep.subr.bf16.mxu0 0
    %1253 = vmatpush1.bf16.msra.mxu0 0
    %1254 = vmatprep.subr.bf16.mxu0 0
    %1255 = vmatpush1.bf16.msra.mxu0 0
    %1256 = vmatprep.subr.bf16.mxu0 0
    %1257 = vmatpush1.bf16.msra.mxu0 0
    %1258 = vmatprep.subr.bf16.mxu0 0
    %1259 = vmatpush1.bf16.msra.mxu0 0
    %1260 = vmatprep.subr.bf16.mxu0 0
    %1261 = vmatpush1.bf16.msra.mxu0 0
    %1262 = vmatprep.subr.bf16.mxu0 0
    %1263 = vmatpush1.bf16.msra.mxu0 0
    %1264 = vmatprep.subr.bf16.mxu0 0
    %1265 = vmatpush1.bf16.msra.mxu0 0
    %1266 = vmatprep.subr.bf16.mxu0 0
    %1267 = vmatpush1.bf16.msra.mxu0 0
    %1268 = vmatprep.mubr.bf16.mxu0 0
    %1269 = vmatmul.mubr.bf16.gmra.mrb[0].mxu0 %v1181
    %v1270 = vpop.f32.mrb[0].mxu0
    %v1271 = vadd.f32 0.0, %v1270
    %v1272 = vpop.f32.mrb[0].mxu0
    %v1273 = vadd.f32 0.0, %v1272
    %v1274 = vpop.f32.mrb[0].mxu0
    %v1275 = vadd.f32 0.0, %v1274
    %v1276 = vpop.f32.mrb[0].mxu0
    %v1277 = vadd.f32 0.0, %v1276
    %1278 = vdwg.mxu0
    %v1279 = vadd.f32 %v1185, %v1228
    %v1280 = vadd.f32 %v1186, %v1230
    %v1281 = vadd.f32 %v1187, %v1271
    %v1282 = vadd.f32 %v1188, %v1273
    %v1283 = vadd.f32 %v1189, %v1232
    %v1284 = vadd.f32 %v1190, %v1234
    %v1285 = vadd.f32 %v1191, %v1275
    %v1286 = vadd.f32 %v1192, %v1277
    %v1287 = vmul.f32 %v1279, 0.5
    %v1288 = vmul.f32 %v1283, 0.5
    %v1289 = vtanh.pop %v1287
    %v1290 = vtanh.pop %v1288
    %v1291 = vmul.f32 %v1289, 0.5
    %v1292 = vmul.f32 %v1290, 0.5
    %v1293 = vadd.f32 %v1291, 0.5
    %v1294 = vadd.f32 %v1292, 0.5
    %v1295 = vmul.f32 %v1280, 0.5
    %v1296 = vmul.f32 %v1284, 0.5
    %v1297 = vtanh.pop %v1295
    %v1298 = vtanh.pop %v1296
    %v1299 = vmul.f32 %v1297, 0.5
    %v1300 = vmul.f32 %v1298, 0.5
    %v1301 = vadd.f32 %v1299, 0.5
    %v1302 = vadd.f32 %v1300, 0.5
    %v1303 = vtanh.pop %v1281
    %v1304 = vtanh.pop %v1285
    %v1305 = vmul.f32 %v1282, 0.5
    %v1306 = vmul.f32 %v1286, 0.5
    %v1307 = vtanh.pop %v1305
    %v1308 = vtanh.pop %v1306
    %v1309 = vmul.f32 %v1307, 0.5
    %v1310 = vmul.f32 %v1308, 0.5
    %v1311 = vadd.f32 %v1309, 0.5
    %v1312 = vadd.f32 %v1310, 0.5
    %v1313 = vmul.f32 %v1301, %v1175
    %v1314 = vmul.f32 %v1302, %v1176
    %v1315 = vmul.f32 %v1293, %v1303
    %v1316 = vmul.f32 %v1294, %v1304
    %v1317 = vadd.f32 %v1313, %v1315
    %v1318 = vadd.f32 %v1314, %v1316
    %v1319 = vtanh.pop %v1317
    %v1320 = vtanh.pop %v1318
    %v1321 = vmul.f32 %v1311, %v1319
    %v1322 = vmul.f32 %v1312, %v1320
    %v1323 = vpack.c.bf16 %v1322, %v1321
    %s1324 = scalar_lea.vmem [#allocation2], 16
    %1325 = vst [vmem:[%s1324] sm:$0xff] %v1323
    %s1326 = scalar_lea.vmem [#allocation3], 192
    %v1327 = vld [vmem:[%s1326] sm:$0xff]
    %v1328 = vld [vmem:[%s1326 + $0x8] sm:$0xff]
    %v1329 = vld [vmem:[%s1326 + $0x10] sm:$0xff]
    %v1330 = vld [vmem:[%s1326 + $0x18] sm:$0xff]
    %v1331 = vld [vmem:[%s1326 + $0x20] sm:$0xff]
    %v1332 = vld [vmem:[%s1326 + $0x28] sm:$0xff]
    %v1333 = vld [vmem:[%s1326 + $0x30] sm:$0xff]
    %v1334 = vld [vmem:[%s1326 + $0x38] sm:$0xff]
    %1335 = vmatprep.subr.bf16.mxu0 %v847
    %1336 = vmatpush1.bf16.msra.mxu0 %v846
    %1337 = vmatprep.subr.bf16.mxu0 %v851
    %1338 = vmatpush1.bf16.msra.mxu0 %v850
    %1339 = vmatprep.subr.bf16.mxu0 %v855
    %1340 = vmatpush1.bf16.msra.mxu0 %v854
    %1341 = vmatprep.subr.bf16.mxu0 %v859
    %1342 = vmatpush1.bf16.msra.mxu0 %v858
    %1343 = vmatprep.subr.bf16.mxu0 %v863
    %1344 = vmatpush1.bf16.msra.mxu0 %v862
    %1345 = vmatprep.subr.bf16.mxu0 %v867
    %1346 = vmatpush1.bf16.msra.mxu0 %v866
    %1347 = vmatprep.subr.bf16.mxu0 %v871
    %1348 = vmatpush1.bf16.msra.mxu0 %v870
    %1349 = vmatprep.subr.bf16.mxu0 %v875
    %1350 = vmatpush1.bf16.msra.mxu0 %v874
    %1351 = vmatprep.subr.bf16.mxu0 0
    %1352 = vmatpush1.bf16.msra.mxu0 0
    %1353 = vmatprep.subr.bf16.mxu0 0
    %1354 = vmatpush1.bf16.msra.mxu0 0
    %1355 = vmatprep.subr.bf16.mxu0 0
    %1356 = vmatpush1.bf16.msra.mxu0 0
    %1357 = vmatprep.subr.bf16.mxu0 0
    %1358 = vmatpush1.bf16.msra.mxu0 0
    %1359 = vmatprep.subr.bf16.mxu0 0
    %1360 = vmatpush1.bf16.msra.mxu0 0
    %1361 = vmatprep.subr.bf16.mxu0 0
    %1362 = vmatpush1.bf16.msra.mxu0 0
    %1363 = vmatprep.subr.bf16.mxu0 0
    %1364 = vmatpush1.bf16.msra.mxu0 0
    %1365 = vmatprep.subr.bf16.mxu0 0
    %1366 = vmatpush1.bf16.msra.mxu0 0
    %1367 = vmatprep.mubr.bf16.mxu0 0
    %1368 = vmatmul.mubr.bf16.gmra.mrb[0].mxu0 %v1323
    %v1369 = vpop.f32.mrb[0].mxu0
    %v1370 = vadd.f32 0.0, %v1369
    %v1371 = vpop.f32.mrb[0].mxu0
    %v1372 = vadd.f32 0.0, %v1371
    %v1373 = vpop.f32.mrb[0].mxu0
    %v1374 = vadd.f32 0.0, %v1373
    %v1375 = vpop.f32.mrb[0].mxu0
    %v1376 = vadd.f32 0.0, %v1375
    %1377 = vdwg.mxu0
    %1378 = vmatprep.subr.bf16.mxu0 %v849
    %1379 = vmatpush1.bf16.msra.mxu0 %v848
    %1380 = vmatprep.subr.bf16.mxu0 %v853
    %1381 = vmatpush1.bf16.msra.mxu0 %v852
    %1382 = vmatprep.subr.bf16.mxu0 %v857
    %1383 = vmatpush1.bf16.msra.mxu0 %v856
    %1384 = vmatprep.subr.bf16.mxu0 %v861
    %1385 = vmatpush1.bf16.msra.mxu0 %v860
    %1386 = vmatprep.subr.bf16.mxu0 %v865
    %1387 = vmatpush1.bf16.msra.mxu0 %v864
    %1388 = vmatprep.subr.bf16.mxu0 %v869
    %1389 = vmatpush1.bf16.msra.mxu0 %v868
    %1390 = vmatprep.subr.bf16.mxu0 %v873
    %1391 = vmatpush1.bf16.msra.mxu0 %v872
    %1392 = vmatprep.subr.bf16.mxu0 %v877
    %1393 = vmatpush1.bf16.msra.mxu0 %v876
    %1394 = vmatprep.subr.bf16.mxu0 0
    %1395 = vmatpush1.bf16.msra.mxu0 0
    %1396 = vmatprep.subr.bf16.mxu0 0
    %1397 = vmatpush1.bf16.msra.mxu0 0
    %1398 = vmatprep.subr.bf16.mxu0 0
    %1399 = vmatpush1.bf16.msra.mxu0 0
    %1400 = vmatprep.subr.bf16.mxu0 0
    %1401 = vmatpush1.bf16.msra.mxu0 0
    %1402 = vmatprep.subr.bf16.mxu0 0
    %1403 = vmatpush1.bf16.msra.mxu0 0
    %1404 = vmatprep.subr.bf16.mxu0 0
    %1405 = vmatpush1.bf16.msra.mxu0 0
    %1406 = vmatprep.subr.bf16.mxu0 0
    %1407 = vmatpush1.bf16.msra.mxu0 0
    %1408 = vmatprep.subr.bf16.mxu0 0
    %1409 = vmatpush1.bf16.msra.mxu0 0
    %1410 = vmatprep.mubr.bf16.mxu0 0
    %1411 = vmatmul.mubr.bf16.gmra.mrb[0].mxu0 %v1323
    %v1412 = vpop.f32.mrb[0].mxu0
    %v1413 = vadd.f32 0.0, %v1412
    %v1414 = vpop.f32.mrb[0].mxu0
    %v1415 = vadd.f32 0.0, %v1414
    %v1416 = vpop.f32.mrb[0].mxu0
    %v1417 = vadd.f32 0.0, %v1416
    %v1418 = vpop.f32.mrb[0].mxu0
    %v1419 = vadd.f32 0.0, %v1418
    %1420 = vdwg.mxu0
    %v1421 = vadd.f32 %v1327, %v1370
    %v1422 = vadd.f32 %v1328, %v1372
    %v1423 = vadd.f32 %v1329, %v1413
    %v1424 = vadd.f32 %v1330, %v1415
    %v1425 = vadd.f32 %v1331, %v1374
    %v1426 = vadd.f32 %v1332, %v1376
    %v1427 = vadd.f32 %v1333, %v1417
    %v1428 = vadd.f32 %v1334, %v1419
    %v1429 = vmul.f32 %v1421, 0.5
    %v1430 = vmul.f32 %v1425, 0.5
    %v1431 = vtanh.pop %v1429
    %v1432 = vtanh.pop %v1430
    %v1433 = vmul.f32 %v1431, 0.5
    %v1434 = vmul.f32 %v1432, 0.5
    %v1435 = vadd.f32 %v1433, 0.5
    %v1436 = vadd.f32 %v1434, 0.5
    %v1437 = vmul.f32 %v1422, 0.5
    %v1438 = vmul.f32 %v1426, 0.5
    %v1439 = vtanh.pop %v1437
    %v1440 = vtanh.pop %v1438
    %v1441 = vmul.f32 %v1439, 0.5
    %v1442 = vmul.f32 %v1440, 0.5
    %v1443 = vadd.f32 %v1441, 0.5
    %v1444 = vadd.f32 %v1442, 0.5
    %v1445 = vtanh.pop %v1423
    %v1446 = vtanh.pop %v1427
    %v1447 = vmul.f32 %v1424, 0.5
    %v1448 = vmul.f32 %v1428, 0.5
    %v1449 = vtanh.pop %v1447
    %v1450 = vtanh.pop %v1448
    %v1451 = vmul.f32 %v1449, 0.5
    %v1452 = vmul.f32 %v1450, 0.5
    %v1453 = vadd.f32 %v1451, 0.5
    %v1454 = vadd.f32 %v1452, 0.5
    %v1455 = vmul.f32 %v1443, %v1317
    %v1456 = vmul.f32 %v1444, %v1318
    %v1457 = vmul.f32 %v1435, %v1445
    %v1458 = vmul.f32 %v1436, %v1446
    %v1459 = vadd.f32 %v1455, %v1457
    %v1460 = vadd.f32 %v1456, %v1458
    %v1461 = vtanh.pop %v1459
    %v1462 = vtanh.pop %v1460
    %v1463 = vmul.f32 %v1453, %v1461
    %v1464 = vmul.f32 %v1454, %v1462
    %v1465 = vpack.c.bf16 %v1464, %v1463
    %s1466 = scalar_lea.vmem [#allocation2], 24
    %1467 = vst [vmem:[%s1466] sm:$0xff] %v1465
    %s1468 = scalar_lea.vmem [#allocation3], 256
    %v1469 = vld [vmem:[%s1468] sm:$0xff]
    %v1470 = vld [vmem:[%s1468 + $0x8] sm:$0xff]
    %v1471 = vld [vmem:[%s1468 + $0x10] sm:$0xff]
    %v1472 = vld [vmem:[%s1468 + $0x18] sm:$0xff]
    %v1473 = vld [vmem:[%s1468 + $0x20] sm:$0xff]
    %v1474 = vld [vmem:[%s1468 + $0x28] sm:$0xff]
    %v1475 = vld [vmem:[%s1468 + $0x30] sm:$0xff]
    %v1476 = vld [vmem:[%s1468 + $0x38] sm:$0xff]
    %1477 = vmatprep.subr.bf16.mxu0 %v847
    %1478 = vmatpush1.bf16.msra.mxu0 %v846
    %1479 = vmatprep.subr.bf16.mxu0 %v851
    %1480 = vmatpush1.bf16.msra.mxu0 %v850
    %1481 = vmatprep.subr.bf16.mxu0 %v855
    %1482 = vmatpush1.bf16.msra.mxu0 %v854
    %1483 = vmatprep.subr.bf16.mxu0 %v859
    %1484 = vmatpush1.bf16.msra.mxu0 %v858
    %1485 = vmatprep.subr.bf16.mxu0 %v863
    %1486 = vmatpush1.bf16.msra.mxu0 %v862
    %1487 = vmatprep.subr.bf16.mxu0 %v867
    %1488 = vmatpush1.bf16.msra.mxu0 %v866
    %1489 = vmatprep.subr.bf16.mxu0 %v871
    %1490 = vmatpush1.bf16.msra.mxu0 %v870
    %1491 = vmatprep.subr.bf16.mxu0 %v875
    %1492 = vmatpush1.bf16.msra.mxu0 %v874
    %1493 = vmatprep.subr.bf16.mxu0 0
    %1494 = vmatpush1.bf16.msra.mxu0 0
    %1495 = vmatprep.subr.bf16.mxu0 0
    %1496 = vmatpush1.bf16.msra.mxu0 0
    %1497 = vmatprep.subr.bf16.mxu0 0
    %1498 = vmatpush1.bf16.msra.mxu0 0
    %1499 = vmatprep.subr.bf16.mxu0 0
    %1500 = vmatpush1.bf16.msra.mxu0 0
    %1501 = vmatprep.subr.bf16.mxu0 0
    %1502 = vmatpush1.bf16.msra.mxu0 0
    %1503 = vmatprep.subr.bf16.mxu0 0
    %1504 = vmatpush1.bf16.msra.mxu0 0
    %1505 = vmatprep.subr.bf16.mxu0 0
    %1506 = vmatpush1.bf16.msra.mxu0 0
    %1507 = vmatprep.subr.bf16.mxu0 0
    %1508 = vmatpush1.bf16.msra.mxu0 0
    %1509 = vmatprep.mubr.bf16.mxu0 0
    %1510 = vmatmul.mubr.bf16.gmra.mrb[0].mxu0 %v1465
    %v1511 = vpop.f32.mrb[0].mxu0
    %v1512 = vadd.f32 0.0, %v1511
    %v1513 = vpop.f32.mrb[0].mxu0
    %v1514 = vadd.f32 0.0, %v1513
    %v1515 = vpop.f32.mrb[0].mxu0
    %v1516 = vadd.f32 0.0, %v1515
    %v1517 = vpop.f32.mrb[0].mxu0
    %v1518 = vadd.f32 0.0, %v1517
    %1519 = vdwg.mxu0
    %1520 = vmatprep.subr.bf16.mxu0 %v849
    %1521 = vmatpush1.bf16.msra.mxu0 %v848
    %1522 = vmatprep.subr.bf16.mxu0 %v853
    %1523 = vmatpush1.bf16.msra.mxu0 %v852
    %1524 = vmatprep.subr.bf16.mxu0 %v857
    %1525 = vmatpush1.bf16.msra.mxu0 %v856
    %1526 = vmatprep.subr.bf16.mxu0 %v861
    %1527 = vmatpush1.bf16.msra.mxu0 %v860
    %1528 = vmatprep.subr.bf16.mxu0 %v865
    %1529 = vmatpush1.bf16.msra.mxu0 %v864
    %1530 = vmatprep.subr.bf16.mxu0 %v869
    %1531 = vmatpush1.bf16.msra.mxu0 %v868
    %1532 = vmatprep.subr.bf16.mxu0 %v873
    %1533 = vmatpush1.bf16.msra.mxu0 %v872
    %1534 = vmatprep.subr.bf16.mxu0 %v877
    %1535 = vmatpush1.bf16.msra.mxu0 %v876
    %1536 = vmatprep.subr.bf16.mxu0 0
    %1537 = vmatpush1.bf16.msra.mxu0 0
    %1538 = vmatprep.subr.bf16.mxu0 0
    %1539 = vmatpush1.bf16.msra.mxu0 0
    %1540 = vmatprep.subr.bf16.mxu0 0
    %1541 = vmatpush1.bf16.msra.mxu0 0
    %1542 = vmatprep.subr.bf16.mxu0 0
    %1543 = vmatpush1.bf16.msra.mxu0 0
    %1544 = vmatprep.subr.bf16.mxu0 0
    %1545 = vmatpush1.bf16.msra.mxu0 0
    %1546 = vmatprep.subr.bf16.mxu0 0
    %1547 = vmatpush1.bf16.msra.mxu0 0
    %1548 = vmatprep.subr.bf16.mxu0 0
    %1549 = vmatpush1.bf16.msra.mxu0 0
    %1550 = vmatprep.subr.bf16.mxu0 0
    %1551 = vmatpush1.bf16.msra.mxu0 0
    %1552 = vmatprep.mubr.bf16.mxu0 0
    %1553 = vmatmul.mubr.bf16.gmra.mrb[0].mxu0 %v1465
    %v1554 = vpop.f32.mrb[0].mxu0
    %v1555 = vadd.f32 0.0, %v1554
    %v1556 = vpop.f32.mrb[0].mxu0
    %v1557 = vadd.f32 0.0, %v1556
    %v1558 = vpop.f32.mrb[0].mxu0
    %v1559 = vadd.f32 0.0, %v1558
    %v1560 = vpop.f32.mrb[0].mxu0
    %v1561 = vadd.f32 0.0, %v1560
    %1562 = vdwg.mxu0
    %v1563 = vadd.f32 %v1469, %v1512
    %v1564 = vadd.f32 %v1470, %v1514
    %v1565 = vadd.f32 %v1471, %v1555
    %v1566 = vadd.f32 %v1472, %v1557
    %v1567 = vadd.f32 %v1473, %v1516
    %v1568 = vadd.f32 %v1474, %v1518
    %v1569 = vadd.f32 %v1475, %v1559
    %v1570 = vadd.f32 %v1476, %v1561
    %v1571 = vmul.f32 %v1563, 0.5
    %v1572 = vmul.f32 %v1567, 0.5
    %v1573 = vtanh.pop %v1571
    %v1574 = vtanh.pop %v1572
    %v1575 = vmul.f32 %v1573, 0.5
    %v1576 = vmul.f32 %v1574, 0.5
    %v1577 = vadd.f32 %v1575, 0.5
    %v1578 = vadd.f32 %v1576, 0.5
    %v1579 = vmul.f32 %v1564, 0.5
    %v1580 = vmul.f32 %v1568, 0.5
    %v1581 = vtanh.pop %v1579
    %v1582 = vtanh.pop %v1580
    %v1583 = vmul.f32 %v1581, 0.5
    %v1584 = vmul.f32 %v1582, 0.5
    %v1585 = vadd.f32 %v1583, 0.5
    %v1586 = vadd.f32 %v1584, 0.5
    %v1587 = vtanh.pop %v1565
    %v1588 = vtanh.pop %v1569
    %v1589 = vmul.f32 %v1566, 0.5
    %v1590 = vmul.f32 %v1570, 0.5
    %v1591 = vtanh.pop %v1589
    %v1592 = vtanh.pop %v1590
    %v1593 = vmul.f32 %v1591, 0.5
    %v1594 = vmul.f32 %v1592, 0.5
    %v1595 = vadd.f32 %v1593, 0.5
    %v1596 = vadd.f32 %v1594, 0.5
    %v1597 = vmul.f32 %v1585, %v1459
    %v1598 = vmul.f32 %v1586, %v1460
    %v1599 = vmul.f32 %v1577, %v1587
    %v1600 = vmul.f32 %v1578, %v1588
    %v1601 = vadd.f32 %v1597, %v1599
    %v1602 = vadd.f32 %v1598, %v1600
    %v1603 = vtanh.pop %v1601
    %v1604 = vtanh.pop %v1602
    %v1605 = vmul.f32 %v1595, %v1603
    %v1606 = vmul.f32 %v1596, %v1604
    %v1607 = vpack.c.bf16 %v1606, %v1605
    %s1608 = scalar_lea.vmem [#allocation2], 32
    %1609 = vst [vmem:[%s1608] sm:$0xff] %v1607
    %s1610 = scalar_lea.vmem [#allocation3], 320
    %v1611 = vld [vmem:[%s1610] sm:$0xff]
    %v1612 = vld [vmem:[%s1610 + $0x8] sm:$0xff]
    %v1613 = vld [vmem:[%s1610 + $0x10] sm:$0xff]
    %v1614 = vld [vmem:[%s1610 + $0x18] sm:$0xff]
    %v1615 = vld [vmem:[%s1610 + $0x20] sm:$0xff]
    %v1616 = vld [vmem:[%s1610 + $0x28] sm:$0xff]
    %v1617 = vld [vmem:[%s1610 + $0x30] sm:$0xff]
    %v1618 = vld [vmem:[%s1610 + $0x38] sm:$0xff]
    %1619 = vmatprep.subr.bf16.mxu0 %v847
    %1620 = vmatpush1.bf16.msra.mxu0 %v846
    %1621 = vmatprep.subr.bf16.mxu0 %v851
    %1622 = vmatpush1.bf16.msra.mxu0 %v850
    %1623 = vmatprep.subr.bf16.mxu0 %v855
    %1624 = vmatpush1.bf16.msra.mxu0 %v854
    %1625 = vmatprep.subr.bf16.mxu0 %v859
    %1626 = vmatpush1.bf16.msra.mxu0 %v858
    %1627 = vmatprep.subr.bf16.mxu0 %v863
    %1628 = vmatpush1.bf16.msra.mxu0 %v862
    %1629 = vmatprep.subr.bf16.mxu0 %v867
    %1630 = vmatpush1.bf16.msra.mxu0 %v866
    %1631 = vmatprep.subr.bf16.mxu0 %v871
    %1632 = vmatpush1.bf16.msra.mxu0 %v870
    %1633 = vmatprep.subr.bf16.mxu0 %v875
    %1634 = vmatpush1.bf16.msra.mxu0 %v874
    %1635 = vmatprep.subr.bf16.mxu0 0
    %1636 = vmatpush1.bf16.msra.mxu0 0
    %1637 = vmatprep.subr.bf16.mxu0 0
    %1638 = vmatpush1.bf16.msra.mxu0 0
    %1639 = vmatprep.subr.bf16.mxu0 0
    %1640 = vmatpush1.bf16.msra.mxu0 0
    %1641 = vmatprep.subr.bf16.mxu0 0
    %1642 = vmatpush1.bf16.msra.mxu0 0
    %1643 = vmatprep.subr.bf16.mxu0 0
    %1644 = vmatpush1.bf16.msra.mxu0 0
    %1645 = vmatprep.subr.bf16.mxu0 0
    %1646 = vmatpush1.bf16.msra.mxu0 0
    %1647 = vmatprep.subr.bf16.mxu0 0
    %1648 = vmatpush1.bf16.msra.mxu0 0
    %1649 = vmatprep.subr.bf16.mxu0 0
    %1650 = vmatpush1.bf16.msra.mxu0 0
    %1651 = vmatprep.mubr.bf16.mxu0 0
    %1652 = vmatmul.mubr.bf16.gmra.mrb[0].mxu0 %v1607
    %v1653 = vpop.f32.mrb[0].mxu0
    %v1654 = vadd.f32 0.0, %v1653
    %v1655 = vpop.f32.mrb[0].mxu0
    %v1656 = vadd.f32 0.0, %v1655
    %v1657 = vpop.f32.mrb[0].mxu0
    %v1658 = vadd.f32 0.0, %v1657
    %v1659 = vpop.f32.mrb[0].mxu0
    %v1660 = vadd.f32 0.0, %v1659
    %1661 = vdwg.mxu0
    %1662 = vmatprep.subr.bf16.mxu0 %v849
    %1663 = vmatpush1.bf16.msra.mxu0 %v848
    %1664 = vmatprep.subr.bf16.mxu0 %v853
    %1665 = vmatpush1.bf16.msra.mxu0 %v852
    %1666 = vmatprep.subr.bf16.mxu0 %v857
    %1667 = vmatpush1.bf16.msra.mxu0 %v856
    %1668 = vmatprep.subr.bf16.mxu0 %v861
    %1669 = vmatpush1.bf16.msra.mxu0 %v860
    %1670 = vmatprep.subr.bf16.mxu0 %v865
    %1671 = vmatpush1.bf16.msra.mxu0 %v864
    %1672 = vmatprep.subr.bf16.mxu0 %v869
    %1673 = vmatpush1.bf16.msra.mxu0 %v868
    %1674 = vmatprep.subr.bf16.mxu0 %v873
    %1675 = vmatpush1.bf16.msra.mxu0 %v872
    %1676 = vmatprep.subr.bf16.mxu0 %v877
    %1677 = vmatpush1.bf16.msra.mxu0 %v876
    %1678 = vmatprep.subr.bf16.mxu0 0
    %1679 = vmatpush1.bf16.msra.mxu0 0
    %1680 = vmatprep.subr.bf16.mxu0 0
    %1681 = vmatpush1.bf16.msra.mxu0 0
    %1682 = vmatprep.subr.bf16.mxu0 0
    %1683 = vmatpush1.bf16.msra.mxu0 0
    %1684 = vmatprep.subr.bf16.mxu0 0
    %1685 = vmatpush1.bf16.msra.mxu0 0
    %1686 = vmatprep.subr.bf16.mxu0 0
    %1687 = vmatpush1.bf16.msra.mxu0 0
    %1688 = vmatprep.subr.bf16.mxu0 0
    %1689 = vmatpush1.bf16.msra.mxu0 0
    %1690 = vmatprep.subr.bf16.mxu0 0
    %1691 = vmatpush1.bf16.msra.mxu0 0
    %1692 = vmatprep.subr.bf16.mxu0 0
    %1693 = vmatpush1.bf16.msra.mxu0 0
    %1694 = vmatprep.mubr.bf16.mxu0 0
    %1695 = vmatmul.mubr.bf16.gmra.mrb[0].mxu0 %v1607
    %v1696 = vpop.f32.mrb[0].mxu0
    %v1697 = vadd.f32 0.0, %v1696
    %v1698 = vpop.f32.mrb[0].mxu0
    %v1699 = vadd.f32 0.0, %v1698
    %v1700 = vpop.f32.mrb[0].mxu0
    %v1701 = vadd.f32 0.0, %v1700
    %v1702 = vpop.f32.mrb[0].mxu0
    %v1703 = vadd.f32 0.0, %v1702
    %1704 = vdwg.mxu0
    %v1705 = vadd.f32 %v1611, %v1654
    %v1706 = vadd.f32 %v1612, %v1656
    %v1707 = vadd.f32 %v1613, %v1697
    %v1708 = vadd.f32 %v1614, %v1699
    %v1709 = vadd.f32 %v1615, %v1658
    %v1710 = vadd.f32 %v1616, %v1660
    %v1711 = vadd.f32 %v1617, %v1701
    %v1712 = vadd.f32 %v1618, %v1703
    %v1713 = vmul.f32 %v1705, 0.5
    %v1714 = vmul.f32 %v1709, 0.5
    %v1715 = vtanh.pop %v1713
    %v1716 = vtanh.pop %v1714
    %v1717 = vmul.f32 %v1715, 0.5
    %v1718 = vmul.f32 %v1716, 0.5
    %v1719 = vadd.f32 %v1717, 0.5
    %v1720 = vadd.f32 %v1718, 0.5
    %v1721 = vmul.f32 %v1706, 0.5
    %v1722 = vmul.f32 %v1710, 0.5
    %v1723 = vtanh.pop %v1721
    %v1724 = vtanh.pop %v1722
    %v1725 = vmul.f32 %v1723, 0.5
    %v1726 = vmul.f32 %v1724, 0.5
    %v1727 = vadd.f32 %v1725, 0.5
    %v1728 = vadd.f32 %v1726, 0.5
    %v1729 = vtanh.pop %v1707
    %v1730 = vtanh.pop %v1711
    %v1731 = vmul.f32 %v1708, 0.5
    %v1732 = vmul.f32 %v1712, 0.5
    %v1733 = vtanh.pop %v1731
    %v1734 = vtanh.pop %v1732
    %v1735 = vmul.f32 %v1733, 0.5
    %v1736 = vmul.f32 %v1734, 0.5
    %v1737 = vadd.f32 %v1735, 0.5
    %v1738 = vadd.f32 %v1736, 0.5
    %v1739 = vmul.f32 %v1727, %v1601
    %v1740 = vmul.f32 %v1728, %v1602
    %v1741 = vmul.f32 %v1719, %v1729
    %v1742 = vmul.f32 %v1720, %v1730
    %v1743 = vadd.f32 %v1739, %v1741
    %v1744 = vadd.f32 %v1740, %v1742
    %v1745 = vtanh.pop %v1743
    %v1746 = vtanh.pop %v1744
    %v1747 = vmul.f32 %v1737, %v1745
    %v1748 = vmul.f32 %v1738, %v1746
    %v1749 = vpack.c.bf16 %v1748, %v1747
    %s1750 = scalar_lea.vmem [#allocation2], 40
    %1751 = vst [vmem:[%s1750] sm:$0xff] %v1749
    %s1752 = scalar_lea.vmem [#allocation3], 384
    %v1753 = vld [vmem:[%s1752] sm:$0xff]
    %v1754 = vld [vmem:[%s1752 + $0x8] sm:$0xff]
    %v1755 = vld [vmem:[%s1752 + $0x10] sm:$0xff]
    %v1756 = vld [vmem:[%s1752 + $0x18] sm:$0xff]
    %v1757 = vld [vmem:[%s1752 + $0x20] sm:$0xff]
    %v1758 = vld [vmem:[%s1752 + $0x28] sm:$0xff]
    %v1759 = vld [vmem:[%s1752 + $0x30] sm:$0xff]
    %v1760 = vld [vmem:[%s1752 + $0x38] sm:$0xff]
    %1761 = vmatprep.subr.bf16.mxu0 %v847
    %1762 = vmatpush1.bf16.msra.mxu0 %v846
    %1763 = vmatprep.subr.bf16.mxu0 %v851
    %1764 = vmatpush1.bf16.msra.mxu0 %v850
    %1765 = vmatprep.subr.bf16.mxu0 %v855
    %1766 = vmatpush1.bf16.msra.mxu0 %v854
    %1767 = vmatprep.subr.bf16.mxu0 %v859
    %1768 = vmatpush1.bf16.msra.mxu0 %v858
    %1769 = vmatprep.subr.bf16.mxu0 %v863
    %1770 = vmatpush1.bf16.msra.mxu0 %v862
    %1771 = vmatprep.subr.bf16.mxu0 %v867
    %1772 = vmatpush1.bf16.msra.mxu0 %v866
    %1773 = vmatprep.subr.bf16.mxu0 %v871
    %1774 = vmatpush1.bf16.msra.mxu0 %v870
    %1775 = vmatprep.subr.bf16.mxu0 %v875
    %1776 = vmatpush1.bf16.msra.mxu0 %v874
    %1777 = vmatprep.subr.bf16.mxu0 0
    %1778 = vmatpush1.bf16.msra.mxu0 0
    %1779 = vmatprep.subr.bf16.mxu0 0
    %1780 = vmatpush1.bf16.msra.mxu0 0
    %1781 = vmatprep.subr.bf16.mxu0 0
    %1782 = vmatpush1.bf16.msra.mxu0 0
    %1783 = vmatprep.subr.bf16.mxu0 0
    %1784 = vmatpush1.bf16.msra.mxu0 0
    %1785 = vmatprep.subr.bf16.mxu0 0
    %1786 = vmatpush1.bf16.msra.mxu0 0
    %1787 = vmatprep.subr.bf16.mxu0 0
    %1788 = vmatpush1.bf16.msra.mxu0 0
    %1789 = vmatprep.subr.bf16.mxu0 0
    %1790 = vmatpush1.bf16.msra.mxu0 0
    %1791 = vmatprep.subr.bf16.mxu0 0
    %1792 = vmatpush1.bf16.msra.mxu0 0
    %1793 = vmatprep.mubr.bf16.mxu0 0
    %1794 = vmatmul.mubr.bf16.gmra.mrb[0].mxu0 %v1749
    %v1795 = vpop.f32.mrb[0].mxu0
    %v1796 = vadd.f32 0.0, %v1795
    %v1797 = vpop.f32.mrb[0].mxu0
    %v1798 = vadd.f32 0.0, %v1797
    %v1799 = vpop.f32.mrb[0].mxu0
    %v1800 = vadd.f32 0.0, %v1799
    %v1801 = vpop.f32.mrb[0].mxu0
    %v1802 = vadd.f32 0.0, %v1801
    %1803 = vdwg.mxu0
    %1804 = vmatprep.subr.bf16.mxu0 %v849
    %1805 = vmatpush1.bf16.msra.mxu0 %v848
    %1806 = vmatprep.subr.bf16.mxu0 %v853
    %1807 = vmatpush1.bf16.msra.mxu0 %v852
    %1808 = vmatprep.subr.bf16.mxu0 %v857
    %1809 = vmatpush1.bf16.msra.mxu0 %v856
    %1810 = vmatprep.subr.bf16.mxu0 %v861
    %1811 = vmatpush1.bf16.msra.mxu0 %v860
    %1812 = vmatprep.subr.bf16.mxu0 %v865
    %1813 = vmatpush1.bf16.msra.mxu0 %v864
    %1814 = vmatprep.subr.bf16.mxu0 %v869
    %1815 = vmatpush1.bf16.msra.mxu0 %v868
    %1816 = vmatprep.subr.bf16.mxu0 %v873
    %1817 = vmatpush1.bf16.msra.mxu0 %v872
    %1818 = vmatprep.subr.bf16.mxu0 %v877
    %1819 = vmatpush1.bf16.msra.mxu0 %v876
    %1820 = vmatprep.subr.bf16.mxu0 0
    %1821 = vmatpush1.bf16.msra.mxu0 0
    %1822 = vmatprep.subr.bf16.mxu0 0
    %1823 = vmatpush1.bf16.msra.mxu0 0
    %1824 = vmatprep.subr.bf16.mxu0 0
    %1825 = vmatpush1.bf16.msra.mxu0 0
    %1826 = vmatprep.subr.bf16.mxu0 0
    %1827 = vmatpush1.bf16.msra.mxu0 0
    %1828 = vmatprep.subr.bf16.mxu0 0
    %1829 = vmatpush1.bf16.msra.mxu0 0
    %1830 = vmatprep.subr.bf16.mxu0 0
    %1831 = vmatpush1.bf16.msra.mxu0 0
    %1832 = vmatprep.subr.bf16.mxu0 0
    %1833 = vmatpush1.bf16.msra.mxu0 0
    %1834 = vmatprep.subr.bf16.mxu0 0
    %1835 = vmatpush1.bf16.msra.mxu0 0
    %1836 = vmatprep.mubr.bf16.mxu0 0
    %1837 = vmatmul.mubr.bf16.gmra.mrb[0].mxu0 %v1749
    %v1838 = vpop.f32.mrb[0].mxu0
    %v1839 = vadd.f32 0.0, %v1838
    %v1840 = vpop.f32.mrb[0].mxu0
    %v1841 = vadd.f32 0.0, %v1840
    %v1842 = vpop.f32.mrb[0].mxu0
    %v1843 = vadd.f32 0.0, %v1842
    %v1844 = vpop.f32.mrb[0].mxu0
    %v1845 = vadd.f32 0.0, %v1844
    %1846 = vdwg.mxu0
    %v1847 = vadd.f32 %v1753, %v1796
    %v1848 = vadd.f32 %v1754, %v1798
    %v1849 = vadd.f32 %v1755, %v1839
    %v1850 = vadd.f32 %v1756, %v1841
    %v1851 = vadd.f32 %v1757, %v1800
    %v1852 = vadd.f32 %v1758, %v1802
    %v1853 = vadd.f32 %v1759, %v1843
    %v1854 = vadd.f32 %v1760, %v1845
    %v1855 = vmul.f32 %v1847, 0.5
    %v1856 = vmul.f32 %v1851, 0.5
    %v1857 = vtanh.pop %v1855
    %v1858 = vtanh.pop %v1856
    %v1859 = vmul.f32 %v1857, 0.5
    %v1860 = vmul.f32 %v1858, 0.5
    %v1861 = vadd.f32 %v1859, 0.5
    %v1862 = vadd.f32 %v1860, 0.5
    %v1863 = vmul.f32 %v1848, 0.5
    %v1864 = vmul.f32 %v1852, 0.5
    %v1865 = vtanh.pop %v1863
    %v1866 = vtanh.pop %v1864
    %v1867 = vmul.f32 %v1865, 0.5
    %v1868 = vmul.f32 %v1866, 0.5
    %v1869 = vadd.f32 %v1867, 0.5
    %v1870 = vadd.f32 %v1868, 0.5
    %v1871 = vtanh.pop %v1849
    %v1872 = vtanh.pop %v1853
    %v1873 = vmul.f32 %v1850, 0.5
    %v1874 = vmul.f32 %v1854, 0.5
    %v1875 = vtanh.pop %v1873
    %v1876 = vtanh.pop %v1874
    %v1877 = vmul.f32 %v1875, 0.5
    %v1878 = vmul.f32 %v1876, 0.5
    %v1879 = vadd.f32 %v1877, 0.5
    %v1880 = vadd.f32 %v1878, 0.5
    %v1881 = vmul.f32 %v1869, %v1743
    %v1882 = vmul.f32 %v1870, %v1744
    %v1883 = vmul.f32 %v1861, %v1871
    %v1884 = vmul.f32 %v1862, %v1872
    %v1885 = vadd.f32 %v1881, %v1883
    %v1886 = vadd.f32 %v1882, %v1884
    %v1887 = vtanh.pop %v1885
    %v1888 = vtanh.pop %v1886
    %v1889 = vmul.f32 %v1879, %v1887
    %v1890 = vmul.f32 %v1880, %v1888
    %v1891 = vpack.c.bf16 %v1890, %v1889
    %s1892 = scalar_lea.vmem [#allocation2], 48
    %1893 = vst [vmem:[%s1892] sm:$0xff] %v1891
    %s1894 = scalar_lea.vmem [#allocation3], 448
    %v1895 = vld [vmem:[%s1894] sm:$0xff]
    %v1896 = vld [vmem:[%s1894 + $0x8] sm:$0xff]
    %v1897 = vld [vmem:[%s1894 + $0x10] sm:$0xff]
    %v1898 = vld [vmem:[%s1894 + $0x18] sm:$0xff]
    %v1899 = vld [vmem:[%s1894 + $0x20] sm:$0xff]
    %v1900 = vld [vmem:[%s1894 + $0x28] sm:$0xff]
    %v1901 = vld [vmem:[%s1894 + $0x30] sm:$0xff]
    %v1902 = vld [vmem:[%s1894 + $0x38] sm:$0xff]
    %1903 = vmatprep.subr.bf16.mxu0 %v847
    %1904 = vmatpush1.bf16.msra.mxu0 %v846
    %1905 = vmatprep.subr.bf16.mxu0 %v851
    %1906 = vmatpush1.bf16.msra.mxu0 %v850
    %1907 = vmatprep.subr.bf16.mxu0 %v855
    %1908 = vmatpush1.bf16.msra.mxu0 %v854
    %1909 = vmatprep.subr.bf16.mxu0 %v859
    %1910 = vmatpush1.bf16.msra.mxu0 %v858
    %1911 = vmatprep.subr.bf16.mxu0 %v863
    %1912 = vmatpush1.bf16.msra.mxu0 %v862
    %1913 = vmatprep.subr.bf16.mxu0 %v867
    %1914 = vmatpush1.bf16.msra.mxu0 %v866
    %1915 = vmatprep.subr.bf16.mxu0 %v871
    %1916 = vmatpush1.bf16.msra.mxu0 %v870
    %1917 = vmatprep.subr.bf16.mxu0 %v875
    %1918 = vmatpush1.bf16.msra.mxu0 %v874
    %1919 = vmatprep.subr.bf16.mxu0 0
    %1920 = vmatpush1.bf16.msra.mxu0 0
    %1921 = vmatprep.subr.bf16.mxu0 0
    %1922 = vmatpush1.bf16.msra.mxu0 0
    %1923 = vmatprep.subr.bf16.mxu0 0
    %1924 = vmatpush1.bf16.msra.mxu0 0
    %1925 = vmatprep.subr.bf16.mxu0 0
    %1926 = vmatpush1.bf16.msra.mxu0 0
    %1927 = vmatprep.subr.bf16.mxu0 0
    %1928 = vmatpush1.bf16.msra.mxu0 0
    %1929 = vmatprep.subr.bf16.mxu0 0
    %1930 = vmatpush1.bf16.msra.mxu0 0
    %1931 = vmatprep.subr.bf16.mxu0 0
    %1932 = vmatpush1.bf16.msra.mxu0 0
    %1933 = vmatprep.subr.bf16.mxu0 0
    %1934 = vmatpush1.bf16.msra.mxu0 0
    %1935 = vmatprep.mubr.bf16.mxu0 0
    %1936 = vmatmul.mubr.bf16.gmra.mrb[0].mxu0 %v1891
    %v1937 = vpop.f32.mrb[0].mxu0
    %v1938 = vadd.f32 0.0, %v1937
    %v1939 = vpop.f32.mrb[0].mxu0
    %v1940 = vadd.f32 0.0, %v1939
    %v1941 = vpop.f32.mrb[0].mxu0
    %v1942 = vadd.f32 0.0, %v1941
    %v1943 = vpop.f32.mrb[0].mxu0
    %v1944 = vadd.f32 0.0, %v1943
    %1945 = vdwg.mxu0
    %1946 = vmatprep.subr.bf16.mxu0 %v849
    %1947 = vmatpush1.bf16.msra.mxu0 %v848
    %1948 = vmatprep.subr.bf16.mxu0 %v853
    %1949 = vmatpush1.bf16.msra.mxu0 %v852
    %1950 = vmatprep.subr.bf16.mxu0 %v857
    %1951 = vmatpush1.bf16.msra.mxu0 %v856
    %1952 = vmatprep.subr.bf16.mxu0 %v861
    %1953 = vmatpush1.bf16.msra.mxu0 %v860
    %1954 = vmatprep.subr.bf16.mxu0 %v865
    %1955 = vmatpush1.bf16.msra.mxu0 %v864
    %1956 = vmatprep.subr.bf16.mxu0 %v869
    %1957 = vmatpush1.bf16.msra.mxu0 %v868
    %1958 = vmatprep.subr.bf16.mxu0 %v873
    %1959 = vmatpush1.bf16.msra.mxu0 %v872
    %1960 = vmatprep.subr.bf16.mxu0 %v877
    %1961 = vmatpush1.bf16.msra.mxu0 %v876
    %1962 = vmatprep.subr.bf16.mxu0 0
    %1963 = vmatpush1.bf16.msra.mxu0 0
    %1964 = vmatprep.subr.bf16.mxu0 0
    %1965 = vmatpush1.bf16.msra.mxu0 0
    %1966 = vmatprep.subr.bf16.mxu0 0
    %1967 = vmatpush1.bf16.msra.mxu0 0
    %1968 = vmatprep.subr.bf16.mxu0 0
    %1969 = vmatpush1.bf16.msra.mxu0 0
    %1970 = vmatprep.subr.bf16.mxu0 0
    %1971 = vmatpush1.bf16.msra.mxu0 0
    %1972 = vmatprep.subr.bf16.mxu0 0
    %1973 = vmatpush1.bf16.msra.mxu0 0
    %1974 = vmatprep.subr.bf16.mxu0 0
    %1975 = vmatpush1.bf16.msra.mxu0 0
    %1976 = vmatprep.subr.bf16.mxu0 0
    %1977 = vmatpush1.bf16.msra.mxu0 0
    %1978 = vmatprep.mubr.bf16.mxu0 0
    %1979 = vmatmul.mubr.bf16.gmra.mrb[0].mxu0 %v1891
    %v1980 = vpop.f32.mrb[0].mxu0
    %v1981 = vadd.f32 0.0, %v1980
    %v1982 = vpop.f32.mrb[0].mxu0
    %v1983 = vadd.f32 0.0, %v1982
    %v1984 = vpop.f32.mrb[0].mxu0
    %v1985 = vadd.f32 0.0, %v1984
    %v1986 = vpop.f32.mrb[0].mxu0
    %v1987 = vadd.f32 0.0, %v1986
    %1988 = vdwg.mxu0
    %v1989 = vadd.f32 %v1895, %v1938
    %v1990 = vadd.f32 %v1896, %v1940
    %v1991 = vadd.f32 %v1897, %v1981
    %v1992 = vadd.f32 %v1898, %v1983
    %v1993 = vadd.f32 %v1899, %v1942
    %v1994 = vadd.f32 %v1900, %v1944
    %v1995 = vadd.f32 %v1901, %v1985
    %v1996 = vadd.f32 %v1902, %v1987
    %v1997 = vmul.f32 %v1989, 0.5
    %v1998 = vmul.f32 %v1993, 0.5
    %v1999 = vtanh.pop %v1997
    %v2000 = vtanh.pop %v1998
    %v2001 = vmul.f32 %v1999, 0.5
    %v2002 = vmul.f32 %v2000, 0.5
    %v2003 = vadd.f32 %v2001, 0.5
    %v2004 = vadd.f32 %v2002, 0.5
    %v2005 = vmul.f32 %v1990, 0.5
    %v2006 = vmul.f32 %v1994, 0.5
    %v2007 = vtanh.pop %v2005
    %v2008 = vtanh.pop %v2006
    %v2009 = vmul.f32 %v2007, 0.5
    %v2010 = vmul.f32 %v2008, 0.5
    %v2011 = vadd.f32 %v2009, 0.5
    %v2012 = vadd.f32 %v2010, 0.5
    %v2013 = vtanh.pop %v1991
    %v2014 = vtanh.pop %v1995
    %v2015 = vmul.f32 %v1992, 0.5
    %v2016 = vmul.f32 %v1996, 0.5
    %v2017 = vtanh.pop %v2015
    %v2018 = vtanh.pop %v2016
    %v2019 = vmul.f32 %v2017, 0.5
    %v2020 = vmul.f32 %v2018, 0.5
    %v2021 = vadd.f32 %v2019, 0.5
    %v2022 = vadd.f32 %v2020, 0.5
    %v2023 = vmul.f32 %v2011, %v1885
    %v2024 = vmul.f32 %v2012, %v1886
    %v2025 = vmul.f32 %v2003, %v2013
    %v2026 = vmul.f32 %v2004, %v2014
    %v2027 = vadd.f32 %v2023, %v2025
    %v2028 = vadd.f32 %v2024, %v2026
    %v2029 = vtanh.pop %v2027
    %v2030 = vtanh.pop %v2028
    %v2031 = vmul.f32 %v2021, %v2029
    %v2032 = vmul.f32 %v2022, %v2030
    %v2033 = vpack.c.bf16 %v2032, %v2031
    %s2034 = scalar_lea.vmem [#allocation2], 56
    %2035 = vst [vmem:[%s2034] sm:$0xff] %v2033
    %2036 = vst [vmem:[#allocation16] sm:$0xff] %v2031
    %2037 = vst [vmem:[#allocation16 + $0x8] sm:$0xff] %v2032
    %2038 = vst [vmem:[#allocation18] sm:$0xff] %v2027
    %2039 = vst [vmem:[#allocation18 + $0x8] sm:$0xff] %v2028
    %v2040 = vld [vmem:[#allocation2] sm:$0xff]
    %v2041 = vld [vmem:[#allocation2 + $0x8] sm:$0xff]
    %v2042 = vld [vmem:[#allocation2 + $0x10] sm:$0xff]
    %v2043 = vld [vmem:[#allocation2 + $0x18] sm:$0xff]
    %v2044 = vld [vmem:[#allocation2 + $0x20] sm:$0xff]
    %v2045 = vld [vmem:[#allocation2 + $0x28] sm:$0xff]
    %v2046 = vld [vmem:[#allocation2 + $0x30] sm:$0xff]
    %v2047 = vld [vmem:[#allocation2 + $0x38] sm:$0xff]
    %s2048 = scalar_lea.vmem [#allocation7], 256
    %v2049 = vld [vmem:[%s2048] sm:$0xff]
    %v2050 = vld [vmem:[%s2048 + $0x8] sm:$0xff]
    %v2051 = vld [vmem:[%s2048 + $0x10] sm:$0xff]
    %v2052 = vld [vmem:[%s2048 + $0x18] sm:$0xff]
    %v2053 = vld [vmem:[%s2048 + $0x20] sm:$0xff]
    %v2054 = vld [vmem:[%s2048 + $0x28] sm:$0xff]
    %v2055 = vld [vmem:[%s2048 + $0x30] sm:$0xff]
    %v2056 = vld [vmem:[%s2048 + $0x38] sm:$0xff]
    %v2057 = vld [vmem:[%s2048 + $0x40] sm:$0xff]
    %v2058 = vld [vmem:[%s2048 + $0x48] sm:$0xff]
    %v2059 = vld [vmem:[%s2048 + $0x50] sm:$0xff]
    %v2060 = vld [vmem:[%s2048 + $0x58] sm:$0xff]
    %v2061 = vld [vmem:[%s2048 + $0x60] sm:$0xff]
    %v2062 = vld [vmem:[%s2048 + $0x68] sm:$0xff]
    %v2063 = vld [vmem:[%s2048 + $0x70] sm:$0xff]
    %v2064 = vld [vmem:[%s2048 + $0x78] sm:$0xff]
    %v2065 = vld [vmem:[%s2048 + $0x80] sm:$0xff]
    %v2066 = vld [vmem:[%s2048 + $0x88] sm:$0xff]
    %v2067 = vld [vmem:[%s2048 + $0x90] sm:$0xff]
    %v2068 = vld [vmem:[%s2048 + $0x98] sm:$0xff]
    %v2069 = vld [vmem:[%s2048 + $0xa0] sm:$0xff]
    %v2070 = vld [vmem:[%s2048 + $0xa8] sm:$0xff]
    %v2071 = vld [vmem:[%s2048 + $0xb0] sm:$0xff]
    %v2072 = vld [vmem:[%s2048 + $0xb8] sm:$0xff]
    %v2073 = vld [vmem:[%s2048 + $0xc0] sm:$0xff]
    %v2074 = vld [vmem:[%s2048 + $0xc8] sm:$0xff]
    %v2075 = vld [vmem:[%s2048 + $0xd0] sm:$0xff]
    %v2076 = vld [vmem:[%s2048 + $0xd8] sm:$0xff]
    %v2077 = vld [vmem:[%s2048 + $0xe0] sm:$0xff]
    %v2078 = vld [vmem:[%s2048 + $0xe8] sm:$0xff]
    %v2079 = vld [vmem:[%s2048 + $0xf0] sm:$0xff]
    %v2080 = vld [vmem:[%s2048 + $0xf8] sm:$0xff]
    %s2081 = scalar_lea.vmem %s3, 4
    %v2082 = vld [vmem:[%s2081] sm:$0xf]
    %v2084 = vlaneseq
    %v2085 = vshrl.u32 %v2084, 7
    %v2086 = vsub.s32 0, %v2085
    %v2087 = vrot.slane %v2082, %v2086
    %v2088 = vlaneseq
    %v2089 = vshrl.u32 %v2088, 7
    %v2090 = vsub.s32 1, %v2089
    %v2091 = vrot.slane %v2082, %v2090
    %v2092 = vlaneseq
    %v2093 = vshrl.u32 %v2092, 7
    %v2094 = vsub.s32 2, %v2093
    %v2095 = vrot.slane %v2082, %v2094
    %v2096 = vlaneseq
    %v2097 = vshrl.u32 %v2096, 7
    %v2098 = vsub.s32 3, %v2097
    %v2099 = vrot.slane %v2082, %v2098
    %v2136 = vunpack.c.l.b16 %v2049
    %v2137 = vunpack.c.h.b16 %v2049
    %v2138 = vunpack.c.l.b16 %v2050
    %v2139 = vunpack.c.h.b16 %v2050
    %v2140 = vunpack.c.l.b16 %v2051
    %v2141 = vunpack.c.h.b16 %v2051
    %v2142 = vunpack.c.l.b16 %v2052
    %v2143 = vunpack.c.h.b16 %v2052
    %v2144 = vunpack.c.l.b16 %v2053
    %v2145 = vunpack.c.h.b16 %v2053
    %v2146 = vunpack.c.l.b16 %v2054
    %v2147 = vunpack.c.h.b16 %v2054
    %v2148 = vunpack.c.l.b16 %v2055
    %v2149 = vunpack.c.h.b16 %v2055
    %v2150 = vunpack.c.l.b16 %v2056
    %v2151 = vunpack.c.h.b16 %v2056
    %v2152 = vunpack.c.l.b16 %v2057
    %v2153 = vunpack.c.h.b16 %v2057
    %v2154 = vunpack.c.l.b16 %v2058
    %v2155 = vunpack.c.h.b16 %v2058
    %v2156 = vunpack.c.l.b16 %v2059
    %v2157 = vunpack.c.h.b16 %v2059
    %v2158 = vunpack.c.l.b16 %v2060
    %v2159 = vunpack.c.h.b16 %v2060
    %v2160 = vunpack.c.l.b16 %v2061
    %v2161 = vunpack.c.h.b16 %v2061
    %v2162 = vunpack.c.l.b16 %v2062
    %v2163 = vunpack.c.h.b16 %v2062
    %v2164 = vunpack.c.l.b16 %v2063
    %v2165 = vunpack.c.h.b16 %v2063
    %v2166 = vunpack.c.l.b16 %v2064
    %v2167 = vunpack.c.h.b16 %v2064
    %v2168 = vunpack.c.l.b16 %v2065
    %v2169 = vunpack.c.h.b16 %v2065
    %v2170 = vunpack.c.l.b16 %v2066
    %v2171 = vunpack.c.h.b16 %v2066
    %v2172 = vunpack.c.l.b16 %v2067
    %v2173 = vunpack.c.h.b16 %v2067
    %v2174 = vunpack.c.l.b16 %v2068
    %v2175 = vunpack.c.h.b16 %v2068
    %v2176 = vunpack.c.l.b16 %v2069
    %v2177 = vunpack.c.h.b16 %v2069
    %v2178 = vunpack.c.l.b16 %v2070
    %v2179 = vunpack.c.h.b16 %v2070
    %v2180 = vunpack.c.l.b16 %v2071
    %v2181 = vunpack.c.h.b16 %v2071
    %v2182 = vunpack.c.l.b16 %v2072
    %v2183 = vunpack.c.h.b16 %v2072
    %v2184 = vunpack.c.l.b16 %v2073
    %v2185 = vunpack.c.h.b16 %v2073
    %v2186 = vunpack.c.l.b16 %v2074
    %v2187 = vunpack.c.h.b16 %v2074
    %v2188 = vunpack.c.l.b16 %v2075
    %v2189 = vunpack.c.h.b16 %v2075
    %v2190 = vunpack.c.l.b16 %v2076
    %v2191 = vunpack.c.h.b16 %v2076
    %v2192 = vunpack.c.l.b16 %v2077
    %v2193 = vunpack.c.h.b16 %v2077
    %v2194 = vunpack.c.l.b16 %v2078
    %v2195 = vunpack.c.h.b16 %v2078
    %v2196 = vunpack.c.l.b16 %v2079
    %v2197 = vunpack.c.h.b16 %v2079
    %v2198 = vunpack.c.l.b16 %v2080
    %v2199 = vunpack.c.h.b16 %v2080
    %v2200 = vpack.c.b16 %v2140, %v2136
    %v2201 = vpack.c.b16 %v2141, %v2137
    %v2202 = vpack.c.b16 %v2142, %v2138
    %v2203 = vpack.c.b16 %v2143, %v2139
    %v2204 = vpack.c.b16 %v2148, %v2144
    %v2205 = vpack.c.b16 %v2149, %v2145
    %v2206 = vpack.c.b16 %v2150, %v2146
    %v2207 = vpack.c.b16 %v2151, %v2147
    %v2208 = vpack.c.b16 %v2156, %v2152
    %v2209 = vpack.c.b16 %v2157, %v2153
    %v2210 = vpack.c.b16 %v2158, %v2154
    %v2211 = vpack.c.b16 %v2159, %v2155
    %v2212 = vpack.c.b16 %v2164, %v2160
    %v2213 = vpack.c.b16 %v2165, %v2161
    %v2214 = vpack.c.b16 %v2166, %v2162
    %v2215 = vpack.c.b16 %v2167, %v2163
    %v2216 = vpack.c.b16 %v2172, %v2168
    %v2217 = vpack.c.b16 %v2173, %v2169
    %v2218 = vpack.c.b16 %v2174, %v2170
    %v2219 = vpack.c.b16 %v2175, %v2171
    %v2220 = vpack.c.b16 %v2180, %v2176
    %v2221 = vpack.c.b16 %v2181, %v2177
    %v2222 = vpack.c.b16 %v2182, %v2178
    %v2223 = vpack.c.b16 %v2183, %v2179
    %v2224 = vpack.c.b16 %v2188, %v2184
    %v2225 = vpack.c.b16 %v2189, %v2185
    %v2226 = vpack.c.b16 %v2190, %v2186
    %v2227 = vpack.c.b16 %v2191, %v2187
    %v2228 = vpack.c.b16 %v2196, %v2192
    %v2229 = vpack.c.b16 %v2197, %v2193
    %v2230 = vpack.c.b16 %v2198, %v2194
    %v2231 = vpack.c.b16 %v2199, %v2195
    %2264 = vmatprep.subr.bf16.mxu0 %v2201
    %2265 = vmatpush1.bf16.msra.mxu0 %v2200
    %2266 = vmatprep.subr.bf16.mxu0 %v2205
    %2267 = vmatpush1.bf16.msra.mxu0 %v2204
    %2268 = vmatprep.subr.bf16.mxu0 %v2209
    %2269 = vmatpush1.bf16.msra.mxu0 %v2208
    %2270 = vmatprep.subr.bf16.mxu0 %v2213
    %2271 = vmatpush1.bf16.msra.mxu0 %v2212
    %2272 = vmatprep.subr.bf16.mxu0 %v2217
    %2273 = vmatpush1.bf16.msra.mxu0 %v2216
    %2274 = vmatprep.subr.bf16.mxu0 %v2221
    %2275 = vmatpush1.bf16.msra.mxu0 %v2220
    %2276 = vmatprep.subr.bf16.mxu0 %v2225
    %2277 = vmatpush1.bf16.msra.mxu0 %v2224
    %2278 = vmatprep.subr.bf16.mxu0 %v2229
    %2279 = vmatpush1.bf16.msra.mxu0 %v2228
    %2280 = vmatprep.subr.bf16.mxu0 0
    %2281 = vmatpush1.bf16.msra.mxu0 0
    %2282 = vmatprep.subr.bf16.mxu0 0
    %2283 = vmatpush1.bf16.msra.mxu0 0
    %2284 = vmatprep.subr.bf16.mxu0 0
    %2285 = vmatpush1.bf16.msra.mxu0 0
    %2286 = vmatprep.subr.bf16.mxu0 0
    %2287 = vmatpush1.bf16.msra.mxu0 0
    %2288 = vmatprep.subr.bf16.mxu0 0
    %2289 = vmatpush1.bf16.msra.mxu0 0
    %2290 = vmatprep.subr.bf16.mxu0 0
    %2291 = vmatpush1.bf16.msra.mxu0 0
    %2292 = vmatprep.subr.bf16.mxu0 0
    %2293 = vmatpush1.bf16.msra.mxu0 0
    %2294 = vmatprep.subr.bf16.mxu0 0
    %2295 = vmatpush1.bf16.msra.mxu0 0
    %2296 = vmatprep.mubr.bf16.mxu0 0
    %2297 = vmatmul.mubr.bf16.gmra.mrb[0].mxu0 %v2040
    %v2298 = vpop.f32.mrb[0].mxu0
    %v2299 = vadd.f32 %v2087, %v2298
    %v2300 = vpop.f32.mrb[0].mxu0
    %v2301 = vadd.f32 %v2091, %v2300
    %v2302 = vpop.f32.mrb[0].mxu0
    %v2303 = vadd.f32 %v2087, %v2302
    %v2304 = vpop.f32.mrb[0].mxu0
    %v2305 = vadd.f32 %v2091, %v2304
    %2306 = vmatprep.mubr.bf16.mxu0 0
    %2307 = vmatmul.mubr.bf16.gmra.mrb[0].mxu0 %v2041
    %v2308 = vpop.f32.mrb[0].mxu0
    %v2309 = vadd.f32 %v2087, %v2308
    %v2310 = vpop.f32.mrb[0].mxu0
    %v2311 = vadd.f32 %v2091, %v2310
    %v2312 = vpop.f32.mrb[0].mxu0
    %v2313 = vadd.f32 %v2087, %v2312
    %v2314 = vpop.f32.mrb[0].mxu0
    %v2315 = vadd.f32 %v2091, %v2314
    %2316 = vmatprep.mubr.bf16.mxu0 0
    %2317 = vmatmul.mubr.bf16.gmra.mrb[0].mxu0 %v2042
    %v2318 = vpop.f32.mrb[0].mxu0
    %v2319 = vadd.f32 %v2087, %v2318
    %v2320 = vpop.f32.mrb[0].mxu0
    %v2321 = vadd.f32 %v2091, %v2320
    %v2322 = vpop.f32.mrb[0].mxu0
    %v2323 = vadd.f32 %v2087, %v2322
    %v2324 = vpop.f32.mrb[0].mxu0
    %v2325 = vadd.f32 %v2091, %v2324
    %2326 = vmatprep.mubr.bf16.mxu0 0
    %2327 = vmatmul.mubr.bf16.gmra.mrb[0].mxu0 %v2043
    %v2328 = vpop.f32.mrb[0].mxu0
    %v2329 = vadd.f32 %v2087, %v2328
    %v2330 = vpop.f32.mrb[0].mxu0
    %v2331 = vadd.f32 %v2091, %v2330
    %v2332 = vpop.f32.mrb[0].mxu0
    %v2333 = vadd.f32 %v2087, %v2332
    %v2334 = vpop.f32.mrb[0].mxu0
    %v2335 = vadd.f32 %v2091, %v2334
    %2336 = vmatprep.mubr.bf16.mxu0 0
    %2337 = vmatmul.mubr.bf16.gmra.mrb[0].mxu0 %v2044
    %v2338 = vpop.f32.mrb[0].mxu0
    %v2339 = vadd.f32 %v2087, %v2338
    %v2340 = vpop.f32.mrb[0].mxu0
    %v2341 = vadd.f32 %v2091, %v2340
    %v2342 = vpop.f32.mrb[0].mxu0
    %v2343 = vadd.f32 %v2087, %v2342
    %v2344 = vpop.f32.mrb[0].mxu0
    %v2345 = vadd.f32 %v2091, %v2344
    %2346 = vmatprep.mubr.bf16.mxu0 0
    %2347 = vmatmul.mubr.bf16.gmra.mrb[0].mxu0 %v2045
    %v2348 = vpop.f32.mrb[0].mxu0
    %v2349 = vadd.f32 %v2087, %v2348
    %v2350 = vpop.f32.mrb[0].mxu0
    %v2351 = vadd.f32 %v2091, %v2350
    %v2352 = vpop.f32.mrb[0].mxu0
    %v2353 = vadd.f32 %v2087, %v2352
    %v2354 = vpop.f32.mrb[0].mxu0
    %v2355 = vadd.f32 %v2091, %v2354
    %2356 = vmatprep.mubr.bf16.mxu0 0
    %2357 = vmatmul.mubr.bf16.gmra.mrb[0].mxu0 %v2046
    %v2358 = vpop.f32.mrb[0].mxu0
    %v2359 = vadd.f32 %v2087, %v2358
    %v2360 = vpop.f32.mrb[0].mxu0
    %v2361 = vadd.f32 %v2091, %v2360
    %v2362 = vpop.f32.mrb[0].mxu0
    %v2363 = vadd.f32 %v2087, %v2362
    %v2364 = vpop.f32.mrb[0].mxu0
    %v2365 = vadd.f32 %v2091, %v2364
    %2366 = vmatprep.mubr.bf16.mxu0 0
    %2367 = vmatmul.mubr.bf16.gmra.mrb[0].mxu0 %v2047
    %v2368 = vpop.f32.mrb[0].mxu0
    %v2369 = vadd.f32 %v2087, %v2368
    %v2370 = vpop.f32.mrb[0].mxu0
    %v2371 = vadd.f32 %v2091, %v2370
    %v2372 = vpop.f32.mrb[0].mxu0
    %v2373 = vadd.f32 %v2087, %v2372
    %v2374 = vpop.f32.mrb[0].mxu0
    %v2375 = vadd.f32 %v2091, %v2374
    %2376 = vdwg.mxu0
    %2377 = vmatprep.subr.bf16.mxu0 %v2203
    %2378 = vmatpush1.bf16.msra.mxu0 %v2202
    %2379 = vmatprep.subr.bf16.mxu0 %v2207
    %2380 = vmatpush1.bf16.msra.mxu0 %v2206
    %2381 = vmatprep.subr.bf16.mxu0 %v2211
    %2382 = vmatpush1.bf16.msra.mxu0 %v2210
    %2383 = vmatprep.subr.bf16.mxu0 %v2215
    %2384 = vmatpush1.bf16.msra.mxu0 %v2214
    %2385 = vmatprep.subr.bf16.mxu0 %v2219
    %2386 = vmatpush1.bf16.msra.mxu0 %v2218
    %2387 = vmatprep.subr.bf16.mxu0 %v2223
    %2388 = vmatpush1.bf16.msra.mxu0 %v2222
    %2389 = vmatprep.subr.bf16.mxu0 %v2227
    %2390 = vmatpush1.bf16.msra.mxu0 %v2226
    %2391 = vmatprep.subr.bf16.mxu0 %v2231
    %2392 = vmatpush1.bf16.msra.mxu0 %v2230
    %2393 = vmatprep.subr.bf16.mxu0 0
    %2394 = vmatpush1.bf16.msra.mxu0 0
    %2395 = vmatprep.subr.bf16.mxu0 0
    %2396 = vmatpush1.bf16.msra.mxu0 0
    %2397 = vmatprep.subr.bf16.mxu0 0
    %2398 = vmatpush1.bf16.msra.mxu0 0
    %2399 = vmatprep.subr.bf16.mxu0 0
    %2400 = vmatpush1.bf16.msra.mxu0 0
    %2401 = vmatprep.subr.bf16.mxu0 0
    %2402 = vmatpush1.bf16.msra.mxu0 0
    %2403 = vmatprep.subr.bf16.mxu0 0
    %2404 = vmatpush1.bf16.msra.mxu0 0
    %2405 = vmatprep.subr.bf16.mxu0 0
    %2406 = vmatpush1.bf16.msra.mxu0 0
    %2407 = vmatprep.subr.bf16.mxu0 0
    %2408 = vmatpush1.bf16.msra.mxu0 0
    %2409 = vmatprep.mubr.bf16.mxu0 0
    %2410 = vmatmul.mubr.bf16.gmra.mrb[0].mxu0 %v2040
    %v2411 = vpop.f32.mrb[0].mxu0
    %v2412 = vadd.f32 %v2095, %v2411
    %v2413 = vpop.f32.mrb[0].mxu0
    %v2414 = vadd.f32 %v2099, %v2413
    %v2415 = vpop.f32.mrb[0].mxu0
    %v2416 = vadd.f32 %v2095, %v2415
    %v2417 = vpop.f32.mrb[0].mxu0
    %v2418 = vadd.f32 %v2099, %v2417
    %2419 = vmatprep.mubr.bf16.mxu0 0
    %2420 = vmatmul.mubr.bf16.gmra.mrb[0].mxu0 %v2041
    %v2421 = vpop.f32.mrb[0].mxu0
    %v2422 = vadd.f32 %v2095, %v2421
    %v2423 = vpop.f32.mrb[0].mxu0
    %v2424 = vadd.f32 %v2099, %v2423
    %v2425 = vpop.f32.mrb[0].mxu0
    %v2426 = vadd.f32 %v2095, %v2425
    %v2427 = vpop.f32.mrb[0].mxu0
    %v2428 = vadd.f32 %v2099, %v2427
    %2429 = vmatprep.mubr.bf16.mxu0 0
    %2430 = vmatmul.mubr.bf16.gmra.mrb[0].mxu0 %v2042
    %v2431 = vpop.f32.mrb[0].mxu0
    %v2432 = vadd.f32 %v2095, %v2431
    %v2433 = vpop.f32.mrb[0].mxu0
    %v2434 = vadd.f32 %v2099, %v2433
    %v2435 = vpop.f32.mrb[0].mxu0
    %v2436 = vadd.f32 %v2095, %v2435
    %v2437 = vpop.f32.mrb[0].mxu0
    %v2438 = vadd.f32 %v2099, %v2437
    %2439 = vmatprep.mubr.bf16.mxu0 0
    %2440 = vmatmul.mubr.bf16.gmra.mrb[0].mxu0 %v2043
    %v2441 = vpop.f32.mrb[0].mxu0
    %v2442 = vadd.f32 %v2095, %v2441
    %v2443 = vpop.f32.mrb[0].mxu0
    %v2444 = vadd.f32 %v2099, %v2443
    %v2445 = vpop.f32.mrb[0].mxu0
    %v2446 = vadd.f32 %v2095, %v2445
    %v2447 = vpop.f32.mrb[0].mxu0
    %v2448 = vadd.f32 %v2099, %v2447
    %2449 = vmatprep.mubr.bf16.mxu0 0
    %2450 = vmatmul.mubr.bf16.gmra.mrb[0].mxu0 %v2044
    %v2451 = vpop.f32.mrb[0].mxu0
    %v2452 = vadd.f32 %v2095, %v2451
    %v2453 = vpop.f32.mrb[0].mxu0
    %v2454 = vadd.f32 %v2099, %v2453
    %v2455 = vpop.f32.mrb[0].mxu0
    %v2456 = vadd.f32 %v2095, %v2455
    %v2457 = vpop.f32.mrb[0].mxu0
    %v2458 = vadd.f32 %v2099, %v2457
    %2459 = vmatprep.mubr.bf16.mxu0 0
    %2460 = vmatmul.mubr.bf16.gmra.mrb[0].mxu0 %v2045
    %v2461 = vpop.f32.mrb[0].mxu0
    %v2462 = vadd.f32 %v2095, %v2461
    %v2463 = vpop.f32.mrb[0].mxu0
    %v2464 = vadd.f32 %v2099, %v2463
    %v2465 = vpop.f32.mrb[0].mxu0
    %v2466 = vadd.f32 %v2095, %v2465
    %v2467 = vpop.f32.mrb[0].mxu0
    %v2468 = vadd.f32 %v2099, %v2467
    %2469 = vmatprep.mubr.bf16.mxu0 0
    %2470 = vmatmul.mubr.bf16.gmra.mrb[0].mxu0 %v2046
    %v2471 = vpop.f32.mrb[0].mxu0
    %v2472 = vadd.f32 %v2095, %v2471
    %v2473 = vpop.f32.mrb[0].mxu0
    %v2474 = vadd.f32 %v2099, %v2473
    %v2475 = vpop.f32.mrb[0].mxu0
    %v2476 = vadd.f32 %v2095, %v2475
    %v2477 = vpop.f32.mrb[0].mxu0
    %v2478 = vadd.f32 %v2099, %v2477
    %2479 = vmatprep.mubr.bf16.mxu0 0
    %2480 = vmatmul.mubr.bf16.gmra.mrb[0].mxu0 %v2047
    %v2481 = vpop.f32.mrb[0].mxu0
    %v2482 = vadd.f32 %v2095, %v2481
    %v2483 = vpop.f32.mrb[0].mxu0
    %v2484 = vadd.f32 %v2099, %v2483
    %v2485 = vpop.f32.mrb[0].mxu0
    %v2486 = vadd.f32 %v2095, %v2485
    %v2487 = vpop.f32.mrb[0].mxu0
    %v2488 = vadd.f32 %v2099, %v2487
    %2489 = vdwg.mxu0
    %2490 = vst [vmem:[#allocation3] sm:$0xff] %v2299
    %2491 = vst [vmem:[#allocation3 + $0x8] sm:$0xff] %v2301
    %2492 = vst [vmem:[#allocation3 + $0x10] sm:$0xff] %v2412
    %2493 = vst [vmem:[#allocation3 + $0x18] sm:$0xff] %v2414
    %2494 = vst [vmem:[#allocation3 + $0x20] sm:$0xff] %v2303
    %2495 = vst [vmem:[#allocation3 + $0x28] sm:$0xff] %v2305
    %2496 = vst [vmem:[#allocation3 + $0x30] sm:$0xff] %v2416
    %2497 = vst [vmem:[#allocation3 + $0x38] sm:$0xff] %v2418
    %2498 = vst [vmem:[#allocation3 + $0x40] sm:$0xff] %v2309
    %2499 = vst [vmem:[#allocation3 + $0x48] sm:$0xff] %v2311
    %2500 = vst [vmem:[#allocation3 + $0x50] sm:$0xff] %v2422
    %2501 = vst [vmem:[#allocation3 + $0x58] sm:$0xff] %v2424
    %2502 = vst [vmem:[#allocation3 + $0x60] sm:$0xff] %v2313
    %2503 = vst [vmem:[#allocation3 + $0x68] sm:$0xff] %v2315
    %2504 = vst [vmem:[#allocation3 + $0x70] sm:$0xff] %v2426
    %2505 = vst [vmem:[#allocation3 + $0x78] sm:$0xff] %v2428
    %2506 = vst [vmem:[#allocation3 + $0x80] sm:$0xff] %v2319
    %2507 = vst [vmem:[#allocation3 + $0x88] sm:$0xff] %v2321
    %2508 = vst [vmem:[#allocation3 + $0x90] sm:$0xff] %v2432
    %2509 = vst [vmem:[#allocation3 + $0x98] sm:$0xff] %v2434
    %2510 = vst [vmem:[#allocation3 + $0xa0] sm:$0xff] %v2323
    %2511 = vst [vmem:[#allocation3 + $0xa8] sm:$0xff] %v2325
    %2512 = vst [vmem:[#allocation3 + $0xb0] sm:$0xff] %v2436
    %2513 = vst [vmem:[#allocation3 + $0xb8] sm:$0xff] %v2438
    %2514 = vst [vmem:[#allocation3 + $0xc0] sm:$0xff] %v2329
    %2515 = vst [vmem:[#allocation3 + $0xc8] sm:$0xff] %v2331
    %2516 = vst [vmem:[#allocation3 + $0xd0] sm:$0xff] %v2442
    %2517 = vst [vmem:[#allocation3 + $0xd8] sm:$0xff] %v2444
    %2518 = vst [vmem:[#allocation3 + $0xe0] sm:$0xff] %v2333
    %2519 = vst [vmem:[#allocation3 + $0xe8] sm:$0xff] %v2335
    %2520 = vst [vmem:[#allocation3 + $0xf0] sm:$0xff] %v2446
    %2521 = vst [vmem:[#allocation3 + $0xf8] sm:$0xff] %v2448
    %2522 = vst [vmem:[#allocation3 + $0x100] sm:$0xff] %v2339
    %2523 = vst [vmem:[#allocation3 + $0x108] sm:$0xff] %v2341
    %2524 = vst [vmem:[#allocation3 + $0x110] sm:$0xff] %v2452
    %2525 = vst [vmem:[#allocation3 + $0x118] sm:$0xff] %v2454
    %2526 = vst [vmem:[#allocation3 + $0x120] sm:$0xff] %v2343
    %2527 = vst [vmem:[#allocation3 + $0x128] sm:$0xff] %v2345
    %2528 = vst [vmem:[#allocation3 + $0x130] sm:$0xff] %v2456
    %2529 = vst [vmem:[#allocation3 + $0x138] sm:$0xff] %v2458
    %2530 = vst [vmem:[#allocation3 + $0x140] sm:$0xff] %v2349
    %2531 = vst [vmem:[#allocation3 + $0x148] sm:$0xff] %v2351
    %2532 = vst [vmem:[#allocation3 + $0x150] sm:$0xff] %v2462
    %2533 = vst [vmem:[#allocation3 + $0x158] sm:$0xff] %v2464
    %2534 = vst [vmem:[#allocation3 + $0x160] sm:$0xff] %v2353
    %2535 = vst [vmem:[#allocation3 + $0x168] sm:$0xff] %v2355
    %2536 = vst [vmem:[#allocation3 + $0x170] sm:$0xff] %v2466
    %2537 = vst [vmem:[#allocation3 + $0x178] sm:$0xff] %v2468
    %2538 = vst [vmem:[#allocation3 + $0x180] sm:$0xff] %v2359
    %2539 = vst [vmem:[#allocation3 + $0x188] sm:$0xff] %v2361
    %2540 = vst [vmem:[#allocation3 + $0x190] sm:$0xff] %v2472
    %2541 = vst [vmem:[#allocation3 + $0x198] sm:$0xff] %v2474
    %2542 = vst [vmem:[#allocation3 + $0x1a0] sm:$0xff] %v2363
    %2543 = vst [vmem:[#allocation3 + $0x1a8] sm:$0xff] %v2365
    %2544 = vst [vmem:[#allocation3 + $0x1b0] sm:$0xff] %v2476
    %2545 = vst [vmem:[#allocation3 + $0x1b8] sm:$0xff] %v2478
    %2546 = vst [vmem:[#allocation3 + $0x1c0] sm:$0xff] %v2369
    %2547 = vst [vmem:[#allocation3 + $0x1c8] sm:$0xff] %v2371
    %2548 = vst [vmem:[#allocation3 + $0x1d0] sm:$0xff] %v2482
    %2549 = vst [vmem:[#allocation3 + $0x1d8] sm:$0xff] %v2484
    %2550 = vst [vmem:[#allocation3 + $0x1e0] sm:$0xff] %v2373
    %2551 = vst [vmem:[#allocation3 + $0x1e8] sm:$0xff] %v2375
    %2552 = vst [vmem:[#allocation3 + $0x1f0] sm:$0xff] %v2486
    %2553 = vst [vmem:[#allocation3 + $0x1f8] sm:$0xff] %v2488
    %s2554 = scalar_lea.vmem [#allocation9], 256
    %v2555 = vld [vmem:[%s2554] sm:$0xff]
    %v2556 = vld [vmem:[%s2554 + $0x8] sm:$0xff]
    %v2557 = vld [vmem:[%s2554 + $0x10] sm:$0xff]
    %v2558 = vld [vmem:[%s2554 + $0x18] sm:$0xff]
    %v2559 = vld [vmem:[%s2554 + $0x20] sm:$0xff]
    %v2560 = vld [vmem:[%s2554 + $0x28] sm:$0xff]
    %v2561 = vld [vmem:[%s2554 + $0x30] sm:$0xff]
    %v2562 = vld [vmem:[%s2554 + $0x38] sm:$0xff]
    %v2563 = vld [vmem:[%s2554 + $0x40] sm:$0xff]
    %v2564 = vld [vmem:[%s2554 + $0x48] sm:$0xff]
    %v2565 = vld [vmem:[%s2554 + $0x50] sm:$0xff]
    %v2566 = vld [vmem:[%s2554 + $0x58] sm:$0xff]
    %v2567 = vld [vmem:[%s2554 + $0x60] sm:$0xff]
    %v2568 = vld [vmem:[%s2554 + $0x68] sm:$0xff]
    %v2569 = vld [vmem:[%s2554 + $0x70] sm:$0xff]
    %v2570 = vld [vmem:[%s2554 + $0x78] sm:$0xff]
    %v2571 = vld [vmem:[%s2554 + $0x80] sm:$0xff]
    %v2572 = vld [vmem:[%s2554 + $0x88] sm:$0xff]
    %v2573 = vld [vmem:[%s2554 + $0x90] sm:$0xff]
    %v2574 = vld [vmem:[%s2554 + $0x98] sm:$0xff]
    %v2575 = vld [vmem:[%s2554 + $0xa0] sm:$0xff]
    %v2576 = vld [vmem:[%s2554 + $0xa8] sm:$0xff]
    %v2577 = vld [vmem:[%s2554 + $0xb0] sm:$0xff]
    %v2578 = vld [vmem:[%s2554 + $0xb8] sm:$0xff]
    %v2579 = vld [vmem:[%s2554 + $0xc0] sm:$0xff]
    %v2580 = vld [vmem:[%s2554 + $0xc8] sm:$0xff]
    %v2581 = vld [vmem:[%s2554 + $0xd0] sm:$0xff]
    %v2582 = vld [vmem:[%s2554 + $0xd8] sm:$0xff]
    %v2583 = vld [vmem:[%s2554 + $0xe0] sm:$0xff]
    %v2584 = vld [vmem:[%s2554 + $0xe8] sm:$0xff]
    %v2585 = vld [vmem:[%s2554 + $0xf0] sm:$0xff]
    %v2586 = vld [vmem:[%s2554 + $0xf8] sm:$0xff]
    %s2587 = scalar_lea.vmem [#allocation16], 16
    %v2588 = vld [vmem:[%s2587] sm:$0xff]
    %v2589 = vld [vmem:[%s2587 + $0x8] sm:$0xff]
    %s2590 = scalar_lea.vmem [#allocation18], 16
    %v2591 = vld [vmem:[%s2590] sm:$0xff]
    %v2592 = vld [vmem:[%s2590 + $0x8] sm:$0xff]
    %v2593 = vld [vmem:[#allocation3] sm:$0xff]
    %v2594 = vld [vmem:[#allocation3 + $0x8] sm:$0xff]
    %v2595 = vld [vmem:[#allocation3 + $0x10] sm:$0xff]
    %v2596 = vld [vmem:[#allocation3 + $0x18] sm:$0xff]
    %v2597 = vld [vmem:[#allocation3 + $0x20] sm:$0xff]
    %v2598 = vld [vmem:[#allocation3 + $0x28] sm:$0xff]
    %v2599 = vld [vmem:[#allocation3 + $0x30] sm:$0xff]
    %v2600 = vld [vmem:[#allocation3 + $0x38] sm:$0xff]
    %v2601 = vpack.c.bf16 %v2589, %v2588
    %v2634 = vunpack.c.l.b16 %v2555
    %v2635 = vunpack.c.h.b16 %v2555
    %v2636 = vunpack.c.l.b16 %v2556
    %v2637 = vunpack.c.h.b16 %v2556
    %v2638 = vunpack.c.l.b16 %v2557
    %v2639 = vunpack.c.h.b16 %v2557
    %v2640 = vunpack.c.l.b16 %v2558
    %v2641 = vunpack.c.h.b16 %v2558
    %v2642 = vunpack.c.l.b16 %v2559
    %v2643 = vunpack.c.h.b16 %v2559
    %v2644 = vunpack.c.l.b16 %v2560
    %v2645 = vunpack.c.h.b16 %v2560
    %v2646 = vunpack.c.l.b16 %v2561
    %v2647 = vunpack.c.h.b16 %v2561
    %v2648 = vunpack.c.l.b16 %v2562
    %v2649 = vunpack.c.h.b16 %v2562
    %v2650 = vunpack.c.l.b16 %v2563
    %v2651 = vunpack.c.h.b16 %v2563
    %v2652 = vunpack.c.l.b16 %v2564
    %v2653 = vunpack.c.h.b16 %v2564
    %v2654 = vunpack.c.l.b16 %v2565
    %v2655 = vunpack.c.h.b16 %v2565
    %v2656 = vunpack.c.l.b16 %v2566
    %v2657 = vunpack.c.h.b16 %v2566
    %v2658 = vunpack.c.l.b16 %v2567
    %v2659 = vunpack.c.h.b16 %v2567
    %v2660 = vunpack.c.l.b16 %v2568
    %v2661 = vunpack.c.h.b16 %v2568
    %v2662 = vunpack.c.l.b16 %v2569
    %v2663 = vunpack.c.h.b16 %v2569
    %v2664 = vunpack.c.l.b16 %v2570
    %v2665 = vunpack.c.h.b16 %v2570
    %v2666 = vunpack.c.l.b16 %v2571
    %v2667 = vunpack.c.h.b16 %v2571
    %v2668 = vunpack.c.l.b16 %v2572
    %v2669 = vunpack.c.h.b16 %v2572
    %v2670 = vunpack.c.l.b16 %v2573
    %v2671 = vunpack.c.h.b16 %v2573
    %v2672 = vunpack.c.l.b16 %v2574
    %v2673 = vunpack.c.h.b16 %v2574
    %v2674 = vunpack.c.l.b16 %v2575
    %v2675 = vunpack.c.h.b16 %v2575
    %v2676 = vunpack.c.l.b16 %v2576
    %v2677 = vunpack.c.h.b16 %v2576
    %v2678 = vunpack.c.l.b16 %v2577
    %v2679 = vunpack.c.h.b16 %v2577
    %v2680 = vunpack.c.l.b16 %v2578
    %v2681 = vunpack.c.h.b16 %v2578
    %v2682 = vunpack.c.l.b16 %v2579
    %v2683 = vunpack.c.h.b16 %v2579
    %v2684 = vunpack.c.l.b16 %v2580
    %v2685 = vunpack.c.h.b16 %v2580
    %v2686 = vunpack.c.l.b16 %v2581
    %v2687 = vunpack.c.h.b16 %v2581
    %v2688 = vunpack.c.l.b16 %v2582
    %v2689 = vunpack.c.h.b16 %v2582
    %v2690 = vunpack.c.l.b16 %v2583
    %v2691 = vunpack.c.h.b16 %v2583
    %v2692 = vunpack.c.l.b16 %v2584
    %v2693 = vunpack.c.h.b16 %v2584
    %v2694 = vunpack.c.l.b16 %v2585
    %v2695 = vunpack.c.h.b16 %v2585
    %v2696 = vunpack.c.l.b16 %v2586
    %v2697 = vunpack.c.h.b16 %v2586
    %v2698 = vpack.c.b16 %v2638, %v2634
    %v2699 = vpack.c.b16 %v2639, %v2635
    %v2700 = vpack.c.b16 %v2640, %v2636
    %v2701 = vpack.c.b16 %v2641, %v2637
    %v2702 = vpack.c.b16 %v2646, %v2642
    %v2703 = vpack.c.b16 %v2647, %v2643
    %v2704 = vpack.c.b16 %v2648, %v2644
    %v2705 = vpack.c.b16 %v2649, %v2645
    %v2706 = vpack.c.b16 %v2654, %v2650
    %v2707 = vpack.c.b16 %v2655, %v2651
    %v2708 = vpack.c.b16 %v2656, %v2652
    %v2709 = vpack.c.b16 %v2657, %v2653
    %v2710 = vpack.c.b16 %v2662, %v2658
    %v2711 = vpack.c.b16 %v2663, %v2659
    %v2712 = vpack.c.b16 %v2664, %v2660
    %v2713 = vpack.c.b16 %v2665, %v2661
    %v2714 = vpack.c.b16 %v2670, %v2666
    %v2715 = vpack.c.b16 %v2671, %v2667
    %v2716 = vpack.c.b16 %v2672, %v2668
    %v2717 = vpack.c.b16 %v2673, %v2669
    %v2718 = vpack.c.b16 %v2678, %v2674
    %v2719 = vpack.c.b16 %v2679, %v2675
    %v2720 = vpack.c.b16 %v2680, %v2676
    %v2721 = vpack.c.b16 %v2681, %v2677
    %v2722 = vpack.c.b16 %v2686, %v2682
    %v2723 = vpack.c.b16 %v2687, %v2683
    %v2724 = vpack.c.b16 %v2688, %v2684
    %v2725 = vpack.c.b16 %v2689, %v2685
    %v2726 = vpack.c.b16 %v2694, %v2690
    %v2727 = vpack.c.b16 %v2695, %v2691
    %v2728 = vpack.c.b16 %v2696, %v2692
    %v2729 = vpack.c.b16 %v2697, %v2693
    %2762 = vmatprep.subr.bf16.mxu0 %v2699
    %2763 = vmatpush1.bf16.msra.mxu0 %v2698
    %2764 = vmatprep.subr.bf16.mxu0 %v2703
    %2765 = vmatpush1.bf16.msra.mxu0 %v2702
    %2766 = vmatprep.subr.bf16.mxu0 %v2707
    %2767 = vmatpush1.bf16.msra.mxu0 %v2706
    %2768 = vmatprep.subr.bf16.mxu0 %v2711
    %2769 = vmatpush1.bf16.msra.mxu0 %v2710
    %2770 = vmatprep.subr.bf16.mxu0 %v2715
    %2771 = vmatpush1.bf16.msra.mxu0 %v2714
    %2772 = vmatprep.subr.bf16.mxu0 %v2719
    %2773 = vmatpush1.bf16.msra.mxu0 %v2718
    %2774 = vmatprep.subr.bf16.mxu0 %v2723
    %2775 = vmatpush1.bf16.msra.mxu0 %v2722
    %2776 = vmatprep.subr.bf16.mxu0 %v2727
    %2777 = vmatpush1.bf16.msra.mxu0 %v2726
    %2778 = vmatprep.subr.bf16.mxu0 0
    %2779 = vmatpush1.bf16.msra.mxu0 0
    %2780 = vmatprep.subr.bf16.mxu0 0
    %2781 = vmatpush1.bf16.msra.mxu0 0
    %2782 = vmatprep.subr.bf16.mxu0 0
    %2783 = vmatpush1.bf16.msra.mxu0 0
    %2784 = vmatprep.subr.bf16.mxu0 0
    %2785 = vmatpush1.bf16.msra.mxu0 0
    %2786 = vmatprep.subr.bf16.mxu0 0
    %2787 = vmatpush1.bf16.msra.mxu0 0
    %2788 = vmatprep.subr.bf16.mxu0 0
    %2789 = vmatpush1.bf16.msra.mxu0 0
    %2790 = vmatprep.subr.bf16.mxu0 0
    %2791 = vmatpush1.bf16.msra.mxu0 0
    %2792 = vmatprep.subr.bf16.mxu0 0
    %2793 = vmatpush1.bf16.msra.mxu0 0
    %2794 = vmatprep.mubr.bf16.mxu0 0
    %2795 = vmatmul.mubr.bf16.gmra.mrb[0].mxu0 %v2601
    %v2796 = vpop.f32.mrb[0].mxu0
    %v2797 = vadd.f32 0.0, %v2796
    %v2798 = vpop.f32.mrb[0].mxu0
    %v2799 = vadd.f32 0.0, %v2798
    %v2800 = vpop.f32.mrb[0].mxu0
    %v2801 = vadd.f32 0.0, %v2800
    %v2802 = vpop.f32.mrb[0].mxu0
    %v2803 = vadd.f32 0.0, %v2802
    %2804 = vdwg.mxu0
    %2805 = vmatprep.subr.bf16.mxu0 %v2701
    %2806 = vmatpush1.bf16.msra.mxu0 %v2700
    %2807 = vmatprep.subr.bf16.mxu0 %v2705
    %2808 = vmatpush1.bf16.msra.mxu0 %v2704
    %2809 = vmatprep.subr.bf16.mxu0 %v2709
    %2810 = vmatpush1.bf16.msra.mxu0 %v2708
    %2811 = vmatprep.subr.bf16.mxu0 %v2713
    %2812 = vmatpush1.bf16.msra.mxu0 %v2712
    %2813 = vmatprep.subr.bf16.mxu0 %v2717
    %2814 = vmatpush1.bf16.msra.mxu0 %v2716
    %2815 = vmatprep.subr.bf16.mxu0 %v2721
    %2816 = vmatpush1.bf16.msra.mxu0 %v2720
    %2817 = vmatprep.subr.bf16.mxu0 %v2725
    %2818 = vmatpush1.bf16.msra.mxu0 %v2724
    %2819 = vmatprep.subr.bf16.mxu0 %v2729
    %2820 = vmatpush1.bf16.msra.mxu0 %v2728
    %2821 = vmatprep.subr.bf16.mxu0 0
    %2822 = vmatpush1.bf16.msra.mxu0 0
    %2823 = vmatprep.subr.bf16.mxu0 0
    %2824 = vmatpush1.bf16.msra.mxu0 0
    %2825 = vmatprep.subr.bf16.mxu0 0
    %2826 = vmatpush1.bf16.msra.mxu0 0
    %2827 = vmatprep.subr.bf16.mxu0 0
    %2828 = vmatpush1.bf16.msra.mxu0 0
    %2829 = vmatprep.subr.bf16.mxu0 0
    %2830 = vmatpush1.bf16.msra.mxu0 0
    %2831 = vmatprep.subr.bf16.mxu0 0
    %2832 = vmatpush1.bf16.msra.mxu0 0
    %2833 = vmatprep.subr.bf16.mxu0 0
    %2834 = vmatpush1.bf16.msra.mxu0 0
    %2835 = vmatprep.subr.bf16.mxu0 0
    %2836 = vmatpush1.bf16.msra.mxu0 0
    %2837 = vmatprep.mubr.bf16.mxu0 0
    %2838 = vmatmul.mubr.bf16.gmra.mrb[0].mxu0 %v2601
    %v2839 = vpop.f32.mrb[0].mxu0
    %v2840 = vadd.f32 0.0, %v2839
    %v2841 = vpop.f32.mrb[0].mxu0
    %v2842 = vadd.f32 0.0, %v2841
    %v2843 = vpop.f32.mrb[0].mxu0
    %v2844 = vadd.f32 0.0, %v2843
    %v2845 = vpop.f32.mrb[0].mxu0
    %v2846 = vadd.f32 0.0, %v2845
    %2847 = vdwg.mxu0
    %v2848 = vadd.f32 %v2593, %v2797
    %v2849 = vadd.f32 %v2594, %v2799
    %v2850 = vadd.f32 %v2595, %v2840
    %v2851 = vadd.f32 %v2596, %v2842
    %v2852 = vadd.f32 %v2597, %v2801
    %v2853 = vadd.f32 %v2598, %v2803
    %v2854 = vadd.f32 %v2599, %v2844
    %v2855 = vadd.f32 %v2600, %v2846
    %v2856 = vmul.f32 %v2848, 0.5
    %v2857 = vmul.f32 %v2852, 0.5
    %v2858 = vtanh.pop %v2856
    %v2859 = vtanh.pop %v2857
    %v2860 = vmul.f32 %v2858, 0.5
    %v2861 = vmul.f32 %v2859, 0.5
    %v2862 = vadd.f32 %v2860, 0.5
    %v2863 = vadd.f32 %v2861, 0.5
    %v2864 = vmul.f32 %v2849, 0.5
    %v2865 = vmul.f32 %v2853, 0.5
    %v2866 = vtanh.pop %v2864
    %v2867 = vtanh.pop %v2865
    %v2868 = vmul.f32 %v2866, 0.5
    %v2869 = vmul.f32 %v2867, 0.5
    %v2870 = vadd.f32 %v2868, 0.5
    %v2871 = vadd.f32 %v2869, 0.5
    %v2872 = vtanh.pop %v2850
    %v2873 = vtanh.pop %v2854
    %v2874 = vmul.f32 %v2851, 0.5
    %v2875 = vmul.f32 %v2855, 0.5
    %v2876 = vtanh.pop %v2874
    %v2877 = vtanh.pop %v2875
    %v2878 = vmul.f32 %v2876, 0.5
    %v2879 = vmul.f32 %v2877, 0.5
    %v2880 = vadd.f32 %v2878, 0.5
    %v2881 = vadd.f32 %v2879, 0.5
    %v2882 = vmul.f32 %v2870, %v2591
    %v2883 = vmul.f32 %v2871, %v2592
    %v2884 = vmul.f32 %v2862, %v2872
    %v2885 = vmul.f32 %v2863, %v2873
    %v2886 = vadd.f32 %v2882, %v2884
    %v2887 = vadd.f32 %v2883, %v2885
    %v2888 = vtanh.pop %v2886
    %v2889 = vtanh.pop %v2887
    %v2890 = vmul.f32 %v2880, %v2888
    %v2891 = vmul.f32 %v2881, %v2889
    %v2892 = vpack.c.bf16 %v2891, %v2890
    %2893 = vst [vmem:[#allocation2] sm:$0xff] %v2892
    %v2894 = vld [vmem:[%s1042] sm:$0xff]
    %v2895 = vld [vmem:[%s1042 + $0x8] sm:$0xff]
    %v2896 = vld [vmem:[%s1042 + $0x10] sm:$0xff]
    %v2897 = vld [vmem:[%s1042 + $0x18] sm:$0xff]
    %v2898 = vld [vmem:[%s1042 + $0x20] sm:$0xff]
    %v2899 = vld [vmem:[%s1042 + $0x28] sm:$0xff]
    %v2900 = vld [vmem:[%s1042 + $0x30] sm:$0xff]
    %v2901 = vld [vmem:[%s1042 + $0x38] sm:$0xff]
    %2902 = vmatprep.subr.bf16.mxu0 %v2699
    %2903 = vmatpush1.bf16.msra.mxu0 %v2698
    %2904 = vmatprep.subr.bf16.mxu0 %v2703
    %2905 = vmatpush1.bf16.msra.mxu0 %v2702
    %2906 = vmatprep.subr.bf16.mxu0 %v2707
    %2907 = vmatpush1.bf16.msra.mxu0 %v2706
    %2908 = vmatprep.subr.bf16.mxu0 %v2711
    %2909 = vmatpush1.bf16.msra.mxu0 %v2710
    %2910 = vmatprep.subr.bf16.mxu0 %v2715
    %2911 = vmatpush1.bf16.msra.mxu0 %v2714
    %2912 = vmatprep.subr.bf16.mxu0 %v2719
    %2913 = vmatpush1.bf16.msra.mxu0 %v2718
    %2914 = vmatprep.subr.bf16.mxu0 %v2723
    %2915 = vmatpush1.bf16.msra.mxu0 %v2722
    %2916 = vmatprep.subr.bf16.mxu0 %v2727
    %2917 = vmatpush1.bf16.msra.mxu0 %v2726
    %2918 = vmatprep.subr.bf16.mxu0 0
    %2919 = vmatpush1.bf16.msra.mxu0 0
    %2920 = vmatprep.subr.bf16.mxu0 0
    %2921 = vmatpush1.bf16.msra.mxu0 0
    %2922 = vmatprep.subr.bf16.mxu0 0
    %2923 = vmatpush1.bf16.msra.mxu0 0
    %2924 = vmatprep.subr.bf16.mxu0 0
    %2925 = vmatpush1.bf16.msra.mxu0 0
    %2926 = vmatprep.subr.bf16.mxu0 0
    %2927 = vmatpush1.bf16.msra.mxu0 0
    %2928 = vmatprep.subr.bf16.mxu0 0
    %2929 = vmatpush1.bf16.msra.mxu0 0
    %2930 = vmatprep.subr.bf16.mxu0 0
    %2931 = vmatpush1.bf16.msra.mxu0 0
    %2932 = vmatprep.subr.bf16.mxu0 0
    %2933 = vmatpush1.bf16.msra.mxu0 0
    %2934 = vmatprep.mubr.bf16.mxu0 0
    %2935 = vmatmul.mubr.bf16.gmra.mrb[0].mxu0 %v2892
    %v2936 = vpop.f32.mrb[0].mxu0
    %v2937 = vadd.f32 0.0, %v2936
    %v2938 = vpop.f32.mrb[0].mxu0
    %v2939 = vadd.f32 0.0, %v2938
    %v2940 = vpop.f32.mrb[0].mxu0
    %v2941 = vadd.f32 0.0, %v2940
    %v2942 = vpop.f32.mrb[0].mxu0
    %v2943 = vadd.f32 0.0, %v2942
    %2944 = vdwg.mxu0
    %2945 = vmatprep.subr.bf16.mxu0 %v2701
    %2946 = vmatpush1.bf16.msra.mxu0 %v2700
    %2947 = vmatprep.subr.bf16.mxu0 %v2705
    %2948 = vmatpush1.bf16.msra.mxu0 %v2704
    %2949 = vmatprep.subr.bf16.mxu0 %v2709
    %2950 = vmatpush1.bf16.msra.mxu0 %v2708
    %2951 = vmatprep.subr.bf16.mxu0 %v2713
    %2952 = vmatpush1.bf16.msra.mxu0 %v2712
    %2953 = vmatprep.subr.bf16.mxu0 %v2717
    %2954 = vmatpush1.bf16.msra.mxu0 %v2716
    %2955 = vmatprep.subr.bf16.mxu0 %v2721
    %2956 = vmatpush1.bf16.msra.mxu0 %v2720
    %2957 = vmatprep.subr.bf16.mxu0 %v2725
    %2958 = vmatpush1.bf16.msra.mxu0 %v2724
    %2959 = vmatprep.subr.bf16.mxu0 %v2729
    %2960 = vmatpush1.bf16.msra.mxu0 %v2728
    %2961 = vmatprep.subr.bf16.mxu0 0
    %2962 = vmatpush1.bf16.msra.mxu0 0
    %2963 = vmatprep.subr.bf16.mxu0 0
    %2964 = vmatpush1.bf16.msra.mxu0 0
    %2965 = vmatprep.subr.bf16.mxu0 0
    %2966 = vmatpush1.bf16.msra.mxu0 0
    %2967 = vmatprep.subr.bf16.mxu0 0
    %2968 = vmatpush1.bf16.msra.mxu0 0
    %2969 = vmatprep.subr.bf16.mxu0 0
    %2970 = vmatpush1.bf16.msra.mxu0 0
    %2971 = vmatprep.subr.bf16.mxu0 0
    %2972 = vmatpush1.bf16.msra.mxu0 0
    %2973 = vmatprep.subr.bf16.mxu0 0
    %2974 = vmatpush1.bf16.msra.mxu0 0
    %2975 = vmatprep.subr.bf16.mxu0 0
    %2976 = vmatpush1.bf16.msra.mxu0 0
    %2977 = vmatprep.mubr.bf16.mxu0 0
    %2978 = vmatmul.mubr.bf16.gmra.mrb[0].mxu0 %v2892
    %v2979 = vpop.f32.mrb[0].mxu0
    %v2980 = vadd.f32 0.0, %v2979
    %v2981 = vpop.f32.mrb[0].mxu0
    %v2982 = vadd.f32 0.0, %v2981
    %v2983 = vpop.f32.mrb[0].mxu0
    %v2984 = vadd.f32 0.0, %v2983
    %v2985 = vpop.f32.mrb[0].mxu0
    %v2986 = vadd.f32 0.0, %v2985
    %2987 = vdwg.mxu0
    %v2988 = vadd.f32 %v2894, %v2937
    %v2989 = vadd.f32 %v2895, %v2939
    %v2990 = vadd.f32 %v2896, %v2980
    %v2991 = vadd.f32 %v2897, %v2982
    %v2992 = vadd.f32 %v2898, %v2941
    %v2993 = vadd.f32 %v2899, %v2943
    %v2994 = vadd.f32 %v2900, %v2984
    %v2995 = vadd.f32 %v2901, %v2986
    %v2996 = vmul.f32 %v2988, 0.5
    %v2997 = vmul.f32 %v2992, 0.5
    %v2998 = vtanh.pop %v2996
    %v2999 = vtanh.pop %v2997
    %v3000 = vmul.f32 %v2998, 0.5
    %v3001 = vmul.f32 %v2999, 0.5
    %v3002 = vadd.f32 %v3000, 0.5
    %v3003 = vadd.f32 %v3001, 0.5
    %v3004 = vmul.f32 %v2989, 0.5
    %v3005 = vmul.f32 %v2993, 0.5
    %v3006 = vtanh.pop %v3004
    %v3007 = vtanh.pop %v3005
    %v3008 = vmul.f32 %v3006, 0.5
    %v3009 = vmul.f32 %v3007, 0.5
    %v3010 = vadd.f32 %v3008, 0.5
    %v3011 = vadd.f32 %v3009, 0.5
    %v3012 = vtanh.pop %v2990
    %v3013 = vtanh.pop %v2994
    %v3014 = vmul.f32 %v2991, 0.5
    %v3015 = vmul.f32 %v2995, 0.5
    %v3016 = vtanh.pop %v3014
    %v3017 = vtanh.pop %v3015
    %v3018 = vmul.f32 %v3016, 0.5
    %v3019 = vmul.f32 %v3017, 0.5
    %v3020 = vadd.f32 %v3018, 0.5
    %v3021 = vadd.f32 %v3019, 0.5
    %v3022 = vmul.f32 %v3010, %v2886
    %v3023 = vmul.f32 %v3011, %v2887
    %v3024 = vmul.f32 %v3002, %v3012
    %v3025 = vmul.f32 %v3003, %v3013
    %v3026 = vadd.f32 %v3022, %v3024
    %v3027 = vadd.f32 %v3023, %v3025
    %v3028 = vtanh.pop %v3026
    %v3029 = vtanh.pop %v3027
    %v3030 = vmul.f32 %v3020, %v3028
    %v3031 = vmul.f32 %v3021, %v3029
    %v3032 = vpack.c.bf16 %v3031, %v3030
    %3033 = vst [vmem:[%s1182] sm:$0xff] %v3032
    %v3034 = vld [vmem:[%s1184] sm:$0xff]
    %v3035 = vld [vmem:[%s1184 + $0x8] sm:$0xff]
    %v3036 = vld [vmem:[%s1184 + $0x10] sm:$0xff]
    %v3037 = vld [vmem:[%s1184 + $0x18] sm:$0xff]
    %v3038 = vld [vmem:[%s1184 + $0x20] sm:$0xff]
    %v3039 = vld [vmem:[%s1184 + $0x28] sm:$0xff]
    %v3040 = vld [vmem:[%s1184 + $0x30] sm:$0xff]
    %v3041 = vld [vmem:[%s1184 + $0x38] sm:$0xff]
    %3042 = vmatprep.subr.bf16.mxu0 %v2699
    %3043 = vmatpush1.bf16.msra.mxu0 %v2698
    %3044 = vmatprep.subr.bf16.mxu0 %v2703
    %3045 = vmatpush1.bf16.msra.mxu0 %v2702
    %3046 = vmatprep.subr.bf16.mxu0 %v2707
    %3047 = vmatpush1.bf16.msra.mxu0 %v2706
    %3048 = vmatprep.subr.bf16.mxu0 %v2711
    %3049 = vmatpush1.bf16.msra.mxu0 %v2710
    %3050 = vmatprep.subr.bf16.mxu0 %v2715
    %3051 = vmatpush1.bf16.msra.mxu0 %v2714
    %3052 = vmatprep.subr.bf16.mxu0 %v2719
    %3053 = vmatpush1.bf16.msra.mxu0 %v2718
    %3054 = vmatprep.subr.bf16.mxu0 %v2723
    %3055 = vmatpush1.bf16.msra.mxu0 %v2722
    %3056 = vmatprep.subr.bf16.mxu0 %v2727
    %3057 = vmatpush1.bf16.msra.mxu0 %v2726
    %3058 = vmatprep.subr.bf16.mxu0 0
    %3059 = vmatpush1.bf16.msra.mxu0 0
    %3060 = vmatprep.subr.bf16.mxu0 0
    %3061 = vmatpush1.bf16.msra.mxu0 0
    %3062 = vmatprep.subr.bf16.mxu0 0
    %3063 = vmatpush1.bf16.msra.mxu0 0
    %3064 = vmatprep.subr.bf16.mxu0 0
    %3065 = vmatpush1.bf16.msra.mxu0 0
    %3066 = vmatprep.subr.bf16.mxu0 0
    %3067 = vmatpush1.bf16.msra.mxu0 0
    %3068 = vmatprep.subr.bf16.mxu0 0
    %3069 = vmatpush1.bf16.msra.mxu0 0
    %3070 = vmatprep.subr.bf16.mxu0 0
    %3071 = vmatpush1.bf16.msra.mxu0 0
    %3072 = vmatprep.subr.bf16.mxu0 0
    %3073 = vmatpush1.bf16.msra.mxu0 0
    %3074 = vmatprep.mubr.bf16.mxu0 0
    %3075 = vmatmul.mubr.bf16.gmra.mrb[0].mxu0 %v3032
    %v3076 = vpop.f32.mrb[0].mxu0
    %v3077 = vadd.f32 0.0, %v3076
    %v3078 = vpop.f32.mrb[0].mxu0
    %v3079 = vadd.f32 0.0, %v3078
    %v3080 = vpop.f32.mrb[0].mxu0
    %v3081 = vadd.f32 0.0, %v3080
    %v3082 = vpop.f32.mrb[0].mxu0
    %v3083 = vadd.f32 0.0, %v3082
    %3084 = vdwg.mxu0
    %3085 = vmatprep.subr.bf16.mxu0 %v2701
    %3086 = vmatpush1.bf16.msra.mxu0 %v2700
    %3087 = vmatprep.subr.bf16.mxu0 %v2705
    %3088 = vmatpush1.bf16.msra.mxu0 %v2704
    %3089 = vmatprep.subr.bf16.mxu0 %v2709
    %3090 = vmatpush1.bf16.msra.mxu0 %v2708
    %3091 = vmatprep.subr.bf16.mxu0 %v2713
    %3092 = vmatpush1.bf16.msra.mxu0 %v2712
    %3093 = vmatprep.subr.bf16.mxu0 %v2717
    %3094 = vmatpush1.bf16.msra.mxu0 %v2716
    %3095 = vmatprep.subr.bf16.mxu0 %v2721
    %3096 = vmatpush1.bf16.msra.mxu0 %v2720
    %3097 = vmatprep.subr.bf16.mxu0 %v2725
    %3098 = vmatpush1.bf16.msra.mxu0 %v2724
    %3099 = vmatprep.subr.bf16.mxu0 %v2729
    %3100 = vmatpush1.bf16.msra.mxu0 %v2728
    %3101 = vmatprep.subr.bf16.mxu0 0
    %3102 = vmatpush1.bf16.msra.mxu0 0
    %3103 = vmatprep.subr.bf16.mxu0 0
    %3104 = vmatpush1.bf16.msra.mxu0 0
    %3105 = vmatprep.subr.bf16.mxu0 0
    %3106 = vmatpush1.bf16.msra.mxu0 0
    %3107 = vmatprep.subr.bf16.mxu0 0
    %3108 = vmatpush1.bf16.msra.mxu0 0
    %3109 = vmatprep.subr.bf16.mxu0 0
    %3110 = vmatpush1.bf16.msra.mxu0 0
    %3111 = vmatprep.subr.bf16.mxu0 0
    %3112 = vmatpush1.bf16.msra.mxu0 0
    %3113 = vmatprep.subr.bf16.mxu0 0
    %3114 = vmatpush1.bf16.msra.mxu0 0
    %3115 = vmatprep.subr.bf16.mxu0 0
    %3116 = vmatpush1.bf16.msra.mxu0 0
    %3117 = vmatprep.mubr.bf16.mxu0 0
    %3118 = vmatmul.mubr.bf16.gmra.mrb[0].mxu0 %v3032
    %v3119 = vpop.f32.mrb[0].mxu0
    %v3120 = vadd.f32 0.0, %v3119
    %v3121 = vpop.f32.mrb[0].mxu0
    %v3122 = vadd.f32 0.0, %v3121
    %v3123 = vpop.f32.mrb[0].mxu0
    %v3124 = vadd.f32 0.0, %v3123
    %v3125 = vpop.f32.mrb[0].mxu0
    %v3126 = vadd.f32 0.0, %v3125
    %3127 = vdwg.mxu0
    %v3128 = vadd.f32 %v3034, %v3077
    %v3129 = vadd.f32 %v3035, %v3079
    %v3130 = vadd.f32 %v3036, %v3120
    %v3131 = vadd.f32 %v3037, %v3122
    %v3132 = vadd.f32 %v3038, %v3081
    %v3133 = vadd.f32 %v3039, %v3083
    %v3134 = vadd.f32 %v3040, %v3124
    %v3135 = vadd.f32 %v3041, %v3126
    %v3136 = vmul.f32 %v3128, 0.5
    %v3137 = vmul.f32 %v3132, 0.5
    %v3138 = vtanh.pop %v3136
    %v3139 = vtanh.pop %v3137
    %v3140 = vmul.f32 %v3138, 0.5
    %v3141 = vmul.f32 %v3139, 0.5
    %v3142 = vadd.f32 %v3140, 0.5
    %v3143 = vadd.f32 %v3141, 0.5
    %v3144 = vmul.f32 %v3129, 0.5
    %v3145 = vmul.f32 %v3133, 0.5
    %v3146 = vtanh.pop %v3144
    %v3147 = vtanh.pop %v3145
    %v3148 = vmul.f32 %v3146, 0.5
    %v3149 = vmul.f32 %v3147, 0.5
    %v3150 = vadd.f32 %v3148, 0.5
    %v3151 = vadd.f32 %v3149, 0.5
    %v3152 = vtanh.pop %v3130
    %v3153 = vtanh.pop %v3134
    %v3154 = vmul.f32 %v3131, 0.5
    %v3155 = vmul.f32 %v3135, 0.5
    %v3156 = vtanh.pop %v3154
    %v3157 = vtanh.pop %v3155
    %v3158 = vmul.f32 %v3156, 0.5
    %v3159 = vmul.f32 %v3157, 0.5
    %v3160 = vadd.f32 %v3158, 0.5
    %v3161 = vadd.f32 %v3159, 0.5
    %v3162 = vmul.f32 %v3150, %v3026
    %v3163 = vmul.f32 %v3151, %v3027
    %v3164 = vmul.f32 %v3142, %v3152
    %v3165 = vmul.f32 %v3143, %v3153
    %v3166 = vadd.f32 %v3162, %v3164
    %v3167 = vadd.f32 %v3163, %v3165
    %v3168 = vtanh.pop %v3166
    %v3169 = vtanh.pop %v3167
    %v3170 = vmul.f32 %v3160, %v3168
    %v3171 = vmul.f32 %v3161, %v3169
    %v3172 = vpack.c.bf16 %v3171, %v3170
    %3173 = vst [vmem:[%s1324] sm:$0xff] %v3172
    %v3174 = vld [vmem:[%s1326] sm:$0xff]
    %v3175 = vld [vmem:[%s1326 + $0x8] sm:$0xff]
    %v3176 = vld [vmem:[%s1326 + $0x10] sm:$0xff]
    %v3177 = vld [vmem:[%s1326 + $0x18] sm:$0xff]
    %v3178 = vld [vmem:[%s1326 + $0x20] sm:$0xff]
    %v3179 = vld [vmem:[%s1326 + $0x28] sm:$0xff]
    %v3180 = vld [vmem:[%s1326 + $0x30] sm:$0xff]
    %v3181 = vld [vmem:[%s1326 + $0x38] sm:$0xff]
    %3182 = vmatprep.subr.bf16.mxu0 %v2699
    %3183 = vmatpush1.bf16.msra.mxu0 %v2698
    %3184 = vmatprep.subr.bf16.mxu0 %v2703
    %3185 = vmatpush1.bf16.msra.mxu0 %v2702
    %3186 = vmatprep.subr.bf16.mxu0 %v2707
    %3187 = vmatpush1.bf16.msra.mxu0 %v2706
    %3188 = vmatprep.subr.bf16.mxu0 %v2711
    %3189 = vmatpush1.bf16.msra.mxu0 %v2710
    %3190 = vmatprep.subr.bf16.mxu0 %v2715
    %3191 = vmatpush1.bf16.msra.mxu0 %v2714
    %3192 = vmatprep.subr.bf16.mxu0 %v2719
    %3193 = vmatpush1.bf16.msra.mxu0 %v2718
    %3194 = vmatprep.subr.bf16.mxu0 %v2723
    %3195 = vmatpush1.bf16.msra.mxu0 %v2722
    %3196 = vmatprep.subr.bf16.mxu0 %v2727
    %3197 = vmatpush1.bf16.msra.mxu0 %v2726
    %3198 = vmatprep.subr.bf16.mxu0 0
    %3199 = vmatpush1.bf16.msra.mxu0 0
    %3200 = vmatprep.subr.bf16.mxu0 0
    %3201 = vmatpush1.bf16.msra.mxu0 0
    %3202 = vmatprep.subr.bf16.mxu0 0
    %3203 = vmatpush1.bf16.msra.mxu0 0
    %3204 = vmatprep.subr.bf16.mxu0 0
    %3205 = vmatpush1.bf16.msra.mxu0 0
    %3206 = vmatprep.subr.bf16.mxu0 0
    %3207 = vmatpush1.bf16.msra.mxu0 0
    %3208 = vmatprep.subr.bf16.mxu0 0
    %3209 = vmatpush1.bf16.msra.mxu0 0
    %3210 = vmatprep.subr.bf16.mxu0 0
    %3211 = vmatpush1.bf16.msra.mxu0 0
    %3212 = vmatprep.subr.bf16.mxu0 0
    %3213 = vmatpush1.bf16.msra.mxu0 0
    %3214 = vmatprep.mubr.bf16.mxu0 0
    %3215 = vmatmul.mubr.bf16.gmra.mrb[0].mxu0 %v3172
    %v3216 = vpop.f32.mrb[0].mxu0
    %v3217 = vadd.f32 0.0, %v3216
    %v3218 = vpop.f32.mrb[0].mxu0
    %v3219 = vadd.f32 0.0, %v3218
    %v3220 = vpop.f32.mrb[0].mxu0
    %v3221 = vadd.f32 0.0, %v3220
    %v3222 = vpop.f32.mrb[0].mxu0
    %v3223 = vadd.f32 0.0, %v3222
    %3224 = vdwg.mxu0
    %3225 = vmatprep.subr.bf16.mxu0 %v2701
    %3226 = vmatpush1.bf16.msra.mxu0 %v2700
    %3227 = vmatprep.subr.bf16.mxu0 %v2705
    %3228 = vmatpush1.bf16.msra.mxu0 %v2704
    %3229 = vmatprep.subr.bf16.mxu0 %v2709
    %3230 = vmatpush1.bf16.msra.mxu0 %v2708
    %3231 = vmatprep.subr.bf16.mxu0 %v2713
    %3232 = vmatpush1.bf16.msra.mxu0 %v2712
    %3233 = vmatprep.subr.bf16.mxu0 %v2717
    %3234 = vmatpush1.bf16.msra.mxu0 %v2716
    %3235 = vmatprep.subr.bf16.mxu0 %v2721
    %3236 = vmatpush1.bf16.msra.mxu0 %v2720
    %3237 = vmatprep.subr.bf16.mxu0 %v2725
    %3238 = vmatpush1.bf16.msra.mxu0 %v2724
    %3239 = vmatprep.subr.bf16.mxu0 %v2729
    %3240 = vmatpush1.bf16.msra.mxu0 %v2728
    %3241 = vmatprep.subr.bf16.mxu0 0
    %3242 = vmatpush1.bf16.msra.mxu0 0
    %3243 = vmatprep.subr.bf16.mxu0 0
    %3244 = vmatpush1.bf16.msra.mxu0 0
    %3245 = vmatprep.subr.bf16.mxu0 0
    %3246 = vmatpush1.bf16.msra.mxu0 0
    %3247 = vmatprep.subr.bf16.mxu0 0
    %3248 = vmatpush1.bf16.msra.mxu0 0
    %3249 = vmatprep.subr.bf16.mxu0 0
    %3250 = vmatpush1.bf16.msra.mxu0 0
    %3251 = vmatprep.subr.bf16.mxu0 0
    %3252 = vmatpush1.bf16.msra.mxu0 0
    %3253 = vmatprep.subr.bf16.mxu0 0
    %3254 = vmatpush1.bf16.msra.mxu0 0
    %3255 = vmatprep.subr.bf16.mxu0 0
    %3256 = vmatpush1.bf16.msra.mxu0 0
    %3257 = vmatprep.mubr.bf16.mxu0 0
    %3258 = vmatmul.mubr.bf16.gmra.mrb[0].mxu0 %v3172
    %v3259 = vpop.f32.mrb[0].mxu0
    %v3260 = vadd.f32 0.0, %v3259
    %v3261 = vpop.f32.mrb[0].mxu0
    %v3262 = vadd.f32 0.0, %v3261
    %v3263 = vpop.f32.mrb[0].mxu0
    %v3264 = vadd.f32 0.0, %v3263
    %v3265 = vpop.f32.mrb[0].mxu0
    %v3266 = vadd.f32 0.0, %v3265
    %3267 = vdwg.mxu0
    %v3268 = vadd.f32 %v3174, %v3217
    %v3269 = vadd.f32 %v3175, %v3219
    %v3270 = vadd.f32 %v3176, %v3260
    %v3271 = vadd.f32 %v3177, %v3262
    %v3272 = vadd.f32 %v3178, %v3221
    %v3273 = vadd.f32 %v3179, %v3223
    %v3274 = vadd.f32 %v3180, %v3264
    %v3275 = vadd.f32 %v3181, %v3266
    %v3276 = vmul.f32 %v3268, 0.5
    %v3277 = vmul.f32 %v3272, 0.5
    %v3278 = vtanh.pop %v3276
    %v3279 = vtanh.pop %v3277
    %v3280 = vmul.f32 %v3278, 0.5
    %v3281 = vmul.f32 %v3279, 0.5
    %v3282 = vadd.f32 %v3280, 0.5
    %v3283 = vadd.f32 %v3281, 0.5
    %v3284 = vmul.f32 %v3269, 0.5
    %v3285 = vmul.f32 %v3273, 0.5
    %v3286 = vtanh.pop %v3284
    %v3287 = vtanh.pop %v3285
    %v3288 = vmul.f32 %v3286, 0.5
    %v3289 = vmul.f32 %v3287, 0.5
    %v3290 = vadd.f32 %v3288, 0.5
    %v3291 = vadd.f32 %v3289, 0.5
    %v3292 = vtanh.pop %v3270
    %v3293 = vtanh.pop %v3274
    %v3294 = vmul.f32 %v3271, 0.5
    %v3295 = vmul.f32 %v3275, 0.5
    %v3296 = vtanh.pop %v3294
    %v3297 = vtanh.pop %v3295
    %v3298 = vmul.f32 %v3296, 0.5
    %v3299 = vmul.f32 %v3297, 0.5
    %v3300 = vadd.f32 %v3298, 0.5
    %v3301 = vadd.f32 %v3299, 0.5
    %v3302 = vmul.f32 %v3290, %v3166
    %v3303 = vmul.f32 %v3291, %v3167
    %v3304 = vmul.f32 %v3282, %v3292
    %v3305 = vmul.f32 %v3283, %v3293
    %v3306 = vadd.f32 %v3302, %v3304
    %v3307 = vadd.f32 %v3303, %v3305
    %v3308 = vtanh.pop %v3306
    %v3309 = vtanh.pop %v3307
    %v3310 = vmul.f32 %v3300, %v3308
    %v3311 = vmul.f32 %v3301, %v3309
    %v3312 = vpack.c.bf16 %v3311, %v3310
    %3313 = vst [vmem:[%s1466] sm:$0xff] %v3312
    %v3314 = vld [vmem:[%s1468] sm:$0xff]
    %v3315 = vld [vmem:[%s1468 + $0x8] sm:$0xff]
    %v3316 = vld [vmem:[%s1468 + $0x10] sm:$0xff]
    %v3317 = vld [vmem:[%s1468 + $0x18] sm:$0xff]
    %v3318 = vld [vmem:[%s1468 + $0x20] sm:$0xff]
    %v3319 = vld [vmem:[%s1468 + $0x28] sm:$0xff]
    %v3320 = vld [vmem:[%s1468 + $0x30] sm:$0xff]
    %v3321 = vld [vmem:[%s1468 + $0x38] sm:$0xff]
    %3322 = vmatprep.subr.bf16.mxu0 %v2699
    %3323 = vmatpush1.bf16.msra.mxu0 %v2698
    %3324 = vmatprep.subr.bf16.mxu0 %v2703
    %3325 = vmatpush1.bf16.msra.mxu0 %v2702
    %3326 = vmatprep.subr.bf16.mxu0 %v2707
    %3327 = vmatpush1.bf16.msra.mxu0 %v2706
    %3328 = vmatprep.subr.bf16.mxu0 %v2711
    %3329 = vmatpush1.bf16.msra.mxu0 %v2710
    %3330 = vmatprep.subr.bf16.mxu0 %v2715
    %3331 = vmatpush1.bf16.msra.mxu0 %v2714
    %3332 = vmatprep.subr.bf16.mxu0 %v2719
    %3333 = vmatpush1.bf16.msra.mxu0 %v2718
    %3334 = vmatprep.subr.bf16.mxu0 %v2723
    %3335 = vmatpush1.bf16.msra.mxu0 %v2722
    %3336 = vmatprep.subr.bf16.mxu0 %v2727
    %3337 = vmatpush1.bf16.msra.mxu0 %v2726
    %3338 = vmatprep.subr.bf16.mxu0 0
    %3339 = vmatpush1.bf16.msra.mxu0 0
    %3340 = vmatprep.subr.bf16.mxu0 0
    %3341 = vmatpush1.bf16.msra.mxu0 0
    %3342 = vmatprep.subr.bf16.mxu0 0
    %3343 = vmatpush1.bf16.msra.mxu0 0
    %3344 = vmatprep.subr.bf16.mxu0 0
    %3345 = vmatpush1.bf16.msra.mxu0 0
    %3346 = vmatprep.subr.bf16.mxu0 0
    %3347 = vmatpush1.bf16.msra.mxu0 0
    %3348 = vmatprep.subr.bf16.mxu0 0
    %3349 = vmatpush1.bf16.msra.mxu0 0
    %3350 = vmatprep.subr.bf16.mxu0 0
    %3351 = vmatpush1.bf16.msra.mxu0 0
    %3352 = vmatprep.subr.bf16.mxu0 0
    %3353 = vmatpush1.bf16.msra.mxu0 0
    %3354 = vmatprep.mubr.bf16.mxu0 0
    %3355 = vmatmul.mubr.bf16.gmra.mrb[0].mxu0 %v3312
    %v3356 = vpop.f32.mrb[0].mxu0
    %v3357 = vadd.f32 0.0, %v3356
    %v3358 = vpop.f32.mrb[0].mxu0
    %v3359 = vadd.f32 0.0, %v3358
    %v3360 = vpop.f32.mrb[0].mxu0
    %v3361 = vadd.f32 0.0, %v3360
    %v3362 = vpop.f32.mrb[0].mxu0
    %v3363 = vadd.f32 0.0, %v3362
    %3364 = vdwg.mxu0
    %3365 = vmatprep.subr.bf16.mxu0 %v2701
    %3366 = vmatpush1.bf16.msra.mxu0 %v2700
    %3367 = vmatprep.subr.bf16.mxu0 %v2705
    %3368 = vmatpush1.bf16.msra.mxu0 %v2704
    %3369 = vmatprep.subr.bf16.mxu0 %v2709
    %3370 = vmatpush1.bf16.msra.mxu0 %v2708
    %3371 = vmatprep.subr.bf16.mxu0 %v2713
    %3372 = vmatpush1.bf16.msra.mxu0 %v2712
    %3373 = vmatprep.subr.bf16.mxu0 %v2717
    %3374 = vmatpush1.bf16.msra.mxu0 %v2716
    %3375 = vmatprep.subr.bf16.mxu0 %v2721
    %3376 = vmatpush1.bf16.msra.mxu0 %v2720
    %3377 = vmatprep.subr.bf16.mxu0 %v2725
    %3378 = vmatpush1.bf16.msra.mxu0 %v2724
    %3379 = vmatprep.subr.bf16.mxu0 %v2729
    %3380 = vmatpush1.bf16.msra.mxu0 %v2728
    %3381 = vmatprep.subr.bf16.mxu0 0
    %3382 = vmatpush1.bf16.msra.mxu0 0
    %3383 = vmatprep.subr.bf16.mxu0 0
    %3384 = vmatpush1.bf16.msra.mxu0 0
    %3385 = vmatprep.subr.bf16.mxu0 0
    %3386 = vmatpush1.bf16.msra.mxu0 0
    %3387 = vmatprep.subr.bf16.mxu0 0
    %3388 = vmatpush1.bf16.msra.mxu0 0
    %3389 = vmatprep.subr.bf16.mxu0 0
    %3390 = vmatpush1.bf16.msra.mxu0 0
    %3391 = vmatprep.subr.bf16.mxu0 0
    %3392 = vmatpush1.bf16.msra.mxu0 0
    %3393 = vmatprep.subr.bf16.mxu0 0
    %3394 = vmatpush1.bf16.msra.mxu0 0
    %3395 = vmatprep.subr.bf16.mxu0 0
    %3396 = vmatpush1.bf16.msra.mxu0 0
    %3397 = vmatprep.mubr.bf16.mxu0 0
    %3398 = vmatmul.mubr.bf16.gmra.mrb[0].mxu0 %v3312
    %v3399 = vpop.f32.mrb[0].mxu0
    %v3400 = vadd.f32 0.0, %v3399
    %v3401 = vpop.f32.mrb[0].mxu0
    %v3402 = vadd.f32 0.0, %v3401
    %v3403 = vpop.f32.mrb[0].mxu0
    %v3404 = vadd.f32 0.0, %v3403
    %v3405 = vpop.f32.mrb[0].mxu0
    %v3406 = vadd.f32 0.0, %v3405
    %3407 = vdwg.mxu0
    %v3408 = vadd.f32 %v3314, %v3357
    %v3409 = vadd.f32 %v3315, %v3359
    %v3410 = vadd.f32 %v3316, %v3400
    %v3411 = vadd.f32 %v3317, %v3402
    %v3412 = vadd.f32 %v3318, %v3361
    %v3413 = vadd.f32 %v3319, %v3363
    %v3414 = vadd.f32 %v3320, %v3404
    %v3415 = vadd.f32 %v3321, %v3406
    %v3416 = vmul.f32 %v3408, 0.5
    %v3417 = vmul.f32 %v3412, 0.5
    %v3418 = vtanh.pop %v3416
    %v3419 = vtanh.pop %v3417
    %v3420 = vmul.f32 %v3418, 0.5
    %v3421 = vmul.f32 %v3419, 0.5
    %v3422 = vadd.f32 %v3420, 0.5
    %v3423 = vadd.f32 %v3421, 0.5
    %v3424 = vmul.f32 %v3409, 0.5
    %v3425 = vmul.f32 %v3413, 0.5
    %v3426 = vtanh.pop %v3424
    %v3427 = vtanh.pop %v3425
    %v3428 = vmul.f32 %v3426, 0.5
    %v3429 = vmul.f32 %v3427, 0.5
    %v3430 = vadd.f32 %v3428, 0.5
    %v3431 = vadd.f32 %v3429, 0.5
    %v3432 = vtanh.pop %v3410
    %v3433 = vtanh.pop %v3414
    %v3434 = vmul.f32 %v3411, 0.5
    %v3435 = vmul.f32 %v3415, 0.5
    %v3436 = vtanh.pop %v3434
    %v3437 = vtanh.pop %v3435
    %v3438 = vmul.f32 %v3436, 0.5
    %v3439 = vmul.f32 %v3437, 0.5
    %v3440 = vadd.f32 %v3438, 0.5
    %v3441 = vadd.f32 %v3439, 0.5
    %v3442 = vmul.f32 %v3430, %v3306
    %v3443 = vmul.f32 %v3431, %v3307
    %v3444 = vmul.f32 %v3422, %v3432
    %v3445 = vmul.f32 %v3423, %v3433
    %v3446 = vadd.f32 %v3442, %v3444
    %v3447 = vadd.f32 %v3443, %v3445
    %v3448 = vtanh.pop %v3446
    %v3449 = vtanh.pop %v3447
    %v3450 = vmul.f32 %v3440, %v3448
    %v3451 = vmul.f32 %v3441, %v3449
    %v3452 = vpack.c.bf16 %v3451, %v3450
    %3453 = vst [vmem:[%s1608] sm:$0xff] %v3452
    %v3454 = vld [vmem:[%s1610] sm:$0xff]
    %v3455 = vld [vmem:[%s1610 + $0x8] sm:$0xff]
    %v3456 = vld [vmem:[%s1610 + $0x10] sm:$0xff]
    %v3457 = vld [vmem:[%s1610 + $0x18] sm:$0xff]
    %v3458 = vld [vmem:[%s1610 + $0x20] sm:$0xff]
    %v3459 = vld [vmem:[%s1610 + $0x28] sm:$0xff]
    %v3460 = vld [vmem:[%s1610 + $0x30] sm:$0xff]
    %v3461 = vld [vmem:[%s1610 + $0x38] sm:$0xff]
    %3462 = vmatprep.subr.bf16.mxu0 %v2699
    %3463 = vmatpush1.bf16.msra.mxu0 %v2698
    %3464 = vmatprep.subr.bf16.mxu0 %v2703
    %3465 = vmatpush1.bf16.msra.mxu0 %v2702
    %3466 = vmatprep.subr.bf16.mxu0 %v2707
    %3467 = vmatpush1.bf16.msra.mxu0 %v2706
    %3468 = vmatprep.subr.bf16.mxu0 %v2711
    %3469 = vmatpush1.bf16.msra.mxu0 %v2710
    %3470 = vmatprep.subr.bf16.mxu0 %v2715
    %3471 = vmatpush1.bf16.msra.mxu0 %v2714
    %3472 = vmatprep.subr.bf16.mxu0 %v2719
    %3473 = vmatpush1.bf16.msra.mxu0 %v2718
    %3474 = vmatprep.subr.bf16.mxu0 %v2723
    %3475 = vmatpush1.bf16.msra.mxu0 %v2722
    %3476 = vmatprep.subr.bf16.mxu0 %v2727
    %3477 = vmatpush1.bf16.msra.mxu0 %v2726
    %3478 = vmatprep.subr.bf16.mxu0 0
    %3479 = vmatpush1.bf16.msra.mxu0 0
    %3480 = vmatprep.subr.bf16.mxu0 0
    %3481 = vmatpush1.bf16.msra.mxu0 0
    %3482 = vmatprep.subr.bf16.mxu0 0
    %3483 = vmatpush1.bf16.msra.mxu0 0
    %3484 = vmatprep.subr.bf16.mxu0 0
    %3485 = vmatpush1.bf16.msra.mxu0 0
    %3486 = vmatprep.subr.bf16.mxu0 0
    %3487 = vmatpush1.bf16.msra.mxu0 0
    %3488 = vmatprep.subr.bf16.mxu0 0
    %3489 = vmatpush1.bf16.msra.mxu0 0
    %3490 = vmatprep.subr.bf16.mxu0 0
    %3491 = vmatpush1.bf16.msra.mxu0 0
    %3492 = vmatprep.subr.bf16.mxu0 0
    %3493 = vmatpush1.bf16.msra.mxu0 0
    %3494 = vmatprep.mubr.bf16.mxu0 0
    %3495 = vmatmul.mubr.bf16.gmra.mrb[0].mxu0 %v3452
    %v3496 = vpop.f32.mrb[0].mxu0
    %v3497 = vadd.f32 0.0, %v3496
    %v3498 = vpop.f32.mrb[0].mxu0
    %v3499 = vadd.f32 0.0, %v3498
    %v3500 = vpop.f32.mrb[0].mxu0
    %v3501 = vadd.f32 0.0, %v3500
    %v3502 = vpop.f32.mrb[0].mxu0
    %v3503 = vadd.f32 0.0, %v3502
    %3504 = vdwg.mxu0
    %3505 = vmatprep.subr.bf16.mxu0 %v2701
    %3506 = vmatpush1.bf16.msra.mxu0 %v2700
    %3507 = vmatprep.subr.bf16.mxu0 %v2705
    %3508 = vmatpush1.bf16.msra.mxu0 %v2704
    %3509 = vmatprep.subr.bf16.mxu0 %v2709
    %3510 = vmatpush1.bf16.msra.mxu0 %v2708
    %3511 = vmatprep.subr.bf16.mxu0 %v2713
    %3512 = vmatpush1.bf16.msra.mxu0 %v2712
    %3513 = vmatprep.subr.bf16.mxu0 %v2717
    %3514 = vmatpush1.bf16.msra.mxu0 %v2716
    %3515 = vmatprep.subr.bf16.mxu0 %v2721
    %3516 = vmatpush1.bf16.msra.mxu0 %v2720
    %3517 = vmatprep.subr.bf16.mxu0 %v2725
    %3518 = vmatpush1.bf16.msra.mxu0 %v2724
    %3519 = vmatprep.subr.bf16.mxu0 %v2729
    %3520 = vmatpush1.bf16.msra.mxu0 %v2728
    %3521 = vmatprep.subr.bf16.mxu0 0
    %3522 = vmatpush1.bf16.msra.mxu0 0
    %3523 = vmatprep.subr.bf16.mxu0 0
    %3524 = vmatpush1.bf16.msra.mxu0 0
    %3525 = vmatprep.subr.bf16.mxu0 0
    %3526 = vmatpush1.bf16.msra.mxu0 0
    %3527 = vmatprep.subr.bf16.mxu0 0
    %3528 = vmatpush1.bf16.msra.mxu0 0
    %3529 = vmatprep.subr.bf16.mxu0 0
    %3530 = vmatpush1.bf16.msra.mxu0 0
    %3531 = vmatprep.subr.bf16.mxu0 0
    %3532 = vmatpush1.bf16.msra.mxu0 0
    %3533 = vmatprep.subr.bf16.mxu0 0
    %3534 = vmatpush1.bf16.msra.mxu0 0
    %3535 = vmatprep.subr.bf16.mxu0 0
    %3536 = vmatpush1.bf16.msra.mxu0 0
    %3537 = vmatprep.mubr.bf16.mxu0 0
    %3538 = vmatmul.mubr.bf16.gmra.mrb[0].mxu0 %v3452
    %v3539 = vpop.f32.mrb[0].mxu0
    %v3540 = vadd.f32 0.0, %v3539
    %v3541 = vpop.f32.mrb[0].mxu0
    %v3542 = vadd.f32 0.0, %v3541
    %v3543 = vpop.f32.mrb[0].mxu0
    %v3544 = vadd.f32 0.0, %v3543
    %v3545 = vpop.f32.mrb[0].mxu0
    %v3546 = vadd.f32 0.0, %v3545
    %3547 = vdwg.mxu0
    %v3548 = vadd.f32 %v3454, %v3497
    %v3549 = vadd.f32 %v3455, %v3499
    %v3550 = vadd.f32 %v3456, %v3540
    %v3551 = vadd.f32 %v3457, %v3542
    %v3552 = vadd.f32 %v3458, %v3501
    %v3553 = vadd.f32 %v3459, %v3503
    %v3554 = vadd.f32 %v3460, %v3544
    %v3555 = vadd.f32 %v3461, %v3546
    %v3556 = vmul.f32 %v3548, 0.5
    %v3557 = vmul.f32 %v3552, 0.5
    %v3558 = vtanh.pop %v3556
    %v3559 = vtanh.pop %v3557
    %v3560 = vmul.f32 %v3558, 0.5
    %v3561 = vmul.f32 %v3559, 0.5
    %v3562 = vadd.f32 %v3560, 0.5
    %v3563 = vadd.f32 %v3561, 0.5
    %v3564 = vmul.f32 %v3549, 0.5
    %v3565 = vmul.f32 %v3553, 0.5
    %v3566 = vtanh.pop %v3564
    %v3567 = vtanh.pop %v3565
    %v3568 = vmul.f32 %v3566, 0.5
    %v3569 = vmul.f32 %v3567, 0.5
    %v3570 = vadd.f32 %v3568, 0.5
    %v3571 = vadd.f32 %v3569, 0.5
    %v3572 = vtanh.pop %v3550
    %v3573 = vtanh.pop %v3554
    %v3574 = vmul.f32 %v3551, 0.5
    %v3575 = vmul.f32 %v3555, 0.5
    %v3576 = vtanh.pop %v3574
    %v3577 = vtanh.pop %v3575
    %v3578 = vmul.f32 %v3576, 0.5
    %v3579 = vmul.f32 %v3577, 0.5
    %v3580 = vadd.f32 %v3578, 0.5
    %v3581 = vadd.f32 %v3579, 0.5
    %v3582 = vmul.f32 %v3570, %v3446
    %v3583 = vmul.f32 %v3571, %v3447
    %v3584 = vmul.f32 %v3562, %v3572
    %v3585 = vmul.f32 %v3563, %v3573
    %v3586 = vadd.f32 %v3582, %v3584
    %v3587 = vadd.f32 %v3583, %v3585
    %v3588 = vtanh.pop %v3586
    %v3589 = vtanh.pop %v3587
    %v3590 = vmul.f32 %v3580, %v3588
    %v3591 = vmul.f32 %v3581, %v3589
    %v3592 = vpack.c.bf16 %v3591, %v3590
    %3593 = vst [vmem:[%s1750] sm:$0xff] %v3592
    %v3594 = vld [vmem:[%s1752] sm:$0xff]
    %v3595 = vld [vmem:[%s1752 + $0x8] sm:$0xff]
    %v3596 = vld [vmem:[%s1752 + $0x10] sm:$0xff]
    %v3597 = vld [vmem:[%s1752 + $0x18] sm:$0xff]
    %v3598 = vld [vmem:[%s1752 + $0x20] sm:$0xff]
    %v3599 = vld [vmem:[%s1752 + $0x28] sm:$0xff]
    %v3600 = vld [vmem:[%s1752 + $0x30] sm:$0xff]
    %v3601 = vld [vmem:[%s1752 + $0x38] sm:$0xff]
    %3602 = vmatprep.subr.bf16.mxu0 %v2699
    %3603 = vmatpush1.bf16.msra.mxu0 %v2698
    %3604 = vmatprep.subr.bf16.mxu0 %v2703
    %3605 = vmatpush1.bf16.msra.mxu0 %v2702
    %3606 = vmatprep.subr.bf16.mxu0 %v2707
    %3607 = vmatpush1.bf16.msra.mxu0 %v2706
    %3608 = vmatprep.subr.bf16.mxu0 %v2711
    %3609 = vmatpush1.bf16.msra.mxu0 %v2710
    %3610 = vmatprep.subr.bf16.mxu0 %v2715
    %3611 = vmatpush1.bf16.msra.mxu0 %v2714
    %3612 = vmatprep.subr.bf16.mxu0 %v2719
    %3613 = vmatpush1.bf16.msra.mxu0 %v2718
    %3614 = vmatprep.subr.bf16.mxu0 %v2723
    %3615 = vmatpush1.bf16.msra.mxu0 %v2722
    %3616 = vmatprep.subr.bf16.mxu0 %v2727
    %3617 = vmatpush1.bf16.msra.mxu0 %v2726
    %3618 = vmatprep.subr.bf16.mxu0 0
    %3619 = vmatpush1.bf16.msra.mxu0 0
    %3620 = vmatprep.subr.bf16.mxu0 0
    %3621 = vmatpush1.bf16.msra.mxu0 0
    %3622 = vmatprep.subr.bf16.mxu0 0
    %3623 = vmatpush1.bf16.msra.mxu0 0
    %3624 = vmatprep.subr.bf16.mxu0 0
    %3625 = vmatpush1.bf16.msra.mxu0 0
    %3626 = vmatprep.subr.bf16.mxu0 0
    %3627 = vmatpush1.bf16.msra.mxu0 0
    %3628 = vmatprep.subr.bf16.mxu0 0
    %3629 = vmatpush1.bf16.msra.mxu0 0
    %3630 = vmatprep.subr.bf16.mxu0 0
    %3631 = vmatpush1.bf16.msra.mxu0 0
    %3632 = vmatprep.subr.bf16.mxu0 0
    %3633 = vmatpush1.bf16.msra.mxu0 0
    %3634 = vmatprep.mubr.bf16.mxu0 0
    %3635 = vmatmul.mubr.bf16.gmra.mrb[0].mxu0 %v3592
    %v3636 = vpop.f32.mrb[0].mxu0
    %v3637 = vadd.f32 0.0, %v3636
    %v3638 = vpop.f32.mrb[0].mxu0
    %v3639 = vadd.f32 0.0, %v3638
    %v3640 = vpop.f32.mrb[0].mxu0
    %v3641 = vadd.f32 0.0, %v3640
    %v3642 = vpop.f32.mrb[0].mxu0
    %v3643 = vadd.f32 0.0, %v3642
    %3644 = vdwg.mxu0
    %3645 = vmatprep.subr.bf16.mxu0 %v2701
    %3646 = vmatpush1.bf16.msra.mxu0 %v2700
    %3647 = vmatprep.subr.bf16.mxu0 %v2705
    %3648 = vmatpush1.bf16.msra.mxu0 %v2704
    %3649 = vmatprep.subr.bf16.mxu0 %v2709
    %3650 = vmatpush1.bf16.msra.mxu0 %v2708
    %3651 = vmatprep.subr.bf16.mxu0 %v2713
    %3652 = vmatpush1.bf16.msra.mxu0 %v2712
    %3653 = vmatprep.subr.bf16.mxu0 %v2717
    %3654 = vmatpush1.bf16.msra.mxu0 %v2716
    %3655 = vmatprep.subr.bf16.mxu0 %v2721
    %3656 = vmatpush1.bf16.msra.mxu0 %v2720
    %3657 = vmatprep.subr.bf16.mxu0 %v2725
    %3658 = vmatpush1.bf16.msra.mxu0 %v2724
    %3659 = vmatprep.subr.bf16.mxu0 %v2729
    %3660 = vmatpush1.bf16.msra.mxu0 %v2728
    %3661 = vmatprep.subr.bf16.mxu0 0
    %3662 = vmatpush1.bf16.msra.mxu0 0
    %3663 = vmatprep.subr.bf16.mxu0 0
    %3664 = vmatpush1.bf16.msra.mxu0 0
    %3665 = vmatprep.subr.bf16.mxu0 0
    %3666 = vmatpush1.bf16.msra.mxu0 0
    %3667 = vmatprep.subr.bf16.mxu0 0
    %3668 = vmatpush1.bf16.msra.mxu0 0
    %3669 = vmatprep.subr.bf16.mxu0 0
    %3670 = vmatpush1.bf16.msra.mxu0 0
    %3671 = vmatprep.subr.bf16.mxu0 0
    %3672 = vmatpush1.bf16.msra.mxu0 0
    %3673 = vmatprep.subr.bf16.mxu0 0
    %3674 = vmatpush1.bf16.msra.mxu0 0
    %3675 = vmatprep.subr.bf16.mxu0 0
    %3676 = vmatpush1.bf16.msra.mxu0 0
    %3677 = vmatprep.mubr.bf16.mxu0 0
    %3678 = vmatmul.mubr.bf16.gmra.mrb[0].mxu0 %v3592
    %v3679 = vpop.f32.mrb[0].mxu0
    %v3680 = vadd.f32 0.0, %v3679
    %v3681 = vpop.f32.mrb[0].mxu0
    %v3682 = vadd.f32 0.0, %v3681
    %v3683 = vpop.f32.mrb[0].mxu0
    %v3684 = vadd.f32 0.0, %v3683
    %v3685 = vpop.f32.mrb[0].mxu0
    %v3686 = vadd.f32 0.0, %v3685
    %3687 = vdwg.mxu0
    %v3688 = vadd.f32 %v3594, %v3637
    %v3689 = vadd.f32 %v3595, %v3639
    %v3690 = vadd.f32 %v3596, %v3680
    %v3691 = vadd.f32 %v3597, %v3682
    %v3692 = vadd.f32 %v3598, %v3641
    %v3693 = vadd.f32 %v3599, %v3643
    %v3694 = vadd.f32 %v3600, %v3684
    %v3695 = vadd.f32 %v3601, %v3686
    %v3696 = vmul.f32 %v3688, 0.5
    %v3697 = vmul.f32 %v3692, 0.5
    %v3698 = vtanh.pop %v3696
    %v3699 = vtanh.pop %v3697
    %v3700 = vmul.f32 %v3698, 0.5
    %v3701 = vmul.f32 %v3699, 0.5
    %v3702 = vadd.f32 %v3700, 0.5
    %v3703 = vadd.f32 %v3701, 0.5
    %v3704 = vmul.f32 %v3689, 0.5
    %v3705 = vmul.f32 %v3693, 0.5
    %v3706 = vtanh.pop %v3704
    %v3707 = vtanh.pop %v3705
    %v3708 = vmul.f32 %v3706, 0.5
    %v3709 = vmul.f32 %v3707, 0.5
    %v3710 = vadd.f32 %v3708, 0.5
    %v3711 = vadd.f32 %v3709, 0.5
    %v3712 = vtanh.pop %v3690
    %v3713 = vtanh.pop %v3694
    %v3714 = vmul.f32 %v3691, 0.5
    %v3715 = vmul.f32 %v3695, 0.5
    %v3716 = vtanh.pop %v3714
    %v3717 = vtanh.pop %v3715
    %v3718 = vmul.f32 %v3716, 0.5
    %v3719 = vmul.f32 %v3717, 0.5
    %v3720 = vadd.f32 %v3718, 0.5
    %v3721 = vadd.f32 %v3719, 0.5
    %v3722 = vmul.f32 %v3710, %v3586
    %v3723 = vmul.f32 %v3711, %v3587
    %v3724 = vmul.f32 %v3702, %v3712
    %v3725 = vmul.f32 %v3703, %v3713
    %v3726 = vadd.f32 %v3722, %v3724
    %v3727 = vadd.f32 %v3723, %v3725
    %v3728 = vtanh.pop %v3726
    %v3729 = vtanh.pop %v3727
    %v3730 = vmul.f32 %v3720, %v3728
    %v3731 = vmul.f32 %v3721, %v3729
    %v3732 = vpack.c.bf16 %v3731, %v3730
    %3733 = vst [vmem:[%s1892] sm:$0xff] %v3732
    %v3734 = vld [vmem:[%s1894] sm:$0xff]
    %v3735 = vld [vmem:[%s1894 + $0x8] sm:$0xff]
    %v3736 = vld [vmem:[%s1894 + $0x10] sm:$0xff]
    %v3737 = vld [vmem:[%s1894 + $0x18] sm:$0xff]
    %v3738 = vld [vmem:[%s1894 + $0x20] sm:$0xff]
    %v3739 = vld [vmem:[%s1894 + $0x28] sm:$0xff]
    %v3740 = vld [vmem:[%s1894 + $0x30] sm:$0xff]
    %v3741 = vld [vmem:[%s1894 + $0x38] sm:$0xff]
    %3742 = vmatprep.subr.bf16.mxu0 %v2699
    %3743 = vmatpush1.bf16.msra.mxu0 %v2698
    %3744 = vmatprep.subr.bf16.mxu0 %v2703
    %3745 = vmatpush1.bf16.msra.mxu0 %v2702
    %3746 = vmatprep.subr.bf16.mxu0 %v2707
    %3747 = vmatpush1.bf16.msra.mxu0 %v2706
    %3748 = vmatprep.subr.bf16.mxu0 %v2711
    %3749 = vmatpush1.bf16.msra.mxu0 %v2710
    %3750 = vmatprep.subr.bf16.mxu0 %v2715
    %3751 = vmatpush1.bf16.msra.mxu0 %v2714
    %3752 = vmatprep.subr.bf16.mxu0 %v2719
    %3753 = vmatpush1.bf16.msra.mxu0 %v2718
    %3754 = vmatprep.subr.bf16.mxu0 %v2723
    %3755 = vmatpush1.bf16.msra.mxu0 %v2722
    %3756 = vmatprep.subr.bf16.mxu0 %v2727
    %3757 = vmatpush1.bf16.msra.mxu0 %v2726
    %3758 = vmatprep.subr.bf16.mxu0 0
    %3759 = vmatpush1.bf16.msra.mxu0 0
    %3760 = vmatprep.subr.bf16.mxu0 0
    %3761 = vmatpush1.bf16.msra.mxu0 0
    %3762 = vmatprep.subr.bf16.mxu0 0
    %3763 = vmatpush1.bf16.msra.mxu0 0
    %3764 = vmatprep.subr.bf16.mxu0 0
    %3765 = vmatpush1.bf16.msra.mxu0 0
    %3766 = vmatprep.subr.bf16.mxu0 0
    %3767 = vmatpush1.bf16.msra.mxu0 0
    %3768 = vmatprep.subr.bf16.mxu0 0
    %3769 = vmatpush1.bf16.msra.mxu0 0
    %3770 = vmatprep.subr.bf16.mxu0 0
    %3771 = vmatpush1.bf16.msra.mxu0 0
    %3772 = vmatprep.subr.bf16.mxu0 0
    %3773 = vmatpush1.bf16.msra.mxu0 0
    %3774 = vmatprep.mubr.bf16.mxu0 0
    %3775 = vmatmul.mubr.bf16.gmra.mrb[0].mxu0 %v3732
    %v3776 = vpop.f32.mrb[0].mxu0
    %v3777 = vadd.f32 0.0, %v3776
    %v3778 = vpop.f32.mrb[0].mxu0
    %v3779 = vadd.f32 0.0, %v3778
    %v3780 = vpop.f32.mrb[0].mxu0
    %v3781 = vadd.f32 0.0, %v3780
    %v3782 = vpop.f32.mrb[0].mxu0
    %v3783 = vadd.f32 0.0, %v3782
    %3784 = vdwg.mxu0
    %3785 = vmatprep.subr.bf16.mxu0 %v2701
    %3786 = vmatpush1.bf16.msra.mxu0 %v2700
    %3787 = vmatprep.subr.bf16.mxu0 %v2705
    %3788 = vmatpush1.bf16.msra.mxu0 %v2704
    %3789 = vmatprep.subr.bf16.mxu0 %v2709
    %3790 = vmatpush1.bf16.msra.mxu0 %v2708
    %3791 = vmatprep.subr.bf16.mxu0 %v2713
    %3792 = vmatpush1.bf16.msra.mxu0 %v2712
    %3793 = vmatprep.subr.bf16.mxu0 %v2717
    %3794 = vmatpush1.bf16.msra.mxu0 %v2716
    %3795 = vmatprep.subr.bf16.mxu0 %v2721
    %3796 = vmatpush1.bf16.msra.mxu0 %v2720
    %3797 = vmatprep.subr.bf16.mxu0 %v2725
    %3798 = vmatpush1.bf16.msra.mxu0 %v2724
    %3799 = vmatprep.subr.bf16.mxu0 %v2729
    %3800 = vmatpush1.bf16.msra.mxu0 %v2728
    %3801 = vmatprep.subr.bf16.mxu0 0
    %3802 = vmatpush1.bf16.msra.mxu0 0
    %3803 = vmatprep.subr.bf16.mxu0 0
    %3804 = vmatpush1.bf16.msra.mxu0 0
    %3805 = vmatprep.subr.bf16.mxu0 0
    %3806 = vmatpush1.bf16.msra.mxu0 0
    %3807 = vmatprep.subr.bf16.mxu0 0
    %3808 = vmatpush1.bf16.msra.mxu0 0
    %3809 = vmatprep.subr.bf16.mxu0 0
    %3810 = vmatpush1.bf16.msra.mxu0 0
    %3811 = vmatprep.subr.bf16.mxu0 0
    %3812 = vmatpush1.bf16.msra.mxu0 0
    %3813 = vmatprep.subr.bf16.mxu0 0
    %3814 = vmatpush1.bf16.msra.mxu0 0
    %3815 = vmatprep.subr.bf16.mxu0 0
    %3816 = vmatpush1.bf16.msra.mxu0 0
    %3817 = vmatprep.mubr.bf16.mxu0 0
    %3818 = vmatmul.mubr.bf16.gmra.mrb[0].mxu0 %v3732
    %v3819 = vpop.f32.mrb[0].mxu0
    %v3820 = vadd.f32 0.0, %v3819
    %v3821 = vpop.f32.mrb[0].mxu0
    %v3822 = vadd.f32 0.0, %v3821
    %v3823 = vpop.f32.mrb[0].mxu0
    %v3824 = vadd.f32 0.0, %v3823
    %v3825 = vpop.f32.mrb[0].mxu0
    %v3826 = vadd.f32 0.0, %v3825
    %3827 = vdwg.mxu0
    %v3828 = vadd.f32 %v3734, %v3777
    %v3829 = vadd.f32 %v3735, %v3779
    %v3830 = vadd.f32 %v3736, %v3820
    %v3831 = vadd.f32 %v3737, %v3822
    %v3832 = vadd.f32 %v3738, %v3781
    %v3833 = vadd.f32 %v3739, %v3783
    %v3834 = vadd.f32 %v3740, %v3824
    %v3835 = vadd.f32 %v3741, %v3826
    %v3836 = vmul.f32 %v3828, 0.5
    %v3837 = vmul.f32 %v3832, 0.5
    %v3838 = vtanh.pop %v3836
    %v3839 = vtanh.pop %v3837
    %v3840 = vmul.f32 %v3838, 0.5
    %v3841 = vmul.f32 %v3839, 0.5
    %v3842 = vadd.f32 %v3840, 0.5
    %v3843 = vadd.f32 %v3841, 0.5
    %v3844 = vmul.f32 %v3829, 0.5
    %v3845 = vmul.f32 %v3833, 0.5
    %v3846 = vtanh.pop %v3844
    %v3847 = vtanh.pop %v3845
    %v3848 = vmul.f32 %v3846, 0.5
    %v3849 = vmul.f32 %v3847, 0.5
    %v3850 = vadd.f32 %v3848, 0.5
    %v3851 = vadd.f32 %v3849, 0.5
    %v3852 = vtanh.pop %v3830
    %v3853 = vtanh.pop %v3834
    %v3854 = vmul.f32 %v3831, 0.5
    %v3855 = vmul.f32 %v3835, 0.5
    %v3856 = vtanh.pop %v3854
    %v3857 = vtanh.pop %v3855
    %v3858 = vmul.f32 %v3856, 0.5
    %v3859 = vmul.f32 %v3857, 0.5
    %v3860 = vadd.f32 %v3858, 0.5
    %v3861 = vadd.f32 %v3859, 0.5
    %v3862 = vmul.f32 %v3850, %v3726
    %v3863 = vmul.f32 %v3851, %v3727
    %v3864 = vmul.f32 %v3842, %v3852
    %v3865 = vmul.f32 %v3843, %v3853
    %v3866 = vadd.f32 %v3862, %v3864
    %v3867 = vadd.f32 %v3863, %v3865
    %v3868 = vtanh.pop %v3866
    %v3869 = vtanh.pop %v3867
    %v3870 = vmul.f32 %v3860, %v3868
    %v3871 = vmul.f32 %v3861, %v3869
    %v3872 = vpack.c.bf16 %v3871, %v3870
    %3873 = vst [vmem:[%s2034] sm:$0xff] %v3872
    %3874 = vst [vmem:[%s2587] sm:$0xff] %v3870
    %3875 = vst [vmem:[%s2587 + $0x8] sm:$0xff] %v3871
    %3876 = vst [vmem:[%s2590] sm:$0xff] %v3866
    %3877 = vst [vmem:[%s2590 + $0x8] sm:$0xff] %v3867
    %v3878 = vld [vmem:[#allocation2] sm:$0xff]
    %v3879 = vld [vmem:[#allocation2 + $0x8] sm:$0xff]
    %v3880 = vld [vmem:[#allocation2 + $0x10] sm:$0xff]
    %v3881 = vld [vmem:[#allocation2 + $0x18] sm:$0xff]
    %v3882 = vld [vmem:[#allocation2 + $0x20] sm:$0xff]
    %v3883 = vld [vmem:[#allocation2 + $0x28] sm:$0xff]
    %v3884 = vld [vmem:[#allocation2 + $0x30] sm:$0xff]
    %v3885 = vld [vmem:[#allocation2 + $0x38] sm:$0xff]
    %v3886 = vld [vmem:[#allocation13] sm:$0xf]
    %v3887 = vld [vmem:[#allocation13 + $0x4] sm:$0xf]
    %v3888 = vld [vmem:[#allocation13 + $0x8] sm:$0xf]
    %v3889 = vld [vmem:[#allocation13 + $0xc] sm:$0xf]
    %v3890 = vld [vmem:[#allocation13 + $0x10] sm:$0xf]
    %v3891 = vld [vmem:[#allocation13 + $0x14] sm:$0xf]
    %v3892 = vld [vmem:[#allocation13 + $0x18] sm:$0xf]
    %v3893 = vld [vmem:[#allocation13 + $0x1c] sm:$0xf]
    %v3894 = vld [vmem:[#allocation13 + $0x20] sm:$0xf]
    %v3895 = vld [vmem:[#allocation13 + $0x24] sm:$0xf]
    %v3896 = vld [vmem:[#allocation13 + $0x28] sm:$0xf]
    %v3897 = vld [vmem:[#allocation13 + $0x2c] sm:$0xf]
    %v3898 = vld [vmem:[#allocation13 + $0x30] sm:$0xf]
    %v3899 = vld [vmem:[#allocation13 + $0x34] sm:$0xf]
    %v3900 = vld [vmem:[#allocation13 + $0x38] sm:$0xf]
    %v3901 = vld [vmem:[#allocation13 + $0x3c] sm:$0xf]
    %v3902 = vld [vmem:[%s7] sm:$0x1]
    %v3904 = vlaneseq
    %v3905 = vshrl.u32 %v3904, 7
    %v3906 = vsub.s32 0, %v3905
    %v3907 = vrot.slane %v3902, %v3906
    %v3925 = vunpack.c.l.b16 %v3886
    %v3926 = vunpack.c.l.b16 %v3887
    %v3927 = vunpack.c.l.b16 %v3888
    %v3928 = vunpack.c.l.b16 %v3889
    %v3929 = vunpack.c.l.b16 %v3890
    %v3930 = vunpack.c.l.b16 %v3891
    %v3931 = vunpack.c.l.b16 %v3892
    %v3932 = vunpack.c.l.b16 %v3893
    %v3933 = vunpack.c.l.b16 %v3894
    %v3934 = vunpack.c.l.b16 %v3895
    %v3935 = vunpack.c.l.b16 %v3896
    %v3936 = vunpack.c.l.b16 %v3897
    %v3937 = vunpack.c.l.b16 %v3898
    %v3938 = vunpack.c.l.b16 %v3899
    %v3939 = vunpack.c.l.b16 %v3900
    %v3940 = vunpack.c.l.b16 %v3901
    %v3941 = vpack.c.b16 %v3926, %v3925
    %v3942 = vpack.c.b16 %v3928, %v3927
    %v3943 = vpack.c.b16 %v3930, %v3929
    %v3944 = vpack.c.b16 %v3932, %v3931
    %v3945 = vpack.c.b16 %v3934, %v3933
    %v3946 = vpack.c.b16 %v3936, %v3935
    %v3947 = vpack.c.b16 %v3938, %v3937
    %v3948 = vpack.c.b16 %v3940, %v3939
    %3957 = vmatprep.subr.bf16.mxu0 0
    %3958 = vmatpush1.bf16.msra.mxu0 %v3941
    %3959 = vmatprep.subr.bf16.mxu0 0
    %3960 = vmatpush1.bf16.msra.mxu0 %v3942
    %3961 = vmatprep.subr.bf16.mxu0 0
    %3962 = vmatpush1.bf16.msra.mxu0 %v3943
    %3963 = vmatprep.subr.bf16.mxu0 0
    %3964 = vmatpush1.bf16.msra.mxu0 %v3944
    %3965 = vmatprep.subr.bf16.mxu0 0
    %3966 = vmatpush1.bf16.msra.mxu0 %v3945
    %3967 = vmatprep.subr.bf16.mxu0 0
    %3968 = vmatpush1.bf16.msra.mxu0 %v3946
    %3969 = vmatprep.subr.bf16.mxu0 0
    %3970 = vmatpush1.bf16.msra.mxu0 %v3947
    %3971 = vmatprep.subr.bf16.mxu0 0
    %3972 = vmatpush1.bf16.msra.mxu0 %v3948
    %3973 = vmatprep.subr.bf16.mxu0 0
    %3974 = vmatpush1.bf16.msra.mxu0 0
    %3975 = vmatprep.subr.bf16.mxu0 0
    %3976 = vmatpush1.bf16.msra.mxu0 0
    %3977 = vmatprep.subr.bf16.mxu0 0
    %3978 = vmatpush1.bf16.msra.mxu0 0
    %3979 = vmatprep.subr.bf16.mxu0 0
    %3980 = vmatpush1.bf16.msra.mxu0 0
    %3981 = vmatprep.subr.bf16.mxu0 0
    %3982 = vmatpush1.bf16.msra.mxu0 0
    %3983 = vmatprep.subr.bf16.mxu0 0
    %3984 = vmatpush1.bf16.msra.mxu0 0
    %3985 = vmatprep.subr.bf16.mxu0 0
    %3986 = vmatpush1.bf16.msra.mxu0 0
    %3987 = vmatprep.subr.bf16.mxu0 0
    %3988 = vmatpush1.bf16.msra.mxu0 0
    %3989 = vmatprep.mubr.bf16.mxu0 0
    %3990 = vmatmul.mubr.bf16.gmra.mrb[0].mxu0 %v3878
    %v3991 = vpop.f32.mrb[0].mxu0
    %v3992 = vadd.f32 %v3907, %v3991
    %v3993 = vpop.f32.mrb[0].mxu0
    %v3994 = vpop.f32.mrb[0].mxu0
    %v3995 = vadd.f32 %v3907, %v3994
    %v3996 = vpop.f32.mrb[0].mxu0
    %3997 = vmatprep.mubr.bf16.mxu0 0
    %3998 = vmatmul.mubr.bf16.gmra.mrb[0].mxu0 %v3879
    %v3999 = vpop.f32.mrb[0].mxu0
    %v4000 = vadd.f32 %v3907, %v3999
    %v4001 = vpop.f32.mrb[0].mxu0
    %v4002 = vpop.f32.mrb[0].mxu0
    %v4003 = vadd.f32 %v3907, %v4002
    %v4004 = vpop.f32.mrb[0].mxu0
    %4005 = vmatprep.mubr.bf16.mxu0 0
    %4006 = vmatmul.mubr.bf16.gmra.mrb[0].mxu0 %v3880
    %v4007 = vpop.f32.mrb[0].mxu0
    %v4008 = vadd.f32 %v3907, %v4007
    %v4009 = vpop.f32.mrb[0].mxu0
    %v4010 = vpop.f32.mrb[0].mxu0
    %v4011 = vadd.f32 %v3907, %v4010
    %v4012 = vpop.f32.mrb[0].mxu0
    %4013 = vmatprep.mubr.bf16.mxu0 0
    %4014 = vmatmul.mubr.bf16.gmra.mrb[0].mxu0 %v3881
    %v4015 = vpop.f32.mrb[0].mxu0
    %v4016 = vadd.f32 %v3907, %v4015
    %v4017 = vpop.f32.mrb[0].mxu0
    %v4018 = vpop.f32.mrb[0].mxu0
    %v4019 = vadd.f32 %v3907, %v4018
    %v4020 = vpop.f32.mrb[0].mxu0
    %4021 = vmatprep.mubr.bf16.mxu0 0
    %4022 = vmatmul.mubr.bf16.gmra.mrb[0].mxu0 %v3882
    %v4023 = vpop.f32.mrb[0].mxu0
    %v4024 = vadd.f32 %v3907, %v4023
    %v4025 = vpop.f32.mrb[0].mxu0
    %v4026 = vpop.f32.mrb[0].mxu0
    %v4027 = vadd.f32 %v3907, %v4026
    %v4028 = vpop.f32.mrb[0].mxu0
    %4029 = vmatprep.mubr.bf16.mxu0 0
    %4030 = vmatmul.mubr.bf16.gmra.mrb[0].mxu0 %v3883
    %v4031 = vpop.f32.mrb[0].mxu0
    %v4032 = vadd.f32 %v3907, %v4031
    %v4033 = vpop.f32.mrb[0].mxu0
    %v4034 = vpop.f32.mrb[0].mxu0
    %v4035 = vadd.f32 %v3907, %v4034
    %v4036 = vpop.f32.mrb[0].mxu0
    %4037 = vmatprep.mubr.bf16.mxu0 0
    %4038 = vmatmul.mubr.bf16.gmra.mrb[0].mxu0 %v3884
    %v4039 = vpop.f32.mrb[0].mxu0
    %v4040 = vadd.f32 %v3907, %v4039
    %v4041 = vpop.f32.mrb[0].mxu0
    %v4042 = vpop.f32.mrb[0].mxu0
    %v4043 = vadd.f32 %v3907, %v4042
    %v4044 = vpop.f32.mrb[0].mxu0
    %4045 = vmatprep.mubr.bf16.mxu0 0
    %4046 = vmatmul.mubr.bf16.gmra.mrb[0].mxu0 %v3885
    %v4047 = vpop.f32.mrb[0].mxu0
    %v4048 = vadd.f32 %v3907, %v4047
    %v4049 = vpop.f32.mrb[0].mxu0
    %v4050 = vpop.f32.mrb[0].mxu0
    %v4051 = vadd.f32 %v3907, %v4050
    %v4052 = vpop.f32.mrb[0].mxu0
    %4053 = vdwg.mxu0
    %4054 = vst [vmem:[#allocation15] sm:$0xff] %v3992
    %4055 = vst [vmem:[#allocation15 + $0x8] sm:$0xff] %v3995
    %4056 = vst [vmem:[#allocation15 + $0x10] sm:$0xff] %v4000
    %4057 = vst [vmem:[#allocation15 + $0x18] sm:$0xff] %v4003
    %4058 = vst [vmem:[#allocation15 + $0x20] sm:$0xff] %v4008
    %4059 = vst [vmem:[#allocation15 + $0x28] sm:$0xff] %v4011
    %4060 = vst [vmem:[#allocation15 + $0x30] sm:$0xff] %v4016
    %4061 = vst [vmem:[#allocation15 + $0x38] sm:$0xff] %v4019
    %4062 = vst [vmem:[#allocation15 + $0x40] sm:$0xff] %v4024
    %4063 = vst [vmem:[#allocation15 + $0x48] sm:$0xff] %v4027
    %4064 = vst [vmem:[#allocation15 + $0x50] sm:$0xff] %v4032
    %4065 = vst [vmem:[#allocation15 + $0x58] sm:$0xff] %v4035
    %4066 = vst [vmem:[#allocation15 + $0x60] sm:$0xff] %v4040
    %4067 = vst [vmem:[#allocation15 + $0x68] sm:$0xff] %v4043
    %4068 = vst [vmem:[#allocation15 + $0x70] sm:$0xff] %v4048
    %4069 = vst [vmem:[#allocation15 + $0x78] sm:$0xff] %v4051
    // Predicated region
    $region62: #{tpu_custom_call.1} parent=1 // pred_check
      _
    $region63: #{tpu_custom_call.1} parent=1 // pred_check_branch
      %4071 = sbr.rel (0) target = $region65
    $region64: #{tpu_custom_call.1} parent=1 // pred_region
      %s4073 = ssub.s32 2048, 2048
      %4074 = vsyncadd [#allocation6], %s4073
      %s4075 = sshll.u32 [#allocation15], 4
      %s4076 = int_to_ptr.vmem [resolvable:$true] %s4075
      %4081 = dma.vmem_to_hbm [thread:$0]  %s4076, 2048, %s8, [#allocation6], 128, 128, 8
    $region65: #{tpu_custom_call.1} parent=1 // pred_fallthru
      _
    // Predicated region
    $region66: #{tpu_custom_call.1} parent=1 // pred_check
      _
    $region67: #{tpu_custom_call.1} parent=1 // pred_check_branch
      %4083 = sbr.rel (0) target = $region69
    $region68: #{tpu_custom_call.1} parent=1 // pred_region
      %s4085 = ssub.s32 512, 512
      %4086 = vsyncadd [#allocation17], %s4085
      %s4087 = sshll.u32 [#allocation16], 4
      %s4088 = int_to_ptr.vmem [resolvable:$true] %s4087
      %4093 = dma.vmem_to_hbm [thread:$0]  %s4088, 512, %s9, [#allocation17], 128, 128, 8
    $region69: #{tpu_custom_call.1} parent=1 // pred_fallthru
      _
    // Predicated region
    $region70: #{tpu_custom_call.1} parent=1 // pred_check
      _
    $region71: #{tpu_custom_call.1} parent=1 // pred_check_branch
      %4095 = sbr.rel (0) target = $region73
    $region72: #{tpu_custom_call.1} parent=1 // pred_region
      %s4097 = ssub.s32 512, 512
      %4098 = vsyncadd [#allocation17], %s4097
      %s4099 = sshll.u32 [#allocation18], 4
      %s4100 = int_to_ptr.vmem [resolvable:$true] %s4099
      %4105 = dma.vmem_to_hbm [thread:$0]  %s4100, 512, %s10, [#allocation17], 128, 128, 8
    $region73: #{tpu_custom_call.1} parent=1 // pred_fallthru
      _
    // Predicated region
    $region74: #{tpu_custom_call.1} parent=1 // pred_check
      _
    $region75: #{tpu_custom_call.1} parent=1 // pred_check_branch
      %4107 = sbr.rel (0) target = $region77
    $region76: #{tpu_custom_call.1} parent=1 // pred_region
      %4108 = dma.done [#allocation6], 2048
    $region77: #{tpu_custom_call.1} parent=1 // pred_fallthru
      _
    // Predicated region
    $region78: #{tpu_custom_call.1} parent=1 // pred_check
      _
    $region79: #{tpu_custom_call.1} parent=1 // pred_check_branch
      %4110 = sbr.rel (0) target = $region81
    $region80: #{tpu_custom_call.1} parent=1 // pred_region
      %4111 = dma.done [#allocation17], 512
    $region81: #{tpu_custom_call.1} parent=1 // pred_fallthru
      _
    // Predicated region
    $region82: #{tpu_custom_call.1} parent=1 // pred_check
      _
    $region83: #{tpu_custom_call.1} parent=1 // pred_check_branch
      %4113 = sbr.rel (0) target = $region85
    $region84: #{tpu_custom_call.1} parent=1 // pred_region
      %4114 = dma.done [#allocation17], 512
    $region85: #{tpu_custom_call.1} parent=1 // pred_fallthru
      _
    %4115 = vsyncpa [#allocation5], 1
    %4116 = vsyncpa [#allocation8], 1
    %4117 = vsyncpa [#allocation11], 1
    %4118 = vsyncpa [#allocation14], 1
    %4119 = vsyncpa [#allocation6], 1
    %4120 = vsyncpa [#allocation17], 1

</llo_original>
